<compile_context>
chip_gen: v5e
topology: v5e:2x2
jax: 0.10.0
libtpu: 0.0.40
codegen_flags: <defaults>
</compile_context>

<pallas_src>
import functools

import jax
import jax.numpy as jnp
from jax.experimental import pallas as pl
from jax.experimental.pallas import tpu as pltpu

EPS = 1e-5                          # BatchNorm2d default eps
LANE = 128                          # TPU lane width
K_ALIGN = 128                       # contraction-dim alignment (use 256 on v7x: 2x256^2 MXU)
TM_MAX = 256                        # rows per conv tile; raise to 512-1024 for big batches
VMEM_LIMIT_BYTES = 48 * 1024 * 1024 # explicit scoped-VMEM limit (fits v7x 64 MiB physical)

# name, cin, cout, kernel, stride, pad  (PyTorch layer order)
LAYERS = (
    ("c1",  3,   64,  3, 1, 1),
    ("c2",  64,  128, 3, 2, 2),
    ("r1a", 128, 32,  1, 1, 0),
    ("r1b", 32,  32,  3, 1, 1),
    ("r1c", 32,  128, 1, 1, 0),
    ("c3",  128, 256, 3, 1, 1),
    ("r2a", 256, 64,  1, 1, 0),
    ("r2b", 64,  64,  3, 1, 1),
    ("r2c", 64,  256, 1, 1, 0),
    ("c4",  256, 128, 3, 1, 0),
)
_GEOM = {name: (k, s, p) for name, _, _, k, s, p in LAYERS}


def _round_up(v, m):
    return ((v + m - 1) // m) * m


# ----------------------------- Pallas kernels -----------------------------

def conv_stats_kernel(p_ref, w_ref, y_ref, s_ref):
    # Pass 1: bf16 im2col matmul (MXU, f32 accumulate) + accumulate per-channel
    # sum / sum-of-squares into a grid-resident (2, Cout) stats block.
    @pl.when(pl.program_id(0) == 0)
    def _():
        s_ref[...] = jnp.zeros_like(s_ref)

    y = jnp.dot(p_ref[...], w_ref[...], preferred_element_type=jnp.float32)
    y_ref[...] = y
    s_ref[0:1, :] = s_ref[0:1, :] + jnp.sum(y, axis=0, keepdims=True)
    s_ref[1:2, :] = s_ref[1:2, :] + jnp.sum(y * y, axis=0, keepdims=True)


def _bn_relu(y, s_ref, gb_ref, inv_m):
    mean = s_ref[0:1, :] * inv_m
    var = s_ref[1:2, :] * inv_m - mean * mean        # biased batch variance
    scale = gb_ref[0:1, :] * jax.lax.rsqrt(var + EPS)
    shift = gb_ref[1:2, :] - mean * scale
    return jnp.maximum(y * scale + shift, 0.0)


def bn_relu_kernel(y_ref, s_ref, gb_ref, o_ref, *, inv_m):
    # Pass 2: BatchNorm (training-mode batch stats) + ReLU, bf16 store.
    o_ref[...] = _bn_relu(y_ref[...], s_ref, gb_ref, inv_m).astype(o_ref.dtype)


def bn_relu_res_kernel(y_ref, s_ref, gb_ref, r_ref, o_ref, *, inv_m):
    # Pass 2 with the ResidualBlock add fused in (x + ConvBlock(...)).
    act = _bn_relu(y_ref[...], s_ref, gb_ref, inv_m)
    o_ref[...] = (r_ref[...].astype(jnp.float32) + act).astype(o_ref.dtype)


def maxpool2_kernel(x_ref, o_ref):
    # MaxPool2d(2): single read of (N*OH, 2, OW, 2, C); max over the 2x2 window dims.
    x = x_ref[...]
    m = jnp.maximum(x[:, 0], x[:, 1])                # window rows (leading dim)
    o_ref[...] = jnp.max(m, axis=2, keepdims=True)   # window cols (sublane dim)


def head_kernel(x_ref, w_ref, o_ref):
    # Fused AdaptiveMaxPool2d((1,1)) + Flatten + Linear(bias=False).
    m = jnp.max(x_ref[...], axis=1)                  # global spatial max -> (N, C)
    o_ref[...] = jnp.dot(m, w_ref[...], preferred_element_type=jnp.float32)


# ----------------------------- wrappers -----------------------------------

def _im2col(x, kh, kw, stride, pad):
    # TODO(synk): extract patches in-kernel (shifted VMEM windows / manual DMA) to avoid
    # materializing the expanded im2col slab in HBM for large batches.
    N, H, W, C = x.shape
    if kh == 1 and kw == 1 and pad == 0 and stride == 1:
        return x.reshape(N * H * W, C), H, W
    xp = jnp.pad(x, ((0, 0), (pad, pad), (pad, pad), (0, 0)))
    OH = (H + 2 * pad - kh) // stride + 1
    OW = (W + 2 * pad - kw) // stride + 1
    cols = [xp[:, i:i + stride * OH:stride, j:j + stride * OW:stride, :]
            for i in range(kh) for j in range(kw)]
    p = jnp.stack(cols, axis=3)                      # (N, OH, OW, kh*kw, C)
    return p.reshape(N * OH * OW, kh * kw * C), OH, OW


def conv_block(x, w2, gb, k, stride, pad, residual=None):
    """ConvBlock = Conv2d(bias=False)+BN(train)+ReLU (+residual). x: (N,H,W,CinP) bf16."""
    N = x.shape[0]
    kp, coutp = w2.shape
    patches, OH, OW = _im2col(x, k, k, stride, pad)            # (M, k*k*CinP) bf16
    M = N * OH * OW
    k0 = patches.shape[1]
    if k0 != kp:                                               # zero K-pad (no-op for dot)
        patches = jnp.pad(patches, ((0, 0), (0, kp - k0)))
    tm = min(TM_MAX, _round_up(M, 8))
    mp = _round_up(M, tm)
    if mp != M:                                                # zero row-pad (no-op for stats)
        patches = jnp.pad(patches, ((0, mp - M), (0, 0)))
    grid_m = mp // tm

    # Pass 1: matmul + stats accumulation (stats block revisited -> "arbitrary").
    y, stats = pl.pallas_call(
        conv_stats_kernel,
        grid=(grid_m,),
        in_specs=[
            pl.BlockSpec((tm, kp), lambda i: (i, 0)),
            pl.BlockSpec((kp, coutp), lambda i: (0, 0)),
        ],
        out_specs=(
            pl.BlockSpec((tm, coutp), lambda i: (i, 0)),
            pl.BlockSpec((2, coutp), lambda i: (0, 0)),
        ),
        out_shape=(
            jax.ShapeDtypeStruct((mp, coutp), jnp.float32),
            jax.ShapeDtypeStruct((2, coutp), jnp.float32),
        ),
        compiler_params=pltpu.CompilerParams(
            dimension_semantics=("arbitrary",),
            vmem_limit_bytes=VMEM_LIMIT_BYTES),
    )(patches, w2)

    inv_m = 1.0 / float(M)        # true row count (zero pad rows do not affect the sums)
    if residual is None:
        kernel = functools.partial(bn_relu_kernel, inv_m=inv_m)
        operands = (y, stats, gb)
        in_specs = [
            pl.BlockSpec((tm, coutp), lambda i: (i, 0)),
            pl.BlockSpec((2, coutp), lambda i: (0, 0)),
            pl.BlockSpec((2, coutp), lambda i: (0, 0)),
        ]
    else:
        r = residual.reshape(M, coutp)
        if mp != M:
            r = jnp.pad(r, ((0, mp - M), (0, 0)))
        kernel = functools.partial(bn_relu_res_kernel, inv_m=inv_m)
        operands = (y, stats, gb, r)
        in_specs = [
            pl.BlockSpec((tm, coutp), lambda i: (i, 0)),
            pl.BlockSpec((2, coutp), lambda i: (0, 0)),
            pl.BlockSpec((2, coutp), lambda i: (0, 0)),
            pl.BlockSpec((tm, coutp), lambda i: (i, 0)),
        ]

    # Pass 2: normalize + ReLU (+residual); rows are independent -> parallel (megacore).
    out = pl.pallas_call(
        kernel,
        grid=(grid_m,),
        in_specs=in_specs,
        out_specs=pl.BlockSpec((tm, coutp), lambda i: (i, 0)),
        out_shape=jax.ShapeDtypeStruct((mp, coutp), jnp.bfloat16),
        compiler_params=pltpu.CompilerParams(
            dimension_semantics=("parallel",),
            vmem_limit_bytes=VMEM_LIMIT_BYTES),
    )(*operands)

    return out[:M].reshape(N, OH, OW, coutp)


def max_pool_2(x):
    N, H, W, C = x.shape
    OH, OW = H // 2, W // 2
    xs = x[:, :2 * OH, :2 * OW, :].reshape(N * OH, 2, OW, 2, C)
    y = pl.pallas_call(
        maxpool2_kernel,
        out_shape=jax.ShapeDtypeStruct((N * OH, OW, 1, C), x.dtype),
        in_specs=[pl.BlockSpec(memory_space=pltpu.MemorySpace.VMEM)],
        out_specs=pl.BlockSpec(memory_space=pltpu.MemorySpace.VMEM),
        compiler_params=pltpu.CompilerParams(vmem_limit_bytes=VMEM_LIMIT_BYTES),
    )(xs)
    return y.reshape(N, OH, OW, C)


def head(x, fc_w):
    N, H, W, C = x.shape
    xs = x.reshape(N, H * W, C)
    return pl.pallas_call(
        head_kernel,
        out_shape=jax.ShapeDtypeStruct((N, fc_w.shape[1]), jnp.float32),
        in_specs=[pl.BlockSpec(memory_space=pltpu.MemorySpace.VMEM),
                  pl.BlockSpec(memory_space=pltpu.MemorySpace.VMEM)],
        out_specs=pl.BlockSpec(memory_space=pltpu.MemorySpace.VMEM),
        compiler_params=pltpu.CompilerParams(vmem_limit_bytes=VMEM_LIMIT_BYTES),
    )(xs, fc_w)


# ----------------------------- parameters ---------------------------------

def init_params(key, num_classes=10):
    """Random parameters in PyTorch layout: conv w (Cout,Cin,KH,KW); BN gamma/beta; fc (out,in)."""
    params = {}
    for name, cin, cout, k, _, _ in LAYERS:
        key, kw_, kg, kb = jax.random.split(key, 4)
        params[name] = {
            "w": 0.05 * jax.random.normal(kw_, (cout, cin, k, k), jnp.float32),
            "gamma": 1.0 + 0.1 * jax.random.normal(kg, (cout,), jnp.float32),
            "beta": 0.1 * jax.random.normal(kb, (cout,), jnp.float32),
        }
    key, kfc = jax.random.split(key)
    params["fc"] = 0.05 * jax.random.normal(kfc, (num_classes, 128), jnp.float32)
    return params


def prepare_params(params, num_classes=10):
    """One-time relayout (outside jit): weights -> (k*k*CinP, CoutP) bf16 with K padded
    to K_ALIGN, gamma/beta packed as (2, CoutP) f32, fc -> (128, CLSP) bf16.
    Channel dims are zero-padded to multiples of 128 for lane-dense kernel I/O."""
    prep = {}
    cur_cp = 3                                   # channel count of the incoming activation
    for name, cin, cout, k, _, _ in LAYERS:
        w = params[name]["w"]
        coutp = _round_up(cout, LANE)
        wp = jnp.zeros((coutp, cur_cp, k, k), jnp.float32).at[:cout, :cin].set(w)
        w2 = jnp.transpose(wp, (2, 3, 1, 0)).reshape(k * k * cur_cp, coutp)
        k0 = k * k * cur_cp
        kp = max(_round_up(k0, K_ALIGN), LANE)
        w2 = jnp.pad(w2, ((0, kp - k0), (0, 0))).astype(jnp.bfloat16)
        gb = jnp.zeros((2, coutp), jnp.float32)
        gb = gb.at[0, :cout].set(params[name]["gamma"]).at[1, :cout].set(params[name]["beta"])
        prep[name] = {"w": w2, "gb": gb}
        cur_cp = coutp
    clsp = _round_up(num_classes, LANE)
    fc = jnp.zeros((128, clsp), jnp.float32).at[:, :num_classes].set(params["fc"].T)
    prep["fc"] = fc.astype(jnp.bfloat16)
    return prep


# ----------------------------- model --------------------------------------

def simp_resnet9_k33(x_nchw, prep, num_classes=10):
    def block(x, name, residual=None):
        k, s, p = _GEOM[name]
        return conv_block(x, prep[name]["w"], prep[name]["gb"], k, s, p, residual)

    x = jnp.transpose(x_nchw, (0, 2, 3, 1)).astype(jnp.bfloat16)   # NCHW -> NHWC, bf16
    x = block(x, "c1")
    x = block(x, "c2")
    h = block(x, "r1a"); h = block(h, "r1b"); x = block(h, "r1c", residual=x)  # Residual 1
    x = block(x, "c3")
    x = max_pool_2(x)
    h = block(x, "r2a"); h = block(h, "r2b"); x = block(h, "r2c", residual=x)  # Residual 2
    x = block(x, "c4")
    logits = head(x, prep["fc"])                 # fused global max pool + Linear
    return logits[:, :num_classes]


if __name__ == "__main__":
    key = jax.random.PRNGKey(0)
    kx, kp = jax.random.split(key)
    # Small shape-consistent input: 16x16 RGB (16 -> 9 -> 9 -> 4 -> 2 -> 1 spatially).
    x = jax.random.normal(kx, (2, 3, 16, 16), jnp.float32)
    params = init_params(kp, num_classes=10)
    prep = prepare_params(params, num_classes=10)        # one-time weight relayout
    fwd = jax.jit(simp_resnet9_k33)
    out = fwd(x, prep)
    jax.block_until_ready(out)
    assert out.shape == (2, 10) and out.dtype == jnp.float32
    assert bool(jnp.all(jnp.isfinite(out)))
    print("KERNEL_OK")
</pallas_src>

<mosaic_0001>
module attributes {stable_mosaic.version = 11 : i64} {
  func.func @conv_stats_kernel(%arg0: i32, %arg1: memref<256x128xbf16, #tpu.memory_space<vmem>>, %arg2: memref<128x128xbf16, #tpu.memory_space<vmem>>, %arg3: memref<256x128xf32, #tpu.memory_space<vmem>>, %arg4: memref<2x128xf32, #tpu.memory_space<vmem>>) attributes {dimension_semantics = [#tpu.dimension_semantics<arbitrary>], iteration_bounds = array<i64: 2>, scalar_prefetch = 0 : i64, scratch_operands = 0 : i64, tpu.core_type = #tpu.core_type<tc>, window_params = [{transform_indices = @transform_0, window_bounds = array<i64: 256, 128>}, {pipeline_mode = #tpu.pipeline_mode<synchronous>, transform_indices = @transform_1, window_bounds = array<i64: 128, 128>}, {transform_indices = @transform_2, window_bounds = array<i64: 256, 128>}, {pipeline_mode = #tpu.pipeline_mode<synchronous>, transform_indices = @transform_3, window_bounds = array<i64: 2, 128>}]} {
    %c0_i32 = arith.constant 0 : i32
    %0 = arith.cmpi eq, %arg0, %c0_i32 : i32
    %1 = arith.extui %0 : i1 to i32
    %c0_i32_0 = arith.constant 0 : i32
    %2 = arith.cmpi ne, %1, %c0_i32_0 : i32
    scf.if %2 {
      %cst_15 = arith.constant 0.000000e+00 : f32
      %18 = vector.broadcast %cst_15 : f32 to vector<2x128xf32>
      %c0_16 = arith.constant 0 : index
      %c0_17 = arith.constant 0 : index
      %19 = vector.load %arg4[%c0_16, %c0_17] : memref<2x128xf32, #tpu.memory_space<vmem>>, vector<2x128xf32>
      tpu.vector_store %arg4[%c0_16, %c0_17], %18 {strides = array<i32>} : memref<2x128xf32, #tpu.memory_space<vmem>>, vector<2x128xf32>,
    } else {
    }
    %c0 = arith.constant 0 : index
    %c0_1 = arith.constant 0 : index
    %3 = vector.load %arg1[%c0, %c0_1] : memref<256x128xbf16, #tpu.memory_space<vmem>>, vector<256x128xbf16>
    %c0_2 = arith.constant 0 : index
    %c0_3 = arith.constant 0 : index
    %4 = vector.load %arg2[%c0_2, %c0_3] : memref<128x128xbf16, #tpu.memory_space<vmem>>, vector<128x128xbf16>
    %cst = arith.constant dense<0.000000e+00> : vector<256x128xf32>
    %5 = tpu.matmul %3, %4, %cst {dimension_numbers = #tpu.dot_dimension_numbers<[1], [0], [0], [1], [0, 0, 1, 1], [], []>} : vector<256x128xbf16>, vector<128x128xbf16>, vector<256x128xf32> -> vector<256x128xf32>
    %c0_4 = arith.constant 0 : index
    %c0_5 = arith.constant 0 : index
    %6 = vector.load %arg3[%c0_4, %c0_5] : memref<256x128xf32, #tpu.memory_space<vmem>>, vector<256x128xf32>
    tpu.vector_store %arg3[%c0_4, %c0_5], %5 {strides = array<i32>} : memref<256x128xf32, #tpu.memory_space<vmem>>, vector<256x128xf32>,
    %c0_6 = arith.constant 0 : index
    %c0_7 = arith.constant 0 : index
    %7 = vector.load %arg4[%c0_6, %c0_7] : memref<2x128xf32, #tpu.memory_space<vmem>>, vector<1x128xf32>
    %cst_8 = arith.constant dense<0.000000e+00> : vector<128xf32>
    %8 = vector.multi_reduction <add>, %5, %cst_8 [0] : vector<256x128xf32> to vector<128xf32>
    %9 = vector.shape_cast %8 : vector<128xf32> to vector<1x128xf32>
    %10 = arith.addf %7, %9 : vector<1x128xf32>
    %c0_9 = arith.constant 0 : index
    %c0_10 = arith.constant 0 : index
    %11 = vector.load %arg4[%c0_9, %c0_10] : memref<2x128xf32, #tpu.memory_space<vmem>>, vector<1x128xf32>
    tpu.vector_store %arg4[%c0_9, %c0_10], %10 {strides = array<i32>} : memref<2x128xf32, #tpu.memory_space<vmem>>, vector<1x128xf32>,
    %c1 = arith.constant 1 : index
    %c0_11 = arith.constant 0 : index
    %12 = vector.load %arg4[%c1, %c0_11] : memref<2x128xf32, #tpu.memory_space<vmem>>, vector<1x128xf32>
    %13 = arith.mulf %5, %5 : vector<256x128xf32>
    %cst_12 = arith.constant dense<0.000000e+00> : vector<128xf32>
    %14 = vector.multi_reduction <add>, %13, %cst_12 [0] : vector<256x128xf32> to vector<128xf32>
    %15 = vector.shape_cast %14 : vector<128xf32> to vector<1x128xf32>
    %16 = arith.addf %12, %15 : vector<1x128xf32>
    %c1_13 = arith.constant 1 : index
    %c0_14 = arith.constant 0 : index
    %17 = vector.load %arg4[%c1_13, %c0_14] : memref<2x128xf32, #tpu.memory_space<vmem>>, vector<1x128xf32>
    tpu.vector_store %arg4[%c1_13, %c0_14], %16 {strides = array<i32>} : memref<2x128xf32, #tpu.memory_space<vmem>>, vector<1x128xf32>,
    return
  }
  func.func @transform_0(%arg0: i32) -> (i32, i32) {
    %c0_i32 = arith.constant 0 : i32
    %c0_i32_0 = arith.constant 0 : i32
    return %arg0, %c0_i32 : i32, i32
  }
  func.func @transform_1(%arg0: i32) -> (i32, i32) {
    %c0_i32 = arith.constant 0 : i32
    %c0_i32_0 = arith.constant 0 : i32
    %c0_i32_1 = arith.constant 0 : i32
    return %c0_i32, %c0_i32_0 : i32, i32
  }
  func.func @transform_2(%arg0: i32) -> (i32, i32) {
    %c0_i32 = arith.constant 0 : i32
    %c0_i32_0 = arith.constant 0 : i32
    return %arg0, %c0_i32 : i32, i32
  }
  func.func @transform_3(%arg0: i32) -> (i32, i32) {
    %c0_i32 = arith.constant 0 : i32
    %c0_i32_0 = arith.constant 0 : i32
    %c0_i32_1 = arith.constant 0 : i32
    return %c0_i32, %c0_i32_0 : i32, i32
  }
}

module attributes {stable_mosaic.version = 11 : i64} {
  func.func @bn_relu_kernel(%arg0: i32, %arg1: memref<256x128xf32, #tpu.memory_space<vmem>>, %arg2: memref<2x128xf32, #tpu.memory_space<vmem>>, %arg3: memref<2x128xf32, #tpu.memory_space<vmem>>, %arg4: memref<256x128xbf16, #tpu.memory_space<vmem>>) attributes {dimension_semantics = [#tpu.dimension_semantics<parallel>], iteration_bounds = array<i64: 2>, scalar_prefetch = 0 : i64, scratch_operands = 0 : i64, tpu.core_type = #tpu.core_type<tc>, window_params = [{transform_indices = @transform_0, window_bounds = array<i64: 256, 128>}, {pipeline_mode = #tpu.pipeline_mode<synchronous>, transform_indices = @transform_1, window_bounds = array<i64: 2, 128>}, {pipeline_mode = #tpu.pipeline_mode<synchronous>, transform_indices = @transform_2, window_bounds = array<i64: 2, 128>}, {transform_indices = @transform_3, window_bounds = array<i64: 256, 128>}]} {
    %c0 = arith.constant 0 : index
    %c0_0 = arith.constant 0 : index
    %0 = vector.load %arg1[%c0, %c0_0] : memref<256x128xf32, #tpu.memory_space<vmem>>, vector<256x128xf32>
    %c0_1 = arith.constant 0 : index
    %c0_2 = arith.constant 0 : index
    %1 = vector.load %arg2[%c0_1, %c0_2] : memref<2x128xf32, #tpu.memory_space<vmem>>, vector<1x128xf32>
    %cst = arith.constant 0.001953125 : f32
    %2 = vector.broadcast %cst : f32 to vector<1x128xf32>
    %3 = arith.mulf %1, %2 : vector<1x128xf32>
    %c1 = arith.constant 1 : index
    %c0_3 = arith.constant 0 : index
    %4 = vector.load %arg2[%c1, %c0_3] : memref<2x128xf32, #tpu.memory_space<vmem>>, vector<1x128xf32>
    %cst_4 = arith.constant 0.001953125 : f32
    %5 = vector.broadcast %cst_4 : f32 to vector<1x128xf32>
    %6 = arith.mulf %4, %5 : vector<1x128xf32>
    %7 = arith.mulf %3, %3 : vector<1x128xf32>
    %8 = arith.subf %6, %7 : vector<1x128xf32>
    %c0_5 = arith.constant 0 : index
    %c0_6 = arith.constant 0 : index
    %9 = vector.load %arg3[%c0_5, %c0_6] : memref<2x128xf32, #tpu.memory_space<vmem>>, vector<1x128xf32>
    %cst_7 = arith.constant 9.99999974E-6 : f32
    %10 = vector.broadcast %cst_7 : f32 to vector<1x128xf32>
    %11 = arith.addf %8, %10 : vector<1x128xf32>
    %12 = math.rsqrt %11 : vector<1x128xf32>
    %13 = arith.mulf %9, %12 : vector<1x128xf32>
    %c1_8 = arith.constant 1 : index
    %c0_9 = arith.constant 0 : index
    %14 = vector.load %arg3[%c1_8, %c0_9] : memref<2x128xf32, #tpu.memory_space<vmem>>, vector<1x128xf32>
    %15 = arith.mulf %3, %13 : vector<1x128xf32>
    %16 = arith.subf %14, %15 : vector<1x128xf32>
    %17 = vector.broadcast %13 : vector<1x128xf32> to vector<256x128xf32>
    %18 = arith.mulf %0, %17 : vector<256x128xf32>
    %19 = vector.broadcast %16 : vector<1x128xf32> to vector<256x128xf32>
    %20 = arith.addf %18, %19 : vector<256x128xf32>
    %cst_10 = arith.constant 0.000000e+00 : f32
    %21 = vector.broadcast %cst_10 : f32 to vector<256x128xf32>
    %22 = arith.maximumf %20, %21 : vector<256x128xf32>
    %23 = arith.truncf %22 : vector<256x128xf32> to vector<256x128xbf16>
    %c0_11 = arith.constant 0 : index
    %c0_12 = arith.constant 0 : index
    %24 = vector.load %arg4[%c0_11, %c0_12] : memref<256x128xbf16, #tpu.memory_space<vmem>>, vector<256x128xbf16>
    tpu.vector_store %arg4[%c0_11, %c0_12], %23 {strides = array<i32>} : memref<256x128xbf16, #tpu.memory_space<vmem>>, vector<256x128xbf16>,
    return
  }
  func.func @transform_0(%arg0: i32) -> (i32, i32) {
    %c0_i32 = arith.constant 0 : i32
    %c0_i32_0 = arith.constant 0 : i32
    return %arg0, %c0_i32 : i32, i32
  }
  func.func @transform_1(%arg0: i32) -> (i32, i32) {
    %c0_i32 = arith.constant 0 : i32
    %c0_i32_0 = arith.constant 0 : i32
    %c0_i32_1 = arith.constant 0 : i32
    return %c0_i32, %c0_i32_0 : i32, i32
  }
  func.func @transform_2(%arg0: i32) -> (i32, i32) {
    %c0_i32 = arith.constant 0 : i32
    %c0_i32_0 = arith.constant 0 : i32
    %c0_i32_1 = arith.constant 0 : i32
    return %c0_i32, %c0_i32_0 : i32, i32
  }
  func.func @transform_3(%arg0: i32) -> (i32, i32) {
    %c0_i32 = arith.constant 0 : i32
    %c0_i32_0 = arith.constant 0 : i32
    return %arg0, %c0_i32 : i32, i32
  }
}

module attributes {stable_mosaic.version = 11 : i64} {
  func.func @conv_stats_kernel(%arg0: i32, %arg1: memref<168x1152xbf16, #tpu.memory_space<vmem>>, %arg2: memref<1152x128xbf16, #tpu.memory_space<vmem>>, %arg3: memref<168x128xf32, #tpu.memory_space<vmem>>, %arg4: memref<2x128xf32, #tpu.memory_space<vmem>>) attributes {dimension_semantics = [#tpu.dimension_semantics<arbitrary>], iteration_bounds = array<i64: 1>, scalar_prefetch = 0 : i64, scratch_operands = 0 : i64, tpu.core_type = #tpu.core_type<tc>, window_params = [{transform_indices = @transform_0, window_bounds = array<i64: 168, 1152>}, {pipeline_mode = #tpu.pipeline_mode<synchronous>, transform_indices = @transform_1, window_bounds = array<i64: 1152, 128>}, {transform_indices = @transform_2, window_bounds = array<i64: 168, 128>}, {pipeline_mode = #tpu.pipeline_mode<synchronous>, transform_indices = @transform_3, window_bounds = array<i64: 2, 128>}]} {
    %c0_i32 = arith.constant 0 : i32
    %0 = arith.cmpi eq, %arg0, %c0_i32 : i32
    %1 = arith.extui %0 : i1 to i32
    %c0_i32_0 = arith.constant 0 : i32
    %2 = arith.cmpi ne, %1, %c0_i32_0 : i32
    scf.if %2 {
      %cst_15 = arith.constant 0.000000e+00 : f32
      %18 = vector.broadcast %cst_15 : f32 to vector<2x128xf32>
      %c0_16 = arith.constant 0 : index
      %c0_17 = arith.constant 0 : index
      %19 = vector.load %arg4[%c0_16, %c0_17] : memref<2x128xf32, #tpu.memory_space<vmem>>, vector<2x128xf32>
      tpu.vector_store %arg4[%c0_16, %c0_17], %18 {strides = array<i32>} : memref<2x128xf32, #tpu.memory_space<vmem>>, vector<2x128xf32>,
    } else {
    }
    %c0 = arith.constant 0 : index
    %c0_1 = arith.constant 0 : index
    %3 = vector.load %arg1[%c0, %c0_1] : memref<168x1152xbf16, #tpu.memory_space<vmem>>, vector<168x1152xbf16>
    %c0_2 = arith.constant 0 : index
    %c0_3 = arith.constant 0 : index
    %4 = vector.load %arg2[%c0_2, %c0_3] : memref<1152x128xbf16, #tpu.memory_space<vmem>>, vector<1152x128xbf16>
    %cst = arith.constant dense<0.000000e+00> : vector<168x128xf32>
    %5 = tpu.matmul %3, %4, %cst {dimension_numbers = #tpu.dot_dimension_numbers<[1], [0], [0], [1], [0, 0, 1, 1], [], []>} : vector<168x1152xbf16>, vector<1152x128xbf16>, vector<168x128xf32> -> vector<168x128xf32>
    %c0_4 = arith.constant 0 : index
    %c0_5 = arith.constant 0 : index
    %6 = vector.load %arg3[%c0_4, %c0_5] : memref<168x128xf32, #tpu.memory_space<vmem>>, vector<168x128xf32>
    tpu.vector_store %arg3[%c0_4, %c0_5], %5 {strides = array<i32>} : memref<168x128xf32, #tpu.memory_space<vmem>>, vector<168x128xf32>,
    %c0_6 = arith.constant 0 : index
    %c0_7 = arith.constant 0 : index
    %7 = vector.load %arg4[%c0_6, %c0_7] : memref<2x128xf32, #tpu.memory_space<vmem>>, vector<1x128xf32>
    %cst_8 = arith.constant dense<0.000000e+00> : vector<128xf32>
    %8 = vector.multi_reduction <add>, %5, %cst_8 [0] : vector<168x128xf32> to vector<128xf32>
    %9 = vector.shape_cast %8 : vector<128xf32> to vector<1x128xf32>
    %10 = arith.addf %7, %9 : vector<1x128xf32>
    %c0_9 = arith.constant 0 : index
    %c0_10 = arith.constant 0 : index
    %11 = vector.load %arg4[%c0_9, %c0_10] : memref<2x128xf32, #tpu.memory_space<vmem>>, vector<1x128xf32>
    tpu.vector_store %arg4[%c0_9, %c0_10], %10 {strides = array<i32>} : memref<2x128xf32, #tpu.memory_space<vmem>>, vector<1x128xf32>,
    %c1 = arith.constant 1 : index
    %c0_11 = arith.constant 0 : index
    %12 = vector.load %arg4[%c1, %c0_11] : memref<2x128xf32, #tpu.memory_space<vmem>>, vector<1x128xf32>
    %13 = arith.mulf %5, %5 : vector<168x128xf32>
    %cst_12 = arith.constant dense<0.000000e+00> : vector<128xf32>
    %14 = vector.multi_reduction <add>, %13, %cst_12 [0] : vector<168x128xf32> to vector<128xf32>
    %15 = vector.shape_cast %14 : vector<128xf32> to vector<1x128xf32>
    %16 = arith.addf %12, %15 : vector<1x128xf32>
    %c1_13 = arith.constant 1 : index
    %c0_14 = arith.constant 0 : index
    %17 = vector.load %arg4[%c1_13, %c0_14] : memref<2x128xf32, #tpu.memory_space<vmem>>, vector<1x128xf32>
    tpu.vector_store %arg4[%c1_13, %c0_14], %16 {strides = array<i32>} : memref<2x128xf32, #tpu.memory_space<vmem>>, vector<1x128xf32>,
    return
  }
  func.func @transform_0(%arg0: i32) -> (i32, i32) {
    %c0_i32 = arith.constant 0 : i32
    %c0_i32_0 = arith.constant 0 : i32
    return %arg0, %c0_i32 : i32, i32
  }
  func.func @transform_1(%arg0: i32) -> (i32, i32) {
    %c0_i32 = arith.constant 0 : i32
    %c0_i32_0 = arith.constant 0 : i32
    %c0_i32_1 = arith.constant 0 : i32
    return %c0_i32, %c0_i32_0 : i32, i32
  }
  func.func @transform_2(%arg0: i32) -> (i32, i32) {
    %c0_i32 = arith.constant 0 : i32
    %c0_i32_0 = arith.constant 0 : i32
    return %arg0, %c0_i32 : i32, i32
  }
  func.func @transform_3(%arg0: i32) -> (i32, i32) {
    %c0_i32 = arith.constant 0 : i32
    %c0_i32_0 = arith.constant 0 : i32
    %c0_i32_1 = arith.constant 0 : i32
    return %c0_i32, %c0_i32_0 : i32, i32
  }
}

module attributes {stable_mosaic.version = 11 : i64} {
  func.func @bn_relu_kernel(%arg0: i32, %arg1: memref<168x128xf32, #tpu.memory_space<vmem>>, %arg2: memref<2x128xf32, #tpu.memory_space<vmem>>, %arg3: memref<2x128xf32, #tpu.memory_space<vmem>>, %arg4: memref<168x128xbf16, #tpu.memory_space<vmem>>) attributes {dimension_semantics = [#tpu.dimension_semantics<parallel>], iteration_bounds = array<i64: 1>, scalar_prefetch = 0 : i64, scratch_operands = 0 : i64, tpu.core_type = #tpu.core_type<tc>, window_params = [{transform_indices = @transform_0, window_bounds = array<i64: 168, 128>}, {pipeline_mode = #tpu.pipeline_mode<synchronous>, transform_indices = @transform_1, window_bounds = array<i64: 2, 128>}, {pipeline_mode = #tpu.pipeline_mode<synchronous>, transform_indices = @transform_2, window_bounds = array<i64: 2, 128>}, {transform_indices = @transform_3, window_bounds = array<i64: 168, 128>}]} {
    %c0 = arith.constant 0 : index
    %c0_0 = arith.constant 0 : index
    %0 = vector.load %arg1[%c0, %c0_0] : memref<168x128xf32, #tpu.memory_space<vmem>>, vector<168x128xf32>
    %c0_1 = arith.constant 0 : index
    %c0_2 = arith.constant 0 : index
    %1 = vector.load %arg2[%c0_1, %c0_2] : memref<2x128xf32, #tpu.memory_space<vmem>>, vector<1x128xf32>
    %cst = arith.constant 0.00617283955 : f32
    %2 = vector.broadcast %cst : f32 to vector<1x128xf32>
    %3 = arith.mulf %1, %2 : vector<1x128xf32>
    %c1 = arith.constant 1 : index
    %c0_3 = arith.constant 0 : index
    %4 = vector.load %arg2[%c1, %c0_3] : memref<2x128xf32, #tpu.memory_space<vmem>>, vector<1x128xf32>
    %cst_4 = arith.constant 0.00617283955 : f32
    %5 = vector.broadcast %cst_4 : f32 to vector<1x128xf32>
    %6 = arith.mulf %4, %5 : vector<1x128xf32>
    %7 = arith.mulf %3, %3 : vector<1x128xf32>
    %8 = arith.subf %6, %7 : vector<1x128xf32>
    %c0_5 = arith.constant 0 : index
    %c0_6 = arith.constant 0 : index
    %9 = vector.load %arg3[%c0_5, %c0_6] : memref<2x128xf32, #tpu.memory_space<vmem>>, vector<1x128xf32>
    %cst_7 = arith.constant 9.99999974E-6 : f32
    %10 = vector.broadcast %cst_7 : f32 to vector<1x128xf32>
    %11 = arith.addf %8, %10 : vector<1x128xf32>
    %12 = math.rsqrt %11 : vector<1x128xf32>
    %13 = arith.mulf %9, %12 : vector<1x128xf32>
    %c1_8 = arith.constant 1 : index
    %c0_9 = arith.constant 0 : index
    %14 = vector.load %arg3[%c1_8, %c0_9] : memref<2x128xf32, #tpu.memory_space<vmem>>, vector<1x128xf32>
    %15 = arith.mulf %3, %13 : vector<1x128xf32>
    %16 = arith.subf %14, %15 : vector<1x128xf32>
    %17 = vector.broadcast %13 : vector<1x128xf32> to vector<168x128xf32>
    %18 = arith.mulf %0, %17 : vector<168x128xf32>
    %19 = vector.broadcast %16 : vector<1x128xf32> to vector<168x128xf32>
    %20 = arith.addf %18, %19 : vector<168x128xf32>
    %cst_10 = arith.constant 0.000000e+00 : f32
    %21 = vector.broadcast %cst_10 : f32 to vector<168x128xf32>
    %22 = arith.maximumf %20, %21 : vector<168x128xf32>
    %23 = arith.truncf %22 : vector<168x128xf32> to vector<168x128xbf16>
    %c0_11 = arith.constant 0 : index
    %c0_12 = arith.constant 0 : index
    %24 = vector.load %arg4[%c0_11, %c0_12] : memref<168x128xbf16, #tpu.memory_space<vmem>>, vector<168x128xbf16>
    tpu.vector_store %arg4[%c0_11, %c0_12], %23 {strides = array<i32>} : memref<168x128xbf16, #tpu.memory_space<vmem>>, vector<168x128xbf16>,
    return
  }
  func.func @transform_0(%arg0: i32) -> (i32, i32) {
    %c0_i32 = arith.constant 0 : i32
    %c0_i32_0 = arith.constant 0 : i32
    return %arg0, %c0_i32 : i32, i32
  }
  func.func @transform_1(%arg0: i32) -> (i32, i32) {
    %c0_i32 = arith.constant 0 : i32
    %c0_i32_0 = arith.constant 0 : i32
    %c0_i32_1 = arith.constant 0 : i32
    return %c0_i32, %c0_i32_0 : i32, i32
  }
  func.func @transform_2(%arg0: i32) -> (i32, i32) {
    %c0_i32 = arith.constant 0 : i32
    %c0_i32_0 = arith.constant 0 : i32
    %c0_i32_1 = arith.constant 0 : i32
    return %c0_i32, %c0_i32_0 : i32, i32
  }
  func.func @transform_3(%arg0: i32) -> (i32, i32) {
    %c0_i32 = arith.constant 0 : i32
    %c0_i32_0 = arith.constant 0 : i32
    return %arg0, %c0_i32 : i32, i32
  }
}

module attributes {stable_mosaic.version = 11 : i64} {
  func.func @conv_stats_kernel(%arg0: i32, %arg1: memref<168x128xbf16, #tpu.memory_space<vmem>>, %arg2: memref<128x128xbf16, #tpu.memory_space<vmem>>, %arg3: memref<168x128xf32, #tpu.memory_space<vmem>>, %arg4: memref<2x128xf32, #tpu.memory_space<vmem>>) attributes {dimension_semantics = [#tpu.dimension_semantics<arbitrary>], iteration_bounds = array<i64: 1>, scalar_prefetch = 0 : i64, scratch_operands = 0 : i64, tpu.core_type = #tpu.core_type<tc>, window_params = [{transform_indices = @transform_0, window_bounds = array<i64: 168, 128>}, {pipeline_mode = #tpu.pipeline_mode<synchronous>, transform_indices = @transform_1, window_bounds = array<i64: 128, 128>}, {transform_indices = @transform_2, window_bounds = array<i64: 168, 128>}, {pipeline_mode = #tpu.pipeline_mode<synchronous>, transform_indices = @transform_3, window_bounds = array<i64: 2, 128>}]} {
    %c0_i32 = arith.constant 0 : i32
    %0 = arith.cmpi eq, %arg0, %c0_i32 : i32
    %1 = arith.extui %0 : i1 to i32
    %c0_i32_0 = arith.constant 0 : i32
    %2 = arith.cmpi ne, %1, %c0_i32_0 : i32
    scf.if %2 {
      %cst_15 = arith.constant 0.000000e+00 : f32
      %18 = vector.broadcast %cst_15 : f32 to vector<2x128xf32>
      %c0_16 = arith.constant 0 : index
      %c0_17 = arith.constant 0 : index
      %19 = vector.load %arg4[%c0_16, %c0_17] : memref<2x128xf32, #tpu.memory_space<vmem>>, vector<2x128xf32>
      tpu.vector_store %arg4[%c0_16, %c0_17], %18 {strides = array<i32>} : memref<2x128xf32, #tpu.memory_space<vmem>>, vector<2x128xf32>,
    } else {
    }
    %c0 = arith.constant 0 : index
    %c0_1 = arith.constant 0 : index
    %3 = vector.load %arg1[%c0, %c0_1] : memref<168x128xbf16, #tpu.memory_space<vmem>>, vector<168x128xbf16>
    %c0_2 = arith.constant 0 : index
    %c0_3 = arith.constant 0 : index
    %4 = vector.load %arg2[%c0_2, %c0_3] : memref<128x128xbf16, #tpu.memory_space<vmem>>, vector<128x128xbf16>
    %cst = arith.constant dense<0.000000e+00> : vector<168x128xf32>
    %5 = tpu.matmul %3, %4, %cst {dimension_numbers = #tpu.dot_dimension_numbers<[1], [0], [0], [1], [0, 0, 1, 1], [], []>} : vector<168x128xbf16>, vector<128x128xbf16>, vector<168x128xf32> -> vector<168x128xf32>
    %c0_4 = arith.constant 0 : index
    %c0_5 = arith.constant 0 : index
    %6 = vector.load %arg3[%c0_4, %c0_5] : memref<168x128xf32, #tpu.memory_space<vmem>>, vector<168x128xf32>
    tpu.vector_store %arg3[%c0_4, %c0_5], %5 {strides = array<i32>} : memref<168x128xf32, #tpu.memory_space<vmem>>, vector<168x128xf32>,
    %c0_6 = arith.constant 0 : index
    %c0_7 = arith.constant 0 : index
    %7 = vector.load %arg4[%c0_6, %c0_7] : memref<2x128xf32, #tpu.memory_space<vmem>>, vector<1x128xf32>
    %cst_8 = arith.constant dense<0.000000e+00> : vector<128xf32>
    %8 = vector.multi_reduction <add>, %5, %cst_8 [0] : vector<168x128xf32> to vector<128xf32>
    %9 = vector.shape_cast %8 : vector<128xf32> to vector<1x128xf32>
    %10 = arith.addf %7, %9 : vector<1x128xf32>
    %c0_9 = arith.constant 0 : index
    %c0_10 = arith.constant 0 : index
    %11 = vector.load %arg4[%c0_9, %c0_10] : memref<2x128xf32, #tpu.memory_space<vmem>>, vector<1x128xf32>
    tpu.vector_store %arg4[%c0_9, %c0_10], %10 {strides = array<i32>} : memref<2x128xf32, #tpu.memory_space<vmem>>, vector<1x128xf32>,
    %c1 = arith.constant 1 : index
    %c0_11 = arith.constant 0 : index
    %12 = vector.load %arg4[%c1, %c0_11] : memref<2x128xf32, #tpu.memory_space<vmem>>, vector<1x128xf32>
    %13 = arith.mulf %5, %5 : vector<168x128xf32>
    %cst_12 = arith.constant dense<0.000000e+00> : vector<128xf32>
    %14 = vector.multi_reduction <add>, %13, %cst_12 [0] : vector<168x128xf32> to vector<128xf32>
    %15 = vector.shape_cast %14 : vector<128xf32> to vector<1x128xf32>
    %16 = arith.addf %12, %15 : vector<1x128xf32>
    %c1_13 = arith.constant 1 : index
    %c0_14 = arith.constant 0 : index
    %17 = vector.load %arg4[%c1_13, %c0_14] : memref<2x128xf32, #tpu.memory_space<vmem>>, vector<1x128xf32>
    tpu.vector_store %arg4[%c1_13, %c0_14], %16 {strides = array<i32>} : memref<2x128xf32, #tpu.memory_space<vmem>>, vector<1x128xf32>,
    return
  }
  func.func @transform_0(%arg0: i32) -> (i32, i32) {
    %c0_i32 = arith.constant 0 : i32
    %c0_i32_0 = arith.constant 0 : i32
    return %arg0, %c0_i32 : i32, i32
  }
  func.func @transform_1(%arg0: i32) -> (i32, i32) {
    %c0_i32 = arith.constant 0 : i32
    %c0_i32_0 = arith.constant 0 : i32
    %c0_i32_1 = arith.constant 0 : i32
    return %c0_i32, %c0_i32_0 : i32, i32
  }
  func.func @transform_2(%arg0: i32) -> (i32, i32) {
    %c0_i32 = arith.constant 0 : i32
    %c0_i32_0 = arith.constant 0 : i32
    return %arg0, %c0_i32 : i32, i32
  }
  func.func @transform_3(%arg0: i32) -> (i32, i32) {
    %c0_i32 = arith.constant 0 : i32
    %c0_i32_0 = arith.constant 0 : i32
    %c0_i32_1 = arith.constant 0 : i32
    return %c0_i32, %c0_i32_0 : i32, i32
  }
}

module attributes {stable_mosaic.version = 11 : i64} {
  func.func @bn_relu_res_kernel(%arg0: i32, %arg1: memref<168x128xf32, #tpu.memory_space<vmem>>, %arg2: memref<2x128xf32, #tpu.memory_space<vmem>>, %arg3: memref<2x128xf32, #tpu.memory_space<vmem>>, %arg4: memref<168x128xbf16, #tpu.memory_space<vmem>>, %arg5: memref<168x128xbf16, #tpu.memory_space<vmem>>) attributes {dimension_semantics = [#tpu.dimension_semantics<parallel>], iteration_bounds = array<i64: 1>, scalar_prefetch = 0 : i64, scratch_operands = 0 : i64, tpu.core_type = #tpu.core_type<tc>, window_params = [{transform_indices = @transform_0, window_bounds = array<i64: 168, 128>}, {pipeline_mode = #tpu.pipeline_mode<synchronous>, transform_indices = @transform_1, window_bounds = array<i64: 2, 128>}, {pipeline_mode = #tpu.pipeline_mode<synchronous>, transform_indices = @transform_2, window_bounds = array<i64: 2, 128>}, {transform_indices = @transform_3, window_bounds = array<i64: 168, 128>}, {transform_indices = @transform_4, window_bounds = array<i64: 168, 128>}]} {
    %c0 = arith.constant 0 : index
    %c0_0 = arith.constant 0 : index
    %0 = vector.load %arg1[%c0, %c0_0] : memref<168x128xf32, #tpu.memory_space<vmem>>, vector<168x128xf32>
    %c0_1 = arith.constant 0 : index
    %c0_2 = arith.constant 0 : index
    %1 = vector.load %arg2[%c0_1, %c0_2] : memref<2x128xf32, #tpu.memory_space<vmem>>, vector<1x128xf32>
    %cst = arith.constant 0.00617283955 : f32
    %2 = vector.broadcast %cst : f32 to vector<1x128xf32>
    %3 = arith.mulf %1, %2 : vector<1x128xf32>
    %c1 = arith.constant 1 : index
    %c0_3 = arith.constant 0 : index
    %4 = vector.load %arg2[%c1, %c0_3] : memref<2x128xf32, #tpu.memory_space<vmem>>, vector<1x128xf32>
    %cst_4 = arith.constant 0.00617283955 : f32
    %5 = vector.broadcast %cst_4 : f32 to vector<1x128xf32>
    %6 = arith.mulf %4, %5 : vector<1x128xf32>
    %7 = arith.mulf %3, %3 : vector<1x128xf32>
    %8 = arith.subf %6, %7 : vector<1x128xf32>
    %c0_5 = arith.constant 0 : index
    %c0_6 = arith.constant 0 : index
    %9 = vector.load %arg3[%c0_5, %c0_6] : memref<2x128xf32, #tpu.memory_space<vmem>>, vector<1x128xf32>
    %cst_7 = arith.constant 9.99999974E-6 : f32
    %10 = vector.broadcast %cst_7 : f32 to vector<1x128xf32>
    %11 = arith.addf %8, %10 : vector<1x128xf32>
    %12 = math.rsqrt %11 : vector<1x128xf32>
    %13 = arith.mulf %9, %12 : vector<1x128xf32>
    %c1_8 = arith.constant 1 : index
    %c0_9 = arith.constant 0 : index
    %14 = vector.load %arg3[%c1_8, %c0_9] : memref<2x128xf32, #tpu.memory_space<vmem>>, vector<1x128xf32>
    %15 = arith.mulf %3, %13 : vector<1x128xf32>
    %16 = arith.subf %14, %15 : vector<1x128xf32>
    %17 = vector.broadcast %13 : vector<1x128xf32> to vector<168x128xf32>
    %18 = arith.mulf %0, %17 : vector<168x128xf32>
    %19 = vector.broadcast %16 : vector<1x128xf32> to vector<168x128xf32>
    %20 = arith.addf %18, %19 : vector<168x128xf32>
    %cst_10 = arith.constant 0.000000e+00 : f32
    %21 = vector.broadcast %cst_10 : f32 to vector<168x128xf32>
    %22 = arith.maximumf %20, %21 : vector<168x128xf32>
    %c0_11 = arith.constant 0 : index
    %c0_12 = arith.constant 0 : index
    %23 = vector.load %arg4[%c0_11, %c0_12] : memref<168x128xbf16, #tpu.memory_space<vmem>>, vector<168x128xbf16>
    %24 = arith.extf %23 : vector<168x128xbf16> to vector<168x128xf32>
    %25 = arith.addf %24, %22 : vector<168x128xf32>
    %26 = arith.truncf %25 : vector<168x128xf32> to vector<168x128xbf16>
    %c0_13 = arith.constant 0 : index
    %c0_14 = arith.constant 0 : index
    %27 = vector.load %arg5[%c0_13, %c0_14] : memref<168x128xbf16, #tpu.memory_space<vmem>>, vector<168x128xbf16>
    tpu.vector_store %arg5[%c0_13, %c0_14], %26 {strides = array<i32>} : memref<168x128xbf16, #tpu.memory_space<vmem>>, vector<168x128xbf16>,
    return
  }
  func.func @transform_0(%arg0: i32) -> (i32, i32) {
    %c0_i32 = arith.constant 0 : i32
    %c0_i32_0 = arith.constant 0 : i32
    return %arg0, %c0_i32 : i32, i32
  }
  func.func @transform_1(%arg0: i32) -> (i32, i32) {
    %c0_i32 = arith.constant 0 : i32
    %c0_i32_0 = arith.constant 0 : i32
    %c0_i32_1 = arith.constant 0 : i32
    return %c0_i32, %c0_i32_0 : i32, i32
  }
  func.func @transform_2(%arg0: i32) -> (i32, i32) {
    %c0_i32 = arith.constant 0 : i32
    %c0_i32_0 = arith.constant 0 : i32
    %c0_i32_1 = arith.constant 0 : i32
    return %c0_i32, %c0_i32_0 : i32, i32
  }
  func.func @transform_3(%arg0: i32) -> (i32, i32) {
    %c0_i32 = arith.constant 0 : i32
    %c0_i32_0 = arith.constant 0 : i32
    return %arg0, %c0_i32 : i32, i32
  }
  func.func @transform_4(%arg0: i32) -> (i32, i32) {
    %c0_i32 = arith.constant 0 : i32
    %c0_i32_0 = arith.constant 0 : i32
    return %arg0, %c0_i32 : i32, i32
  }
}

module attributes {stable_mosaic.version = 11 : i64} {
  func.func @conv_stats_kernel(%arg0: i32, %arg1: memref<168x1152xbf16, #tpu.memory_space<vmem>>, %arg2: memref<1152x256xbf16, #tpu.memory_space<vmem>>, %arg3: memref<168x256xf32, #tpu.memory_space<vmem>>, %arg4: memref<2x256xf32, #tpu.memory_space<vmem>>) attributes {dimension_semantics = [#tpu.dimension_semantics<arbitrary>], iteration_bounds = array<i64: 1>, scalar_prefetch = 0 : i64, scratch_operands = 0 : i64, tpu.core_type = #tpu.core_type<tc>, window_params = [{transform_indices = @transform_0, window_bounds = array<i64: 168, 1152>}, {pipeline_mode = #tpu.pipeline_mode<synchronous>, transform_indices = @transform_1, window_bounds = array<i64: 1152, 256>}, {transform_indices = @transform_2, window_bounds = array<i64: 168, 256>}, {pipeline_mode = #tpu.pipeline_mode<synchronous>, transform_indices = @transform_3, window_bounds = array<i64: 2, 256>}]} {
    %c0_i32 = arith.constant 0 : i32
    %0 = arith.cmpi eq, %arg0, %c0_i32 : i32
    %1 = arith.extui %0 : i1 to i32
    %c0_i32_0 = arith.constant 0 : i32
    %2 = arith.cmpi ne, %1, %c0_i32_0 : i32
    scf.if %2 {
      %cst_15 = arith.constant 0.000000e+00 : f32
      %18 = vector.broadcast %cst_15 : f32 to vector<2x256xf32>
      %c0_16 = arith.constant 0 : index
      %c0_17 = arith.constant 0 : index
      %19 = vector.load %arg4[%c0_16, %c0_17] : memref<2x256xf32, #tpu.memory_space<vmem>>, vector<2x256xf32>
      tpu.vector_store %arg4[%c0_16, %c0_17], %18 {strides = array<i32>} : memref<2x256xf32, #tpu.memory_space<vmem>>, vector<2x256xf32>,
    } else {
    }
    %c0 = arith.constant 0 : index
    %c0_1 = arith.constant 0 : index
    %3 = vector.load %arg1[%c0, %c0_1] : memref<168x1152xbf16, #tpu.memory_space<vmem>>, vector<168x1152xbf16>
    %c0_2 = arith.constant 0 : index
    %c0_3 = arith.constant 0 : index
    %4 = vector.load %arg2[%c0_2, %c0_3] : memref<1152x256xbf16, #tpu.memory_space<vmem>>, vector<1152x256xbf16>
    %cst = arith.constant dense<0.000000e+00> : vector<168x256xf32>
    %5 = tpu.matmul %3, %4, %cst {dimension_numbers = #tpu.dot_dimension_numbers<[1], [0], [0], [1], [0, 0, 1, 1], [], []>} : vector<168x1152xbf16>, vector<1152x256xbf16>, vector<168x256xf32> -> vector<168x256xf32>
    %c0_4 = arith.constant 0 : index
    %c0_5 = arith.constant 0 : index
    %6 = vector.load %arg3[%c0_4, %c0_5] : memref<168x256xf32, #tpu.memory_space<vmem>>, vector<168x256xf32>
    tpu.vector_store %arg3[%c0_4, %c0_5], %5 {strides = array<i32>} : memref<168x256xf32, #tpu.memory_space<vmem>>, vector<168x256xf32>,
    %c0_6 = arith.constant 0 : index
    %c0_7 = arith.constant 0 : index
    %7 = vector.load %arg4[%c0_6, %c0_7] : memref<2x256xf32, #tpu.memory_space<vmem>>, vector<1x256xf32>
    %cst_8 = arith.constant dense<0.000000e+00> : vector<256xf32>
    %8 = vector.multi_reduction <add>, %5, %cst_8 [0] : vector<168x256xf32> to vector<256xf32>
    %9 = vector.shape_cast %8 : vector<256xf32> to vector<1x256xf32>
    %10 = arith.addf %7, %9 : vector<1x256xf32>
    %c0_9 = arith.constant 0 : index
    %c0_10 = arith.constant 0 : index
    %11 = vector.load %arg4[%c0_9, %c0_10] : memref<2x256xf32, #tpu.memory_space<vmem>>, vector<1x256xf32>
    tpu.vector_store %arg4[%c0_9, %c0_10], %10 {strides = array<i32>} : memref<2x256xf32, #tpu.memory_space<vmem>>, vector<1x256xf32>,
    %c1 = arith.constant 1 : index
    %c0_11 = arith.constant 0 : index
    %12 = vector.load %arg4[%c1, %c0_11] : memref<2x256xf32, #tpu.memory_space<vmem>>, vector<1x256xf32>
    %13 = arith.mulf %5, %5 : vector<168x256xf32>
    %cst_12 = arith.constant dense<0.000000e+00> : vector<256xf32>
    %14 = vector.multi_reduction <add>, %13, %cst_12 [0] : vector<168x256xf32> to vector<256xf32>
    %15 = vector.shape_cast %14 : vector<256xf32> to vector<1x256xf32>
    %16 = arith.addf %12, %15 : vector<1x256xf32>
    %c1_13 = arith.constant 1 : index
    %c0_14 = arith.constant 0 : index
    %17 = vector.load %arg4[%c1_13, %c0_14] : memref<2x256xf32, #tpu.memory_space<vmem>>, vector<1x256xf32>
    tpu.vector_store %arg4[%c1_13, %c0_14], %16 {strides = array<i32>} : memref<2x256xf32, #tpu.memory_space<vmem>>, vector<1x256xf32>,
    return
  }
  func.func @transform_0(%arg0: i32) -> (i32, i32) {
    %c0_i32 = arith.constant 0 : i32
    %c0_i32_0 = arith.constant 0 : i32
    return %arg0, %c0_i32 : i32, i32
  }
  func.func @transform_1(%arg0: i32) -> (i32, i32) {
    %c0_i32 = arith.constant 0 : i32
    %c0_i32_0 = arith.constant 0 : i32
    %c0_i32_1 = arith.constant 0 : i32
    return %c0_i32, %c0_i32_0 : i32, i32
  }
  func.func @transform_2(%arg0: i32) -> (i32, i32) {
    %c0_i32 = arith.constant 0 : i32
    %c0_i32_0 = arith.constant 0 : i32
    return %arg0, %c0_i32 : i32, i32
  }
  func.func @transform_3(%arg0: i32) -> (i32, i32) {
    %c0_i32 = arith.constant 0 : i32
    %c0_i32_0 = arith.constant 0 : i32
    %c0_i32_1 = arith.constant 0 : i32
    return %c0_i32, %c0_i32_0 : i32, i32
  }
}

module attributes {stable_mosaic.version = 11 : i64} {
  func.func @bn_relu_kernel(%arg0: i32, %arg1: memref<168x256xf32, #tpu.memory_space<vmem>>, %arg2: memref<2x256xf32, #tpu.memory_space<vmem>>, %arg3: memref<2x256xf32, #tpu.memory_space<vmem>>, %arg4: memref<168x256xbf16, #tpu.memory_space<vmem>>) attributes {dimension_semantics = [#tpu.dimension_semantics<parallel>], iteration_bounds = array<i64: 1>, scalar_prefetch = 0 : i64, scratch_operands = 0 : i64, tpu.core_type = #tpu.core_type<tc>, window_params = [{transform_indices = @transform_0, window_bounds = array<i64: 168, 256>}, {pipeline_mode = #tpu.pipeline_mode<synchronous>, transform_indices = @transform_1, window_bounds = array<i64: 2, 256>}, {pipeline_mode = #tpu.pipeline_mode<synchronous>, transform_indices = @transform_2, window_bounds = array<i64: 2, 256>}, {transform_indices = @transform_3, window_bounds = array<i64: 168, 256>}]} {
    %c0 = arith.constant 0 : index
    %c0_0 = arith.constant 0 : index
    %0 = vector.load %arg1[%c0, %c0_0] : memref<168x256xf32, #tpu.memory_space<vmem>>, vector<168x256xf32>
    %c0_1 = arith.constant 0 : index
    %c0_2 = arith.constant 0 : index
    %1 = vector.load %arg2[%c0_1, %c0_2] : memref<2x256xf32, #tpu.memory_space<vmem>>, vector<1x256xf32>
    %cst = arith.constant 0.00617283955 : f32
    %2 = vector.broadcast %cst : f32 to vector<1x256xf32>
    %3 = arith.mulf %1, %2 : vector<1x256xf32>
    %c1 = arith.constant 1 : index
    %c0_3 = arith.constant 0 : index
    %4 = vector.load %arg2[%c1, %c0_3] : memref<2x256xf32, #tpu.memory_space<vmem>>, vector<1x256xf32>
    %cst_4 = arith.constant 0.00617283955 : f32
    %5 = vector.broadcast %cst_4 : f32 to vector<1x256xf32>
    %6 = arith.mulf %4, %5 : vector<1x256xf32>
    %7 = arith.mulf %3, %3 : vector<1x256xf32>
    %8 = arith.subf %6, %7 : vector<1x256xf32>
    %c0_5 = arith.constant 0 : index
    %c0_6 = arith.constant 0 : index
    %9 = vector.load %arg3[%c0_5, %c0_6] : memref<2x256xf32, #tpu.memory_space<vmem>>, vector<1x256xf32>
    %cst_7 = arith.constant 9.99999974E-6 : f32
    %10 = vector.broadcast %cst_7 : f32 to vector<1x256xf32>
    %11 = arith.addf %8, %10 : vector<1x256xf32>
    %12 = math.rsqrt %11 : vector<1x256xf32>
    %13 = arith.mulf %9, %12 : vector<1x256xf32>
    %c1_8 = arith.constant 1 : index
    %c0_9 = arith.constant 0 : index
    %14 = vector.load %arg3[%c1_8, %c0_9] : memref<2x256xf32, #tpu.memory_space<vmem>>, vector<1x256xf32>
    %15 = arith.mulf %3, %13 : vector<1x256xf32>
    %16 = arith.subf %14, %15 : vector<1x256xf32>
    %17 = vector.broadcast %13 : vector<1x256xf32> to vector<168x256xf32>
    %18 = arith.mulf %0, %17 : vector<168x256xf32>
    %19 = vector.broadcast %16 : vector<1x256xf32> to vector<168x256xf32>
    %20 = arith.addf %18, %19 : vector<168x256xf32>
    %cst_10 = arith.constant 0.000000e+00 : f32
    %21 = vector.broadcast %cst_10 : f32 to vector<168x256xf32>
    %22 = arith.maximumf %20, %21 : vector<168x256xf32>
    %23 = arith.truncf %22 : vector<168x256xf32> to vector<168x256xbf16>
    %c0_11 = arith.constant 0 : index
    %c0_12 = arith.constant 0 : index
    %24 = vector.load %arg4[%c0_11, %c0_12] : memref<168x256xbf16, #tpu.memory_space<vmem>>, vector<168x256xbf16>
    tpu.vector_store %arg4[%c0_11, %c0_12], %23 {strides = array<i32>} : memref<168x256xbf16, #tpu.memory_space<vmem>>, vector<168x256xbf16>,
    return
  }
  func.func @transform_0(%arg0: i32) -> (i32, i32) {
    %c0_i32 = arith.constant 0 : i32
    %c0_i32_0 = arith.constant 0 : i32
    return %arg0, %c0_i32 : i32, i32
  }
  func.func @transform_1(%arg0: i32) -> (i32, i32) {
    %c0_i32 = arith.constant 0 : i32
    %c0_i32_0 = arith.constant 0 : i32
    %c0_i32_1 = arith.constant 0 : i32
    return %c0_i32, %c0_i32_0 : i32, i32
  }
  func.func @transform_2(%arg0: i32) -> (i32, i32) {
    %c0_i32 = arith.constant 0 : i32
    %c0_i32_0 = arith.constant 0 : i32
    %c0_i32_1 = arith.constant 0 : i32
    return %c0_i32, %c0_i32_0 : i32, i32
  }
  func.func @transform_3(%arg0: i32) -> (i32, i32) {
    %c0_i32 = arith.constant 0 : i32
    %c0_i32_0 = arith.constant 0 : i32
    return %arg0, %c0_i32 : i32, i32
  }
}

module attributes {stable_mosaic.version = 11 : i64} {
  func.func @maxpool2_kernel(%arg0: memref<8x2x4x2x256xbf16, #tpu.memory_space<vmem>>, %arg1: memref<8x4x1x256xbf16, #tpu.memory_space<vmem>>) attributes {dimension_semantics = [], scalar_prefetch = 0 : i64, scratch_operands = 0 : i64, tpu.core_type = #tpu.core_type<tc>} {
    %c0 = arith.constant 0 : index
    %c0_0 = arith.constant 0 : index
    %c0_1 = arith.constant 0 : index
    %c0_2 = arith.constant 0 : index
    %c0_3 = arith.constant 0 : index
    %0 = vector.load %arg0[%c0, %c0_0, %c0_1, %c0_2, %c0_3] : memref<8x2x4x2x256xbf16, #tpu.memory_space<vmem>>, vector<8x2x4x2x256xbf16>
    %1 = vector.extract_strided_slice %0 {offsets = [0, 0, 0, 0, 0], sizes = [8, 1, 4, 2, 256], strides = [1, 1, 1, 1, 1]} : vector<8x2x4x2x256xbf16> to vector<8x1x4x2x256xbf16>
    %2 = vector.shape_cast %1 : vector<8x1x4x2x256xbf16> to vector<8x4x2x256xbf16>
    %3 = vector.extract_strided_slice %0 {offsets = [0, 1, 0, 0, 0], sizes = [8, 1, 4, 2, 256], strides = [1, 1, 1, 1, 1]} : vector<8x2x4x2x256xbf16> to vector<8x1x4x2x256xbf16>
    %4 = vector.shape_cast %3 : vector<8x1x4x2x256xbf16> to vector<8x4x2x256xbf16>
    %5 = arith.maximumf %2, %4 : vector<8x4x2x256xbf16>
    %cst = arith.constant dense<0xFF80> : vector<8x4x256xbf16>
    %6 = vector.multi_reduction <maximumf>, %5, %cst [2] : vector<8x4x2x256xbf16> to vector<8x4x256xbf16>
    %7 = vector.shape_cast %6 : vector<8x4x256xbf16> to vector<8x4x1x256xbf16>
    %c0_4 = arith.constant 0 : index
    %c0_5 = arith.constant 0 : index
    %c0_6 = arith.constant 0 : index
    %c0_7 = arith.constant 0 : index
    %8 = vector.load %arg1[%c0_4, %c0_5, %c0_6, %c0_7] : memref<8x4x1x256xbf16, #tpu.memory_space<vmem>>, vector<8x4x1x256xbf16>
    tpu.vector_store %arg1[%c0_4, %c0_5, %c0_6, %c0_7], %7 {strides = array<i32>} : memref<8x4x1x256xbf16, #tpu.memory_space<vmem>>, vector<8x4x1x256xbf16>,
    return
  }
}

module attributes {stable_mosaic.version = 11 : i64} {
  func.func @conv_stats_kernel(%arg0: i32, %arg1: memref<32x256xbf16, #tpu.memory_space<vmem>>, %arg2: memref<256x128xbf16, #tpu.memory_space<vmem>>, %arg3: memref<32x128xf32, #tpu.memory_space<vmem>>, %arg4: memref<2x128xf32, #tpu.memory_space<vmem>>) attributes {dimension_semantics = [#tpu.dimension_semantics<arbitrary>], iteration_bounds = array<i64: 1>, scalar_prefetch = 0 : i64, scratch_operands = 0 : i64, tpu.core_type = #tpu.core_type<tc>, window_params = [{transform_indices = @transform_0, window_bounds = array<i64: 32, 256>}, {pipeline_mode = #tpu.pipeline_mode<synchronous>, transform_indices = @transform_1, window_bounds = array<i64: 256, 128>}, {transform_indices = @transform_2, window_bounds = array<i64: 32, 128>}, {pipeline_mode = #tpu.pipeline_mode<synchronous>, transform_indices = @transform_3, window_bounds = array<i64: 2, 128>}]} {
    %c0_i32 = arith.constant 0 : i32
    %0 = arith.cmpi eq, %arg0, %c0_i32 : i32
    %1 = arith.extui %0 : i1 to i32
    %c0_i32_0 = arith.constant 0 : i32
    %2 = arith.cmpi ne, %1, %c0_i32_0 : i32
    scf.if %2 {
      %cst_15 = arith.constant 0.000000e+00 : f32
      %18 = vector.broadcast %cst_15 : f32 to vector<2x128xf32>
      %c0_16 = arith.constant 0 : index
      %c0_17 = arith.constant 0 : index
      %19 = vector.load %arg4[%c0_16, %c0_17] : memref<2x128xf32, #tpu.memory_space<vmem>>, vector<2x128xf32>
      tpu.vector_store %arg4[%c0_16, %c0_17], %18 {strides = array<i32>} : memref<2x128xf32, #tpu.memory_space<vmem>>, vector<2x128xf32>,
    } else {
    }
    %c0 = arith.constant 0 : index
    %c0_1 = arith.constant 0 : index
    %3 = vector.load %arg1[%c0, %c0_1] : memref<32x256xbf16, #tpu.memory_space<vmem>>, vector<32x256xbf16>
    %c0_2 = arith.constant 0 : index
    %c0_3 = arith.constant 0 : index
    %4 = vector.load %arg2[%c0_2, %c0_3] : memref<256x128xbf16, #tpu.memory_space<vmem>>, vector<256x128xbf16>
    %cst = arith.constant dense<0.000000e+00> : vector<32x128xf32>
    %5 = tpu.matmul %3, %4, %cst {dimension_numbers = #tpu.dot_dimension_numbers<[1], [0], [0], [1], [0, 0, 1, 1], [], []>} : vector<32x256xbf16>, vector<256x128xbf16>, vector<32x128xf32> -> vector<32x128xf32>
    %c0_4 = arith.constant 0 : index
    %c0_5 = arith.constant 0 : index
    %6 = vector.load %arg3[%c0_4, %c0_5] : memref<32x128xf32, #tpu.memory_space<vmem>>, vector<32x128xf32>
    tpu.vector_store %arg3[%c0_4, %c0_5], %5 {strides = array<i32>} : memref<32x128xf32, #tpu.memory_space<vmem>>, vector<32x128xf32>,
    %c0_6 = arith.constant 0 : index
    %c0_7 = arith.constant 0 : index
    %7 = vector.load %arg4[%c0_6, %c0_7] : memref<2x128xf32, #tpu.memory_space<vmem>>, vector<1x128xf32>
    %cst_8 = arith.constant dense<0.000000e+00> : vector<128xf32>
    %8 = vector.multi_reduction <add>, %5, %cst_8 [0] : vector<32x128xf32> to vector<128xf32>
    %9 = vector.shape_cast %8 : vector<128xf32> to vector<1x128xf32>
    %10 = arith.addf %7, %9 : vector<1x128xf32>
    %c0_9 = arith.constant 0 : index
    %c0_10 = arith.constant 0 : index
    %11 = vector.load %arg4[%c0_9, %c0_10] : memref<2x128xf32, #tpu.memory_space<vmem>>, vector<1x128xf32>
    tpu.vector_store %arg4[%c0_9, %c0_10], %10 {strides = array<i32>} : memref<2x128xf32, #tpu.memory_space<vmem>>, vector<1x128xf32>,
    %c1 = arith.constant 1 : index
    %c0_11 = arith.constant 0 : index
    %12 = vector.load %arg4[%c1, %c0_11] : memref<2x128xf32, #tpu.memory_space<vmem>>, vector<1x128xf32>
    %13 = arith.mulf %5, %5 : vector<32x128xf32>
    %cst_12 = arith.constant dense<0.000000e+00> : vector<128xf32>
    %14 = vector.multi_reduction <add>, %13, %cst_12 [0] : vector<32x128xf32> to vector<128xf32>
    %15 = vector.shape_cast %14 : vector<128xf32> to vector<1x128xf32>
    %16 = arith.addf %12, %15 : vector<1x128xf32>
    %c1_13 = arith.constant 1 : index
    %c0_14 = arith.constant 0 : index
    %17 = vector.load %arg4[%c1_13, %c0_14] : memref<2x128xf32, #tpu.memory_space<vmem>>, vector<1x128xf32>
    tpu.vector_store %arg4[%c1_13, %c0_14], %16 {strides = array<i32>} : memref<2x128xf32, #tpu.memory_space<vmem>>, vector<1x128xf32>,
    return
  }
  func.func @transform_0(%arg0: i32) -> (i32, i32) {
    %c0_i32 = arith.constant 0 : i32
    %c0_i32_0 = arith.constant 0 : i32
    return %arg0, %c0_i32 : i32, i32
  }
  func.func @transform_1(%arg0: i32) -> (i32, i32) {
    %c0_i32 = arith.constant 0 : i32
    %c0_i32_0 = arith.constant 0 : i32
    %c0_i32_1 = arith.constant 0 : i32
    return %c0_i32, %c0_i32_0 : i32, i32
  }
  func.func @transform_2(%arg0: i32) -> (i32, i32) {
    %c0_i32 = arith.constant 0 : i32
    %c0_i32_0 = arith.constant 0 : i32
    return %arg0, %c0_i32 : i32, i32
  }
  func.func @transform_3(%arg0: i32) -> (i32, i32) {
    %c0_i32 = arith.constant 0 : i32
    %c0_i32_0 = arith.constant 0 : i32
    %c0_i32_1 = arith.constant 0 : i32
    return %c0_i32, %c0_i32_0 : i32, i32
  }
}

module attributes {stable_mosaic.version = 11 : i64} {
  func.func @bn_relu_kernel(%arg0: i32, %arg1: memref<32x128xf32, #tpu.memory_space<vmem>>, %arg2: memref<2x128xf32, #tpu.memory_space<vmem>>, %arg3: memref<2x128xf32, #tpu.memory_space<vmem>>, %arg4: memref<32x128xbf16, #tpu.memory_space<vmem>>) attributes {dimension_semantics = [#tpu.dimension_semantics<parallel>], iteration_bounds = array<i64: 1>, scalar_prefetch = 0 : i64, scratch_operands = 0 : i64, tpu.core_type = #tpu.core_type<tc>, window_params = [{transform_indices = @transform_0, window_bounds = array<i64: 32, 128>}, {pipeline_mode = #tpu.pipeline_mode<synchronous>, transform_indices = @transform_1, window_bounds = array<i64: 2, 128>}, {pipeline_mode = #tpu.pipeline_mode<synchronous>, transform_indices = @transform_2, window_bounds = array<i64: 2, 128>}, {transform_indices = @transform_3, window_bounds = array<i64: 32, 128>}]} {
    %c0 = arith.constant 0 : index
    %c0_0 = arith.constant 0 : index
    %0 = vector.load %arg1[%c0, %c0_0] : memref<32x128xf32, #tpu.memory_space<vmem>>, vector<32x128xf32>
    %c0_1 = arith.constant 0 : index
    %c0_2 = arith.constant 0 : index
    %1 = vector.load %arg2[%c0_1, %c0_2] : memref<2x128xf32, #tpu.memory_space<vmem>>, vector<1x128xf32>
    %cst = arith.constant 3.125000e-02 : f32
    %2 = vector.broadcast %cst : f32 to vector<1x128xf32>
    %3 = arith.mulf %1, %2 : vector<1x128xf32>
    %c1 = arith.constant 1 : index
    %c0_3 = arith.constant 0 : index
    %4 = vector.load %arg2[%c1, %c0_3] : memref<2x128xf32, #tpu.memory_space<vmem>>, vector<1x128xf32>
    %cst_4 = arith.constant 3.125000e-02 : f32
    %5 = vector.broadcast %cst_4 : f32 to vector<1x128xf32>
    %6 = arith.mulf %4, %5 : vector<1x128xf32>
    %7 = arith.mulf %3, %3 : vector<1x128xf32>
    %8 = arith.subf %6, %7 : vector<1x128xf32>
    %c0_5 = arith.constant 0 : index
    %c0_6 = arith.constant 0 : index
    %9 = vector.load %arg3[%c0_5, %c0_6] : memref<2x128xf32, #tpu.memory_space<vmem>>, vector<1x128xf32>
    %cst_7 = arith.constant 9.99999974E-6 : f32
    %10 = vector.broadcast %cst_7 : f32 to vector<1x128xf32>
    %11 = arith.addf %8, %10 : vector<1x128xf32>
    %12 = math.rsqrt %11 : vector<1x128xf32>
    %13 = arith.mulf %9, %12 : vector<1x128xf32>
    %c1_8 = arith.constant 1 : index
    %c0_9 = arith.constant 0 : index
    %14 = vector.load %arg3[%c1_8, %c0_9] : memref<2x128xf32, #tpu.memory_space<vmem>>, vector<1x128xf32>
    %15 = arith.mulf %3, %13 : vector<1x128xf32>
    %16 = arith.subf %14, %15 : vector<1x128xf32>
    %17 = vector.broadcast %13 : vector<1x128xf32> to vector<32x128xf32>
    %18 = arith.mulf %0, %17 : vector<32x128xf32>
    %19 = vector.broadcast %16 : vector<1x128xf32> to vector<32x128xf32>
    %20 = arith.addf %18, %19 : vector<32x128xf32>
    %cst_10 = arith.constant 0.000000e+00 : f32
    %21 = vector.broadcast %cst_10 : f32 to vector<32x128xf32>
    %22 = arith.maximumf %20, %21 : vector<32x128xf32>
    %23 = arith.truncf %22 : vector<32x128xf32> to vector<32x128xbf16>
    %c0_11 = arith.constant 0 : index
    %c0_12 = arith.constant 0 : index
    %24 = vector.load %arg4[%c0_11, %c0_12] : memref<32x128xbf16, #tpu.memory_space<vmem>>, vector<32x128xbf16>
    tpu.vector_store %arg4[%c0_11, %c0_12], %23 {strides = array<i32>} : memref<32x128xbf16, #tpu.memory_space<vmem>>, vector<32x128xbf16>,
    return
  }
  func.func @transform_0(%arg0: i32) -> (i32, i32) {
    %c0_i32 = arith.constant 0 : i32
    %c0_i32_0 = arith.constant 0 : i32
    return %arg0, %c0_i32 : i32, i32
  }
  func.func @transform_1(%arg0: i32) -> (i32, i32) {
    %c0_i32 = arith.constant 0 : i32
    %c0_i32_0 = arith.constant 0 : i32
    %c0_i32_1 = arith.constant 0 : i32
    return %c0_i32, %c0_i32_0 : i32, i32
  }
  func.func @transform_2(%arg0: i32) -> (i32, i32) {
    %c0_i32 = arith.constant 0 : i32
    %c0_i32_0 = arith.constant 0 : i32
    %c0_i32_1 = arith.constant 0 : i32
    return %c0_i32, %c0_i32_0 : i32, i32
  }
  func.func @transform_3(%arg0: i32) -> (i32, i32) {
    %c0_i32 = arith.constant 0 : i32
    %c0_i32_0 = arith.constant 0 : i32
    return %arg0, %c0_i32 : i32, i32
  }
}

module attributes {stable_mosaic.version = 11 : i64} {
  func.func @conv_stats_kernel(%arg0: i32, %arg1: memref<32x128xbf16, #tpu.memory_space<vmem>>, %arg2: memref<128x256xbf16, #tpu.memory_space<vmem>>, %arg3: memref<32x256xf32, #tpu.memory_space<vmem>>, %arg4: memref<2x256xf32, #tpu.memory_space<vmem>>) attributes {dimension_semantics = [#tpu.dimension_semantics<arbitrary>], iteration_bounds = array<i64: 1>, scalar_prefetch = 0 : i64, scratch_operands = 0 : i64, tpu.core_type = #tpu.core_type<tc>, window_params = [{transform_indices = @transform_0, window_bounds = array<i64: 32, 128>}, {pipeline_mode = #tpu.pipeline_mode<synchronous>, transform_indices = @transform_1, window_bounds = array<i64: 128, 256>}, {transform_indices = @transform_2, window_bounds = array<i64: 32, 256>}, {pipeline_mode = #tpu.pipeline_mode<synchronous>, transform_indices = @transform_3, window_bounds = array<i64: 2, 256>}]} {
    %c0_i32 = arith.constant 0 : i32
    %0 = arith.cmpi eq, %arg0, %c0_i32 : i32
    %1 = arith.extui %0 : i1 to i32
    %c0_i32_0 = arith.constant 0 : i32
    %2 = arith.cmpi ne, %1, %c0_i32_0 : i32
    scf.if %2 {
      %cst_15 = arith.constant 0.000000e+00 : f32
      %18 = vector.broadcast %cst_15 : f32 to vector<2x256xf32>
      %c0_16 = arith.constant 0 : index
      %c0_17 = arith.constant 0 : index
      %19 = vector.load %arg4[%c0_16, %c0_17] : memref<2x256xf32, #tpu.memory_space<vmem>>, vector<2x256xf32>
      tpu.vector_store %arg4[%c0_16, %c0_17], %18 {strides = array<i32>} : memref<2x256xf32, #tpu.memory_space<vmem>>, vector<2x256xf32>,
    } else {
    }
    %c0 = arith.constant 0 : index
    %c0_1 = arith.constant 0 : index
    %3 = vector.load %arg1[%c0, %c0_1] : memref<32x128xbf16, #tpu.memory_space<vmem>>, vector<32x128xbf16>
    %c0_2 = arith.constant 0 : index
    %c0_3 = arith.constant 0 : index
    %4 = vector.load %arg2[%c0_2, %c0_3] : memref<128x256xbf16, #tpu.memory_space<vmem>>, vector<128x256xbf16>
    %cst = arith.constant dense<0.000000e+00> : vector<32x256xf32>
    %5 = tpu.matmul %3, %4, %cst {dimension_numbers = #tpu.dot_dimension_numbers<[1], [0], [0], [1], [0, 0, 1, 1], [], []>} : vector<32x128xbf16>, vector<128x256xbf16>, vector<32x256xf32> -> vector<32x256xf32>
    %c0_4 = arith.constant 0 : index
    %c0_5 = arith.constant 0 : index
    %6 = vector.load %arg3[%c0_4, %c0_5] : memref<32x256xf32, #tpu.memory_space<vmem>>, vector<32x256xf32>
    tpu.vector_store %arg3[%c0_4, %c0_5], %5 {strides = array<i32>} : memref<32x256xf32, #tpu.memory_space<vmem>>, vector<32x256xf32>,
    %c0_6 = arith.constant 0 : index
    %c0_7 = arith.constant 0 : index
    %7 = vector.load %arg4[%c0_6, %c0_7] : memref<2x256xf32, #tpu.memory_space<vmem>>, vector<1x256xf32>
    %cst_8 = arith.constant dense<0.000000e+00> : vector<256xf32>
    %8 = vector.multi_reduction <add>, %5, %cst_8 [0] : vector<32x256xf32> to vector<256xf32>
    %9 = vector.shape_cast %8 : vector<256xf32> to vector<1x256xf32>
    %10 = arith.addf %7, %9 : vector<1x256xf32>
    %c0_9 = arith.constant 0 : index
    %c0_10 = arith.constant 0 : index
    %11 = vector.load %arg4[%c0_9, %c0_10] : memref<2x256xf32, #tpu.memory_space<vmem>>, vector<1x256xf32>
    tpu.vector_store %arg4[%c0_9, %c0_10], %10 {strides = array<i32>} : memref<2x256xf32, #tpu.memory_space<vmem>>, vector<1x256xf32>,
    %c1 = arith.constant 1 : index
    %c0_11 = arith.constant 0 : index
    %12 = vector.load %arg4[%c1, %c0_11] : memref<2x256xf32, #tpu.memory_space<vmem>>, vector<1x256xf32>
    %13 = arith.mulf %5, %5 : vector<32x256xf32>
    %cst_12 = arith.constant dense<0.000000e+00> : vector<256xf32>
    %14 = vector.multi_reduction <add>, %13, %cst_12 [0] : vector<32x256xf32> to vector<256xf32>
    %15 = vector.shape_cast %14 : vector<256xf32> to vector<1x256xf32>
    %16 = arith.addf %12, %15 : vector<1x256xf32>
    %c1_13 = arith.constant 1 : index
    %c0_14 = arith.constant 0 : index
    %17 = vector.load %arg4[%c1_13, %c0_14] : memref<2x256xf32, #tpu.memory_space<vmem>>, vector<1x256xf32>
    tpu.vector_store %arg4[%c1_13, %c0_14], %16 {strides = array<i32>} : memref<2x256xf32, #tpu.memory_space<vmem>>, vector<1x256xf32>,
    return
  }
  func.func @transform_0(%arg0: i32) -> (i32, i32) {
    %c0_i32 = arith.constant 0 : i32
    %c0_i32_0 = arith.constant 0 : i32
    return %arg0, %c0_i32 : i32, i32
  }
  func.func @transform_1(%arg0: i32) -> (i32, i32) {
    %c0_i32 = arith.constant 0 : i32
    %c0_i32_0 = arith.constant 0 : i32
    %c0_i32_1 = arith.constant 0 : i32
    return %c0_i32, %c0_i32_0 : i32, i32
  }
  func.func @transform_2(%arg0: i32) -> (i32, i32) {
    %c0_i32 = arith.constant 0 : i32
    %c0_i32_0 = arith.constant 0 : i32
    return %arg0, %c0_i32 : i32, i32
  }
  func.func @transform_3(%arg0: i32) -> (i32, i32) {
    %c0_i32 = arith.constant 0 : i32
    %c0_i32_0 = arith.constant 0 : i32
    %c0_i32_1 = arith.constant 0 : i32
    return %c0_i32, %c0_i32_0 : i32, i32
  }
}

module attributes {stable_mosaic.version = 11 : i64} {
  func.func @bn_relu_res_kernel(%arg0: i32, %arg1: memref<32x256xf32, #tpu.memory_space<vmem>>, %arg2: memref<2x256xf32, #tpu.memory_space<vmem>>, %arg3: memref<2x256xf32, #tpu.memory_space<vmem>>, %arg4: memref<32x256xbf16, #tpu.memory_space<vmem>>, %arg5: memref<32x256xbf16, #tpu.memory_space<vmem>>) attributes {dimension_semantics = [#tpu.dimension_semantics<parallel>], iteration_bounds = array<i64: 1>, scalar_prefetch = 0 : i64, scratch_operands = 0 : i64, tpu.core_type = #tpu.core_type<tc>, window_params = [{transform_indices = @transform_0, window_bounds = array<i64: 32, 256>}, {pipeline_mode = #tpu.pipeline_mode<synchronous>, transform_indices = @transform_1, window_bounds = array<i64: 2, 256>}, {pipeline_mode = #tpu.pipeline_mode<synchronous>, transform_indices = @transform_2, window_bounds = array<i64: 2, 256>}, {transform_indices = @transform_3, window_bounds = array<i64: 32, 256>}, {transform_indices = @transform_4, window_bounds = array<i64: 32, 256>}]} {
    %c0 = arith.constant 0 : index
    %c0_0 = arith.constant 0 : index
    %0 = vector.load %arg1[%c0, %c0_0] : memref<32x256xf32, #tpu.memory_space<vmem>>, vector<32x256xf32>
    %c0_1 = arith.constant 0 : index
    %c0_2 = arith.constant 0 : index
    %1 = vector.load %arg2[%c0_1, %c0_2] : memref<2x256xf32, #tpu.memory_space<vmem>>, vector<1x256xf32>
    %cst = arith.constant 3.125000e-02 : f32
    %2 = vector.broadcast %cst : f32 to vector<1x256xf32>
    %3 = arith.mulf %1, %2 : vector<1x256xf32>
    %c1 = arith.constant 1 : index
    %c0_3 = arith.constant 0 : index
    %4 = vector.load %arg2[%c1, %c0_3] : memref<2x256xf32, #tpu.memory_space<vmem>>, vector<1x256xf32>
    %cst_4 = arith.constant 3.125000e-02 : f32
    %5 = vector.broadcast %cst_4 : f32 to vector<1x256xf32>
    %6 = arith.mulf %4, %5 : vector<1x256xf32>
    %7 = arith.mulf %3, %3 : vector<1x256xf32>
    %8 = arith.subf %6, %7 : vector<1x256xf32>
    %c0_5 = arith.constant 0 : index
    %c0_6 = arith.constant 0 : index
    %9 = vector.load %arg3[%c0_5, %c0_6] : memref<2x256xf32, #tpu.memory_space<vmem>>, vector<1x256xf32>
    %cst_7 = arith.constant 9.99999974E-6 : f32
    %10 = vector.broadcast %cst_7 : f32 to vector<1x256xf32>
    %11 = arith.addf %8, %10 : vector<1x256xf32>
    %12 = math.rsqrt %11 : vector<1x256xf32>
    %13 = arith.mulf %9, %12 : vector<1x256xf32>
    %c1_8 = arith.constant 1 : index
    %c0_9 = arith.constant 0 : index
    %14 = vector.load %arg3[%c1_8, %c0_9] : memref<2x256xf32, #tpu.memory_space<vmem>>, vector<1x256xf32>
    %15 = arith.mulf %3, %13 : vector<1x256xf32>
    %16 = arith.subf %14, %15 : vector<1x256xf32>
    %17 = vector.broadcast %13 : vector<1x256xf32> to vector<32x256xf32>
    %18 = arith.mulf %0, %17 : vector<32x256xf32>
    %19 = vector.broadcast %16 : vector<1x256xf32> to vector<32x256xf32>
    %20 = arith.addf %18, %19 : vector<32x256xf32>
    %cst_10 = arith.constant 0.000000e+00 : f32
    %21 = vector.broadcast %cst_10 : f32 to vector<32x256xf32>
    %22 = arith.maximumf %20, %21 : vector<32x256xf32>
    %c0_11 = arith.constant 0 : index
    %c0_12 = arith.constant 0 : index
    %23 = vector.load %arg4[%c0_11, %c0_12] : memref<32x256xbf16, #tpu.memory_space<vmem>>, vector<32x256xbf16>
    %24 = arith.extf %23 : vector<32x256xbf16> to vector<32x256xf32>
    %25 = arith.addf %24, %22 : vector<32x256xf32>
    %26 = arith.truncf %25 : vector<32x256xf32> to vector<32x256xbf16>
    %c0_13 = arith.constant 0 : index
    %c0_14 = arith.constant 0 : index
    %27 = vector.load %arg5[%c0_13, %c0_14] : memref<32x256xbf16, #tpu.memory_space<vmem>>, vector<32x256xbf16>
    tpu.vector_store %arg5[%c0_13, %c0_14], %26 {strides = array<i32>} : memref<32x256xbf16, #tpu.memory_space<vmem>>, vector<32x256xbf16>,
    return
  }
  func.func @transform_0(%arg0: i32) -> (i32, i32) {
    %c0_i32 = arith.constant 0 : i32
    %c0_i32_0 = arith.constant 0 : i32
    return %arg0, %c0_i32 : i32, i32
  }
  func.func @transform_1(%arg0: i32) -> (i32, i32) {
    %c0_i32 = arith.constant 0 : i32
    %c0_i32_0 = arith.constant 0 : i32
    %c0_i32_1 = arith.constant 0 : i32
    return %c0_i32, %c0_i32_0 : i32, i32
  }
  func.func @transform_2(%arg0: i32) -> (i32, i32) {
    %c0_i32 = arith.constant 0 : i32
    %c0_i32_0 = arith.constant 0 : i32
    %c0_i32_1 = arith.constant 0 : i32
    return %c0_i32, %c0_i32_0 : i32, i32
  }
  func.func @transform_3(%arg0: i32) -> (i32, i32) {
    %c0_i32 = arith.constant 0 : i32
    %c0_i32_0 = arith.constant 0 : i32
    return %arg0, %c0_i32 : i32, i32
  }
  func.func @transform_4(%arg0: i32) -> (i32, i32) {
    %c0_i32 = arith.constant 0 : i32
    %c0_i32_0 = arith.constant 0 : i32
    return %arg0, %c0_i32 : i32, i32
  }
}

module attributes {stable_mosaic.version = 11 : i64} {
  func.func @conv_stats_kernel(%arg0: i32, %arg1: memref<32x1152xbf16, #tpu.memory_space<vmem>>, %arg2: memref<1152x128xbf16, #tpu.memory_space<vmem>>, %arg3: memref<32x128xf32, #tpu.memory_space<vmem>>, %arg4: memref<2x128xf32, #tpu.memory_space<vmem>>) attributes {dimension_semantics = [#tpu.dimension_semantics<arbitrary>], iteration_bounds = array<i64: 1>, scalar_prefetch = 0 : i64, scratch_operands = 0 : i64, tpu.core_type = #tpu.core_type<tc>, window_params = [{transform_indices = @transform_0, window_bounds = array<i64: 32, 1152>}, {pipeline_mode = #tpu.pipeline_mode<synchronous>, transform_indices = @transform_1, window_bounds = array<i64: 1152, 128>}, {transform_indices = @transform_2, window_bounds = array<i64: 32, 128>}, {pipeline_mode = #tpu.pipeline_mode<synchronous>, transform_indices = @transform_3, window_bounds = array<i64: 2, 128>}]} {
    %c0_i32 = arith.constant 0 : i32
    %0 = arith.cmpi eq, %arg0, %c0_i32 : i32
    %1 = arith.extui %0 : i1 to i32
    %c0_i32_0 = arith.constant 0 : i32
    %2 = arith.cmpi ne, %1, %c0_i32_0 : i32
    scf.if %2 {
      %cst_15 = arith.constant 0.000000e+00 : f32
      %18 = vector.broadcast %cst_15 : f32 to vector<2x128xf32>
      %c0_16 = arith.constant 0 : index
      %c0_17 = arith.constant 0 : index
      %19 = vector.load %arg4[%c0_16, %c0_17] : memref<2x128xf32, #tpu.memory_space<vmem>>, vector<2x128xf32>
      tpu.vector_store %arg4[%c0_16, %c0_17], %18 {strides = array<i32>} : memref<2x128xf32, #tpu.memory_space<vmem>>, vector<2x128xf32>,
    } else {
    }
    %c0 = arith.constant 0 : index
    %c0_1 = arith.constant 0 : index
    %3 = vector.load %arg1[%c0, %c0_1] : memref<32x1152xbf16, #tpu.memory_space<vmem>>, vector<32x1152xbf16>
    %c0_2 = arith.constant 0 : index
    %c0_3 = arith.constant 0 : index
    %4 = vector.load %arg2[%c0_2, %c0_3] : memref<1152x128xbf16, #tpu.memory_space<vmem>>, vector<1152x128xbf16>
    %cst = arith.constant dense<0.000000e+00> : vector<32x128xf32>
    %5 = tpu.matmul %3, %4, %cst {dimension_numbers = #tpu.dot_dimension_numbers<[1], [0], [0], [1], [0, 0, 1, 1], [], []>} : vector<32x1152xbf16>, vector<1152x128xbf16>, vector<32x128xf32> -> vector<32x128xf32>
    %c0_4 = arith.constant 0 : index
    %c0_5 = arith.constant 0 : index
    %6 = vector.load %arg3[%c0_4, %c0_5] : memref<32x128xf32, #tpu.memory_space<vmem>>, vector<32x128xf32>
    tpu.vector_store %arg3[%c0_4, %c0_5], %5 {strides = array<i32>} : memref<32x128xf32, #tpu.memory_space<vmem>>, vector<32x128xf32>,
    %c0_6 = arith.constant 0 : index
    %c0_7 = arith.constant 0 : index
    %7 = vector.load %arg4[%c0_6, %c0_7] : memref<2x128xf32, #tpu.memory_space<vmem>>, vector<1x128xf32>
    %cst_8 = arith.constant dense<0.000000e+00> : vector<128xf32>
    %8 = vector.multi_reduction <add>, %5, %cst_8 [0] : vector<32x128xf32> to vector<128xf32>
    %9 = vector.shape_cast %8 : vector<128xf32> to vector<1x128xf32>
    %10 = arith.addf %7, %9 : vector<1x128xf32>
    %c0_9 = arith.constant 0 : index
    %c0_10 = arith.constant 0 : index
    %11 = vector.load %arg4[%c0_9, %c0_10] : memref<2x128xf32, #tpu.memory_space<vmem>>, vector<1x128xf32>
    tpu.vector_store %arg4[%c0_9, %c0_10], %10 {strides = array<i32>} : memref<2x128xf32, #tpu.memory_space<vmem>>, vector<1x128xf32>,
    %c1 = arith.constant 1 : index
    %c0_11 = arith.constant 0 : index
    %12 = vector.load %arg4[%c1, %c0_11] : memref<2x128xf32, #tpu.memory_space<vmem>>, vector<1x128xf32>
    %13 = arith.mulf %5, %5 : vector<32x128xf32>
    %cst_12 = arith.constant dense<0.000000e+00> : vector<128xf32>
    %14 = vector.multi_reduction <add>, %13, %cst_12 [0] : vector<32x128xf32> to vector<128xf32>
    %15 = vector.shape_cast %14 : vector<128xf32> to vector<1x128xf32>
    %16 = arith.addf %12, %15 : vector<1x128xf32>
    %c1_13 = arith.constant 1 : index
    %c0_14 = arith.constant 0 : index
    %17 = vector.load %arg4[%c1_13, %c0_14] : memref<2x128xf32, #tpu.memory_space<vmem>>, vector<1x128xf32>
    tpu.vector_store %arg4[%c1_13, %c0_14], %16 {strides = array<i32>} : memref<2x128xf32, #tpu.memory_space<vmem>>, vector<1x128xf32>,
    return
  }
  func.func @transform_0(%arg0: i32) -> (i32, i32) {
    %c0_i32 = arith.constant 0 : i32
    %c0_i32_0 = arith.constant 0 : i32
    return %arg0, %c0_i32 : i32, i32
  }
  func.func @transform_1(%arg0: i32) -> (i32, i32) {
    %c0_i32 = arith.constant 0 : i32
    %c0_i32_0 = arith.constant 0 : i32
    %c0_i32_1 = arith.constant 0 : i32
    return %c0_i32, %c0_i32_0 : i32, i32
  }
  func.func @transform_2(%arg0: i32) -> (i32, i32) {
    %c0_i32 = arith.constant 0 : i32
    %c0_i32_0 = arith.constant 0 : i32
    return %arg0, %c0_i32 : i32, i32
  }
  func.func @transform_3(%arg0: i32) -> (i32, i32) {
    %c0_i32 = arith.constant 0 : i32
    %c0_i32_0 = arith.constant 0 : i32
    %c0_i32_1 = arith.constant 0 : i32
    return %c0_i32, %c0_i32_0 : i32, i32
  }
}

module attributes {stable_mosaic.version = 11 : i64} {
  func.func @conv_stats_kernel(%arg0: i32, %arg1: memref<8x2304xbf16, #tpu.memory_space<vmem>>, %arg2: memref<2304x128xbf16, #tpu.memory_space<vmem>>, %arg3: memref<8x128xf32, #tpu.memory_space<vmem>>, %arg4: memref<2x128xf32, #tpu.memory_space<vmem>>) attributes {dimension_semantics = [#tpu.dimension_semantics<arbitrary>], iteration_bounds = array<i64: 1>, scalar_prefetch = 0 : i64, scratch_operands = 0 : i64, tpu.core_type = #tpu.core_type<tc>, window_params = [{transform_indices = @transform_0, window_bounds = array<i64: 8, 2304>}, {pipeline_mode = #tpu.pipeline_mode<synchronous>, transform_indices = @transform_1, window_bounds = array<i64: 2304, 128>}, {transform_indices = @transform_2, window_bounds = array<i64: 8, 128>}, {pipeline_mode = #tpu.pipeline_mode<synchronous>, transform_indices = @transform_3, window_bounds = array<i64: 2, 128>}]} {
    %c0_i32 = arith.constant 0 : i32
    %0 = arith.cmpi eq, %arg0, %c0_i32 : i32
    %1 = arith.extui %0 : i1 to i32
    %c0_i32_0 = arith.constant 0 : i32
    %2 = arith.cmpi ne, %1, %c0_i32_0 : i32
    scf.if %2 {
      %cst_15 = arith.constant 0.000000e+00 : f32
      %18 = vector.broadcast %cst_15 : f32 to vector<2x128xf32>
      %c0_16 = arith.constant 0 : index
      %c0_17 = arith.constant 0 : index
      %19 = vector.load %arg4[%c0_16, %c0_17] : memref<2x128xf32, #tpu.memory_space<vmem>>, vector<2x128xf32>
      tpu.vector_store %arg4[%c0_16, %c0_17], %18 {strides = array<i32>} : memref<2x128xf32, #tpu.memory_space<vmem>>, vector<2x128xf32>,
    } else {
    }
    %c0 = arith.constant 0 : index
    %c0_1 = arith.constant 0 : index
    %3 = vector.load %arg1[%c0, %c0_1] : memref<8x2304xbf16, #tpu.memory_space<vmem>>, vector<8x2304xbf16>
    %c0_2 = arith.constant 0 : index
    %c0_3 = arith.constant 0 : index
    %4 = vector.load %arg2[%c0_2, %c0_3] : memref<2304x128xbf16, #tpu.memory_space<vmem>>, vector<2304x128xbf16>
    %cst = arith.constant dense<0.000000e+00> : vector<8x128xf32>
    %5 = tpu.matmul %3, %4, %cst {dimension_numbers = #tpu.dot_dimension_numbers<[1], [0], [0], [1], [0, 0, 1, 1], [], []>} : vector<8x2304xbf16>, vector<2304x128xbf16>, vector<8x128xf32> -> vector<8x128xf32>
    %c0_4 = arith.constant 0 : index
    %c0_5 = arith.constant 0 : index
    %6 = vector.load %arg3[%c0_4, %c0_5] : memref<8x128xf32, #tpu.memory_space<vmem>>, vector<8x128xf32>
    tpu.vector_store %arg3[%c0_4, %c0_5], %5 {strides = array<i32>} : memref<8x128xf32, #tpu.memory_space<vmem>>, vector<8x128xf32>,
    %c0_6 = arith.constant 0 : index
    %c0_7 = arith.constant 0 : index
    %7 = vector.load %arg4[%c0_6, %c0_7] : memref<2x128xf32, #tpu.memory_space<vmem>>, vector<1x128xf32>
    %cst_8 = arith.constant dense<0.000000e+00> : vector<128xf32>
    %8 = vector.multi_reduction <add>, %5, %cst_8 [0] : vector<8x128xf32> to vector<128xf32>
    %9 = vector.shape_cast %8 : vector<128xf32> to vector<1x128xf32>
    %10 = arith.addf %7, %9 : vector<1x128xf32>
    %c0_9 = arith.constant 0 : index
    %c0_10 = arith.constant 0 : index
    %11 = vector.load %arg4[%c0_9, %c0_10] : memref<2x128xf32, #tpu.memory_space<vmem>>, vector<1x128xf32>
    tpu.vector_store %arg4[%c0_9, %c0_10], %10 {strides = array<i32>} : memref<2x128xf32, #tpu.memory_space<vmem>>, vector<1x128xf32>,
    %c1 = arith.constant 1 : index
    %c0_11 = arith.constant 0 : index
    %12 = vector.load %arg4[%c1, %c0_11] : memref<2x128xf32, #tpu.memory_space<vmem>>, vector<1x128xf32>
    %13 = arith.mulf %5, %5 : vector<8x128xf32>
    %cst_12 = arith.constant dense<0.000000e+00> : vector<128xf32>
    %14 = vector.multi_reduction <add>, %13, %cst_12 [0] : vector<8x128xf32> to vector<128xf32>
    %15 = vector.shape_cast %14 : vector<128xf32> to vector<1x128xf32>
    %16 = arith.addf %12, %15 : vector<1x128xf32>
    %c1_13 = arith.constant 1 : index
    %c0_14 = arith.constant 0 : index
    %17 = vector.load %arg4[%c1_13, %c0_14] : memref<2x128xf32, #tpu.memory_space<vmem>>, vector<1x128xf32>
    tpu.vector_store %arg4[%c1_13, %c0_14], %16 {strides = array<i32>} : memref<2x128xf32, #tpu.memory_space<vmem>>, vector<1x128xf32>,
    return
  }
  func.func @transform_0(%arg0: i32) -> (i32, i32) {
    %c0_i32 = arith.constant 0 : i32
    %c0_i32_0 = arith.constant 0 : i32
    return %arg0, %c0_i32 : i32, i32
  }
  func.func @transform_1(%arg0: i32) -> (i32, i32) {
    %c0_i32 = arith.constant 0 : i32
    %c0_i32_0 = arith.constant 0 : i32
    %c0_i32_1 = arith.constant 0 : i32
    return %c0_i32, %c0_i32_0 : i32, i32
  }
  func.func @transform_2(%arg0: i32) -> (i32, i32) {
    %c0_i32 = arith.constant 0 : i32
    %c0_i32_0 = arith.constant 0 : i32
    return %arg0, %c0_i32 : i32, i32
  }
  func.func @transform_3(%arg0: i32) -> (i32, i32) {
    %c0_i32 = arith.constant 0 : i32
    %c0_i32_0 = arith.constant 0 : i32
    %c0_i32_1 = arith.constant 0 : i32
    return %c0_i32, %c0_i32_0 : i32, i32
  }
}

module attributes {stable_mosaic.version = 11 : i64} {
  func.func @head_kernel(%arg0: memref<2x4x128xbf16, #tpu.memory_space<vmem>>, %arg1: memref<128x128xbf16, #tpu.memory_space<vmem>>, %arg2: memref<2x128xf32, #tpu.memory_space<vmem>>) attributes {dimension_semantics = [], scalar_prefetch = 0 : i64, scratch_operands = 0 : i64, tpu.core_type = #tpu.core_type<tc>} {
    %c0 = arith.constant 0 : index
    %c0_0 = arith.constant 0 : index
    %c0_1 = arith.constant 0 : index
    %0 = vector.load %arg0[%c0, %c0_0, %c0_1] : memref<2x4x128xbf16, #tpu.memory_space<vmem>>, vector<2x4x128xbf16>
    %cst = arith.constant dense<0xFF80> : vector<2x128xbf16>
    %1 = vector.multi_reduction <maximumf>, %0, %cst [1] : vector<2x4x128xbf16> to vector<2x128xbf16>
    %c0_2 = arith.constant 0 : index
    %c0_3 = arith.constant 0 : index
    %2 = vector.load %arg1[%c0_2, %c0_3] : memref<128x128xbf16, #tpu.memory_space<vmem>>, vector<128x128xbf16>
    %cst_4 = arith.constant dense<0.000000e+00> : vector<2x128xf32>
    %3 = tpu.matmul %1, %2, %cst_4 {dimension_numbers = #tpu.dot_dimension_numbers<[1], [0], [0], [1], [0, 0, 1, 1], [], []>} : vector<2x128xbf16>, vector<128x128xbf16>, vector<2x128xf32> -> vector<2x128xf32>
    %c0_5 = arith.constant 0 : index
    %c0_6 = arith.constant 0 : index
    %4 = vector.load %arg2[%c0_5, %c0_6] : memref<2x128xf32, #tpu.memory_space<vmem>>, vector<2x128xf32>
    tpu.vector_store %arg2[%c0_5, %c0_6], %3 {strides = array<i32>} : memref<2x128xf32, #tpu.memory_space<vmem>>, vector<2x128xf32>,
    return
  }
}

module attributes {stable_mosaic.version = 11 : i64} {
  func.func @bn_relu_kernel(%arg0: i32, %arg1: memref<8x128xf32, #tpu.memory_space<vmem>>, %arg2: memref<2x128xf32, #tpu.memory_space<vmem>>, %arg3: memref<2x128xf32, #tpu.memory_space<vmem>>, %arg4: memref<8x128xbf16, #tpu.memory_space<vmem>>) attributes {dimension_semantics = [#tpu.dimension_semantics<parallel>], iteration_bounds = array<i64: 1>, scalar_prefetch = 0 : i64, scratch_operands = 0 : i64, tpu.core_type = #tpu.core_type<tc>, window_params = [{transform_indices = @transform_0, window_bounds = array<i64: 8, 128>}, {pipeline_mode = #tpu.pipeline_mode<synchronous>, transform_indices = @transform_1, window_bounds = array<i64: 2, 128>}, {pipeline_mode = #tpu.pipeline_mode<synchronous>, transform_indices = @transform_2, window_bounds = array<i64: 2, 128>}, {transform_indices = @transform_3, window_bounds = array<i64: 8, 128>}]} {
    %c0 = arith.constant 0 : index
    %c0_0 = arith.constant 0 : index
    %0 = vector.load %arg1[%c0, %c0_0] : memref<8x128xf32, #tpu.memory_space<vmem>>, vector<8x128xf32>
    %c0_1 = arith.constant 0 : index
    %c0_2 = arith.constant 0 : index
    %1 = vector.load %arg2[%c0_1, %c0_2] : memref<2x128xf32, #tpu.memory_space<vmem>>, vector<1x128xf32>
    %cst = arith.constant 1.250000e-01 : f32
    %2 = vector.broadcast %cst : f32 to vector<1x128xf32>
    %3 = arith.mulf %1, %2 : vector<1x128xf32>
    %c1 = arith.constant 1 : index
    %c0_3 = arith.constant 0 : index
    %4 = vector.load %arg2[%c1, %c0_3] : memref<2x128xf32, #tpu.memory_space<vmem>>, vector<1x128xf32>
    %cst_4 = arith.constant 1.250000e-01 : f32
    %5 = vector.broadcast %cst_4 : f32 to vector<1x128xf32>
    %6 = arith.mulf %4, %5 : vector<1x128xf32>
    %7 = arith.mulf %3, %3 : vector<1x128xf32>
    %8 = arith.subf %6, %7 : vector<1x128xf32>
    %c0_5 = arith.constant 0 : index
    %c0_6 = arith.constant 0 : index
    %9 = vector.load %arg3[%c0_5, %c0_6] : memref<2x128xf32, #tpu.memory_space<vmem>>, vector<1x128xf32>
    %cst_7 = arith.constant 9.99999974E-6 : f32
    %10 = vector.broadcast %cst_7 : f32 to vector<1x128xf32>
    %11 = arith.addf %8, %10 : vector<1x128xf32>
    %12 = math.rsqrt %11 : vector<1x128xf32>
    %13 = arith.mulf %9, %12 : vector<1x128xf32>
    %c1_8 = arith.constant 1 : index
    %c0_9 = arith.constant 0 : index
    %14 = vector.load %arg3[%c1_8, %c0_9] : memref<2x128xf32, #tpu.memory_space<vmem>>, vector<1x128xf32>
    %15 = arith.mulf %3, %13 : vector<1x128xf32>
    %16 = arith.subf %14, %15 : vector<1x128xf32>
    %17 = vector.broadcast %13 : vector<1x128xf32> to vector<8x128xf32>
    %18 = arith.mulf %0, %17 : vector<8x128xf32>
    %19 = vector.broadcast %16 : vector<1x128xf32> to vector<8x128xf32>
    %20 = arith.addf %18, %19 : vector<8x128xf32>
    %cst_10 = arith.constant 0.000000e+00 : f32
    %21 = vector.broadcast %cst_10 : f32 to vector<8x128xf32>
    %22 = arith.maximumf %20, %21 : vector<8x128xf32>
    %23 = arith.truncf %22 : vector<8x128xf32> to vector<8x128xbf16>
    %c0_11 = arith.constant 0 : index
    %c0_12 = arith.constant 0 : index
    %24 = vector.load %arg4[%c0_11, %c0_12] : memref<8x128xbf16, #tpu.memory_space<vmem>>, vector<8x128xbf16>
    tpu.vector_store %arg4[%c0_11, %c0_12], %23 {strides = array<i32>} : memref<8x128xbf16, #tpu.memory_space<vmem>>, vector<8x128xbf16>,
    return
  }
  func.func @transform_0(%arg0: i32) -> (i32, i32) {
    %c0_i32 = arith.constant 0 : i32
    %c0_i32_0 = arith.constant 0 : i32
    return %arg0, %c0_i32 : i32, i32
  }
  func.func @transform_1(%arg0: i32) -> (i32, i32) {
    %c0_i32 = arith.constant 0 : i32
    %c0_i32_0 = arith.constant 0 : i32
    %c0_i32_1 = arith.constant 0 : i32
    return %c0_i32, %c0_i32_0 : i32, i32
  }
  func.func @transform_2(%arg0: i32) -> (i32, i32) {
    %c0_i32 = arith.constant 0 : i32
    %c0_i32_0 = arith.constant 0 : i32
    %c0_i32_1 = arith.constant 0 : i32
    return %c0_i32, %c0_i32_0 : i32, i32
  }
  func.func @transform_3(%arg0: i32) -> (i32, i32) {
    %c0_i32 = arith.constant 0 : i32
    %c0_i32_0 = arith.constant 0 : i32
    return %arg0, %c0_i32 : i32, i32
  }
}

</mosaic_0001>

<llo_original>
// kernel: simp_resnet9_k33.23
$region0: #{simp_resnet9_k33.23}
  #allocation0 [shape = 'u32[]', space=smem, size = 0x4, offset = 0x4, fixed_abs, tag = 'smem constant byte address 0x4 - core index']
  #allocation1 [shape = 'u32[72,128]{1,0:T(1,128)}', space=vmem, size = 0x9000, scoped, tag = 'internal scratch']
  %s0 = inlined_call_operand.vmem [shape: f32[512,128], index: 0, kind: input, shape index: {}]
  %s1 = inlined_call_operand.vmem [shape: f32[2,128], index: 1, kind: input, shape index: {}]
  %s2 = inlined_call_operand.vmem [shape: f32[2,128], index: 2, kind: input, shape index: {}]
  %s3 = inlined_call_operand.vmem [shape: bf16[512,128], index: 3, kind: output, shape index: {}]
  %s4 = sld [smem:[#allocation0]]
  $region45: #{simp_resnet9_k33.23} parent=0
    _
  %s6 = ssub.s32 1, %s4
  %s7 = scalar_select 0, %s6, %s4
  loop: start=0, step=1, limit=4
  $region2: #{simp_resnet9_k33.23} parent=0 // loop_pre_header
    _
  $region3: #{simp_resnet9_k33.23} parent=0 // loop_header
    %s9 = sphi 0, %s13
    %p10 = scmp.ge.s32.totalorder %s9, 4
    %s19 = sphi 0, %s21
    %s22 = sphi 0, %s19
    %s23 = sphi 0, %s22
    %s39 = sphi 0, %s23
    %s43 = sphi 0, %s43
    %s45 = sphi 0, %s43
    %s46 = sphi 0, %s45
    %s60 = sphi 0, %s46
    %s64 = sphi 0, %s64
    %s66 = sphi 0, %s64
    %s67 = sphi 0, %s66
    %s81 = sphi 0, %s67
    %s87 = sphi 0, %s89
    %s90 = sphi 0, %s87
    %s91 = sphi 0, %s90
    %s107 = sphi 0, %s91
  $region4: #{simp_resnet9_k33.23} parent=0 // loop_header_branch
    %12 = sbr.rel (%p10) target = $region8
  $region5: #{simp_resnet9_k33.23} parent=0 // loop_body
    %s14 = ssub.s32 %s9, 1
    %s15 = ssub.s32 %s9, 2
    %s16 = sadd.s32 %s9, 1
    %s17 = ssub.s32 %s9, %s16
    %p18 = scmp.eq.s32.totalorder %s17, 0
    %s20 = sadd.s32 %s19, 1
    %s21 = scalar_select %p18, %s19, %s20
    %p24 = pneg %p18
    %p25 = scmp.eq.s32.totalorder %s9, 1
    %p26 = por %p24, %p25
    %p27 = scmp.ne.s32.totalorder %s19, %s22
    %p28 = scmp.eq.s32.totalorder %s9, 0
    %p29 = por %p27, %p28
    %p30 = scmp.ne.s32.totalorder %s19, %s22
    %p31 = scmp.eq.s32.totalorder %s14, 1
    %p32 = por %p30, %p31
    %p33 = scmp.ne.s32.totalorder %s22, %s23
    %p34 = scmp.eq.s32.totalorder %s14, 0
    %p35 = por %p33, %p34
    %p36 = scmp.ne.s32.totalorder %s22, %s23
    %p37 = scmp.eq.s32.totalorder %s15, 1
    %p38 = por %p36, %p37
    %p40 = scmp.ne.s32.totalorder %s23, %s39
    %p41 = scmp.eq.s32.totalorder %s15, 0
    %p42 = por %p40, %p41
    %s44 = sadd.s32 %s43, 1
    %p47 = scmp.eq.s32.totalorder %s9, 1
    %p48 = scmp.ne.s32.totalorder %s43, %s45
    %p49 = scmp.eq.s32.totalorder %s9, 0
    %p50 = por %p48, %p49
    %p51 = scmp.ne.s32.totalorder %s43, %s45
    %p52 = scmp.eq.s32.totalorder %s14, 1
    %p53 = por %p51, %p52
    %p54 = scmp.ne.s32.totalorder %s45, %s46
    %p55 = scmp.eq.s32.totalorder %s14, 0
    %p56 = por %p54, %p55
    %p57 = scmp.ne.s32.totalorder %s45, %s46
    %p58 = scmp.eq.s32.totalorder %s15, 1
    %p59 = por %p57, %p58
    %p61 = scmp.ne.s32.totalorder %s46, %s60
    %p62 = scmp.eq.s32.totalorder %s15, 0
    %p63 = por %p61, %p62
    %s65 = sadd.s32 %s64, 1
    %p68 = scmp.eq.s32.totalorder %s9, 1
    %p69 = scmp.ne.s32.totalorder %s64, %s66
    %p70 = scmp.eq.s32.totalorder %s9, 0
    %p71 = por %p69, %p70
    %p72 = scmp.ne.s32.totalorder %s64, %s66
    %p73 = scmp.eq.s32.totalorder %s14, 1
    %p74 = por %p72, %p73
    %p75 = scmp.ne.s32.totalorder %s66, %s67
    %p76 = scmp.eq.s32.totalorder %s14, 0
    %p77 = por %p75, %p76
    %p78 = scmp.ne.s32.totalorder %s66, %s67
    %p79 = scmp.eq.s32.totalorder %s15, 1
    %p80 = por %p78, %p79
    %p82 = scmp.ne.s32.totalorder %s67, %s81
    %p83 = scmp.eq.s32.totalorder %s15, 0
    %p84 = por %p82, %p83
    %s85 = ssub.s32 %s9, %s16
    %p86 = scmp.eq.s32.totalorder %s85, 0
    %s88 = sadd.s32 %s87, 1
    %s89 = scalar_select %p86, %s87, %s88
    %p92 = pneg %p86
    %p93 = scmp.eq.s32.totalorder %s9, 1
    %p94 = por %p92, %p93
    %p95 = scmp.ne.s32.totalorder %s87, %s90
    %p96 = scmp.eq.s32.totalorder %s9, 0
    %p97 = por %p95, %p96
    %p98 = scmp.ne.s32.totalorder %s87, %s90
    %p99 = scmp.eq.s32.totalorder %s14, 1
    %p100 = por %p98, %p99
    %p101 = scmp.ne.s32.totalorder %s90, %s91
    %p102 = scmp.eq.s32.totalorder %s14, 0
    %p103 = por %p101, %p102
    %p104 = scmp.ne.s32.totalorder %s90, %s91
    %p105 = scmp.eq.s32.totalorder %s15, 1
    %p106 = por %p104, %p105
    %p108 = scmp.ne.s32.totalorder %s91, %s107
    %p109 = scmp.eq.s32.totalorder %s15, 0
    %p110 = por %p108, %p109
    %p111 = scmp.le.s32.totalorder 1, %s9
    %p112 = scmp.lt.s32.totalorder %s9, 3
    %p113 = pnand %p111, %p112
    %p114 = pneg %p113
    // Predicated region
    $region9: #{simp_resnet9_k33.23} parent=5 // pred_check
      _
    $region10: #{simp_resnet9_k33.23} parent=5 // pred_check_branch
      %116 = sbr.rel (%p113) target = $region12
    $region11: #{simp_resnet9_k33.23} parent=5 // pred_region
      %s117 = ssub.s32 %s9, 1
      // Predicated region
      $region13: #{simp_resnet9_k33.23} parent=11 // pred_check
        %p118 = pneg %p56
      $region14: #{simp_resnet9_k33.23} parent=11 // pred_check_branch
        %120 = sbr.rel (%p118) target = $region16
      $region15: #{simp_resnet9_k33.23} parent=11 // pred_region
        _
      $region16: #{simp_resnet9_k33.23} parent=11 // pred_fallthru
        _
      // Predicated region
      $region17: #{simp_resnet9_k33.23} parent=11 // pred_check
        %p121 = pneg %p77
      $region18: #{simp_resnet9_k33.23} parent=11 // pred_check_branch
        %123 = sbr.rel (%p121) target = $region20
      $region19: #{simp_resnet9_k33.23} parent=11 // pred_region
        _
      $region20: #{simp_resnet9_k33.23} parent=11 // pred_fallthru
        _
    $region12: #{simp_resnet9_k33.23} parent=5 // pred_fallthru
      _
    %p124 = scmp.lt.s32.totalorder %s9, 2
    // Predicated region
    $region21: #{simp_resnet9_k33.23} parent=5 // pred_check
      %p125 = pneg %p124
    $region22: #{simp_resnet9_k33.23} parent=5 // pred_check_branch
      %127 = sbr.rel (%p125) target = $region24
    $region23: #{simp_resnet9_k33.23} parent=5 // pred_region
      // Predicated region
      $region25: #{simp_resnet9_k33.23} parent=23 // pred_check
        %p128 = pneg %p29
      $region26: #{simp_resnet9_k33.23} parent=23 // pred_check_branch
        %130 = sbr.rel (%p128) target = $region28
      $region27: #{simp_resnet9_k33.23} parent=23 // pred_region
        %s131 = smul.u32 32, %s9
        %p132 = scmp.lt.s32.totalorder %s131, 63
        %s133 = scalar_select %p132, %s131, 63
        %s134 = smul.addr %s133, 8
        %s135 = scalar_lea.vmem %s0, %s134
        %s136 = smul.u32 32, %s9
      $region28: #{simp_resnet9_k33.23} parent=23 // pred_fallthru
        _
    $region24: #{simp_resnet9_k33.23} parent=5 // pred_fallthru
      _
    %p137 = scmp.le.s32.totalorder 1, %s9
    %p138 = scmp.lt.s32.totalorder %s9, 3
    %p139 = pnand %p137, %p138
    %p140 = pneg %p139
    // Predicated region
    $region29: #{simp_resnet9_k33.23} parent=5 // pred_check
      _
    $region30: #{simp_resnet9_k33.23} parent=5 // pred_check_branch
      %142 = sbr.rel (%p139) target = $region32
    $region31: #{simp_resnet9_k33.23} parent=5 // pred_region
      %s143 = ssub.s32 %s9, 1
      %s144 = smul.u32 32, %s14
      %p145 = scmp.lt.s32.totalorder %s144, 63
      %s146 = scalar_select %p145, %s144, 63
      %s147 = smul.addr %s146, 8
      %s148 = scalar_lea.vmem %s0, %s147
      %p149 = pneg %p35
      %p150 = pneg %p32
      %p151 = pneg %p56
      %p152 = pneg %p53
      %p153 = pneg %p77
      %p154 = pneg %p74
      %p155 = pneg %p103
      %p156 = pneg %p100
      %s157 = smul.u32 32, %s14
      %p158 = scmp.lt.s32.totalorder %s157, 63
      %s159 = scalar_select %p158, %s157, 63
      %s160 = smul.addr %s159, 4
      %s161 = scalar_lea.vmem %s3, %s160
      %s162 = smul.u32 32, %s14
      %p163 = scmp.lt.s32.totalorder %s162, 63
      %s164 = scalar_select %p163, %s162, 63
      %s165 = smul.addr %s164, 8
      %s166 = scalar_lea.vmem %s0, %s165
      %s167 = smul.u32 32, %s14
      %s168 = smul.u32 32, %s14
      %p169 = scmp.lt.s32.totalorder %s168, 63
      %s170 = scalar_select %p169, %s168, 63
      %s171 = smul.addr %s170, 4
      %s172 = scalar_lea.vmem %s3, %s171
      %s173 = smul.u32 32, %s14
      %v174 = vld [vmem:[%s166] sm:$0xff]
      %v175 = vld [vmem:[%s166 + $0x8] sm:$0xff]
      %v176 = vld [vmem:[%s166 + $0x10] sm:$0xff]
      %v177 = vld [vmem:[%s166 + $0x18] sm:$0xff]
      %v178 = vld [vmem:[%s166 + $0x20] sm:$0xff]
      %v179 = vld [vmem:[%s166 + $0x28] sm:$0xff]
      %v180 = vld [vmem:[%s166 + $0x30] sm:$0xff]
      %v181 = vld [vmem:[%s166 + $0x38] sm:$0xff]
      %v182 = vld [vmem:[%s166 + $0x40] sm:$0xff]
      %v183 = vld [vmem:[%s166 + $0x48] sm:$0xff]
      %v184 = vld [vmem:[%s166 + $0x50] sm:$0xff]
      %v185 = vld [vmem:[%s166 + $0x58] sm:$0xff]
      %v186 = vld [vmem:[%s166 + $0x60] sm:$0xff]
      %v187 = vld [vmem:[%s166 + $0x68] sm:$0xff]
      %v188 = vld [vmem:[%s166 + $0x70] sm:$0xff]
      %v189 = vld [vmem:[%s166 + $0x78] sm:$0xff]
      %v190 = vld [vmem:[%s166 + $0x80] sm:$0xff]
      %v191 = vld [vmem:[%s166 + $0x88] sm:$0xff]
      %v192 = vld [vmem:[%s166 + $0x90] sm:$0xff]
      %v193 = vld [vmem:[%s166 + $0x98] sm:$0xff]
      %v194 = vld [vmem:[%s166 + $0xa0] sm:$0xff]
      %v195 = vld [vmem:[%s166 + $0xa8] sm:$0xff]
      %v196 = vld [vmem:[%s166 + $0xb0] sm:$0xff]
      %v197 = vld [vmem:[%s166 + $0xb8] sm:$0xff]
      %v198 = vld [vmem:[%s166 + $0xc0] sm:$0xff]
      %v199 = vld [vmem:[%s166 + $0xc8] sm:$0xff]
      %v200 = vld [vmem:[%s166 + $0xd0] sm:$0xff]
      %v201 = vld [vmem:[%s166 + $0xd8] sm:$0xff]
      %v202 = vld [vmem:[%s166 + $0xe0] sm:$0xff]
      %v203 = vld [vmem:[%s166 + $0xe8] sm:$0xff]
      %v204 = vld [vmem:[%s166 + $0xf0] sm:$0xff]
      %v205 = vld [vmem:[%s166 + $0xf8] sm:$0xff]
      %v206 = vld [vmem:[%s1] sm:$0x1]
      %v207 = vmul.f32 %v206, 0.001953125
      %v208 = vld [vmem:[%s1 + $0x1] sm:$0x1]
      %v209 = vmul.f32 %v208, 0.001953125
      %v210 = vmul.f32 %v207, %v207
      %v211 = vsub.f32 %v209, %v210
      %v212 = vld [vmem:[%s2] sm:$0x1]
      %v213 = vadd.f32 %v211, 1e-05
      %v214 = vrsqrt.pop %v213
      %v215 = vmul.f32 %v214, %v213
      %v216 = vmul.f32 %v215, %v214
      %v217 = vmul.f32 0.5, %v216
      %v218 = vsub.f32 1.5, %v217
      %v219 = vmul.f32 %v214, %v218
      %vm220 = vweird.f32 %v213
      %vm221 = vweird.f32 %v214
      %vm222 = vmor %vm220, %vm221
      %v223 = vsel %vm222, %v214, %v219
      %v224 = vmul.f32 %v212, %v223
      %v225 = vld [vmem:[%s2 + $0x1] sm:$0x1]
      %v226 = vmul.f32 %v207, %v224
      %v227 = vsub.f32 %v225, %v226
      %v228 = vperm.slane %v224, 0
      %v229 = vmul.f32 %v174, %v228
      %v230 = vmul.f32 %v175, %v228
      %v231 = vmul.f32 %v176, %v228
      %v232 = vmul.f32 %v177, %v228
      %v233 = vmul.f32 %v178, %v228
      %v234 = vmul.f32 %v179, %v228
      %v235 = vmul.f32 %v180, %v228
      %v236 = vmul.f32 %v181, %v228
      %v237 = vmul.f32 %v182, %v228
      %v238 = vmul.f32 %v183, %v228
      %v239 = vmul.f32 %v184, %v228
      %v240 = vmul.f32 %v185, %v228
      %v241 = vmul.f32 %v186, %v228
      %v242 = vmul.f32 %v187, %v228
      %v243 = vmul.f32 %v188, %v228
      %v244 = vmul.f32 %v189, %v228
      %v245 = vmul.f32 %v190, %v228
      %v246 = vmul.f32 %v191, %v228
      %v247 = vmul.f32 %v192, %v228
      %v248 = vmul.f32 %v193, %v228
      %v249 = vmul.f32 %v194, %v228
      %v250 = vmul.f32 %v195, %v228
      %v251 = vmul.f32 %v196, %v228
      %v252 = vmul.f32 %v197, %v228
      %v253 = vmul.f32 %v198, %v228
      %v254 = vmul.f32 %v199, %v228
      %v255 = vmul.f32 %v200, %v228
      %v256 = vmul.f32 %v201, %v228
      %v257 = vmul.f32 %v202, %v228
      %v258 = vmul.f32 %v203, %v228
      %v259 = vmul.f32 %v204, %v228
      %v260 = vmul.f32 %v205, %v228
      %v261 = vperm.slane %v227, 0
      %v262 = vadd.f32 %v229, %v261
      %v263 = vadd.f32 %v230, %v261
      %v264 = vadd.f32 %v231, %v261
      %v265 = vadd.f32 %v232, %v261
      %v266 = vadd.f32 %v233, %v261
      %v267 = vadd.f32 %v234, %v261
      %v268 = vadd.f32 %v235, %v261
      %v269 = vadd.f32 %v236, %v261
      %v270 = vadd.f32 %v237, %v261
      %v271 = vadd.f32 %v238, %v261
      %v272 = vadd.f32 %v239, %v261
      %v273 = vadd.f32 %v240, %v261
      %v274 = vadd.f32 %v241, %v261
      %v275 = vadd.f32 %v242, %v261
      %v276 = vadd.f32 %v243, %v261
      %v277 = vadd.f32 %v244, %v261
      %v278 = vadd.f32 %v245, %v261
      %v279 = vadd.f32 %v246, %v261
      %v280 = vadd.f32 %v247, %v261
      %v281 = vadd.f32 %v248, %v261
      %v282 = vadd.f32 %v249, %v261
      %v283 = vadd.f32 %v250, %v261
      %v284 = vadd.f32 %v251, %v261
      %v285 = vadd.f32 %v252, %v261
      %v286 = vadd.f32 %v253, %v261
      %v287 = vadd.f32 %v254, %v261
      %v288 = vadd.f32 %v255, %v261
      %v289 = vadd.f32 %v256, %v261
      %v290 = vadd.f32 %v257, %v261
      %v291 = vadd.f32 %v258, %v261
      %v292 = vadd.f32 %v259, %v261
      %v293 = vadd.f32 %v260, %v261
      %v294 = vmax.f32 %v262, 0.0
      %v295 = vmax.f32 %v263, 0.0
      %v296 = vmax.f32 %v264, 0.0
      %v297 = vmax.f32 %v265, 0.0
      %v298 = vmax.f32 %v266, 0.0
      %v299 = vmax.f32 %v267, 0.0
      %v300 = vmax.f32 %v268, 0.0
      %v301 = vmax.f32 %v269, 0.0
      %v302 = vmax.f32 %v270, 0.0
      %v303 = vmax.f32 %v271, 0.0
      %v304 = vmax.f32 %v272, 0.0
      %v305 = vmax.f32 %v273, 0.0
      %v306 = vmax.f32 %v274, 0.0
      %v307 = vmax.f32 %v275, 0.0
      %v308 = vmax.f32 %v276, 0.0
      %v309 = vmax.f32 %v277, 0.0
      %v310 = vmax.f32 %v278, 0.0
      %v311 = vmax.f32 %v279, 0.0
      %v312 = vmax.f32 %v280, 0.0
      %v313 = vmax.f32 %v281, 0.0
      %v314 = vmax.f32 %v282, 0.0
      %v315 = vmax.f32 %v283, 0.0
      %v316 = vmax.f32 %v284, 0.0
      %v317 = vmax.f32 %v285, 0.0
      %v318 = vmax.f32 %v286, 0.0
      %v319 = vmax.f32 %v287, 0.0
      %v320 = vmax.f32 %v288, 0.0
      %v321 = vmax.f32 %v289, 0.0
      %v322 = vmax.f32 %v290, 0.0
      %v323 = vmax.f32 %v291, 0.0
      %v324 = vmax.f32 %v292, 0.0
      %v325 = vmax.f32 %v293, 0.0
      %v326 = vpack.c.bf16 %v294, %v294
      %v327 = vpack.c.bf16 %v295, %v295
      %v328 = vpack.c.bf16 %v296, %v296
      %v329 = vpack.c.bf16 %v297, %v297
      %v330 = vpack.c.bf16 %v298, %v298
      %v331 = vpack.c.bf16 %v299, %v299
      %v332 = vpack.c.bf16 %v300, %v300
      %v333 = vpack.c.bf16 %v301, %v301
      %v334 = vpack.c.bf16 %v302, %v302
      %v335 = vpack.c.bf16 %v303, %v303
      %v336 = vpack.c.bf16 %v304, %v304
      %v337 = vpack.c.bf16 %v305, %v305
      %v338 = vpack.c.bf16 %v306, %v306
      %v339 = vpack.c.bf16 %v307, %v307
      %v340 = vpack.c.bf16 %v308, %v308
      %v341 = vpack.c.bf16 %v309, %v309
      %v342 = vpack.c.bf16 %v310, %v310
      %v343 = vpack.c.bf16 %v311, %v311
      %v344 = vpack.c.bf16 %v312, %v312
      %v345 = vpack.c.bf16 %v313, %v313
      %v346 = vpack.c.bf16 %v314, %v314
      %v347 = vpack.c.bf16 %v315, %v315
      %v348 = vpack.c.bf16 %v316, %v316
      %v349 = vpack.c.bf16 %v317, %v317
      %v350 = vpack.c.bf16 %v318, %v318
      %v351 = vpack.c.bf16 %v319, %v319
      %v352 = vpack.c.bf16 %v320, %v320
      %v353 = vpack.c.bf16 %v321, %v321
      %v354 = vpack.c.bf16 %v322, %v322
      %v355 = vpack.c.bf16 %v323, %v323
      %v356 = vpack.c.bf16 %v324, %v324
      %v357 = vpack.c.bf16 %v325, %v325
      %358 = vst [vmem:[%s172] sm:$0xf] %v326
      %359 = vst [vmem:[%s172 + $0x4] sm:$0xf] %v327
      %360 = vst [vmem:[%s172 + $0x8] sm:$0xf] %v328
      %361 = vst [vmem:[%s172 + $0xc] sm:$0xf] %v329
      %362 = vst [vmem:[%s172 + $0x10] sm:$0xf] %v330
      %363 = vst [vmem:[%s172 + $0x14] sm:$0xf] %v331
      %364 = vst [vmem:[%s172 + $0x18] sm:$0xf] %v332
      %365 = vst [vmem:[%s172 + $0x1c] sm:$0xf] %v333
      %366 = vst [vmem:[%s172 + $0x20] sm:$0xf] %v334
      %367 = vst [vmem:[%s172 + $0x24] sm:$0xf] %v335
      %368 = vst [vmem:[%s172 + $0x28] sm:$0xf] %v336
      %369 = vst [vmem:[%s172 + $0x2c] sm:$0xf] %v337
      %370 = vst [vmem:[%s172 + $0x30] sm:$0xf] %v338
      %371 = vst [vmem:[%s172 + $0x34] sm:$0xf] %v339
      %372 = vst [vmem:[%s172 + $0x38] sm:$0xf] %v340
      %373 = vst [vmem:[%s172 + $0x3c] sm:$0xf] %v341
      %374 = vst [vmem:[%s172 + $0x40] sm:$0xf] %v342
      %375 = vst [vmem:[%s172 + $0x44] sm:$0xf] %v343
      %376 = vst [vmem:[%s172 + $0x48] sm:$0xf] %v344
      %377 = vst [vmem:[%s172 + $0x4c] sm:$0xf] %v345
      %378 = vst [vmem:[%s172 + $0x50] sm:$0xf] %v346
      %379 = vst [vmem:[%s172 + $0x54] sm:$0xf] %v347
      %380 = vst [vmem:[%s172 + $0x58] sm:$0xf] %v348
      %381 = vst [vmem:[%s172 + $0x5c] sm:$0xf] %v349
      %382 = vst [vmem:[%s172 + $0x60] sm:$0xf] %v350
      %383 = vst [vmem:[%s172 + $0x64] sm:$0xf] %v351
      %384 = vst [vmem:[%s172 + $0x68] sm:$0xf] %v352
      %385 = vst [vmem:[%s172 + $0x6c] sm:$0xf] %v353
      %386 = vst [vmem:[%s172 + $0x70] sm:$0xf] %v354
      %387 = vst [vmem:[%s172 + $0x74] sm:$0xf] %v355
      %388 = vst [vmem:[%s172 + $0x78] sm:$0xf] %v356
      %389 = vst [vmem:[%s172 + $0x7c] sm:$0xf] %v357
      %s390 = smul.u32 32, %s14
      %p391 = scmp.lt.s32.totalorder %s390, 63
      %s392 = scalar_select %p391, %s390, 63
      %s393 = smul.addr %s392, 4
      %s394 = scalar_lea.vmem %s3, %s393
      // Predicated region
      $region33: #{simp_resnet9_k33.23} parent=31 // pred_check
        %p395 = pneg %p100
      $region34: #{simp_resnet9_k33.23} parent=31 // pred_check_branch
        %397 = sbr.rel (%p395) target = $region36
      $region35: #{simp_resnet9_k33.23} parent=31 // pred_region
        %s398 = smul.u32 32, %s14
      $region36: #{simp_resnet9_k33.23} parent=31 // pred_fallthru
        _
    $region32: #{simp_resnet9_k33.23} parent=5 // pred_fallthru
      _
    %p399 = scmp.le.s32.totalorder 2, %s9
    // Predicated region
    $region37: #{simp_resnet9_k33.23} parent=5 // pred_check
      %p400 = pneg %p399
    $region38: #{simp_resnet9_k33.23} parent=5 // pred_check_branch
      %402 = sbr.rel (%p400) target = $region40
    $region39: #{simp_resnet9_k33.23} parent=5 // pred_region
      %s403 = ssub.s32 %s9, 2
      // Predicated region
      $region41: #{simp_resnet9_k33.23} parent=39 // pred_check
        %p404 = pneg %p106
      $region42: #{simp_resnet9_k33.23} parent=39 // pred_check_branch
        %406 = sbr.rel (%p404) target = $region44
      $region43: #{simp_resnet9_k33.23} parent=39 // pred_region
        %s407 = smul.u32 32, %s15
        %p408 = scmp.lt.s32.totalorder %s407, 63
        %s409 = scalar_select %p408, %s407, 63
        %s410 = smul.addr %s409, 4
        %s411 = scalar_lea.vmem %s3, %s410
      $region44: #{simp_resnet9_k33.23} parent=39 // pred_fallthru
        _
    $region40: #{simp_resnet9_k33.23} parent=5 // pred_fallthru
      _
  $region6: #{simp_resnet9_k33.23} parent=0 // loop_footer
    %s13 = sadd.s32 1, %s9
  $region7: #{simp_resnet9_k33.23} parent=0 // loop_footer_branch
    %8 = sbr.rel target = $region3
  $region8: #{simp_resnet9_k33.23} parent=0 // loop_exit
    _

// kernel: simp_resnet9_k33.22
$region0: #{simp_resnet9_k33.22}
  #allocation0 [shape = 'u32[]', space=smem, size = 0x4, offset = 0x4, fixed_abs, tag = 'smem constant byte address 0x4 - core index']
  #allocation1 [shape = 'u32[72,128]{1,0:T(1,128)}', space=vmem, size = 0x9000, scoped, tag = 'internal scratch']
  %s0 = inlined_call_operand.vmem [shape: bf16[512,128], index: 0, kind: input, shape index: {}]
  %s1 = inlined_call_operand.vmem [shape: bf16[128,128], index: 1, kind: input, shape index: {}]
  %s2 = inlined_call_operand.vmem [shape: f32[512,128], index: 2, kind: output, shape index: {0}]
  %s3 = inlined_call_operand.vmem [shape: f32[2,128], index: 3, kind: output, shape index: {1}]
  %4 = xla_tuple %s2, %s3
  %s5 = sld [smem:[#allocation0]]
  $region53: #{simp_resnet9_k33.22} parent=0
    _
  %s7 = ssub.s32 1, %s5
  %s8 = scalar_select 0, %s7, %s5
  loop: start=0, step=1, limit=4
  $region2: #{simp_resnet9_k33.22} parent=0 // loop_pre_header
    _
  $region3: #{simp_resnet9_k33.22} parent=0 // loop_header
    %s10 = sphi 0, %s14
    %p11 = scmp.ge.s32.totalorder %s10, 4
    %s20 = sphi 0, %s22
    %s23 = sphi 0, %s20
    %s24 = sphi 0, %s23
    %s40 = sphi 0, %s24
    %s44 = sphi 0, %s44
    %s46 = sphi 0, %s44
    %s47 = sphi 0, %s46
    %s61 = sphi 0, %s47
    %s67 = sphi 0, %s69
    %s70 = sphi 0, %s67
    %s71 = sphi 0, %s70
    %s87 = sphi 0, %s71
    %s91 = sphi 0, %s91
    %s93 = sphi 0, %s91
    %s94 = sphi 0, %s93
    %s108 = sphi 0, %s94
  $region4: #{simp_resnet9_k33.22} parent=0 // loop_header_branch
    %13 = sbr.rel (%p11) target = $region8
  $region5: #{simp_resnet9_k33.22} parent=0 // loop_body
    %s15 = ssub.s32 %s10, 1
    %s16 = ssub.s32 %s10, 2
    %s17 = sadd.s32 %s10, 1
    %s18 = ssub.s32 %s10, %s17
    %p19 = scmp.eq.s32.totalorder %s18, 0
    %s21 = sadd.s32 %s20, 1
    %s22 = scalar_select %p19, %s20, %s21
    %p25 = pneg %p19
    %p26 = scmp.eq.s32.totalorder %s10, 1
    %p27 = por %p25, %p26
    %p28 = scmp.ne.s32.totalorder %s20, %s23
    %p29 = scmp.eq.s32.totalorder %s10, 0
    %p30 = por %p28, %p29
    %p31 = scmp.ne.s32.totalorder %s20, %s23
    %p32 = scmp.eq.s32.totalorder %s15, 1
    %p33 = por %p31, %p32
    %p34 = scmp.ne.s32.totalorder %s23, %s24
    %p35 = scmp.eq.s32.totalorder %s15, 0
    %p36 = por %p34, %p35
    %p37 = scmp.ne.s32.totalorder %s23, %s24
    %p38 = scmp.eq.s32.totalorder %s16, 1
    %p39 = por %p37, %p38
    %p41 = scmp.ne.s32.totalorder %s24, %s40
    %p42 = scmp.eq.s32.totalorder %s16, 0
    %p43 = por %p41, %p42
    %s45 = sadd.s32 %s44, 1
    %p48 = scmp.eq.s32.totalorder %s10, 1
    %p49 = scmp.ne.s32.totalorder %s44, %s46
    %p50 = scmp.eq.s32.totalorder %s10, 0
    %p51 = por %p49, %p50
    %p52 = scmp.ne.s32.totalorder %s44, %s46
    %p53 = scmp.eq.s32.totalorder %s15, 1
    %p54 = por %p52, %p53
    %p55 = scmp.ne.s32.totalorder %s46, %s47
    %p56 = scmp.eq.s32.totalorder %s15, 0
    %p57 = por %p55, %p56
    %p58 = scmp.ne.s32.totalorder %s46, %s47
    %p59 = scmp.eq.s32.totalorder %s16, 1
    %p60 = por %p58, %p59
    %p62 = scmp.ne.s32.totalorder %s47, %s61
    %p63 = scmp.eq.s32.totalorder %s16, 0
    %p64 = por %p62, %p63
    %s65 = ssub.s32 %s10, %s17
    %p66 = scmp.eq.s32.totalorder %s65, 0
    %s68 = sadd.s32 %s67, 1
    %s69 = scalar_select %p66, %s67, %s68
    %p72 = pneg %p66
    %p73 = scmp.eq.s32.totalorder %s10, 1
    %p74 = por %p72, %p73
    %p75 = scmp.ne.s32.totalorder %s67, %s70
    %p76 = scmp.eq.s32.totalorder %s10, 0
    %p77 = por %p75, %p76
    %p78 = scmp.ne.s32.totalorder %s67, %s70
    %p79 = scmp.eq.s32.totalorder %s15, 1
    %p80 = por %p78, %p79
    %p81 = scmp.ne.s32.totalorder %s70, %s71
    %p82 = scmp.eq.s32.totalorder %s15, 0
    %p83 = por %p81, %p82
    %p84 = scmp.ne.s32.totalorder %s70, %s71
    %p85 = scmp.eq.s32.totalorder %s16, 1
    %p86 = por %p84, %p85
    %p88 = scmp.ne.s32.totalorder %s71, %s87
    %p89 = scmp.eq.s32.totalorder %s16, 0
    %p90 = por %p88, %p89
    %s92 = sadd.s32 %s91, 1
    %p95 = scmp.eq.s32.totalorder %s10, 1
    %p96 = scmp.ne.s32.totalorder %s91, %s93
    %p97 = scmp.eq.s32.totalorder %s10, 0
    %p98 = por %p96, %p97
    %p99 = scmp.ne.s32.totalorder %s91, %s93
    %p100 = scmp.eq.s32.totalorder %s15, 1
    %p101 = por %p99, %p100
    %p102 = scmp.ne.s32.totalorder %s93, %s94
    %p103 = scmp.eq.s32.totalorder %s15, 0
    %p104 = por %p102, %p103
    %p105 = scmp.ne.s32.totalorder %s93, %s94
    %p106 = scmp.eq.s32.totalorder %s16, 1
    %p107 = por %p105, %p106
    %p109 = scmp.ne.s32.totalorder %s94, %s108
    %p110 = scmp.eq.s32.totalorder %s16, 0
    %p111 = por %p109, %p110
    %p112 = scmp.le.s32.totalorder 1, %s10
    %p113 = scmp.lt.s32.totalorder %s10, 3
    %p114 = pnand %p112, %p113
    %p115 = pneg %p114
    // Predicated region
    $region9: #{simp_resnet9_k33.22} parent=5 // pred_check
      _
    $region10: #{simp_resnet9_k33.22} parent=5 // pred_check_branch
      %117 = sbr.rel (%p114) target = $region12
    $region11: #{simp_resnet9_k33.22} parent=5 // pred_region
      %s118 = ssub.s32 %s10, 1
      // Predicated region
      $region13: #{simp_resnet9_k33.22} parent=11 // pred_check
        %p119 = pneg %p57
      $region14: #{simp_resnet9_k33.22} parent=11 // pred_check_branch
        %121 = sbr.rel (%p119) target = $region16
      $region15: #{simp_resnet9_k33.22} parent=11 // pred_region
        _
      $region16: #{simp_resnet9_k33.22} parent=11 // pred_fallthru
        _
    $region12: #{simp_resnet9_k33.22} parent=5 // pred_fallthru
      _
    %p122 = scmp.lt.s32.totalorder %s10, 2
    // Predicated region
    $region17: #{simp_resnet9_k33.22} parent=5 // pred_check
      %p123 = pneg %p122
    $region18: #{simp_resnet9_k33.22} parent=5 // pred_check_branch
      %125 = sbr.rel (%p123) target = $region20
    $region19: #{simp_resnet9_k33.22} parent=5 // pred_region
      // Predicated region
      $region21: #{simp_resnet9_k33.22} parent=19 // pred_check
        %p126 = pneg %p30
      $region22: #{simp_resnet9_k33.22} parent=19 // pred_check_branch
        %128 = sbr.rel (%p126) target = $region24
      $region23: #{simp_resnet9_k33.22} parent=19 // pred_region
        %s129 = smul.u32 32, %s10
        %p130 = scmp.lt.s32.totalorder %s129, 63
        %s131 = scalar_select %p130, %s129, 63
        %s132 = smul.addr %s131, 4
        %s133 = scalar_lea.vmem %s0, %s132
        %s134 = smul.u32 32, %s10
      $region24: #{simp_resnet9_k33.22} parent=19 // pred_fallthru
        _
    $region20: #{simp_resnet9_k33.22} parent=5 // pred_fallthru
      _
    %p135 = scmp.le.s32.totalorder 1, %s10
    %p136 = scmp.lt.s32.totalorder %s10, 3
    %p137 = pnand %p135, %p136
    %p138 = pneg %p137
    // Predicated region
    $region25: #{simp_resnet9_k33.22} parent=5 // pred_check
      _
    $region26: #{simp_resnet9_k33.22} parent=5 // pred_check_branch
      %140 = sbr.rel (%p137) target = $region28
    $region27: #{simp_resnet9_k33.22} parent=5 // pred_region
      %s141 = ssub.s32 %s10, 1
      %s142 = smul.u32 32, %s15
      %p143 = scmp.lt.s32.totalorder %s142, 63
      %s144 = scalar_select %p143, %s142, 63
      %s145 = smul.addr %s144, 4
      %s146 = scalar_lea.vmem %s0, %s145
      %p147 = pneg %p36
      %p148 = pneg %p33
      %p149 = pneg %p57
      %p150 = pneg %p54
      %p151 = pneg %p83
      %p152 = pneg %p80
      %s153 = smul.u32 32, %s15
      %p154 = scmp.lt.s32.totalorder %s153, 63
      %s155 = scalar_select %p154, %s153, 63
      %s156 = smul.addr %s155, 8
      %s157 = scalar_lea.vmem %s2, %s156
      %p158 = pneg %p104
      %p159 = pneg %p101
      %s160 = smul.u32 32, %s15
      %p161 = scmp.lt.s32.totalorder %s160, 63
      %s162 = scalar_select %p161, %s160, 63
      %s163 = smul.addr %s162, 4
      %s164 = scalar_lea.vmem %s0, %s163
      %s165 = smul.u32 32, %s15
      %s166 = smul.u32 32, %s15
      %p167 = scmp.lt.s32.totalorder %s166, 63
      %s168 = scalar_select %p167, %s166, 63
      %s169 = smul.addr %s168, 8
      %s170 = scalar_lea.vmem %s2, %s169
      %s171 = smul.u32 32, %s15
      %p172 = scmp.eq.s32.totalorder %s15, 0
      // Predicated region
      $region29: #{simp_resnet9_k33.22} parent=27 // pred_check
        %p173 = pneg %p172
      $region30: #{simp_resnet9_k33.22} parent=27 // pred_check_branch
        %175 = sbr.rel (%p173) target = $region32
      $region31: #{simp_resnet9_k33.22} parent=27 // pred_region
        %176 = vst [vmem:[%s3] sm:$0x3] 0.0
      $region32: #{simp_resnet9_k33.22} parent=27 // pred_fallthru
        _
      %v177 = vld [vmem:[%s164] sm:$0xf]
      %v178 = vld [vmem:[%s164 + $0x4] sm:$0xf]
      %v179 = vld [vmem:[%s164 + $0x8] sm:$0xf]
      %v180 = vld [vmem:[%s164 + $0xc] sm:$0xf]
      %v181 = vld [vmem:[%s164 + $0x10] sm:$0xf]
      %v182 = vld [vmem:[%s164 + $0x14] sm:$0xf]
      %v183 = vld [vmem:[%s164 + $0x18] sm:$0xf]
      %v184 = vld [vmem:[%s164 + $0x1c] sm:$0xf]
      %v185 = vld [vmem:[%s164 + $0x20] sm:$0xf]
      %v186 = vld [vmem:[%s164 + $0x24] sm:$0xf]
      %v187 = vld [vmem:[%s164 + $0x28] sm:$0xf]
      %v188 = vld [vmem:[%s164 + $0x2c] sm:$0xf]
      %v189 = vld [vmem:[%s164 + $0x30] sm:$0xf]
      %v190 = vld [vmem:[%s164 + $0x34] sm:$0xf]
      %v191 = vld [vmem:[%s164 + $0x38] sm:$0xf]
      %v192 = vld [vmem:[%s164 + $0x3c] sm:$0xf]
      %v193 = vld [vmem:[%s164 + $0x40] sm:$0xf]
      %v194 = vld [vmem:[%s164 + $0x44] sm:$0xf]
      %v195 = vld [vmem:[%s164 + $0x48] sm:$0xf]
      %v196 = vld [vmem:[%s164 + $0x4c] sm:$0xf]
      %v197 = vld [vmem:[%s164 + $0x50] sm:$0xf]
      %v198 = vld [vmem:[%s164 + $0x54] sm:$0xf]
      %v199 = vld [vmem:[%s164 + $0x58] sm:$0xf]
      %v200 = vld [vmem:[%s164 + $0x5c] sm:$0xf]
      %v201 = vld [vmem:[%s164 + $0x60] sm:$0xf]
      %v202 = vld [vmem:[%s164 + $0x64] sm:$0xf]
      %v203 = vld [vmem:[%s164 + $0x68] sm:$0xf]
      %v204 = vld [vmem:[%s164 + $0x6c] sm:$0xf]
      %v205 = vld [vmem:[%s164 + $0x70] sm:$0xf]
      %v206 = vld [vmem:[%s164 + $0x74] sm:$0xf]
      %v207 = vld [vmem:[%s164 + $0x78] sm:$0xf]
      %v208 = vld [vmem:[%s164 + $0x7c] sm:$0xf]
      %v209 = vld [vmem:[%s1] sm:$0xf]
      %v210 = vld [vmem:[%s1 + $0x4] sm:$0xf]
      %v211 = vld [vmem:[%s1 + $0x8] sm:$0xf]
      %v212 = vld [vmem:[%s1 + $0xc] sm:$0xf]
      %v213 = vld [vmem:[%s1 + $0x10] sm:$0xf]
      %v214 = vld [vmem:[%s1 + $0x14] sm:$0xf]
      %v215 = vld [vmem:[%s1 + $0x18] sm:$0xf]
      %v216 = vld [vmem:[%s1 + $0x1c] sm:$0xf]
      %v217 = vld [vmem:[%s1 + $0x20] sm:$0xf]
      %v218 = vld [vmem:[%s1 + $0x24] sm:$0xf]
      %v219 = vld [vmem:[%s1 + $0x28] sm:$0xf]
      %v220 = vld [vmem:[%s1 + $0x2c] sm:$0xf]
      %v221 = vld [vmem:[%s1 + $0x30] sm:$0xf]
      %v222 = vld [vmem:[%s1 + $0x34] sm:$0xf]
      %v223 = vld [vmem:[%s1 + $0x38] sm:$0xf]
      %v224 = vld [vmem:[%s1 + $0x3c] sm:$0xf]
      %v257 = vunpack.c.l.b16 %v177
      %v258 = vunpack.c.l.b16 %v178
      %v259 = vunpack.c.l.b16 %v179
      %v260 = vunpack.c.l.b16 %v180
      %v261 = vunpack.c.l.b16 %v181
      %v262 = vunpack.c.l.b16 %v182
      %v263 = vunpack.c.l.b16 %v183
      %v264 = vunpack.c.l.b16 %v184
      %v265 = vunpack.c.l.b16 %v185
      %v266 = vunpack.c.l.b16 %v186
      %v267 = vunpack.c.l.b16 %v187
      %v268 = vunpack.c.l.b16 %v188
      %v269 = vunpack.c.l.b16 %v189
      %v270 = vunpack.c.l.b16 %v190
      %v271 = vunpack.c.l.b16 %v191
      %v272 = vunpack.c.l.b16 %v192
      %v273 = vunpack.c.l.b16 %v193
      %v274 = vunpack.c.l.b16 %v194
      %v275 = vunpack.c.l.b16 %v195
      %v276 = vunpack.c.l.b16 %v196
      %v277 = vunpack.c.l.b16 %v197
      %v278 = vunpack.c.l.b16 %v198
      %v279 = vunpack.c.l.b16 %v199
      %v280 = vunpack.c.l.b16 %v200
      %v281 = vunpack.c.l.b16 %v201
      %v282 = vunpack.c.l.b16 %v202
      %v283 = vunpack.c.l.b16 %v203
      %v284 = vunpack.c.l.b16 %v204
      %v285 = vunpack.c.l.b16 %v205
      %v286 = vunpack.c.l.b16 %v206
      %v287 = vunpack.c.l.b16 %v207
      %v288 = vunpack.c.l.b16 %v208
      %v289 = vpack.c.b16 %v258, %v257
      %v290 = vpack.c.b16 %v260, %v259
      %v291 = vpack.c.b16 %v262, %v261
      %v292 = vpack.c.b16 %v264, %v263
      %v293 = vpack.c.b16 %v266, %v265
      %v294 = vpack.c.b16 %v268, %v267
      %v295 = vpack.c.b16 %v270, %v269
      %v296 = vpack.c.b16 %v272, %v271
      %v297 = vpack.c.b16 %v274, %v273
      %v298 = vpack.c.b16 %v276, %v275
      %v299 = vpack.c.b16 %v278, %v277
      %v300 = vpack.c.b16 %v280, %v279
      %v301 = vpack.c.b16 %v282, %v281
      %v302 = vpack.c.b16 %v284, %v283
      %v303 = vpack.c.b16 %v286, %v285
      %v304 = vpack.c.b16 %v288, %v287
      %v337 = vunpack.c.l.b16 %v209
      %v338 = vunpack.c.l.b16 %v210
      %v339 = vunpack.c.l.b16 %v211
      %v340 = vunpack.c.l.b16 %v212
      %v341 = vunpack.c.l.b16 %v213
      %v342 = vunpack.c.l.b16 %v214
      %v343 = vunpack.c.l.b16 %v215
      %v344 = vunpack.c.l.b16 %v216
      %v345 = vunpack.c.l.b16 %v217
      %v346 = vunpack.c.l.b16 %v218
      %v347 = vunpack.c.l.b16 %v219
      %v348 = vunpack.c.l.b16 %v220
      %v349 = vunpack.c.l.b16 %v221
      %v350 = vunpack.c.l.b16 %v222
      %v351 = vunpack.c.l.b16 %v223
      %v352 = vunpack.c.l.b16 %v224
      %v353 = vpack.c.b16 %v338, %v337
      %v354 = vpack.c.b16 %v340, %v339
      %v355 = vpack.c.b16 %v342, %v341
      %v356 = vpack.c.b16 %v344, %v343
      %v357 = vpack.c.b16 %v346, %v345
      %v358 = vpack.c.b16 %v348, %v347
      %v359 = vpack.c.b16 %v350, %v349
      %v360 = vpack.c.b16 %v352, %v351
      %369 = vmatpush.bf16.msra.mxu0 %v360
      %370 = vmatpush.bf16.msra.mxu0 %v359
      %371 = vmatpush.bf16.msra.mxu0 %v358
      %372 = vmatpush.bf16.msra.mxu0 %v357
      %373 = vmatpush.bf16.msra.mxu0 %v356
      %374 = vmatpush.bf16.msra.mxu0 %v355
      %375 = vmatpush.bf16.msra.mxu0 %v354
      %376 = vmatpush.bf16.msra.mxu0 %v353
      %377 = vmatmul.bf16.gmra.mxu0 %v289
      %v378 = vpop.f32.mrf.mxu0
      %v379 = vadd.f32 0.0, %v378
      %v380 = vpop.f32.mrf.mxu0
      %v381 = vadd.f32 0.0, %v380
      %382 = vmatmul.bf16.gmra.mxu0 %v290
      %v383 = vpop.f32.mrf.mxu0
      %v384 = vadd.f32 0.0, %v383
      %v385 = vpop.f32.mrf.mxu0
      %v386 = vadd.f32 0.0, %v385
      %387 = vmatmul.bf16.gmra.mxu0 %v291
      %v388 = vpop.f32.mrf.mxu0
      %v389 = vadd.f32 0.0, %v388
      %v390 = vpop.f32.mrf.mxu0
      %v391 = vadd.f32 0.0, %v390
      %392 = vmatmul.bf16.gmra.mxu0 %v292
      %v393 = vpop.f32.mrf.mxu0
      %v394 = vadd.f32 0.0, %v393
      %v395 = vpop.f32.mrf.mxu0
      %v396 = vadd.f32 0.0, %v395
      %397 = vmatmul.bf16.gmra.mxu0 %v293
      %v398 = vpop.f32.mrf.mxu0
      %v399 = vadd.f32 0.0, %v398
      %v400 = vpop.f32.mrf.mxu0
      %v401 = vadd.f32 0.0, %v400
      %402 = vmatmul.bf16.gmra.mxu0 %v294
      %v403 = vpop.f32.mrf.mxu0
      %v404 = vadd.f32 0.0, %v403
      %v405 = vpop.f32.mrf.mxu0
      %v406 = vadd.f32 0.0, %v405
      %407 = vmatmul.bf16.gmra.mxu0 %v295
      %v408 = vpop.f32.mrf.mxu0
      %v409 = vadd.f32 0.0, %v408
      %v410 = vpop.f32.mrf.mxu0
      %v411 = vadd.f32 0.0, %v410
      %412 = vmatmul.bf16.gmra.mxu0 %v296
      %v413 = vpop.f32.mrf.mxu0
      %v414 = vadd.f32 0.0, %v413
      %v415 = vpop.f32.mrf.mxu0
      %v416 = vadd.f32 0.0, %v415
      %417 = vmatmul.bf16.gmra.mxu0 %v297
      %v418 = vpop.f32.mrf.mxu0
      %v419 = vadd.f32 0.0, %v418
      %v420 = vpop.f32.mrf.mxu0
      %v421 = vadd.f32 0.0, %v420
      %422 = vmatmul.bf16.gmra.mxu0 %v298
      %v423 = vpop.f32.mrf.mxu0
      %v424 = vadd.f32 0.0, %v423
      %v425 = vpop.f32.mrf.mxu0
      %v426 = vadd.f32 0.0, %v425
      %427 = vmatmul.bf16.gmra.mxu0 %v299
      %v428 = vpop.f32.mrf.mxu0
      %v429 = vadd.f32 0.0, %v428
      %v430 = vpop.f32.mrf.mxu0
      %v431 = vadd.f32 0.0, %v430
      %432 = vmatmul.bf16.gmra.mxu0 %v300
      %v433 = vpop.f32.mrf.mxu0
      %v434 = vadd.f32 0.0, %v433
      %v435 = vpop.f32.mrf.mxu0
      %v436 = vadd.f32 0.0, %v435
      %437 = vmatmul.bf16.gmra.mxu0 %v301
      %v438 = vpop.f32.mrf.mxu0
      %v439 = vadd.f32 0.0, %v438
      %v440 = vpop.f32.mrf.mxu0
      %v441 = vadd.f32 0.0, %v440
      %442 = vmatmul.bf16.gmra.mxu0 %v302
      %v443 = vpop.f32.mrf.mxu0
      %v444 = vadd.f32 0.0, %v443
      %v445 = vpop.f32.mrf.mxu0
      %v446 = vadd.f32 0.0, %v445
      %447 = vmatmul.bf16.gmra.mxu0 %v303
      %v448 = vpop.f32.mrf.mxu0
      %v449 = vadd.f32 0.0, %v448
      %v450 = vpop.f32.mrf.mxu0
      %v451 = vadd.f32 0.0, %v450
      %452 = vmatmul.bf16.gmra.mxu0 %v304
      %v453 = vpop.f32.mrf.mxu0
      %v454 = vadd.f32 0.0, %v453
      %v455 = vpop.f32.mrf.mxu0
      %v456 = vadd.f32 0.0, %v455
      %457 = vdwg.mxu0
      %458 = vst [vmem:[%s170] sm:$0xff] %v379
      %459 = vst [vmem:[%s170 + $0x8] sm:$0xff] %v381
      %460 = vst [vmem:[%s170 + $0x10] sm:$0xff] %v384
      %461 = vst [vmem:[%s170 + $0x18] sm:$0xff] %v386
      %462 = vst [vmem:[%s170 + $0x20] sm:$0xff] %v389
      %463 = vst [vmem:[%s170 + $0x28] sm:$0xff] %v391
      %464 = vst [vmem:[%s170 + $0x30] sm:$0xff] %v394
      %465 = vst [vmem:[%s170 + $0x38] sm:$0xff] %v396
      %466 = vst [vmem:[%s170 + $0x40] sm:$0xff] %v399
      %467 = vst [vmem:[%s170 + $0x48] sm:$0xff] %v401
      %468 = vst [vmem:[%s170 + $0x50] sm:$0xff] %v404
      %469 = vst [vmem:[%s170 + $0x58] sm:$0xff] %v406
      %470 = vst [vmem:[%s170 + $0x60] sm:$0xff] %v409
      %471 = vst [vmem:[%s170 + $0x68] sm:$0xff] %v411
      %472 = vst [vmem:[%s170 + $0x70] sm:$0xff] %v414
      %473 = vst [vmem:[%s170 + $0x78] sm:$0xff] %v416
      %474 = vst [vmem:[%s170 + $0x80] sm:$0xff] %v419
      %475 = vst [vmem:[%s170 + $0x88] sm:$0xff] %v421
      %476 = vst [vmem:[%s170 + $0x90] sm:$0xff] %v424
      %477 = vst [vmem:[%s170 + $0x98] sm:$0xff] %v426
      %478 = vst [vmem:[%s170 + $0xa0] sm:$0xff] %v429
      %479 = vst [vmem:[%s170 + $0xa8] sm:$0xff] %v431
      %480 = vst [vmem:[%s170 + $0xb0] sm:$0xff] %v434
      %481 = vst [vmem:[%s170 + $0xb8] sm:$0xff] %v436
      %482 = vst [vmem:[%s170 + $0xc0] sm:$0xff] %v439
      %483 = vst [vmem:[%s170 + $0xc8] sm:$0xff] %v441
      %484 = vst [vmem:[%s170 + $0xd0] sm:$0xff] %v444
      %485 = vst [vmem:[%s170 + $0xd8] sm:$0xff] %v446
      %486 = vst [vmem:[%s170 + $0xe0] sm:$0xff] %v449
      %487 = vst [vmem:[%s170 + $0xe8] sm:$0xff] %v451
      %488 = vst [vmem:[%s170 + $0xf0] sm:$0xff] %v454
      %489 = vst [vmem:[%s170 + $0xf8] sm:$0xff] %v456
      %v490 = vld [vmem:[%s3] sm:$0x1]
      %v491 = vadd.f32 %v379, %v381
      %v492 = vadd.f32 %v491, %v384
      %v493 = vadd.f32 %v492, %v386
      %v494 = vadd.f32 %v493, %v389
      %v495 = vadd.f32 %v494, %v391
      %v496 = vadd.f32 %v495, %v394
      %v497 = vadd.f32 %v496, %v396
      %v498 = vadd.f32 %v497, %v399
      %v499 = vadd.f32 %v498, %v401
      %v500 = vadd.f32 %v499, %v404
      %v501 = vadd.f32 %v500, %v406
      %v502 = vadd.f32 %v501, %v409
      %v503 = vadd.f32 %v502, %v411
      %v504 = vadd.f32 %v503, %v414
      %v505 = vadd.f32 %v504, %v416
      %v506 = vadd.f32 %v505, %v419
      %v507 = vadd.f32 %v506, %v421
      %v508 = vadd.f32 %v507, %v424
      %v509 = vadd.f32 %v508, %v426
      %v510 = vadd.f32 %v509, %v429
      %v511 = vadd.f32 %v510, %v431
      %v512 = vadd.f32 %v511, %v434
      %v513 = vadd.f32 %v512, %v436
      %v514 = vadd.f32 %v513, %v439
      %v515 = vadd.f32 %v514, %v441
      %v516 = vadd.f32 %v515, %v444
      %v517 = vadd.f32 %v516, %v446
      %v518 = vadd.f32 %v517, %v449
      %v519 = vadd.f32 %v518, %v451
      %v520 = vadd.f32 %v519, %v454
      %v521 = vadd.f32 %v520, %v456
      %v522 = vrot.slane %v521, 4
      %v523 = vadd.f32 %v521, %v522
      %v524 = vrot.slane %v523, 2
      %v525 = vadd.f32 %v523, %v524
      %v526 = vrot.slane %v525, 1
      %v527 = vadd.f32 %v525, %v526
      %v528 = vadd.f32 %v490, %v527
      %529 = vst [vmem:[%s3] sm:$0x1] %v528
      %v530 = vld [vmem:[%s3 + $0x1] sm:$0x1]
      %v531 = vmul.f32 %v379, %v379
      %v532 = vmul.f32 %v381, %v381
      %v533 = vmul.f32 %v384, %v384
      %v534 = vmul.f32 %v386, %v386
      %v535 = vmul.f32 %v389, %v389
      %v536 = vmul.f32 %v391, %v391
      %v537 = vmul.f32 %v394, %v394
      %v538 = vmul.f32 %v396, %v396
      %v539 = vmul.f32 %v399, %v399
      %v540 = vmul.f32 %v401, %v401
      %v541 = vmul.f32 %v404, %v404
      %v542 = vmul.f32 %v406, %v406
      %v543 = vmul.f32 %v409, %v409
      %v544 = vmul.f32 %v411, %v411
      %v545 = vmul.f32 %v414, %v414
      %v546 = vmul.f32 %v416, %v416
      %v547 = vmul.f32 %v419, %v419
      %v548 = vmul.f32 %v421, %v421
      %v549 = vmul.f32 %v424, %v424
      %v550 = vmul.f32 %v426, %v426
      %v551 = vmul.f32 %v429, %v429
      %v552 = vmul.f32 %v431, %v431
      %v553 = vmul.f32 %v434, %v434
      %v554 = vmul.f32 %v436, %v436
      %v555 = vmul.f32 %v439, %v439
      %v556 = vmul.f32 %v441, %v441
      %v557 = vmul.f32 %v444, %v444
      %v558 = vmul.f32 %v446, %v446
      %v559 = vmul.f32 %v449, %v449
      %v560 = vmul.f32 %v451, %v451
      %v561 = vmul.f32 %v454, %v454
      %v562 = vmul.f32 %v456, %v456
      %v563 = vadd.f32 %v531, %v532
      %v564 = vadd.f32 %v563, %v533
      %v565 = vadd.f32 %v564, %v534
      %v566 = vadd.f32 %v565, %v535
      %v567 = vadd.f32 %v566, %v536
      %v568 = vadd.f32 %v567, %v537
      %v569 = vadd.f32 %v568, %v538
      %v570 = vadd.f32 %v569, %v539
      %v571 = vadd.f32 %v570, %v540
      %v572 = vadd.f32 %v571, %v541
      %v573 = vadd.f32 %v572, %v542
      %v574 = vadd.f32 %v573, %v543
      %v575 = vadd.f32 %v574, %v544
      %v576 = vadd.f32 %v575, %v545
      %v577 = vadd.f32 %v576, %v546
      %v578 = vadd.f32 %v577, %v547
      %v579 = vadd.f32 %v578, %v548
      %v580 = vadd.f32 %v579, %v549
      %v581 = vadd.f32 %v580, %v550
      %v582 = vadd.f32 %v581, %v551
      %v583 = vadd.f32 %v582, %v552
      %v584 = vadd.f32 %v583, %v553
      %v585 = vadd.f32 %v584, %v554
      %v586 = vadd.f32 %v585, %v555
      %v587 = vadd.f32 %v586, %v556
      %v588 = vadd.f32 %v587, %v557
      %v589 = vadd.f32 %v588, %v558
      %v590 = vadd.f32 %v589, %v559
      %v591 = vadd.f32 %v590, %v560
      %v592 = vadd.f32 %v591, %v561
      %v593 = vadd.f32 %v592, %v562
      %v594 = vrot.slane %v593, 4
      %v595 = vadd.f32 %v593, %v594
      %v596 = vrot.slane %v595, 2
      %v597 = vadd.f32 %v595, %v596
      %v598 = vrot.slane %v597, 1
      %v599 = vadd.f32 %v597, %v598
      %v600 = vadd.f32 %v530, %v599
      %601 = vst [vmem:[%s3 + $0x1] sm:$0x1] %v600
      %s602 = smul.u32 32, %s15
      %p603 = scmp.lt.s32.totalorder %s602, 63
      %s604 = scalar_select %p603, %s602, 63
      %s605 = smul.addr %s604, 8
      %s606 = scalar_lea.vmem %s2, %s605
      // Predicated region
      $region33: #{simp_resnet9_k33.22} parent=27 // pred_check
        %p607 = pneg %p80
      $region34: #{simp_resnet9_k33.22} parent=27 // pred_check_branch
        %609 = sbr.rel (%p607) target = $region36
      $region35: #{simp_resnet9_k33.22} parent=27 // pred_region
        %s610 = smul.u32 32, %s15
      $region36: #{simp_resnet9_k33.22} parent=27 // pred_fallthru
        _
      // Predicated region
      $region37: #{simp_resnet9_k33.22} parent=27 // pred_check
        %p611 = pneg %p101
      $region38: #{simp_resnet9_k33.22} parent=27 // pred_check_branch
        %613 = sbr.rel (%p611) target = $region40
      $region39: #{simp_resnet9_k33.22} parent=27 // pred_region
        _
      $region40: #{simp_resnet9_k33.22} parent=27 // pred_fallthru
        _
      // Predicated region
      $region41: #{simp_resnet9_k33.22} parent=27 // pred_check
        %p614 = pneg %p101
      $region42: #{simp_resnet9_k33.22} parent=27 // pred_check_branch
        %616 = sbr.rel (%p614) target = $region44
      $region43: #{simp_resnet9_k33.22} parent=27 // pred_region
        _
      $region44: #{simp_resnet9_k33.22} parent=27 // pred_fallthru
        _
    $region28: #{simp_resnet9_k33.22} parent=5 // pred_fallthru
      _
    %p617 = scmp.le.s32.totalorder 2, %s10
    // Predicated region
    $region45: #{simp_resnet9_k33.22} parent=5 // pred_check
      %p618 = pneg %p617
    $region46: #{simp_resnet9_k33.22} parent=5 // pred_check_branch
      %620 = sbr.rel (%p618) target = $region48
    $region47: #{simp_resnet9_k33.22} parent=5 // pred_region
      %s621 = ssub.s32 %s10, 2
      // Predicated region
      $region49: #{simp_resnet9_k33.22} parent=47 // pred_check
        %p622 = pneg %p86
      $region50: #{simp_resnet9_k33.22} parent=47 // pred_check_branch
        %624 = sbr.rel (%p622) target = $region52
      $region51: #{simp_resnet9_k33.22} parent=47 // pred_region
        %s625 = smul.u32 32, %s16
        %p626 = scmp.lt.s32.totalorder %s625, 63
        %s627 = scalar_select %p626, %s625, 63
        %s628 = smul.addr %s627, 8
        %s629 = scalar_lea.vmem %s2, %s628
      $region52: #{simp_resnet9_k33.22} parent=47 // pred_fallthru
        _
    $region48: #{simp_resnet9_k33.22} parent=5 // pred_fallthru
      _
  $region6: #{simp_resnet9_k33.22} parent=0 // loop_footer
    %s14 = sadd.s32 1, %s10
  $region7: #{simp_resnet9_k33.22} parent=0 // loop_footer_branch
    %9 = sbr.rel target = $region3
  $region8: #{simp_resnet9_k33.22} parent=0 // loop_exit
    _

// kernel: simp_resnet9_k33.25
$region0: #{simp_resnet9_k33.25}
  #allocation0 [shape = 'u32[]', space=smem, size = 0x4, offset = 0x4, fixed_abs, tag = 'smem constant byte address 0x4 - core index']
  #allocation1 [shape = 'u32[72,128]{1,0:T(1,128)}', space=vmem, size = 0x9000, scoped, tag = 'internal scratch']
  %s0 = inlined_call_operand.vmem [shape: f32[168,128], index: 0, kind: input, shape index: {}]
  %s1 = inlined_call_operand.vmem [shape: f32[2,128], index: 1, kind: input, shape index: {}]
  %s2 = inlined_call_operand.vmem [shape: f32[2,128], index: 2, kind: input, shape index: {}]
  %s3 = inlined_call_operand.vmem [shape: bf16[168,128], index: 3, kind: output, shape index: {}]
  %s4 = sld [smem:[#allocation0]]
  $region22: #{simp_resnet9_k33.25} parent=0
    _
  %s6 = ssub.s32 1, %s4
  %s7 = scalar_select 0, %s6, %s4
  // Predicated region
  $region2: #{simp_resnet9_k33.25} parent=0 // pred_check
    _
  $region3: #{simp_resnet9_k33.25} parent=0 // pred_check_branch
    %9 = sbr.rel (0) target = $region5
  $region4: #{simp_resnet9_k33.25} parent=0 // pred_region
    _
  $region5: #{simp_resnet9_k33.25} parent=0 // pred_fallthru
    _
  // Predicated region
  $region6: #{simp_resnet9_k33.25} parent=0 // pred_check
    _
  $region7: #{simp_resnet9_k33.25} parent=0 // pred_check_branch
    %11 = sbr.rel (0) target = $region9
  $region8: #{simp_resnet9_k33.25} parent=0 // pred_region
    _
  $region9: #{simp_resnet9_k33.25} parent=0 // pred_fallthru
    _
  // Predicated region
  $region10: #{simp_resnet9_k33.25} parent=0 // pred_check
    _
  $region11: #{simp_resnet9_k33.25} parent=0 // pred_check_branch
    %13 = sbr.rel (0) target = $region13
  $region12: #{simp_resnet9_k33.25} parent=0 // pred_region
    _
  $region13: #{simp_resnet9_k33.25} parent=0 // pred_fallthru
    _
  %v14 = vld [vmem:[%s0] sm:$0xff]
  %v15 = vld [vmem:[%s0 + $0x8] sm:$0xff]
  %v16 = vld [vmem:[%s0 + $0x10] sm:$0xff]
  %v17 = vld [vmem:[%s0 + $0x18] sm:$0xff]
  %v18 = vld [vmem:[%s0 + $0x20] sm:$0xff]
  %v19 = vld [vmem:[%s0 + $0x28] sm:$0xff]
  %v20 = vld [vmem:[%s0 + $0x30] sm:$0xff]
  %v21 = vld [vmem:[%s0 + $0x38] sm:$0xff]
  %v22 = vld [vmem:[%s0 + $0x40] sm:$0xff]
  %v23 = vld [vmem:[%s0 + $0x48] sm:$0xff]
  %v24 = vld [vmem:[%s0 + $0x50] sm:$0xff]
  %v25 = vld [vmem:[%s0 + $0x58] sm:$0xff]
  %v26 = vld [vmem:[%s0 + $0x60] sm:$0xff]
  %v27 = vld [vmem:[%s0 + $0x68] sm:$0xff]
  %v28 = vld [vmem:[%s0 + $0x70] sm:$0xff]
  %v29 = vld [vmem:[%s0 + $0x78] sm:$0xff]
  %v30 = vld [vmem:[%s0 + $0x80] sm:$0xff]
  %v31 = vld [vmem:[%s0 + $0x88] sm:$0xff]
  %v32 = vld [vmem:[%s0 + $0x90] sm:$0xff]
  %v33 = vld [vmem:[%s0 + $0x98] sm:$0xff]
  %v34 = vld [vmem:[%s0 + $0xa0] sm:$0xff]
  %v35 = vld [vmem:[%s1] sm:$0x1]
  %v36 = vmul.f32 %v35, 0.0061728396
  %v37 = vld [vmem:[%s1 + $0x1] sm:$0x1]
  %v38 = vmul.f32 %v37, 0.0061728396
  %v39 = vmul.f32 %v36, %v36
  %v40 = vsub.f32 %v38, %v39
  %v41 = vld [vmem:[%s2] sm:$0x1]
  %v42 = vadd.f32 %v40, 1e-05
  %v43 = vrsqrt.pop %v42
  %v44 = vmul.f32 %v43, %v42
  %v45 = vmul.f32 %v44, %v43
  %v46 = vmul.f32 0.5, %v45
  %v47 = vsub.f32 1.5, %v46
  %v48 = vmul.f32 %v43, %v47
  %vm49 = vweird.f32 %v42
  %vm50 = vweird.f32 %v43
  %vm51 = vmor %vm49, %vm50
  %v52 = vsel %vm51, %v43, %v48
  %v53 = vmul.f32 %v41, %v52
  %v54 = vld [vmem:[%s2 + $0x1] sm:$0x1]
  %v55 = vmul.f32 %v36, %v53
  %v56 = vsub.f32 %v54, %v55
  %v57 = vperm.slane %v53, 0
  %v58 = vmul.f32 %v14, %v57
  %v59 = vmul.f32 %v15, %v57
  %v60 = vmul.f32 %v16, %v57
  %v61 = vmul.f32 %v17, %v57
  %v62 = vmul.f32 %v18, %v57
  %v63 = vmul.f32 %v19, %v57
  %v64 = vmul.f32 %v20, %v57
  %v65 = vmul.f32 %v21, %v57
  %v66 = vmul.f32 %v22, %v57
  %v67 = vmul.f32 %v23, %v57
  %v68 = vmul.f32 %v24, %v57
  %v69 = vmul.f32 %v25, %v57
  %v70 = vmul.f32 %v26, %v57
  %v71 = vmul.f32 %v27, %v57
  %v72 = vmul.f32 %v28, %v57
  %v73 = vmul.f32 %v29, %v57
  %v74 = vmul.f32 %v30, %v57
  %v75 = vmul.f32 %v31, %v57
  %v76 = vmul.f32 %v32, %v57
  %v77 = vmul.f32 %v33, %v57
  %v78 = vmul.f32 %v34, %v57
  %v79 = vperm.slane %v56, 0
  %v80 = vadd.f32 %v58, %v79
  %v81 = vadd.f32 %v59, %v79
  %v82 = vadd.f32 %v60, %v79
  %v83 = vadd.f32 %v61, %v79
  %v84 = vadd.f32 %v62, %v79
  %v85 = vadd.f32 %v63, %v79
  %v86 = vadd.f32 %v64, %v79
  %v87 = vadd.f32 %v65, %v79
  %v88 = vadd.f32 %v66, %v79
  %v89 = vadd.f32 %v67, %v79
  %v90 = vadd.f32 %v68, %v79
  %v91 = vadd.f32 %v69, %v79
  %v92 = vadd.f32 %v70, %v79
  %v93 = vadd.f32 %v71, %v79
  %v94 = vadd.f32 %v72, %v79
  %v95 = vadd.f32 %v73, %v79
  %v96 = vadd.f32 %v74, %v79
  %v97 = vadd.f32 %v75, %v79
  %v98 = vadd.f32 %v76, %v79
  %v99 = vadd.f32 %v77, %v79
  %v100 = vadd.f32 %v78, %v79
  %v101 = vmax.f32 %v80, 0.0
  %v102 = vmax.f32 %v81, 0.0
  %v103 = vmax.f32 %v82, 0.0
  %v104 = vmax.f32 %v83, 0.0
  %v105 = vmax.f32 %v84, 0.0
  %v106 = vmax.f32 %v85, 0.0
  %v107 = vmax.f32 %v86, 0.0
  %v108 = vmax.f32 %v87, 0.0
  %v109 = vmax.f32 %v88, 0.0
  %v110 = vmax.f32 %v89, 0.0
  %v111 = vmax.f32 %v90, 0.0
  %v112 = vmax.f32 %v91, 0.0
  %v113 = vmax.f32 %v92, 0.0
  %v114 = vmax.f32 %v93, 0.0
  %v115 = vmax.f32 %v94, 0.0
  %v116 = vmax.f32 %v95, 0.0
  %v117 = vmax.f32 %v96, 0.0
  %v118 = vmax.f32 %v97, 0.0
  %v119 = vmax.f32 %v98, 0.0
  %v120 = vmax.f32 %v99, 0.0
  %v121 = vmax.f32 %v100, 0.0
  %v122 = vpack.c.bf16 %v101, %v101
  %v123 = vpack.c.bf16 %v102, %v102
  %v124 = vpack.c.bf16 %v103, %v103
  %v125 = vpack.c.bf16 %v104, %v104
  %v126 = vpack.c.bf16 %v105, %v105
  %v127 = vpack.c.bf16 %v106, %v106
  %v128 = vpack.c.bf16 %v107, %v107
  %v129 = vpack.c.bf16 %v108, %v108
  %v130 = vpack.c.bf16 %v109, %v109
  %v131 = vpack.c.bf16 %v110, %v110
  %v132 = vpack.c.bf16 %v111, %v111
  %v133 = vpack.c.bf16 %v112, %v112
  %v134 = vpack.c.bf16 %v113, %v113
  %v135 = vpack.c.bf16 %v114, %v114
  %v136 = vpack.c.bf16 %v115, %v115
  %v137 = vpack.c.bf16 %v116, %v116
  %v138 = vpack.c.bf16 %v117, %v117
  %v139 = vpack.c.bf16 %v118, %v118
  %v140 = vpack.c.bf16 %v119, %v119
  %v141 = vpack.c.bf16 %v120, %v120
  %v142 = vpack.c.bf16 %v121, %v121
  %143 = vst [vmem:[%s3] sm:$0xf] %v122
  %144 = vst [vmem:[%s3 + $0x4] sm:$0xf] %v123
  %145 = vst [vmem:[%s3 + $0x8] sm:$0xf] %v124
  %146 = vst [vmem:[%s3 + $0xc] sm:$0xf] %v125
  %147 = vst [vmem:[%s3 + $0x10] sm:$0xf] %v126
  %148 = vst [vmem:[%s3 + $0x14] sm:$0xf] %v127
  %149 = vst [vmem:[%s3 + $0x18] sm:$0xf] %v128
  %150 = vst [vmem:[%s3 + $0x1c] sm:$0xf] %v129
  %151 = vst [vmem:[%s3 + $0x20] sm:$0xf] %v130
  %152 = vst [vmem:[%s3 + $0x24] sm:$0xf] %v131
  %153 = vst [vmem:[%s3 + $0x28] sm:$0xf] %v132
  %154 = vst [vmem:[%s3 + $0x2c] sm:$0xf] %v133
  %155 = vst [vmem:[%s3 + $0x30] sm:$0xf] %v134
  %156 = vst [vmem:[%s3 + $0x34] sm:$0xf] %v135
  %157 = vst [vmem:[%s3 + $0x38] sm:$0xf] %v136
  %158 = vst [vmem:[%s3 + $0x3c] sm:$0xf] %v137
  %159 = vst [vmem:[%s3 + $0x40] sm:$0xf] %v138
  %160 = vst [vmem:[%s3 + $0x44] sm:$0xf] %v139
  %161 = vst [vmem:[%s3 + $0x48] sm:$0xf] %v140
  %162 = vst [vmem:[%s3 + $0x4c] sm:$0xf] %v141
  %163 = vst [vmem:[%s3 + $0x50] sm:$0xf] %v142
  // Predicated region
  $region14: #{simp_resnet9_k33.25} parent=0 // pred_check
    _
  $region15: #{simp_resnet9_k33.25} parent=0 // pred_check_branch
    %165 = sbr.rel (0) target = $region17
  $region16: #{simp_resnet9_k33.25} parent=0 // pred_region
    _
  $region17: #{simp_resnet9_k33.25} parent=0 // pred_fallthru
    _
  // Predicated region
  $region18: #{simp_resnet9_k33.25} parent=0 // pred_check
    _
  $region19: #{simp_resnet9_k33.25} parent=0 // pred_check_branch
    %167 = sbr.rel (0) target = $region21
  $region20: #{simp_resnet9_k33.25} parent=0 // pred_region
    _
  $region21: #{simp_resnet9_k33.25} parent=0 // pred_fallthru
    _

// kernel: simp_resnet9_k33.26
$region0: #{simp_resnet9_k33.26}
  #allocation0 [shape = 'u32[]', space=smem, size = 0x4, offset = 0x4, fixed_abs, tag = 'smem constant byte address 0x4 - core index']
  #allocation1 [shape = 'u32[72,128]{1,0:T(1,128)}', space=vmem, size = 0x9000, scoped, tag = 'internal scratch']
  %s0 = inlined_call_operand.vmem [shape: bf16[168,128], index: 0, kind: input, shape index: {}]
  %s1 = inlined_call_operand.vmem [shape: bf16[128,128], index: 1, kind: input, shape index: {}]
  %s2 = inlined_call_operand.vmem [shape: f32[168,128], index: 2, kind: output, shape index: {0}]
  %s3 = inlined_call_operand.vmem [shape: f32[2,128], index: 3, kind: output, shape index: {1}]
  %4 = xla_tuple %s2, %s3
  %s5 = sld [smem:[#allocation0]]
  $region30: #{simp_resnet9_k33.26} parent=0
    _
  %s7 = ssub.s32 1, %s5
  %s8 = scalar_select 0, %s7, %s5
  // Predicated region
  $region2: #{simp_resnet9_k33.26} parent=0 // pred_check
    _
  $region3: #{simp_resnet9_k33.26} parent=0 // pred_check_branch
    %10 = sbr.rel (0) target = $region5
  $region4: #{simp_resnet9_k33.26} parent=0 // pred_region
    _
  $region5: #{simp_resnet9_k33.26} parent=0 // pred_fallthru
    _
  // Predicated region
  $region6: #{simp_resnet9_k33.26} parent=0 // pred_check
    _
  $region7: #{simp_resnet9_k33.26} parent=0 // pred_check_branch
    %12 = sbr.rel (0) target = $region9
  $region8: #{simp_resnet9_k33.26} parent=0 // pred_region
    _
  $region9: #{simp_resnet9_k33.26} parent=0 // pred_fallthru
    _
  %p13 = scmp.eq.s32.totalorder 0, 0
  // Predicated region
  $region10: #{simp_resnet9_k33.26} parent=0 // pred_check
    %p14 = pneg %p13
  $region11: #{simp_resnet9_k33.26} parent=0 // pred_check_branch
    %16 = sbr.rel (%p14) target = $region13
  $region12: #{simp_resnet9_k33.26} parent=0 // pred_region
    %17 = vst [vmem:[%s3] sm:$0x3] 0.0
  $region13: #{simp_resnet9_k33.26} parent=0 // pred_fallthru
    _
  %v18 = vld [vmem:[%s0] sm:$0xf]
  %v19 = vld [vmem:[%s0 + $0x4] sm:$0xf]
  %v20 = vld [vmem:[%s0 + $0x8] sm:$0xf]
  %v21 = vld [vmem:[%s0 + $0xc] sm:$0xf]
  %v22 = vld [vmem:[%s0 + $0x10] sm:$0xf]
  %v23 = vld [vmem:[%s0 + $0x14] sm:$0xf]
  %v24 = vld [vmem:[%s0 + $0x18] sm:$0xf]
  %v25 = vld [vmem:[%s0 + $0x1c] sm:$0xf]
  %v26 = vld [vmem:[%s0 + $0x20] sm:$0xf]
  %v27 = vld [vmem:[%s0 + $0x24] sm:$0xf]
  %v28 = vld [vmem:[%s0 + $0x28] sm:$0xf]
  %v29 = vld [vmem:[%s0 + $0x2c] sm:$0xf]
  %v30 = vld [vmem:[%s0 + $0x30] sm:$0xf]
  %v31 = vld [vmem:[%s0 + $0x34] sm:$0xf]
  %v32 = vld [vmem:[%s0 + $0x38] sm:$0xf]
  %v33 = vld [vmem:[%s0 + $0x3c] sm:$0xf]
  %v34 = vld [vmem:[%s0 + $0x40] sm:$0xf]
  %v35 = vld [vmem:[%s0 + $0x44] sm:$0xf]
  %v36 = vld [vmem:[%s0 + $0x48] sm:$0xf]
  %v37 = vld [vmem:[%s0 + $0x4c] sm:$0xf]
  %v38 = vld [vmem:[%s0 + $0x50] sm:$0xf]
  %v39 = vld [vmem:[%s1] sm:$0xf]
  %v40 = vld [vmem:[%s1 + $0x4] sm:$0xf]
  %v41 = vld [vmem:[%s1 + $0x8] sm:$0xf]
  %v42 = vld [vmem:[%s1 + $0xc] sm:$0xf]
  %v43 = vld [vmem:[%s1 + $0x10] sm:$0xf]
  %v44 = vld [vmem:[%s1 + $0x14] sm:$0xf]
  %v45 = vld [vmem:[%s1 + $0x18] sm:$0xf]
  %v46 = vld [vmem:[%s1 + $0x1c] sm:$0xf]
  %v47 = vld [vmem:[%s1 + $0x20] sm:$0xf]
  %v48 = vld [vmem:[%s1 + $0x24] sm:$0xf]
  %v49 = vld [vmem:[%s1 + $0x28] sm:$0xf]
  %v50 = vld [vmem:[%s1 + $0x2c] sm:$0xf]
  %v51 = vld [vmem:[%s1 + $0x30] sm:$0xf]
  %v52 = vld [vmem:[%s1 + $0x34] sm:$0xf]
  %v53 = vld [vmem:[%s1 + $0x38] sm:$0xf]
  %v54 = vld [vmem:[%s1 + $0x3c] sm:$0xf]
  %v76 = vunpack.c.l.b16 %v18
  %v77 = vunpack.c.l.b16 %v19
  %v78 = vunpack.c.l.b16 %v20
  %v79 = vunpack.c.l.b16 %v21
  %v80 = vunpack.c.l.b16 %v22
  %v81 = vunpack.c.l.b16 %v23
  %v82 = vunpack.c.l.b16 %v24
  %v83 = vunpack.c.l.b16 %v25
  %v84 = vunpack.c.l.b16 %v26
  %v85 = vunpack.c.l.b16 %v27
  %v86 = vunpack.c.l.b16 %v28
  %v87 = vunpack.c.l.b16 %v29
  %v88 = vunpack.c.l.b16 %v30
  %v89 = vunpack.c.l.b16 %v31
  %v90 = vunpack.c.l.b16 %v32
  %v91 = vunpack.c.l.b16 %v33
  %v92 = vunpack.c.l.b16 %v34
  %v93 = vunpack.c.l.b16 %v35
  %v94 = vunpack.c.l.b16 %v36
  %v95 = vunpack.c.l.b16 %v37
  %v96 = vunpack.c.l.b16 %v38
  %v97 = vpack.c.b16 %v77, %v76
  %v98 = vpack.c.b16 %v79, %v78
  %v99 = vpack.c.b16 %v81, %v80
  %v100 = vpack.c.b16 %v83, %v82
  %v101 = vpack.c.b16 %v85, %v84
  %v102 = vpack.c.b16 %v87, %v86
  %v103 = vpack.c.b16 %v89, %v88
  %v104 = vpack.c.b16 %v91, %v90
  %v105 = vpack.c.b16 %v93, %v92
  %v106 = vpack.c.b16 %v95, %v94
  %v107 = vpack.c.b16 %v96, %v96
  %v135 = vunpack.c.l.b16 %v39
  %v136 = vunpack.c.l.b16 %v40
  %v137 = vunpack.c.l.b16 %v41
  %v138 = vunpack.c.l.b16 %v42
  %v139 = vunpack.c.l.b16 %v43
  %v140 = vunpack.c.l.b16 %v44
  %v141 = vunpack.c.l.b16 %v45
  %v142 = vunpack.c.l.b16 %v46
  %v143 = vunpack.c.l.b16 %v47
  %v144 = vunpack.c.l.b16 %v48
  %v145 = vunpack.c.l.b16 %v49
  %v146 = vunpack.c.l.b16 %v50
  %v147 = vunpack.c.l.b16 %v51
  %v148 = vunpack.c.l.b16 %v52
  %v149 = vunpack.c.l.b16 %v53
  %v150 = vunpack.c.l.b16 %v54
  %v151 = vpack.c.b16 %v136, %v135
  %v152 = vpack.c.b16 %v138, %v137
  %v153 = vpack.c.b16 %v140, %v139
  %v154 = vpack.c.b16 %v142, %v141
  %v155 = vpack.c.b16 %v144, %v143
  %v156 = vpack.c.b16 %v146, %v145
  %v157 = vpack.c.b16 %v148, %v147
  %v158 = vpack.c.b16 %v150, %v149
  %167 = vmatpush.bf16.msra.mxu0 %v158
  %168 = vmatpush.bf16.msra.mxu0 %v157
  %169 = vmatpush.bf16.msra.mxu0 %v156
  %170 = vmatpush.bf16.msra.mxu0 %v155
  %171 = vmatpush.bf16.msra.mxu0 %v154
  %172 = vmatpush.bf16.msra.mxu0 %v153
  %173 = vmatpush.bf16.msra.mxu0 %v152
  %174 = vmatpush.bf16.msra.mxu0 %v151
  %175 = vmatmul.bf16.gmra.mxu0 %v97
  %v176 = vpop.f32.mrf.mxu0
  %v177 = vadd.f32 0.0, %v176
  %v178 = vpop.f32.mrf.mxu0
  %v179 = vadd.f32 0.0, %v178
  %180 = vmatmul.bf16.gmra.mxu0 %v98
  %v181 = vpop.f32.mrf.mxu0
  %v182 = vadd.f32 0.0, %v181
  %v183 = vpop.f32.mrf.mxu0
  %v184 = vadd.f32 0.0, %v183
  %185 = vmatmul.bf16.gmra.mxu0 %v99
  %v186 = vpop.f32.mrf.mxu0
  %v187 = vadd.f32 0.0, %v186
  %v188 = vpop.f32.mrf.mxu0
  %v189 = vadd.f32 0.0, %v188
  %190 = vmatmul.bf16.gmra.mxu0 %v100
  %v191 = vpop.f32.mrf.mxu0
  %v192 = vadd.f32 0.0, %v191
  %v193 = vpop.f32.mrf.mxu0
  %v194 = vadd.f32 0.0, %v193
  %195 = vmatmul.bf16.gmra.mxu0 %v101
  %v196 = vpop.f32.mrf.mxu0
  %v197 = vadd.f32 0.0, %v196
  %v198 = vpop.f32.mrf.mxu0
  %v199 = vadd.f32 0.0, %v198
  %200 = vmatmul.bf16.gmra.mxu0 %v102
  %v201 = vpop.f32.mrf.mxu0
  %v202 = vadd.f32 0.0, %v201
  %v203 = vpop.f32.mrf.mxu0
  %v204 = vadd.f32 0.0, %v203
  %205 = vmatmul.bf16.gmra.mxu0 %v103
  %v206 = vpop.f32.mrf.mxu0
  %v207 = vadd.f32 0.0, %v206
  %v208 = vpop.f32.mrf.mxu0
  %v209 = vadd.f32 0.0, %v208
  %210 = vmatmul.bf16.gmra.mxu0 %v104
  %v211 = vpop.f32.mrf.mxu0
  %v212 = vadd.f32 0.0, %v211
  %v213 = vpop.f32.mrf.mxu0
  %v214 = vadd.f32 0.0, %v213
  %215 = vmatmul.bf16.gmra.mxu0 %v105
  %v216 = vpop.f32.mrf.mxu0
  %v217 = vadd.f32 0.0, %v216
  %v218 = vpop.f32.mrf.mxu0
  %v219 = vadd.f32 0.0, %v218
  %220 = vmatmul.bf16.gmra.mxu0 %v106
  %v221 = vpop.f32.mrf.mxu0
  %v222 = vadd.f32 0.0, %v221
  %v223 = vpop.f32.mrf.mxu0
  %v224 = vadd.f32 0.0, %v223
  %225 = vmatmul.bf16.gmra.mxu0 %v107
  %v226 = vpop.f32.mrf.mxu0
  %v227 = vadd.f32 0.0, %v226
  %v228 = vpop.f32.mrf.mxu0
  %229 = vdwg.mxu0
  %230 = vst [vmem:[%s2] sm:$0xff] %v177
  %231 = vst [vmem:[%s2 + $0x8] sm:$0xff] %v179
  %232 = vst [vmem:[%s2 + $0x10] sm:$0xff] %v182
  %233 = vst [vmem:[%s2 + $0x18] sm:$0xff] %v184
  %234 = vst [vmem:[%s2 + $0x20] sm:$0xff] %v187
  %235 = vst [vmem:[%s2 + $0x28] sm:$0xff] %v189
  %236 = vst [vmem:[%s2 + $0x30] sm:$0xff] %v192
  %237 = vst [vmem:[%s2 + $0x38] sm:$0xff] %v194
  %238 = vst [vmem:[%s2 + $0x40] sm:$0xff] %v197
  %239 = vst [vmem:[%s2 + $0x48] sm:$0xff] %v199
  %240 = vst [vmem:[%s2 + $0x50] sm:$0xff] %v202
  %241 = vst [vmem:[%s2 + $0x58] sm:$0xff] %v204
  %242 = vst [vmem:[%s2 + $0x60] sm:$0xff] %v207
  %243 = vst [vmem:[%s2 + $0x68] sm:$0xff] %v209
  %244 = vst [vmem:[%s2 + $0x70] sm:$0xff] %v212
  %245 = vst [vmem:[%s2 + $0x78] sm:$0xff] %v214
  %246 = vst [vmem:[%s2 + $0x80] sm:$0xff] %v217
  %247 = vst [vmem:[%s2 + $0x88] sm:$0xff] %v219
  %248 = vst [vmem:[%s2 + $0x90] sm:$0xff] %v222
  %249 = vst [vmem:[%s2 + $0x98] sm:$0xff] %v224
  %250 = vst [vmem:[%s2 + $0xa0] sm:$0xff] %v227
  %v251 = vld [vmem:[%s3] sm:$0x1]
  %v252 = vadd.f32 %v177, %v179
  %v253 = vadd.f32 %v252, %v182
  %v254 = vadd.f32 %v253, %v184
  %v255 = vadd.f32 %v254, %v187
  %v256 = vadd.f32 %v255, %v189
  %v257 = vadd.f32 %v256, %v192
  %v258 = vadd.f32 %v257, %v194
  %v259 = vadd.f32 %v258, %v197
  %v260 = vadd.f32 %v259, %v199
  %v261 = vadd.f32 %v260, %v202
  %v262 = vadd.f32 %v261, %v204
  %v263 = vadd.f32 %v262, %v207
  %v264 = vadd.f32 %v263, %v209
  %v265 = vadd.f32 %v264, %v212
  %v266 = vadd.f32 %v265, %v214
  %v267 = vadd.f32 %v266, %v217
  %v268 = vadd.f32 %v267, %v219
  %v269 = vadd.f32 %v268, %v222
  %v270 = vadd.f32 %v269, %v224
  %v271 = vadd.f32 %v270, %v227
  %v272 = vrot.slane %v271, 4
  %v273 = vadd.f32 %v271, %v272
  %v274 = vrot.slane %v273, 2
  %v275 = vadd.f32 %v273, %v274
  %v276 = vrot.slane %v275, 1
  %v277 = vadd.f32 %v275, %v276
  %v278 = vadd.f32 %v251, %v277
  %279 = vst [vmem:[%s3] sm:$0x1] %v278
  %v280 = vld [vmem:[%s3 + $0x1] sm:$0x1]
  %v281 = vmul.f32 %v177, %v177
  %v282 = vmul.f32 %v179, %v179
  %v283 = vmul.f32 %v182, %v182
  %v284 = vmul.f32 %v184, %v184
  %v285 = vmul.f32 %v187, %v187
  %v286 = vmul.f32 %v189, %v189
  %v287 = vmul.f32 %v192, %v192
  %v288 = vmul.f32 %v194, %v194
  %v289 = vmul.f32 %v197, %v197
  %v290 = vmul.f32 %v199, %v199
  %v291 = vmul.f32 %v202, %v202
  %v292 = vmul.f32 %v204, %v204
  %v293 = vmul.f32 %v207, %v207
  %v294 = vmul.f32 %v209, %v209
  %v295 = vmul.f32 %v212, %v212
  %v296 = vmul.f32 %v214, %v214
  %v297 = vmul.f32 %v217, %v217
  %v298 = vmul.f32 %v219, %v219
  %v299 = vmul.f32 %v222, %v222
  %v300 = vmul.f32 %v224, %v224
  %v301 = vmul.f32 %v227, %v227
  %v302 = vadd.f32 %v281, %v282
  %v303 = vadd.f32 %v302, %v283
  %v304 = vadd.f32 %v303, %v284
  %v305 = vadd.f32 %v304, %v285
  %v306 = vadd.f32 %v305, %v286
  %v307 = vadd.f32 %v306, %v287
  %v308 = vadd.f32 %v307, %v288
  %v309 = vadd.f32 %v308, %v289
  %v310 = vadd.f32 %v309, %v290
  %v311 = vadd.f32 %v310, %v291
  %v312 = vadd.f32 %v311, %v292
  %v313 = vadd.f32 %v312, %v293
  %v314 = vadd.f32 %v313, %v294
  %v315 = vadd.f32 %v314, %v295
  %v316 = vadd.f32 %v315, %v296
  %v317 = vadd.f32 %v316, %v297
  %v318 = vadd.f32 %v317, %v298
  %v319 = vadd.f32 %v318, %v299
  %v320 = vadd.f32 %v319, %v300
  %v321 = vadd.f32 %v320, %v301
  %v322 = vrot.slane %v321, 4
  %v323 = vadd.f32 %v321, %v322
  %v324 = vrot.slane %v323, 2
  %v325 = vadd.f32 %v323, %v324
  %v326 = vrot.slane %v325, 1
  %v327 = vadd.f32 %v325, %v326
  %v328 = vadd.f32 %v280, %v327
  %329 = vst [vmem:[%s3 + $0x1] sm:$0x1] %v328
  // Predicated region
  $region14: #{simp_resnet9_k33.26} parent=0 // pred_check
    _
  $region15: #{simp_resnet9_k33.26} parent=0 // pred_check_branch
    %331 = sbr.rel (0) target = $region17
  $region16: #{simp_resnet9_k33.26} parent=0 // pred_region
    _
  $region17: #{simp_resnet9_k33.26} parent=0 // pred_fallthru
    _
  // Predicated region
  $region18: #{simp_resnet9_k33.26} parent=0 // pred_check
    _
  $region19: #{simp_resnet9_k33.26} parent=0 // pred_check_branch
    %333 = sbr.rel (0) target = $region21
  $region20: #{simp_resnet9_k33.26} parent=0 // pred_region
    _
  $region21: #{simp_resnet9_k33.26} parent=0 // pred_fallthru
    _
  // Predicated region
  $region22: #{simp_resnet9_k33.26} parent=0 // pred_check
    _
  $region23: #{simp_resnet9_k33.26} parent=0 // pred_check_branch
    %335 = sbr.rel (0) target = $region25
  $region24: #{simp_resnet9_k33.26} parent=0 // pred_region
    _
  $region25: #{simp_resnet9_k33.26} parent=0 // pred_fallthru
    _
  // Predicated region
  $region26: #{simp_resnet9_k33.26} parent=0 // pred_check
    _
  $region27: #{simp_resnet9_k33.26} parent=0 // pred_check_branch
    %337 = sbr.rel (0) target = $region29
  $region28: #{simp_resnet9_k33.26} parent=0 // pred_region
    _
  $region29: #{simp_resnet9_k33.26} parent=0 // pred_fallthru
    _

// kernel: simp_resnet9_k33.24
$region0: #{simp_resnet9_k33.24}
  #allocation0 [shape = 'u32[]', space=smem, size = 0x4, offset = 0x4, fixed_abs, tag = 'smem constant byte address 0x4 - core index']
  #allocation1 [shape = 'u32[72,128]{1,0:T(1,128)}', space=vmem, size = 0x9000, scoped, tag = 'internal scratch']
  %s0 = inlined_call_operand.vmem [shape: bf16[168,1152], index: 0, kind: input, shape index: {}]
  %s1 = inlined_call_operand.vmem [shape: bf16[1152,128], index: 1, kind: input, shape index: {}]
  %s2 = inlined_call_operand.vmem [shape: f32[168,128], index: 2, kind: output, shape index: {0}]
  %s3 = inlined_call_operand.vmem [shape: f32[2,128], index: 3, kind: output, shape index: {1}]
  %4 = xla_tuple %s2, %s3
  %s5 = sld [smem:[#allocation0]]
  $region30: #{simp_resnet9_k33.24} parent=0
    _
  %s7 = ssub.s32 1, %s5
  %s8 = scalar_select 0, %s7, %s5
  // Predicated region
  $region2: #{simp_resnet9_k33.24} parent=0 // pred_check
    _
  $region3: #{simp_resnet9_k33.24} parent=0 // pred_check_branch
    %10 = sbr.rel (0) target = $region5
  $region4: #{simp_resnet9_k33.24} parent=0 // pred_region
    _
  $region5: #{simp_resnet9_k33.24} parent=0 // pred_fallthru
    _
  // Predicated region
  $region6: #{simp_resnet9_k33.24} parent=0 // pred_check
    _
  $region7: #{simp_resnet9_k33.24} parent=0 // pred_check_branch
    %12 = sbr.rel (0) target = $region9
  $region8: #{simp_resnet9_k33.24} parent=0 // pred_region
    _
  $region9: #{simp_resnet9_k33.24} parent=0 // pred_fallthru
    _
  %p13 = scmp.eq.s32.totalorder 0, 0
  // Predicated region
  $region10: #{simp_resnet9_k33.24} parent=0 // pred_check
    %p14 = pneg %p13
  $region11: #{simp_resnet9_k33.24} parent=0 // pred_check_branch
    %16 = sbr.rel (%p14) target = $region13
  $region12: #{simp_resnet9_k33.24} parent=0 // pred_region
    %17 = vst [vmem:[%s3] sm:$0x3] 0.0
  $region13: #{simp_resnet9_k33.24} parent=0 // pred_fallthru
    _
  %v18 = vld [vmem:[%s0] sm:$0xff]
  %v19 = vld [vmem:[%s0 + $0x8] sm:$0xff]
  %v20 = vld [vmem:[%s0 + $0x10] sm:$0xff]
  %v21 = vld [vmem:[%s0 + $0x18] sm:$0xff]
  %v22 = vld [vmem:[%s0 + $0x20] sm:$0xf]
  %v23 = vld [vmem:[%s0 + $0x24] sm:$0xff]
  %v24 = vld [vmem:[%s0 + $0x2c] sm:$0xff]
  %v25 = vld [vmem:[%s0 + $0x34] sm:$0xff]
  %v26 = vld [vmem:[%s0 + $0x3c] sm:$0xff]
  %v27 = vld [vmem:[%s0 + $0x44] sm:$0xf]
  %v28 = vld [vmem:[%s0 + $0x48] sm:$0xff]
  %v29 = vld [vmem:[%s0 + $0x50] sm:$0xff]
  %v30 = vld [vmem:[%s0 + $0x58] sm:$0xff]
  %v31 = vld [vmem:[%s0 + $0x60] sm:$0xff]
  %v32 = vld [vmem:[%s0 + $0x68] sm:$0xf]
  %v33 = vld [vmem:[%s0 + $0x6c] sm:$0xff]
  %v34 = vld [vmem:[%s0 + $0x74] sm:$0xff]
  %v35 = vld [vmem:[%s0 + $0x7c] sm:$0xff]
  %v36 = vld [vmem:[%s0 + $0x84] sm:$0xff]
  %v37 = vld [vmem:[%s0 + $0x8c] sm:$0xf]
  %v38 = vld [vmem:[%s0 + $0x90] sm:$0xff]
  %v39 = vld [vmem:[%s0 + $0x98] sm:$0xff]
  %v40 = vld [vmem:[%s0 + $0xa0] sm:$0xff]
  %v41 = vld [vmem:[%s0 + $0xa8] sm:$0xff]
  %v42 = vld [vmem:[%s0 + $0xb0] sm:$0xf]
  %v43 = vld [vmem:[%s0 + $0xb4] sm:$0xff]
  %v44 = vld [vmem:[%s0 + $0xbc] sm:$0xff]
  %v45 = vld [vmem:[%s0 + $0xc4] sm:$0xff]
  %v46 = vld [vmem:[%s0 + $0xcc] sm:$0xff]
  %v47 = vld [vmem:[%s0 + $0xd4] sm:$0xf]
  %v48 = vld [vmem:[%s0 + $0xd8] sm:$0xff]
  %v49 = vld [vmem:[%s0 + $0xe0] sm:$0xff]
  %v50 = vld [vmem:[%s0 + $0xe8] sm:$0xff]
  %v51 = vld [vmem:[%s0 + $0xf0] sm:$0xff]
  %v52 = vld [vmem:[%s0 + $0xf8] sm:$0xf]
  %v53 = vld [vmem:[%s0 + $0xfc] sm:$0xff]
  %v54 = vld [vmem:[%s0 + $0x104] sm:$0xff]
  %v55 = vld [vmem:[%s0 + $0x10c] sm:$0xff]
  %v56 = vld [vmem:[%s0 + $0x114] sm:$0xff]
  %v57 = vld [vmem:[%s0 + $0x11c] sm:$0xf]
  %v58 = vld [vmem:[%s0 + $0x120] sm:$0xff]
  %v59 = vld [vmem:[%s0 + $0x128] sm:$0xff]
  %v60 = vld [vmem:[%s0 + $0x130] sm:$0xff]
  %v61 = vld [vmem:[%s0 + $0x138] sm:$0xff]
  %v62 = vld [vmem:[%s0 + $0x140] sm:$0xf]
  %v63 = vld [vmem:[%s0 + $0x144] sm:$0xff]
  %v64 = vld [vmem:[%s0 + $0x14c] sm:$0xff]
  %v65 = vld [vmem:[%s0 + $0x154] sm:$0xff]
  %v66 = vld [vmem:[%s0 + $0x15c] sm:$0xff]
  %v67 = vld [vmem:[%s0 + $0x164] sm:$0xf]
  %v68 = vld [vmem:[%s0 + $0x168] sm:$0xff]
  %v69 = vld [vmem:[%s0 + $0x170] sm:$0xff]
  %v70 = vld [vmem:[%s0 + $0x178] sm:$0xff]
  %v71 = vld [vmem:[%s0 + $0x180] sm:$0xff]
  %v72 = vld [vmem:[%s0 + $0x188] sm:$0xf]
  %v73 = vld [vmem:[%s0 + $0x18c] sm:$0xff]
  %v74 = vld [vmem:[%s0 + $0x194] sm:$0xff]
  %v75 = vld [vmem:[%s0 + $0x19c] sm:$0xff]
  %v76 = vld [vmem:[%s0 + $0x1a4] sm:$0xff]
  %v77 = vld [vmem:[%s0 + $0x1ac] sm:$0xf]
  %v78 = vld [vmem:[%s0 + $0x1b0] sm:$0xff]
  %v79 = vld [vmem:[%s0 + $0x1b8] sm:$0xff]
  %v80 = vld [vmem:[%s0 + $0x1c0] sm:$0xff]
  %v81 = vld [vmem:[%s0 + $0x1c8] sm:$0xff]
  %v82 = vld [vmem:[%s0 + $0x1d0] sm:$0xf]
  %v83 = vld [vmem:[%s0 + $0x1d4] sm:$0xff]
  %v84 = vld [vmem:[%s0 + $0x1dc] sm:$0xff]
  %v85 = vld [vmem:[%s0 + $0x1e4] sm:$0xff]
  %v86 = vld [vmem:[%s0 + $0x1ec] sm:$0xff]
  %v87 = vld [vmem:[%s0 + $0x1f4] sm:$0xf]
  %v88 = vld [vmem:[%s0 + $0x1f8] sm:$0xff]
  %v89 = vld [vmem:[%s0 + $0x200] sm:$0xff]
  %v90 = vld [vmem:[%s0 + $0x208] sm:$0xff]
  %v91 = vld [vmem:[%s0 + $0x210] sm:$0xff]
  %v92 = vld [vmem:[%s0 + $0x218] sm:$0xf]
  %v93 = vld [vmem:[%s0 + $0x21c] sm:$0xff]
  %v94 = vld [vmem:[%s0 + $0x224] sm:$0xff]
  %v95 = vld [vmem:[%s0 + $0x22c] sm:$0xff]
  %v96 = vld [vmem:[%s0 + $0x234] sm:$0xff]
  %v97 = vld [vmem:[%s0 + $0x23c] sm:$0xf]
  %v98 = vld [vmem:[%s0 + $0x240] sm:$0xff]
  %v99 = vld [vmem:[%s0 + $0x248] sm:$0xff]
  %v100 = vld [vmem:[%s0 + $0x250] sm:$0xff]
  %v101 = vld [vmem:[%s0 + $0x258] sm:$0xff]
  %v102 = vld [vmem:[%s0 + $0x260] sm:$0xf]
  %v103 = vld [vmem:[%s0 + $0x264] sm:$0xff]
  %v104 = vld [vmem:[%s0 + $0x26c] sm:$0xff]
  %v105 = vld [vmem:[%s0 + $0x274] sm:$0xff]
  %v106 = vld [vmem:[%s0 + $0x27c] sm:$0xff]
  %v107 = vld [vmem:[%s0 + $0x284] sm:$0xf]
  %v108 = vld [vmem:[%s0 + $0x288] sm:$0xff]
  %v109 = vld [vmem:[%s0 + $0x290] sm:$0xff]
  %v110 = vld [vmem:[%s0 + $0x298] sm:$0xff]
  %v111 = vld [vmem:[%s0 + $0x2a0] sm:$0xff]
  %v112 = vld [vmem:[%s0 + $0x2a8] sm:$0xf]
  %v113 = vld [vmem:[%s0 + $0x2ac] sm:$0xff]
  %v114 = vld [vmem:[%s0 + $0x2b4] sm:$0xff]
  %v115 = vld [vmem:[%s0 + $0x2bc] sm:$0xff]
  %v116 = vld [vmem:[%s0 + $0x2c4] sm:$0xff]
  %v117 = vld [vmem:[%s0 + $0x2cc] sm:$0xf]
  %v118 = vld [vmem:[%s0 + $0x2d0] sm:$0xff]
  %v119 = vld [vmem:[%s0 + $0x2d8] sm:$0xff]
  %v120 = vld [vmem:[%s0 + $0x2e0] sm:$0xff]
  %v121 = vld [vmem:[%s0 + $0x2e8] sm:$0xff]
  %v122 = vld [vmem:[%s0 + $0x2f0] sm:$0xf]
  %v123 = vld [vmem:[%s1] sm:$0xf]
  %v124 = vld [vmem:[%s1 + $0x4] sm:$0xf]
  %v125 = vld [vmem:[%s1 + $0x8] sm:$0xf]
  %v126 = vld [vmem:[%s1 + $0xc] sm:$0xf]
  %v127 = vld [vmem:[%s1 + $0x10] sm:$0xf]
  %v128 = vld [vmem:[%s1 + $0x14] sm:$0xf]
  %v129 = vld [vmem:[%s1 + $0x18] sm:$0xf]
  %v130 = vld [vmem:[%s1 + $0x1c] sm:$0xf]
  %v131 = vld [vmem:[%s1 + $0x20] sm:$0xf]
  %v132 = vld [vmem:[%s1 + $0x24] sm:$0xf]
  %v133 = vld [vmem:[%s1 + $0x28] sm:$0xf]
  %v134 = vld [vmem:[%s1 + $0x2c] sm:$0xf]
  %v135 = vld [vmem:[%s1 + $0x30] sm:$0xf]
  %v136 = vld [vmem:[%s1 + $0x34] sm:$0xf]
  %v137 = vld [vmem:[%s1 + $0x38] sm:$0xf]
  %v138 = vld [vmem:[%s1 + $0x3c] sm:$0xf]
  %v139 = vld [vmem:[%s1 + $0x40] sm:$0xf]
  %v140 = vld [vmem:[%s1 + $0x44] sm:$0xf]
  %v141 = vld [vmem:[%s1 + $0x48] sm:$0xf]
  %v142 = vld [vmem:[%s1 + $0x4c] sm:$0xf]
  %v143 = vld [vmem:[%s1 + $0x50] sm:$0xf]
  %v144 = vld [vmem:[%s1 + $0x54] sm:$0xf]
  %v145 = vld [vmem:[%s1 + $0x58] sm:$0xf]
  %v146 = vld [vmem:[%s1 + $0x5c] sm:$0xf]
  %v147 = vld [vmem:[%s1 + $0x60] sm:$0xf]
  %v148 = vld [vmem:[%s1 + $0x64] sm:$0xf]
  %v149 = vld [vmem:[%s1 + $0x68] sm:$0xf]
  %v150 = vld [vmem:[%s1 + $0x6c] sm:$0xf]
  %v151 = vld [vmem:[%s1 + $0x70] sm:$0xf]
  %v152 = vld [vmem:[%s1 + $0x74] sm:$0xf]
  %v153 = vld [vmem:[%s1 + $0x78] sm:$0xf]
  %v154 = vld [vmem:[%s1 + $0x7c] sm:$0xf]
  %v155 = vld [vmem:[%s1 + $0x80] sm:$0xf]
  %v156 = vld [vmem:[%s1 + $0x84] sm:$0xf]
  %v157 = vld [vmem:[%s1 + $0x88] sm:$0xf]
  %v158 = vld [vmem:[%s1 + $0x8c] sm:$0xf]
  %v159 = vld [vmem:[%s1 + $0x90] sm:$0xf]
  %v160 = vld [vmem:[%s1 + $0x94] sm:$0xf]
  %v161 = vld [vmem:[%s1 + $0x98] sm:$0xf]
  %v162 = vld [vmem:[%s1 + $0x9c] sm:$0xf]
  %v163 = vld [vmem:[%s1 + $0xa0] sm:$0xf]
  %v164 = vld [vmem:[%s1 + $0xa4] sm:$0xf]
  %v165 = vld [vmem:[%s1 + $0xa8] sm:$0xf]
  %v166 = vld [vmem:[%s1 + $0xac] sm:$0xf]
  %v167 = vld [vmem:[%s1 + $0xb0] sm:$0xf]
  %v168 = vld [vmem:[%s1 + $0xb4] sm:$0xf]
  %v169 = vld [vmem:[%s1 + $0xb8] sm:$0xf]
  %v170 = vld [vmem:[%s1 + $0xbc] sm:$0xf]
  %v171 = vld [vmem:[%s1 + $0xc0] sm:$0xf]
  %v172 = vld [vmem:[%s1 + $0xc4] sm:$0xf]
  %v173 = vld [vmem:[%s1 + $0xc8] sm:$0xf]
  %v174 = vld [vmem:[%s1 + $0xcc] sm:$0xf]
  %v175 = vld [vmem:[%s1 + $0xd0] sm:$0xf]
  %v176 = vld [vmem:[%s1 + $0xd4] sm:$0xf]
  %v177 = vld [vmem:[%s1 + $0xd8] sm:$0xf]
  %v178 = vld [vmem:[%s1 + $0xdc] sm:$0xf]
  %v179 = vld [vmem:[%s1 + $0xe0] sm:$0xf]
  %v180 = vld [vmem:[%s1 + $0xe4] sm:$0xf]
  %v181 = vld [vmem:[%s1 + $0xe8] sm:$0xf]
  %v182 = vld [vmem:[%s1 + $0xec] sm:$0xf]
  %v183 = vld [vmem:[%s1 + $0xf0] sm:$0xf]
  %v184 = vld [vmem:[%s1 + $0xf4] sm:$0xf]
  %v185 = vld [vmem:[%s1 + $0xf8] sm:$0xf]
  %v186 = vld [vmem:[%s1 + $0xfc] sm:$0xf]
  %v187 = vld [vmem:[%s1 + $0x100] sm:$0xf]
  %v188 = vld [vmem:[%s1 + $0x104] sm:$0xf]
  %v189 = vld [vmem:[%s1 + $0x108] sm:$0xf]
  %v190 = vld [vmem:[%s1 + $0x10c] sm:$0xf]
  %v191 = vld [vmem:[%s1 + $0x110] sm:$0xf]
  %v192 = vld [vmem:[%s1 + $0x114] sm:$0xf]
  %v193 = vld [vmem:[%s1 + $0x118] sm:$0xf]
  %v194 = vld [vmem:[%s1 + $0x11c] sm:$0xf]
  %v195 = vld [vmem:[%s1 + $0x120] sm:$0xf]
  %v196 = vld [vmem:[%s1 + $0x124] sm:$0xf]
  %v197 = vld [vmem:[%s1 + $0x128] sm:$0xf]
  %v198 = vld [vmem:[%s1 + $0x12c] sm:$0xf]
  %v199 = vld [vmem:[%s1 + $0x130] sm:$0xf]
  %v200 = vld [vmem:[%s1 + $0x134] sm:$0xf]
  %v201 = vld [vmem:[%s1 + $0x138] sm:$0xf]
  %v202 = vld [vmem:[%s1 + $0x13c] sm:$0xf]
  %v203 = vld [vmem:[%s1 + $0x140] sm:$0xf]
  %v204 = vld [vmem:[%s1 + $0x144] sm:$0xf]
  %v205 = vld [vmem:[%s1 + $0x148] sm:$0xf]
  %v206 = vld [vmem:[%s1 + $0x14c] sm:$0xf]
  %v207 = vld [vmem:[%s1 + $0x150] sm:$0xf]
  %v208 = vld [vmem:[%s1 + $0x154] sm:$0xf]
  %v209 = vld [vmem:[%s1 + $0x158] sm:$0xf]
  %v210 = vld [vmem:[%s1 + $0x15c] sm:$0xf]
  %v211 = vld [vmem:[%s1 + $0x160] sm:$0xf]
  %v212 = vld [vmem:[%s1 + $0x164] sm:$0xf]
  %v213 = vld [vmem:[%s1 + $0x168] sm:$0xf]
  %v214 = vld [vmem:[%s1 + $0x16c] sm:$0xf]
  %v215 = vld [vmem:[%s1 + $0x170] sm:$0xf]
  %v216 = vld [vmem:[%s1 + $0x174] sm:$0xf]
  %v217 = vld [vmem:[%s1 + $0x178] sm:$0xf]
  %v218 = vld [vmem:[%s1 + $0x17c] sm:$0xf]
  %v219 = vld [vmem:[%s1 + $0x180] sm:$0xf]
  %v220 = vld [vmem:[%s1 + $0x184] sm:$0xf]
  %v221 = vld [vmem:[%s1 + $0x188] sm:$0xf]
  %v222 = vld [vmem:[%s1 + $0x18c] sm:$0xf]
  %v223 = vld [vmem:[%s1 + $0x190] sm:$0xf]
  %v224 = vld [vmem:[%s1 + $0x194] sm:$0xf]
  %v225 = vld [vmem:[%s1 + $0x198] sm:$0xf]
  %v226 = vld [vmem:[%s1 + $0x19c] sm:$0xf]
  %v227 = vld [vmem:[%s1 + $0x1a0] sm:$0xf]
  %v228 = vld [vmem:[%s1 + $0x1a4] sm:$0xf]
  %v229 = vld [vmem:[%s1 + $0x1a8] sm:$0xf]
  %v230 = vld [vmem:[%s1 + $0x1ac] sm:$0xf]
  %v231 = vld [vmem:[%s1 + $0x1b0] sm:$0xf]
  %v232 = vld [vmem:[%s1 + $0x1b4] sm:$0xf]
  %v233 = vld [vmem:[%s1 + $0x1b8] sm:$0xf]
  %v234 = vld [vmem:[%s1 + $0x1bc] sm:$0xf]
  %v235 = vld [vmem:[%s1 + $0x1c0] sm:$0xf]
  %v236 = vld [vmem:[%s1 + $0x1c4] sm:$0xf]
  %v237 = vld [vmem:[%s1 + $0x1c8] sm:$0xf]
  %v238 = vld [vmem:[%s1 + $0x1cc] sm:$0xf]
  %v239 = vld [vmem:[%s1 + $0x1d0] sm:$0xf]
  %v240 = vld [vmem:[%s1 + $0x1d4] sm:$0xf]
  %v241 = vld [vmem:[%s1 + $0x1d8] sm:$0xf]
  %v242 = vld [vmem:[%s1 + $0x1dc] sm:$0xf]
  %v243 = vld [vmem:[%s1 + $0x1e0] sm:$0xf]
  %v244 = vld [vmem:[%s1 + $0x1e4] sm:$0xf]
  %v245 = vld [vmem:[%s1 + $0x1e8] sm:$0xf]
  %v246 = vld [vmem:[%s1 + $0x1ec] sm:$0xf]
  %v247 = vld [vmem:[%s1 + $0x1f0] sm:$0xf]
  %v248 = vld [vmem:[%s1 + $0x1f4] sm:$0xf]
  %v249 = vld [vmem:[%s1 + $0x1f8] sm:$0xf]
  %v250 = vld [vmem:[%s1 + $0x1fc] sm:$0xf]
  %v251 = vld [vmem:[%s1 + $0x200] sm:$0xf]
  %v252 = vld [vmem:[%s1 + $0x204] sm:$0xf]
  %v253 = vld [vmem:[%s1 + $0x208] sm:$0xf]
  %v254 = vld [vmem:[%s1 + $0x20c] sm:$0xf]
  %v255 = vld [vmem:[%s1 + $0x210] sm:$0xf]
  %v256 = vld [vmem:[%s1 + $0x214] sm:$0xf]
  %v257 = vld [vmem:[%s1 + $0x218] sm:$0xf]
  %v258 = vld [vmem:[%s1 + $0x21c] sm:$0xf]
  %v259 = vld [vmem:[%s1 + $0x220] sm:$0xf]
  %v260 = vld [vmem:[%s1 + $0x224] sm:$0xf]
  %v261 = vld [vmem:[%s1 + $0x228] sm:$0xf]
  %v262 = vld [vmem:[%s1 + $0x22c] sm:$0xf]
  %v263 = vld [vmem:[%s1 + $0x230] sm:$0xf]
  %v264 = vld [vmem:[%s1 + $0x234] sm:$0xf]
  %v265 = vld [vmem:[%s1 + $0x238] sm:$0xf]
  %v266 = vld [vmem:[%s1 + $0x23c] sm:$0xf]
  %v372 = vunpack.c.l.b16 %v18
  %v373 = vunpack.c.h.b16 %v18
  %v374 = vunpack.c.l.b16 %v19
  %v375 = vunpack.c.h.b16 %v19
  %v376 = vunpack.c.l.b16 %v20
  %v377 = vunpack.c.h.b16 %v20
  %v378 = vunpack.c.l.b16 %v21
  %v379 = vunpack.c.h.b16 %v21
  %v380 = vunpack.c.l.b16 %v22
  %v381 = vunpack.c.l.b16 %v23
  %v382 = vunpack.c.h.b16 %v23
  %v383 = vunpack.c.l.b16 %v24
  %v384 = vunpack.c.h.b16 %v24
  %v385 = vunpack.c.l.b16 %v25
  %v386 = vunpack.c.h.b16 %v25
  %v387 = vunpack.c.l.b16 %v26
  %v388 = vunpack.c.h.b16 %v26
  %v389 = vunpack.c.l.b16 %v27
  %v390 = vunpack.c.l.b16 %v28
  %v391 = vunpack.c.h.b16 %v28
  %v392 = vunpack.c.l.b16 %v29
  %v393 = vunpack.c.h.b16 %v29
  %v394 = vunpack.c.l.b16 %v30
  %v395 = vunpack.c.h.b16 %v30
  %v396 = vunpack.c.l.b16 %v31
  %v397 = vunpack.c.h.b16 %v31
  %v398 = vunpack.c.l.b16 %v32
  %v399 = vunpack.c.l.b16 %v33
  %v400 = vunpack.c.h.b16 %v33
  %v401 = vunpack.c.l.b16 %v34
  %v402 = vunpack.c.h.b16 %v34
  %v403 = vunpack.c.l.b16 %v35
  %v404 = vunpack.c.h.b16 %v35
  %v405 = vunpack.c.l.b16 %v36
  %v406 = vunpack.c.h.b16 %v36
  %v407 = vunpack.c.l.b16 %v37
  %v408 = vunpack.c.l.b16 %v38
  %v409 = vunpack.c.h.b16 %v38
  %v410 = vunpack.c.l.b16 %v39
  %v411 = vunpack.c.h.b16 %v39
  %v412 = vunpack.c.l.b16 %v40
  %v413 = vunpack.c.h.b16 %v40
  %v414 = vunpack.c.l.b16 %v41
  %v415 = vunpack.c.h.b16 %v41
  %v416 = vunpack.c.l.b16 %v42
  %v417 = vunpack.c.l.b16 %v43
  %v418 = vunpack.c.h.b16 %v43
  %v419 = vunpack.c.l.b16 %v44
  %v420 = vunpack.c.h.b16 %v44
  %v421 = vunpack.c.l.b16 %v45
  %v422 = vunpack.c.h.b16 %v45
  %v423 = vunpack.c.l.b16 %v46
  %v424 = vunpack.c.h.b16 %v46
  %v425 = vunpack.c.l.b16 %v47
  %v426 = vunpack.c.l.b16 %v48
  %v427 = vunpack.c.h.b16 %v48
  %v428 = vunpack.c.l.b16 %v49
  %v429 = vunpack.c.h.b16 %v49
  %v430 = vunpack.c.l.b16 %v50
  %v431 = vunpack.c.h.b16 %v50
  %v432 = vunpack.c.l.b16 %v51
  %v433 = vunpack.c.h.b16 %v51
  %v434 = vunpack.c.l.b16 %v52
  %v435 = vunpack.c.l.b16 %v53
  %v436 = vunpack.c.h.b16 %v53
  %v437 = vunpack.c.l.b16 %v54
  %v438 = vunpack.c.h.b16 %v54
  %v439 = vunpack.c.l.b16 %v55
  %v440 = vunpack.c.h.b16 %v55
  %v441 = vunpack.c.l.b16 %v56
  %v442 = vunpack.c.h.b16 %v56
  %v443 = vunpack.c.l.b16 %v57
  %v444 = vunpack.c.l.b16 %v58
  %v445 = vunpack.c.h.b16 %v58
  %v446 = vunpack.c.l.b16 %v59
  %v447 = vunpack.c.h.b16 %v59
  %v448 = vunpack.c.l.b16 %v60
  %v449 = vunpack.c.h.b16 %v60
  %v450 = vunpack.c.l.b16 %v61
  %v451 = vunpack.c.h.b16 %v61
  %v452 = vunpack.c.l.b16 %v62
  %v453 = vunpack.c.l.b16 %v63
  %v454 = vunpack.c.h.b16 %v63
  %v455 = vunpack.c.l.b16 %v64
  %v456 = vunpack.c.h.b16 %v64
  %v457 = vunpack.c.l.b16 %v65
  %v458 = vunpack.c.h.b16 %v65
  %v459 = vunpack.c.l.b16 %v66
  %v460 = vunpack.c.h.b16 %v66
  %v461 = vunpack.c.l.b16 %v67
  %v462 = vunpack.c.l.b16 %v68
  %v463 = vunpack.c.h.b16 %v68
  %v464 = vunpack.c.l.b16 %v69
  %v465 = vunpack.c.h.b16 %v69
  %v466 = vunpack.c.l.b16 %v70
  %v467 = vunpack.c.h.b16 %v70
  %v468 = vunpack.c.l.b16 %v71
  %v469 = vunpack.c.h.b16 %v71
  %v470 = vunpack.c.l.b16 %v72
  %v471 = vunpack.c.l.b16 %v73
  %v472 = vunpack.c.h.b16 %v73
  %v473 = vunpack.c.l.b16 %v74
  %v474 = vunpack.c.h.b16 %v74
  %v475 = vunpack.c.l.b16 %v75
  %v476 = vunpack.c.h.b16 %v75
  %v477 = vunpack.c.l.b16 %v76
  %v478 = vunpack.c.h.b16 %v76
  %v479 = vunpack.c.l.b16 %v77
  %v480 = vunpack.c.l.b16 %v78
  %v481 = vunpack.c.h.b16 %v78
  %v482 = vunpack.c.l.b16 %v79
  %v483 = vunpack.c.h.b16 %v79
  %v484 = vunpack.c.l.b16 %v80
  %v485 = vunpack.c.h.b16 %v80
  %v486 = vunpack.c.l.b16 %v81
  %v487 = vunpack.c.h.b16 %v81
  %v488 = vunpack.c.l.b16 %v82
  %v489 = vunpack.c.l.b16 %v83
  %v490 = vunpack.c.h.b16 %v83
  %v491 = vunpack.c.l.b16 %v84
  %v492 = vunpack.c.h.b16 %v84
  %v493 = vunpack.c.l.b16 %v85
  %v494 = vunpack.c.h.b16 %v85
  %v495 = vunpack.c.l.b16 %v86
  %v496 = vunpack.c.h.b16 %v86
  %v497 = vunpack.c.l.b16 %v87
  %v498 = vunpack.c.l.b16 %v88
  %v499 = vunpack.c.h.b16 %v88
  %v500 = vunpack.c.l.b16 %v89
  %v501 = vunpack.c.h.b16 %v89
  %v502 = vunpack.c.l.b16 %v90
  %v503 = vunpack.c.h.b16 %v90
  %v504 = vunpack.c.l.b16 %v91
  %v505 = vunpack.c.h.b16 %v91
  %v506 = vunpack.c.l.b16 %v92
  %v507 = vunpack.c.l.b16 %v93
  %v508 = vunpack.c.h.b16 %v93
  %v509 = vunpack.c.l.b16 %v94
  %v510 = vunpack.c.h.b16 %v94
  %v511 = vunpack.c.l.b16 %v95
  %v512 = vunpack.c.h.b16 %v95
  %v513 = vunpack.c.l.b16 %v96
  %v514 = vunpack.c.h.b16 %v96
  %v515 = vunpack.c.l.b16 %v97
  %v516 = vunpack.c.l.b16 %v98
  %v517 = vunpack.c.h.b16 %v98
  %v518 = vunpack.c.l.b16 %v99
  %v519 = vunpack.c.h.b16 %v99
  %v520 = vunpack.c.l.b16 %v100
  %v521 = vunpack.c.h.b16 %v100
  %v522 = vunpack.c.l.b16 %v101
  %v523 = vunpack.c.h.b16 %v101
  %v524 = vunpack.c.l.b16 %v102
  %v525 = vunpack.c.l.b16 %v103
  %v526 = vunpack.c.h.b16 %v103
  %v527 = vunpack.c.l.b16 %v104
  %v528 = vunpack.c.h.b16 %v104
  %v529 = vunpack.c.l.b16 %v105
  %v530 = vunpack.c.h.b16 %v105
  %v531 = vunpack.c.l.b16 %v106
  %v532 = vunpack.c.h.b16 %v106
  %v533 = vunpack.c.l.b16 %v107
  %v534 = vunpack.c.l.b16 %v108
  %v535 = vunpack.c.h.b16 %v108
  %v536 = vunpack.c.l.b16 %v109
  %v537 = vunpack.c.h.b16 %v109
  %v538 = vunpack.c.l.b16 %v110
  %v539 = vunpack.c.h.b16 %v110
  %v540 = vunpack.c.l.b16 %v111
  %v541 = vunpack.c.h.b16 %v111
  %v542 = vunpack.c.l.b16 %v112
  %v543 = vunpack.c.l.b16 %v113
  %v544 = vunpack.c.h.b16 %v113
  %v545 = vunpack.c.l.b16 %v114
  %v546 = vunpack.c.h.b16 %v114
  %v547 = vunpack.c.l.b16 %v115
  %v548 = vunpack.c.h.b16 %v115
  %v549 = vunpack.c.l.b16 %v116
  %v550 = vunpack.c.h.b16 %v116
  %v551 = vunpack.c.l.b16 %v117
  %v552 = vunpack.c.l.b16 %v118
  %v553 = vunpack.c.h.b16 %v118
  %v554 = vunpack.c.l.b16 %v119
  %v555 = vunpack.c.h.b16 %v119
  %v556 = vunpack.c.l.b16 %v120
  %v557 = vunpack.c.h.b16 %v120
  %v558 = vunpack.c.l.b16 %v121
  %v559 = vunpack.c.h.b16 %v121
  %v560 = vunpack.c.l.b16 %v122
  %v561 = vpack.c.b16 %v381, %v372
  %v562 = vpack.c.b16 %v382, %v373
  %v563 = vpack.c.b16 %v383, %v374
  %v564 = vpack.c.b16 %v384, %v375
  %v565 = vpack.c.b16 %v385, %v376
  %v566 = vpack.c.b16 %v386, %v377
  %v567 = vpack.c.b16 %v387, %v378
  %v568 = vpack.c.b16 %v388, %v379
  %v569 = vpack.c.b16 %v389, %v380
  %v570 = vpack.c.b16 %v399, %v390
  %v571 = vpack.c.b16 %v400, %v391
  %v572 = vpack.c.b16 %v401, %v392
  %v573 = vpack.c.b16 %v402, %v393
  %v574 = vpack.c.b16 %v403, %v394
  %v575 = vpack.c.b16 %v404, %v395
  %v576 = vpack.c.b16 %v405, %v396
  %v577 = vpack.c.b16 %v406, %v397
  %v578 = vpack.c.b16 %v407, %v398
  %v579 = vpack.c.b16 %v417, %v408
  %v580 = vpack.c.b16 %v418, %v409
  %v581 = vpack.c.b16 %v419, %v410
  %v582 = vpack.c.b16 %v420, %v411
  %v583 = vpack.c.b16 %v421, %v412
  %v584 = vpack.c.b16 %v422, %v413
  %v585 = vpack.c.b16 %v423, %v414
  %v586 = vpack.c.b16 %v424, %v415
  %v587 = vpack.c.b16 %v425, %v416
  %v588 = vpack.c.b16 %v435, %v426
  %v589 = vpack.c.b16 %v436, %v427
  %v590 = vpack.c.b16 %v437, %v428
  %v591 = vpack.c.b16 %v438, %v429
  %v592 = vpack.c.b16 %v439, %v430
  %v593 = vpack.c.b16 %v440, %v431
  %v594 = vpack.c.b16 %v441, %v432
  %v595 = vpack.c.b16 %v442, %v433
  %v596 = vpack.c.b16 %v443, %v434
  %v597 = vpack.c.b16 %v453, %v444
  %v598 = vpack.c.b16 %v454, %v445
  %v599 = vpack.c.b16 %v455, %v446
  %v600 = vpack.c.b16 %v456, %v447
  %v601 = vpack.c.b16 %v457, %v448
  %v602 = vpack.c.b16 %v458, %v449
  %v603 = vpack.c.b16 %v459, %v450
  %v604 = vpack.c.b16 %v460, %v451
  %v605 = vpack.c.b16 %v461, %v452
  %v606 = vpack.c.b16 %v471, %v462
  %v607 = vpack.c.b16 %v472, %v463
  %v608 = vpack.c.b16 %v473, %v464
  %v609 = vpack.c.b16 %v474, %v465
  %v610 = vpack.c.b16 %v475, %v466
  %v611 = vpack.c.b16 %v476, %v467
  %v612 = vpack.c.b16 %v477, %v468
  %v613 = vpack.c.b16 %v478, %v469
  %v614 = vpack.c.b16 %v479, %v470
  %v615 = vpack.c.b16 %v489, %v480
  %v616 = vpack.c.b16 %v490, %v481
  %v617 = vpack.c.b16 %v491, %v482
  %v618 = vpack.c.b16 %v492, %v483
  %v619 = vpack.c.b16 %v493, %v484
  %v620 = vpack.c.b16 %v494, %v485
  %v621 = vpack.c.b16 %v495, %v486
  %v622 = vpack.c.b16 %v496, %v487
  %v623 = vpack.c.b16 %v497, %v488
  %v624 = vpack.c.b16 %v507, %v498
  %v625 = vpack.c.b16 %v508, %v499
  %v626 = vpack.c.b16 %v509, %v500
  %v627 = vpack.c.b16 %v510, %v501
  %v628 = vpack.c.b16 %v511, %v502
  %v629 = vpack.c.b16 %v512, %v503
  %v630 = vpack.c.b16 %v513, %v504
  %v631 = vpack.c.b16 %v514, %v505
  %v632 = vpack.c.b16 %v515, %v506
  %v633 = vpack.c.b16 %v525, %v516
  %v634 = vpack.c.b16 %v526, %v517
  %v635 = vpack.c.b16 %v527, %v518
  %v636 = vpack.c.b16 %v528, %v519
  %v637 = vpack.c.b16 %v529, %v520
  %v638 = vpack.c.b16 %v530, %v521
  %v639 = vpack.c.b16 %v531, %v522
  %v640 = vpack.c.b16 %v532, %v523
  %v641 = vpack.c.b16 %v533, %v524
  %v642 = vpack.c.b16 %v543, %v534
  %v643 = vpack.c.b16 %v544, %v535
  %v644 = vpack.c.b16 %v545, %v536
  %v645 = vpack.c.b16 %v546, %v537
  %v646 = vpack.c.b16 %v547, %v538
  %v647 = vpack.c.b16 %v548, %v539
  %v648 = vpack.c.b16 %v549, %v540
  %v649 = vpack.c.b16 %v550, %v541
  %v650 = vpack.c.b16 %v551, %v542
  %v651 = vpack.c.b16 %v552, %v552
  %v652 = vpack.c.b16 %v553, %v553
  %v653 = vpack.c.b16 %v554, %v554
  %v654 = vpack.c.b16 %v555, %v555
  %v655 = vpack.c.b16 %v556, %v556
  %v656 = vpack.c.b16 %v557, %v557
  %v657 = vpack.c.b16 %v558, %v558
  %v658 = vpack.c.b16 %v559, %v559
  %v659 = vpack.c.b16 %v560, %v560
  %v903 = vunpack.c.l.b16 %v123
  %v904 = vunpack.c.l.b16 %v124
  %v905 = vunpack.c.l.b16 %v125
  %v906 = vunpack.c.l.b16 %v126
  %v907 = vunpack.c.l.b16 %v127
  %v908 = vunpack.c.l.b16 %v128
  %v909 = vunpack.c.l.b16 %v129
  %v910 = vunpack.c.l.b16 %v130
  %v911 = vunpack.c.l.b16 %v131
  %v912 = vunpack.c.l.b16 %v132
  %v913 = vunpack.c.l.b16 %v133
  %v914 = vunpack.c.l.b16 %v134
  %v915 = vunpack.c.l.b16 %v135
  %v916 = vunpack.c.l.b16 %v136
  %v917 = vunpack.c.l.b16 %v137
  %v918 = vunpack.c.l.b16 %v138
  %v919 = vunpack.c.l.b16 %v139
  %v920 = vunpack.c.l.b16 %v140
  %v921 = vunpack.c.l.b16 %v141
  %v922 = vunpack.c.l.b16 %v142
  %v923 = vunpack.c.l.b16 %v143
  %v924 = vunpack.c.l.b16 %v144
  %v925 = vunpack.c.l.b16 %v145
  %v926 = vunpack.c.l.b16 %v146
  %v927 = vunpack.c.l.b16 %v147
  %v928 = vunpack.c.l.b16 %v148
  %v929 = vunpack.c.l.b16 %v149
  %v930 = vunpack.c.l.b16 %v150
  %v931 = vunpack.c.l.b16 %v151
  %v932 = vunpack.c.l.b16 %v152
  %v933 = vunpack.c.l.b16 %v153
  %v934 = vunpack.c.l.b16 %v154
  %v935 = vunpack.c.l.b16 %v155
  %v936 = vunpack.c.l.b16 %v156
  %v937 = vunpack.c.l.b16 %v157
  %v938 = vunpack.c.l.b16 %v158
  %v939 = vunpack.c.l.b16 %v159
  %v940 = vunpack.c.l.b16 %v160
  %v941 = vunpack.c.l.b16 %v161
  %v942 = vunpack.c.l.b16 %v162
  %v943 = vunpack.c.l.b16 %v163
  %v944 = vunpack.c.l.b16 %v164
  %v945 = vunpack.c.l.b16 %v165
  %v946 = vunpack.c.l.b16 %v166
  %v947 = vunpack.c.l.b16 %v167
  %v948 = vunpack.c.l.b16 %v168
  %v949 = vunpack.c.l.b16 %v169
  %v950 = vunpack.c.l.b16 %v170
  %v951 = vunpack.c.l.b16 %v171
  %v952 = vunpack.c.l.b16 %v172
  %v953 = vunpack.c.l.b16 %v173
  %v954 = vunpack.c.l.b16 %v174
  %v955 = vunpack.c.l.b16 %v175
  %v956 = vunpack.c.l.b16 %v176
  %v957 = vunpack.c.l.b16 %v177
  %v958 = vunpack.c.l.b16 %v178
  %v959 = vunpack.c.l.b16 %v179
  %v960 = vunpack.c.l.b16 %v180
  %v961 = vunpack.c.l.b16 %v181
  %v962 = vunpack.c.l.b16 %v182
  %v963 = vunpack.c.l.b16 %v183
  %v964 = vunpack.c.l.b16 %v184
  %v965 = vunpack.c.l.b16 %v185
  %v966 = vunpack.c.l.b16 %v186
  %v967 = vunpack.c.l.b16 %v187
  %v968 = vunpack.c.l.b16 %v188
  %v969 = vunpack.c.l.b16 %v189
  %v970 = vunpack.c.l.b16 %v190
  %v971 = vunpack.c.l.b16 %v191
  %v972 = vunpack.c.l.b16 %v192
  %v973 = vunpack.c.l.b16 %v193
  %v974 = vunpack.c.l.b16 %v194
  %v975 = vunpack.c.l.b16 %v195
  %v976 = vunpack.c.l.b16 %v196
  %v977 = vunpack.c.l.b16 %v197
  %v978 = vunpack.c.l.b16 %v198
  %v979 = vunpack.c.l.b16 %v199
  %v980 = vunpack.c.l.b16 %v200
  %v981 = vunpack.c.l.b16 %v201
  %v982 = vunpack.c.l.b16 %v202
  %v983 = vunpack.c.l.b16 %v203
  %v984 = vunpack.c.l.b16 %v204
  %v985 = vunpack.c.l.b16 %v205
  %v986 = vunpack.c.l.b16 %v206
  %v987 = vunpack.c.l.b16 %v207
  %v988 = vunpack.c.l.b16 %v208
  %v989 = vunpack.c.l.b16 %v209
  %v990 = vunpack.c.l.b16 %v210
  %v991 = vunpack.c.l.b16 %v211
  %v992 = vunpack.c.l.b16 %v212
  %v993 = vunpack.c.l.b16 %v213
  %v994 = vunpack.c.l.b16 %v214
  %v995 = vunpack.c.l.b16 %v215
  %v996 = vunpack.c.l.b16 %v216
  %v997 = vunpack.c.l.b16 %v217
  %v998 = vunpack.c.l.b16 %v218
  %v999 = vunpack.c.l.b16 %v219
  %v1000 = vunpack.c.l.b16 %v220
  %v1001 = vunpack.c.l.b16 %v221
  %v1002 = vunpack.c.l.b16 %v222
  %v1003 = vunpack.c.l.b16 %v223
  %v1004 = vunpack.c.l.b16 %v224
  %v1005 = vunpack.c.l.b16 %v225
  %v1006 = vunpack.c.l.b16 %v226
  %v1007 = vunpack.c.l.b16 %v227
  %v1008 = vunpack.c.l.b16 %v228
  %v1009 = vunpack.c.l.b16 %v229
  %v1010 = vunpack.c.l.b16 %v230
  %v1011 = vunpack.c.l.b16 %v231
  %v1012 = vunpack.c.l.b16 %v232
  %v1013 = vunpack.c.l.b16 %v233
  %v1014 = vunpack.c.l.b16 %v234
  %v1015 = vunpack.c.l.b16 %v235
  %v1016 = vunpack.c.l.b16 %v236
  %v1017 = vunpack.c.l.b16 %v237
  %v1018 = vunpack.c.l.b16 %v238
  %v1019 = vunpack.c.l.b16 %v239
  %v1020 = vunpack.c.l.b16 %v240
  %v1021 = vunpack.c.l.b16 %v241
  %v1022 = vunpack.c.l.b16 %v242
  %v1023 = vunpack.c.l.b16 %v243
  %v1024 = vunpack.c.l.b16 %v244
  %v1025 = vunpack.c.l.b16 %v245
  %v1026 = vunpack.c.l.b16 %v246
  %v1027 = vunpack.c.l.b16 %v247
  %v1028 = vunpack.c.l.b16 %v248
  %v1029 = vunpack.c.l.b16 %v249
  %v1030 = vunpack.c.l.b16 %v250
  %v1031 = vunpack.c.l.b16 %v251
  %v1032 = vunpack.c.l.b16 %v252
  %v1033 = vunpack.c.l.b16 %v253
  %v1034 = vunpack.c.l.b16 %v254
  %v1035 = vunpack.c.l.b16 %v255
  %v1036 = vunpack.c.l.b16 %v256
  %v1037 = vunpack.c.l.b16 %v257
  %v1038 = vunpack.c.l.b16 %v258
  %v1039 = vunpack.c.l.b16 %v259
  %v1040 = vunpack.c.l.b16 %v260
  %v1041 = vunpack.c.l.b16 %v261
  %v1042 = vunpack.c.l.b16 %v262
  %v1043 = vunpack.c.l.b16 %v263
  %v1044 = vunpack.c.l.b16 %v264
  %v1045 = vunpack.c.l.b16 %v265
  %v1046 = vunpack.c.l.b16 %v266
  %v1047 = vpack.c.b16 %v904, %v903
  %v1048 = vpack.c.b16 %v906, %v905
  %v1049 = vpack.c.b16 %v908, %v907
  %v1050 = vpack.c.b16 %v910, %v909
  %v1051 = vpack.c.b16 %v912, %v911
  %v1052 = vpack.c.b16 %v914, %v913
  %v1053 = vpack.c.b16 %v916, %v915
  %v1054 = vpack.c.b16 %v918, %v917
  %v1055 = vpack.c.b16 %v920, %v919
  %v1056 = vpack.c.b16 %v922, %v921
  %v1057 = vpack.c.b16 %v924, %v923
  %v1058 = vpack.c.b16 %v926, %v925
  %v1059 = vpack.c.b16 %v928, %v927
  %v1060 = vpack.c.b16 %v930, %v929
  %v1061 = vpack.c.b16 %v932, %v931
  %v1062 = vpack.c.b16 %v934, %v933
  %v1063 = vpack.c.b16 %v936, %v935
  %v1064 = vpack.c.b16 %v938, %v937
  %v1065 = vpack.c.b16 %v940, %v939
  %v1066 = vpack.c.b16 %v942, %v941
  %v1067 = vpack.c.b16 %v944, %v943
  %v1068 = vpack.c.b16 %v946, %v945
  %v1069 = vpack.c.b16 %v948, %v947
  %v1070 = vpack.c.b16 %v950, %v949
  %v1071 = vpack.c.b16 %v952, %v951
  %v1072 = vpack.c.b16 %v954, %v953
  %v1073 = vpack.c.b16 %v956, %v955
  %v1074 = vpack.c.b16 %v958, %v957
  %v1075 = vpack.c.b16 %v960, %v959
  %v1076 = vpack.c.b16 %v962, %v961
  %v1077 = vpack.c.b16 %v964, %v963
  %v1078 = vpack.c.b16 %v966, %v965
  %v1079 = vpack.c.b16 %v968, %v967
  %v1080 = vpack.c.b16 %v970, %v969
  %v1081 = vpack.c.b16 %v972, %v971
  %v1082 = vpack.c.b16 %v974, %v973
  %v1083 = vpack.c.b16 %v976, %v975
  %v1084 = vpack.c.b16 %v978, %v977
  %v1085 = vpack.c.b16 %v980, %v979
  %v1086 = vpack.c.b16 %v982, %v981
  %v1087 = vpack.c.b16 %v984, %v983
  %v1088 = vpack.c.b16 %v986, %v985
  %v1089 = vpack.c.b16 %v988, %v987
  %v1090 = vpack.c.b16 %v990, %v989
  %v1091 = vpack.c.b16 %v992, %v991
  %v1092 = vpack.c.b16 %v994, %v993
  %v1093 = vpack.c.b16 %v996, %v995
  %v1094 = vpack.c.b16 %v998, %v997
  %v1095 = vpack.c.b16 %v1000, %v999
  %v1096 = vpack.c.b16 %v1002, %v1001
  %v1097 = vpack.c.b16 %v1004, %v1003
  %v1098 = vpack.c.b16 %v1006, %v1005
  %v1099 = vpack.c.b16 %v1008, %v1007
  %v1100 = vpack.c.b16 %v1010, %v1009
  %v1101 = vpack.c.b16 %v1012, %v1011
  %v1102 = vpack.c.b16 %v1014, %v1013
  %v1103 = vpack.c.b16 %v1016, %v1015
  %v1104 = vpack.c.b16 %v1018, %v1017
  %v1105 = vpack.c.b16 %v1020, %v1019
  %v1106 = vpack.c.b16 %v1022, %v1021
  %v1107 = vpack.c.b16 %v1024, %v1023
  %v1108 = vpack.c.b16 %v1026, %v1025
  %v1109 = vpack.c.b16 %v1028, %v1027
  %v1110 = vpack.c.b16 %v1030, %v1029
  %v1111 = vpack.c.b16 %v1032, %v1031
  %v1112 = vpack.c.b16 %v1034, %v1033
  %v1113 = vpack.c.b16 %v1036, %v1035
  %v1114 = vpack.c.b16 %v1038, %v1037
  %v1115 = vpack.c.b16 %v1040, %v1039
  %v1116 = vpack.c.b16 %v1042, %v1041
  %v1117 = vpack.c.b16 %v1044, %v1043
  %v1118 = vpack.c.b16 %v1046, %v1045
  %1191 = vmatpush.bf16.msra.mxu0 %v1054
  %1192 = vmatpush.bf16.msra.mxu0 %v1053
  %1193 = vmatpush.bf16.msra.mxu0 %v1052
  %1194 = vmatpush.bf16.msra.mxu0 %v1051
  %1195 = vmatpush.bf16.msra.mxu0 %v1050
  %1196 = vmatpush.bf16.msra.mxu0 %v1049
  %1197 = vmatpush.bf16.msra.mxu0 %v1048
  %1198 = vmatpush.bf16.msra.mxu0 %v1047
  %1199 = vmatmul.bf16.gmra.mxu0 %v561
  %v1200 = vpop.f32.mrf.mxu0
  %v1201 = vadd.f32 0.0, %v1200
  %v1202 = vpop.f32.mrf.mxu0
  %v1203 = vadd.f32 0.0, %v1202
  %1204 = vmatmul.bf16.gmra.mxu0 %v570
  %v1205 = vpop.f32.mrf.mxu0
  %v1206 = vadd.f32 0.0, %v1205
  %v1207 = vpop.f32.mrf.mxu0
  %v1208 = vadd.f32 0.0, %v1207
  %1209 = vmatmul.bf16.gmra.mxu0 %v579
  %v1210 = vpop.f32.mrf.mxu0
  %v1211 = vadd.f32 0.0, %v1210
  %v1212 = vpop.f32.mrf.mxu0
  %v1213 = vadd.f32 0.0, %v1212
  %1214 = vmatmul.bf16.gmra.mxu0 %v588
  %v1215 = vpop.f32.mrf.mxu0
  %v1216 = vadd.f32 0.0, %v1215
  %v1217 = vpop.f32.mrf.mxu0
  %v1218 = vadd.f32 0.0, %v1217
  %1219 = vmatmul.bf16.gmra.mxu0 %v597
  %v1220 = vpop.f32.mrf.mxu0
  %v1221 = vadd.f32 0.0, %v1220
  %v1222 = vpop.f32.mrf.mxu0
  %v1223 = vadd.f32 0.0, %v1222
  %1224 = vmatmul.bf16.gmra.mxu0 %v606
  %v1225 = vpop.f32.mrf.mxu0
  %v1226 = vadd.f32 0.0, %v1225
  %v1227 = vpop.f32.mrf.mxu0
  %v1228 = vadd.f32 0.0, %v1227
  %1229 = vmatmul.bf16.gmra.mxu0 %v615
  %v1230 = vpop.f32.mrf.mxu0
  %v1231 = vadd.f32 0.0, %v1230
  %v1232 = vpop.f32.mrf.mxu0
  %v1233 = vadd.f32 0.0, %v1232
  %1234 = vmatmul.bf16.gmra.mxu0 %v624
  %v1235 = vpop.f32.mrf.mxu0
  %v1236 = vadd.f32 0.0, %v1235
  %v1237 = vpop.f32.mrf.mxu0
  %v1238 = vadd.f32 0.0, %v1237
  %1239 = vmatmul.bf16.gmra.mxu0 %v633
  %v1240 = vpop.f32.mrf.mxu0
  %v1241 = vadd.f32 0.0, %v1240
  %v1242 = vpop.f32.mrf.mxu0
  %v1243 = vadd.f32 0.0, %v1242
  %1244 = vmatmul.bf16.gmra.mxu0 %v642
  %v1245 = vpop.f32.mrf.mxu0
  %v1246 = vadd.f32 0.0, %v1245
  %v1247 = vpop.f32.mrf.mxu0
  %v1248 = vadd.f32 0.0, %v1247
  %1249 = vmatmul.bf16.gmra.mxu0 %v651
  %v1250 = vpop.f32.mrf.mxu0
  %v1251 = vadd.f32 0.0, %v1250
  %v1252 = vpop.f32.mrf.mxu0
  %1253 = vdwg.mxu0
  %1254 = vmatpush.bf16.msra.mxu0 %v1062
  %1255 = vmatpush.bf16.msra.mxu0 %v1061
  %1256 = vmatpush.bf16.msra.mxu0 %v1060
  %1257 = vmatpush.bf16.msra.mxu0 %v1059
  %1258 = vmatpush.bf16.msra.mxu0 %v1058
  %1259 = vmatpush.bf16.msra.mxu0 %v1057
  %1260 = vmatpush.bf16.msra.mxu0 %v1056
  %1261 = vmatpush.bf16.msra.mxu0 %v1055
  %1262 = vmatmul.bf16.gmra.mxu0 %v562
  %v1263 = vpop.f32.mrf.mxu0
  %v1264 = vadd.f32 %v1201, %v1263
  %v1265 = vpop.f32.mrf.mxu0
  %v1266 = vadd.f32 %v1203, %v1265
  %1267 = vmatmul.bf16.gmra.mxu0 %v571
  %v1268 = vpop.f32.mrf.mxu0
  %v1269 = vadd.f32 %v1206, %v1268
  %v1270 = vpop.f32.mrf.mxu0
  %v1271 = vadd.f32 %v1208, %v1270
  %1272 = vmatmul.bf16.gmra.mxu0 %v580
  %v1273 = vpop.f32.mrf.mxu0
  %v1274 = vadd.f32 %v1211, %v1273
  %v1275 = vpop.f32.mrf.mxu0
  %v1276 = vadd.f32 %v1213, %v1275
  %1277 = vmatmul.bf16.gmra.mxu0 %v589
  %v1278 = vpop.f32.mrf.mxu0
  %v1279 = vadd.f32 %v1216, %v1278
  %v1280 = vpop.f32.mrf.mxu0
  %v1281 = vadd.f32 %v1218, %v1280
  %1282 = vmatmul.bf16.gmra.mxu0 %v598
  %v1283 = vpop.f32.mrf.mxu0
  %v1284 = vadd.f32 %v1221, %v1283
  %v1285 = vpop.f32.mrf.mxu0
  %v1286 = vadd.f32 %v1223, %v1285
  %1287 = vmatmul.bf16.gmra.mxu0 %v607
  %v1288 = vpop.f32.mrf.mxu0
  %v1289 = vadd.f32 %v1226, %v1288
  %v1290 = vpop.f32.mrf.mxu0
  %v1291 = vadd.f32 %v1228, %v1290
  %1292 = vmatmul.bf16.gmra.mxu0 %v616
  %v1293 = vpop.f32.mrf.mxu0
  %v1294 = vadd.f32 %v1231, %v1293
  %v1295 = vpop.f32.mrf.mxu0
  %v1296 = vadd.f32 %v1233, %v1295
  %1297 = vmatmul.bf16.gmra.mxu0 %v625
  %v1298 = vpop.f32.mrf.mxu0
  %v1299 = vadd.f32 %v1236, %v1298
  %v1300 = vpop.f32.mrf.mxu0
  %v1301 = vadd.f32 %v1238, %v1300
  %1302 = vmatmul.bf16.gmra.mxu0 %v634
  %v1303 = vpop.f32.mrf.mxu0
  %v1304 = vadd.f32 %v1241, %v1303
  %v1305 = vpop.f32.mrf.mxu0
  %v1306 = vadd.f32 %v1243, %v1305
  %1307 = vmatmul.bf16.gmra.mxu0 %v643
  %v1308 = vpop.f32.mrf.mxu0
  %v1309 = vadd.f32 %v1246, %v1308
  %v1310 = vpop.f32.mrf.mxu0
  %v1311 = vadd.f32 %v1248, %v1310
  %1312 = vmatmul.bf16.gmra.mxu0 %v652
  %v1313 = vpop.f32.mrf.mxu0
  %v1314 = vadd.f32 %v1251, %v1313
  %v1315 = vpop.f32.mrf.mxu0
  %1316 = vdwg.mxu0
  %1317 = vmatpush.bf16.msra.mxu0 %v1070
  %1318 = vmatpush.bf16.msra.mxu0 %v1069
  %1319 = vmatpush.bf16.msra.mxu0 %v1068
  %1320 = vmatpush.bf16.msra.mxu0 %v1067
  %1321 = vmatpush.bf16.msra.mxu0 %v1066
  %1322 = vmatpush.bf16.msra.mxu0 %v1065
  %1323 = vmatpush.bf16.msra.mxu0 %v1064
  %1324 = vmatpush.bf16.msra.mxu0 %v1063
  %1325 = vmatmul.bf16.gmra.mxu0 %v563
  %v1326 = vpop.f32.mrf.mxu0
  %v1327 = vadd.f32 %v1264, %v1326
  %v1328 = vpop.f32.mrf.mxu0
  %v1329 = vadd.f32 %v1266, %v1328
  %1330 = vmatmul.bf16.gmra.mxu0 %v572
  %v1331 = vpop.f32.mrf.mxu0
  %v1332 = vadd.f32 %v1269, %v1331
  %v1333 = vpop.f32.mrf.mxu0
  %v1334 = vadd.f32 %v1271, %v1333
  %1335 = vmatmul.bf16.gmra.mxu0 %v581
  %v1336 = vpop.f32.mrf.mxu0
  %v1337 = vadd.f32 %v1274, %v1336
  %v1338 = vpop.f32.mrf.mxu0
  %v1339 = vadd.f32 %v1276, %v1338
  %1340 = vmatmul.bf16.gmra.mxu0 %v590
  %v1341 = vpop.f32.mrf.mxu0
  %v1342 = vadd.f32 %v1279, %v1341
  %v1343 = vpop.f32.mrf.mxu0
  %v1344 = vadd.f32 %v1281, %v1343
  %1345 = vmatmul.bf16.gmra.mxu0 %v599
  %v1346 = vpop.f32.mrf.mxu0
  %v1347 = vadd.f32 %v1284, %v1346
  %v1348 = vpop.f32.mrf.mxu0
  %v1349 = vadd.f32 %v1286, %v1348
  %1350 = vmatmul.bf16.gmra.mxu0 %v608
  %v1351 = vpop.f32.mrf.mxu0
  %v1352 = vadd.f32 %v1289, %v1351
  %v1353 = vpop.f32.mrf.mxu0
  %v1354 = vadd.f32 %v1291, %v1353
  %1355 = vmatmul.bf16.gmra.mxu0 %v617
  %v1356 = vpop.f32.mrf.mxu0
  %v1357 = vadd.f32 %v1294, %v1356
  %v1358 = vpop.f32.mrf.mxu0
  %v1359 = vadd.f32 %v1296, %v1358
  %1360 = vmatmul.bf16.gmra.mxu0 %v626
  %v1361 = vpop.f32.mrf.mxu0
  %v1362 = vadd.f32 %v1299, %v1361
  %v1363 = vpop.f32.mrf.mxu0
  %v1364 = vadd.f32 %v1301, %v1363
  %1365 = vmatmul.bf16.gmra.mxu0 %v635
  %v1366 = vpop.f32.mrf.mxu0
  %v1367 = vadd.f32 %v1304, %v1366
  %v1368 = vpop.f32.mrf.mxu0
  %v1369 = vadd.f32 %v1306, %v1368
  %1370 = vmatmul.bf16.gmra.mxu0 %v644
  %v1371 = vpop.f32.mrf.mxu0
  %v1372 = vadd.f32 %v1309, %v1371
  %v1373 = vpop.f32.mrf.mxu0
  %v1374 = vadd.f32 %v1311, %v1373
  %1375 = vmatmul.bf16.gmra.mxu0 %v653
  %v1376 = vpop.f32.mrf.mxu0
  %v1377 = vadd.f32 %v1314, %v1376
  %v1378 = vpop.f32.mrf.mxu0
  %1379 = vdwg.mxu0
  %1380 = vmatpush.bf16.msra.mxu0 %v1078
  %1381 = vmatpush.bf16.msra.mxu0 %v1077
  %1382 = vmatpush.bf16.msra.mxu0 %v1076
  %1383 = vmatpush.bf16.msra.mxu0 %v1075
  %1384 = vmatpush.bf16.msra.mxu0 %v1074
  %1385 = vmatpush.bf16.msra.mxu0 %v1073
  %1386 = vmatpush.bf16.msra.mxu0 %v1072
  %1387 = vmatpush.bf16.msra.mxu0 %v1071
  %1388 = vmatmul.bf16.gmra.mxu0 %v564
  %v1389 = vpop.f32.mrf.mxu0
  %v1390 = vadd.f32 %v1327, %v1389
  %v1391 = vpop.f32.mrf.mxu0
  %v1392 = vadd.f32 %v1329, %v1391
  %1393 = vmatmul.bf16.gmra.mxu0 %v573
  %v1394 = vpop.f32.mrf.mxu0
  %v1395 = vadd.f32 %v1332, %v1394
  %v1396 = vpop.f32.mrf.mxu0
  %v1397 = vadd.f32 %v1334, %v1396
  %1398 = vmatmul.bf16.gmra.mxu0 %v582
  %v1399 = vpop.f32.mrf.mxu0
  %v1400 = vadd.f32 %v1337, %v1399
  %v1401 = vpop.f32.mrf.mxu0
  %v1402 = vadd.f32 %v1339, %v1401
  %1403 = vmatmul.bf16.gmra.mxu0 %v591
  %v1404 = vpop.f32.mrf.mxu0
  %v1405 = vadd.f32 %v1342, %v1404
  %v1406 = vpop.f32.mrf.mxu0
  %v1407 = vadd.f32 %v1344, %v1406
  %1408 = vmatmul.bf16.gmra.mxu0 %v600
  %v1409 = vpop.f32.mrf.mxu0
  %v1410 = vadd.f32 %v1347, %v1409
  %v1411 = vpop.f32.mrf.mxu0
  %v1412 = vadd.f32 %v1349, %v1411
  %1413 = vmatmul.bf16.gmra.mxu0 %v609
  %v1414 = vpop.f32.mrf.mxu0
  %v1415 = vadd.f32 %v1352, %v1414
  %v1416 = vpop.f32.mrf.mxu0
  %v1417 = vadd.f32 %v1354, %v1416
  %1418 = vmatmul.bf16.gmra.mxu0 %v618
  %v1419 = vpop.f32.mrf.mxu0
  %v1420 = vadd.f32 %v1357, %v1419
  %v1421 = vpop.f32.mrf.mxu0
  %v1422 = vadd.f32 %v1359, %v1421
  %1423 = vmatmul.bf16.gmra.mxu0 %v627
  %v1424 = vpop.f32.mrf.mxu0
  %v1425 = vadd.f32 %v1362, %v1424
  %v1426 = vpop.f32.mrf.mxu0
  %v1427 = vadd.f32 %v1364, %v1426
  %1428 = vmatmul.bf16.gmra.mxu0 %v636
  %v1429 = vpop.f32.mrf.mxu0
  %v1430 = vadd.f32 %v1367, %v1429
  %v1431 = vpop.f32.mrf.mxu0
  %v1432 = vadd.f32 %v1369, %v1431
  %1433 = vmatmul.bf16.gmra.mxu0 %v645
  %v1434 = vpop.f32.mrf.mxu0
  %v1435 = vadd.f32 %v1372, %v1434
  %v1436 = vpop.f32.mrf.mxu0
  %v1437 = vadd.f32 %v1374, %v1436
  %1438 = vmatmul.bf16.gmra.mxu0 %v654
  %v1439 = vpop.f32.mrf.mxu0
  %v1440 = vadd.f32 %v1377, %v1439
  %v1441 = vpop.f32.mrf.mxu0
  %1442 = vdwg.mxu0
  %1443 = vmatpush.bf16.msra.mxu0 %v1086
  %1444 = vmatpush.bf16.msra.mxu0 %v1085
  %1445 = vmatpush.bf16.msra.mxu0 %v1084
  %1446 = vmatpush.bf16.msra.mxu0 %v1083
  %1447 = vmatpush.bf16.msra.mxu0 %v1082
  %1448 = vmatpush.bf16.msra.mxu0 %v1081
  %1449 = vmatpush.bf16.msra.mxu0 %v1080
  %1450 = vmatpush.bf16.msra.mxu0 %v1079
  %1451 = vmatmul.bf16.gmra.mxu0 %v565
  %v1452 = vpop.f32.mrf.mxu0
  %v1453 = vadd.f32 %v1390, %v1452
  %v1454 = vpop.f32.mrf.mxu0
  %v1455 = vadd.f32 %v1392, %v1454
  %1456 = vmatmul.bf16.gmra.mxu0 %v574
  %v1457 = vpop.f32.mrf.mxu0
  %v1458 = vadd.f32 %v1395, %v1457
  %v1459 = vpop.f32.mrf.mxu0
  %v1460 = vadd.f32 %v1397, %v1459
  %1461 = vmatmul.bf16.gmra.mxu0 %v583
  %v1462 = vpop.f32.mrf.mxu0
  %v1463 = vadd.f32 %v1400, %v1462
  %v1464 = vpop.f32.mrf.mxu0
  %v1465 = vadd.f32 %v1402, %v1464
  %1466 = vmatmul.bf16.gmra.mxu0 %v592
  %v1467 = vpop.f32.mrf.mxu0
  %v1468 = vadd.f32 %v1405, %v1467
  %v1469 = vpop.f32.mrf.mxu0
  %v1470 = vadd.f32 %v1407, %v1469
  %1471 = vmatmul.bf16.gmra.mxu0 %v601
  %v1472 = vpop.f32.mrf.mxu0
  %v1473 = vadd.f32 %v1410, %v1472
  %v1474 = vpop.f32.mrf.mxu0
  %v1475 = vadd.f32 %v1412, %v1474
  %1476 = vmatmul.bf16.gmra.mxu0 %v610
  %v1477 = vpop.f32.mrf.mxu0
  %v1478 = vadd.f32 %v1415, %v1477
  %v1479 = vpop.f32.mrf.mxu0
  %v1480 = vadd.f32 %v1417, %v1479
  %1481 = vmatmul.bf16.gmra.mxu0 %v619
  %v1482 = vpop.f32.mrf.mxu0
  %v1483 = vadd.f32 %v1420, %v1482
  %v1484 = vpop.f32.mrf.mxu0
  %v1485 = vadd.f32 %v1422, %v1484
  %1486 = vmatmul.bf16.gmra.mxu0 %v628
  %v1487 = vpop.f32.mrf.mxu0
  %v1488 = vadd.f32 %v1425, %v1487
  %v1489 = vpop.f32.mrf.mxu0
  %v1490 = vadd.f32 %v1427, %v1489
  %1491 = vmatmul.bf16.gmra.mxu0 %v637
  %v1492 = vpop.f32.mrf.mxu0
  %v1493 = vadd.f32 %v1430, %v1492
  %v1494 = vpop.f32.mrf.mxu0
  %v1495 = vadd.f32 %v1432, %v1494
  %1496 = vmatmul.bf16.gmra.mxu0 %v646
  %v1497 = vpop.f32.mrf.mxu0
  %v1498 = vadd.f32 %v1435, %v1497
  %v1499 = vpop.f32.mrf.mxu0
  %v1500 = vadd.f32 %v1437, %v1499
  %1501 = vmatmul.bf16.gmra.mxu0 %v655
  %v1502 = vpop.f32.mrf.mxu0
  %v1503 = vadd.f32 %v1440, %v1502
  %v1504 = vpop.f32.mrf.mxu0
  %1505 = vdwg.mxu0
  %1506 = vmatpush.bf16.msra.mxu0 %v1094
  %1507 = vmatpush.bf16.msra.mxu0 %v1093
  %1508 = vmatpush.bf16.msra.mxu0 %v1092
  %1509 = vmatpush.bf16.msra.mxu0 %v1091
  %1510 = vmatpush.bf16.msra.mxu0 %v1090
  %1511 = vmatpush.bf16.msra.mxu0 %v1089
  %1512 = vmatpush.bf16.msra.mxu0 %v1088
  %1513 = vmatpush.bf16.msra.mxu0 %v1087
  %1514 = vmatmul.bf16.gmra.mxu0 %v566
  %v1515 = vpop.f32.mrf.mxu0
  %v1516 = vadd.f32 %v1453, %v1515
  %v1517 = vpop.f32.mrf.mxu0
  %v1518 = vadd.f32 %v1455, %v1517
  %1519 = vmatmul.bf16.gmra.mxu0 %v575
  %v1520 = vpop.f32.mrf.mxu0
  %v1521 = vadd.f32 %v1458, %v1520
  %v1522 = vpop.f32.mrf.mxu0
  %v1523 = vadd.f32 %v1460, %v1522
  %1524 = vmatmul.bf16.gmra.mxu0 %v584
  %v1525 = vpop.f32.mrf.mxu0
  %v1526 = vadd.f32 %v1463, %v1525
  %v1527 = vpop.f32.mrf.mxu0
  %v1528 = vadd.f32 %v1465, %v1527
  %1529 = vmatmul.bf16.gmra.mxu0 %v593
  %v1530 = vpop.f32.mrf.mxu0
  %v1531 = vadd.f32 %v1468, %v1530
  %v1532 = vpop.f32.mrf.mxu0
  %v1533 = vadd.f32 %v1470, %v1532
  %1534 = vmatmul.bf16.gmra.mxu0 %v602
  %v1535 = vpop.f32.mrf.mxu0
  %v1536 = vadd.f32 %v1473, %v1535
  %v1537 = vpop.f32.mrf.mxu0
  %v1538 = vadd.f32 %v1475, %v1537
  %1539 = vmatmul.bf16.gmra.mxu0 %v611
  %v1540 = vpop.f32.mrf.mxu0
  %v1541 = vadd.f32 %v1478, %v1540
  %v1542 = vpop.f32.mrf.mxu0
  %v1543 = vadd.f32 %v1480, %v1542
  %1544 = vmatmul.bf16.gmra.mxu0 %v620
  %v1545 = vpop.f32.mrf.mxu0
  %v1546 = vadd.f32 %v1483, %v1545
  %v1547 = vpop.f32.mrf.mxu0
  %v1548 = vadd.f32 %v1485, %v1547
  %1549 = vmatmul.bf16.gmra.mxu0 %v629
  %v1550 = vpop.f32.mrf.mxu0
  %v1551 = vadd.f32 %v1488, %v1550
  %v1552 = vpop.f32.mrf.mxu0
  %v1553 = vadd.f32 %v1490, %v1552
  %1554 = vmatmul.bf16.gmra.mxu0 %v638
  %v1555 = vpop.f32.mrf.mxu0
  %v1556 = vadd.f32 %v1493, %v1555
  %v1557 = vpop.f32.mrf.mxu0
  %v1558 = vadd.f32 %v1495, %v1557
  %1559 = vmatmul.bf16.gmra.mxu0 %v647
  %v1560 = vpop.f32.mrf.mxu0
  %v1561 = vadd.f32 %v1498, %v1560
  %v1562 = vpop.f32.mrf.mxu0
  %v1563 = vadd.f32 %v1500, %v1562
  %1564 = vmatmul.bf16.gmra.mxu0 %v656
  %v1565 = vpop.f32.mrf.mxu0
  %v1566 = vadd.f32 %v1503, %v1565
  %v1567 = vpop.f32.mrf.mxu0
  %1568 = vdwg.mxu0
  %1569 = vmatpush.bf16.msra.mxu0 %v1102
  %1570 = vmatpush.bf16.msra.mxu0 %v1101
  %1571 = vmatpush.bf16.msra.mxu0 %v1100
  %1572 = vmatpush.bf16.msra.mxu0 %v1099
  %1573 = vmatpush.bf16.msra.mxu0 %v1098
  %1574 = vmatpush.bf16.msra.mxu0 %v1097
  %1575 = vmatpush.bf16.msra.mxu0 %v1096
  %1576 = vmatpush.bf16.msra.mxu0 %v1095
  %1577 = vmatmul.bf16.gmra.mxu0 %v567
  %v1578 = vpop.f32.mrf.mxu0
  %v1579 = vadd.f32 %v1516, %v1578
  %v1580 = vpop.f32.mrf.mxu0
  %v1581 = vadd.f32 %v1518, %v1580
  %1582 = vmatmul.bf16.gmra.mxu0 %v576
  %v1583 = vpop.f32.mrf.mxu0
  %v1584 = vadd.f32 %v1521, %v1583
  %v1585 = vpop.f32.mrf.mxu0
  %v1586 = vadd.f32 %v1523, %v1585
  %1587 = vmatmul.bf16.gmra.mxu0 %v585
  %v1588 = vpop.f32.mrf.mxu0
  %v1589 = vadd.f32 %v1526, %v1588
  %v1590 = vpop.f32.mrf.mxu0
  %v1591 = vadd.f32 %v1528, %v1590
  %1592 = vmatmul.bf16.gmra.mxu0 %v594
  %v1593 = vpop.f32.mrf.mxu0
  %v1594 = vadd.f32 %v1531, %v1593
  %v1595 = vpop.f32.mrf.mxu0
  %v1596 = vadd.f32 %v1533, %v1595
  %1597 = vmatmul.bf16.gmra.mxu0 %v603
  %v1598 = vpop.f32.mrf.mxu0
  %v1599 = vadd.f32 %v1536, %v1598
  %v1600 = vpop.f32.mrf.mxu0
  %v1601 = vadd.f32 %v1538, %v1600
  %1602 = vmatmul.bf16.gmra.mxu0 %v612
  %v1603 = vpop.f32.mrf.mxu0
  %v1604 = vadd.f32 %v1541, %v1603
  %v1605 = vpop.f32.mrf.mxu0
  %v1606 = vadd.f32 %v1543, %v1605
  %1607 = vmatmul.bf16.gmra.mxu0 %v621
  %v1608 = vpop.f32.mrf.mxu0
  %v1609 = vadd.f32 %v1546, %v1608
  %v1610 = vpop.f32.mrf.mxu0
  %v1611 = vadd.f32 %v1548, %v1610
  %1612 = vmatmul.bf16.gmra.mxu0 %v630
  %v1613 = vpop.f32.mrf.mxu0
  %v1614 = vadd.f32 %v1551, %v1613
  %v1615 = vpop.f32.mrf.mxu0
  %v1616 = vadd.f32 %v1553, %v1615
  %1617 = vmatmul.bf16.gmra.mxu0 %v639
  %v1618 = vpop.f32.mrf.mxu0
  %v1619 = vadd.f32 %v1556, %v1618
  %v1620 = vpop.f32.mrf.mxu0
  %v1621 = vadd.f32 %v1558, %v1620
  %1622 = vmatmul.bf16.gmra.mxu0 %v648
  %v1623 = vpop.f32.mrf.mxu0
  %v1624 = vadd.f32 %v1561, %v1623
  %v1625 = vpop.f32.mrf.mxu0
  %v1626 = vadd.f32 %v1563, %v1625
  %1627 = vmatmul.bf16.gmra.mxu0 %v657
  %v1628 = vpop.f32.mrf.mxu0
  %v1629 = vadd.f32 %v1566, %v1628
  %v1630 = vpop.f32.mrf.mxu0
  %1631 = vdwg.mxu0
  %1632 = vmatpush.bf16.msra.mxu0 %v1110
  %1633 = vmatpush.bf16.msra.mxu0 %v1109
  %1634 = vmatpush.bf16.msra.mxu0 %v1108
  %1635 = vmatpush.bf16.msra.mxu0 %v1107
  %1636 = vmatpush.bf16.msra.mxu0 %v1106
  %1637 = vmatpush.bf16.msra.mxu0 %v1105
  %1638 = vmatpush.bf16.msra.mxu0 %v1104
  %1639 = vmatpush.bf16.msra.mxu0 %v1103
  %1640 = vmatmul.bf16.gmra.mxu0 %v568
  %v1641 = vpop.f32.mrf.mxu0
  %v1642 = vadd.f32 %v1579, %v1641
  %v1643 = vpop.f32.mrf.mxu0
  %v1644 = vadd.f32 %v1581, %v1643
  %1645 = vmatmul.bf16.gmra.mxu0 %v577
  %v1646 = vpop.f32.mrf.mxu0
  %v1647 = vadd.f32 %v1584, %v1646
  %v1648 = vpop.f32.mrf.mxu0
  %v1649 = vadd.f32 %v1586, %v1648
  %1650 = vmatmul.bf16.gmra.mxu0 %v586
  %v1651 = vpop.f32.mrf.mxu0
  %v1652 = vadd.f32 %v1589, %v1651
  %v1653 = vpop.f32.mrf.mxu0
  %v1654 = vadd.f32 %v1591, %v1653
  %1655 = vmatmul.bf16.gmra.mxu0 %v595
  %v1656 = vpop.f32.mrf.mxu0
  %v1657 = vadd.f32 %v1594, %v1656
  %v1658 = vpop.f32.mrf.mxu0
  %v1659 = vadd.f32 %v1596, %v1658
  %1660 = vmatmul.bf16.gmra.mxu0 %v604
  %v1661 = vpop.f32.mrf.mxu0
  %v1662 = vadd.f32 %v1599, %v1661
  %v1663 = vpop.f32.mrf.mxu0
  %v1664 = vadd.f32 %v1601, %v1663
  %1665 = vmatmul.bf16.gmra.mxu0 %v613
  %v1666 = vpop.f32.mrf.mxu0
  %v1667 = vadd.f32 %v1604, %v1666
  %v1668 = vpop.f32.mrf.mxu0
  %v1669 = vadd.f32 %v1606, %v1668
  %1670 = vmatmul.bf16.gmra.mxu0 %v622
  %v1671 = vpop.f32.mrf.mxu0
  %v1672 = vadd.f32 %v1609, %v1671
  %v1673 = vpop.f32.mrf.mxu0
  %v1674 = vadd.f32 %v1611, %v1673
  %1675 = vmatmul.bf16.gmra.mxu0 %v631
  %v1676 = vpop.f32.mrf.mxu0
  %v1677 = vadd.f32 %v1614, %v1676
  %v1678 = vpop.f32.mrf.mxu0
  %v1679 = vadd.f32 %v1616, %v1678
  %1680 = vmatmul.bf16.gmra.mxu0 %v640
  %v1681 = vpop.f32.mrf.mxu0
  %v1682 = vadd.f32 %v1619, %v1681
  %v1683 = vpop.f32.mrf.mxu0
  %v1684 = vadd.f32 %v1621, %v1683
  %1685 = vmatmul.bf16.gmra.mxu0 %v649
  %v1686 = vpop.f32.mrf.mxu0
  %v1687 = vadd.f32 %v1624, %v1686
  %v1688 = vpop.f32.mrf.mxu0
  %v1689 = vadd.f32 %v1626, %v1688
  %1690 = vmatmul.bf16.gmra.mxu0 %v658
  %v1691 = vpop.f32.mrf.mxu0
  %v1692 = vadd.f32 %v1629, %v1691
  %v1693 = vpop.f32.mrf.mxu0
  %1694 = vdwg.mxu0
  %1695 = vmatpush.bf16.msra.mxu0 %v1118
  %1696 = vmatpush.bf16.msra.mxu0 %v1117
  %1697 = vmatpush.bf16.msra.mxu0 %v1116
  %1698 = vmatpush.bf16.msra.mxu0 %v1115
  %1699 = vmatpush.bf16.msra.mxu0 %v1114
  %1700 = vmatpush.bf16.msra.mxu0 %v1113
  %1701 = vmatpush.bf16.msra.mxu0 %v1112
  %1702 = vmatpush.bf16.msra.mxu0 %v1111
  %1703 = vmatmul.bf16.gmra.mxu0 %v569
  %v1704 = vpop.f32.mrf.mxu0
  %v1705 = vadd.f32 %v1642, %v1704
  %v1706 = vpop.f32.mrf.mxu0
  %v1707 = vadd.f32 %v1644, %v1706
  %1708 = vmatmul.bf16.gmra.mxu0 %v578
  %v1709 = vpop.f32.mrf.mxu0
  %v1710 = vadd.f32 %v1647, %v1709
  %v1711 = vpop.f32.mrf.mxu0
  %v1712 = vadd.f32 %v1649, %v1711
  %1713 = vmatmul.bf16.gmra.mxu0 %v587
  %v1714 = vpop.f32.mrf.mxu0
  %v1715 = vadd.f32 %v1652, %v1714
  %v1716 = vpop.f32.mrf.mxu0
  %v1717 = vadd.f32 %v1654, %v1716
  %1718 = vmatmul.bf16.gmra.mxu0 %v596
  %v1719 = vpop.f32.mrf.mxu0
  %v1720 = vadd.f32 %v1657, %v1719
  %v1721 = vpop.f32.mrf.mxu0
  %v1722 = vadd.f32 %v1659, %v1721
  %1723 = vmatmul.bf16.gmra.mxu0 %v605
  %v1724 = vpop.f32.mrf.mxu0
  %v1725 = vadd.f32 %v1662, %v1724
  %v1726 = vpop.f32.mrf.mxu0
  %v1727 = vadd.f32 %v1664, %v1726
  %1728 = vmatmul.bf16.gmra.mxu0 %v614
  %v1729 = vpop.f32.mrf.mxu0
  %v1730 = vadd.f32 %v1667, %v1729
  %v1731 = vpop.f32.mrf.mxu0
  %v1732 = vadd.f32 %v1669, %v1731
  %1733 = vmatmul.bf16.gmra.mxu0 %v623
  %v1734 = vpop.f32.mrf.mxu0
  %v1735 = vadd.f32 %v1672, %v1734
  %v1736 = vpop.f32.mrf.mxu0
  %v1737 = vadd.f32 %v1674, %v1736
  %1738 = vmatmul.bf16.gmra.mxu0 %v632
  %v1739 = vpop.f32.mrf.mxu0
  %v1740 = vadd.f32 %v1677, %v1739
  %v1741 = vpop.f32.mrf.mxu0
  %v1742 = vadd.f32 %v1679, %v1741
  %1743 = vmatmul.bf16.gmra.mxu0 %v641
  %v1744 = vpop.f32.mrf.mxu0
  %v1745 = vadd.f32 %v1682, %v1744
  %v1746 = vpop.f32.mrf.mxu0
  %v1747 = vadd.f32 %v1684, %v1746
  %1748 = vmatmul.bf16.gmra.mxu0 %v650
  %v1749 = vpop.f32.mrf.mxu0
  %v1750 = vadd.f32 %v1687, %v1749
  %v1751 = vpop.f32.mrf.mxu0
  %v1752 = vadd.f32 %v1689, %v1751
  %1753 = vmatmul.bf16.gmra.mxu0 %v659
  %v1754 = vpop.f32.mrf.mxu0
  %v1755 = vadd.f32 %v1692, %v1754
  %v1756 = vpop.f32.mrf.mxu0
  %1757 = vdwg.mxu0
  %1758 = vst [vmem:[%s2] sm:$0xff] %v1705
  %1759 = vst [vmem:[%s2 + $0x8] sm:$0xff] %v1707
  %1760 = vst [vmem:[%s2 + $0x10] sm:$0xff] %v1710
  %1761 = vst [vmem:[%s2 + $0x18] sm:$0xff] %v1712
  %1762 = vst [vmem:[%s2 + $0x20] sm:$0xff] %v1715
  %1763 = vst [vmem:[%s2 + $0x28] sm:$0xff] %v1717
  %1764 = vst [vmem:[%s2 + $0x30] sm:$0xff] %v1720
  %1765 = vst [vmem:[%s2 + $0x38] sm:$0xff] %v1722
  %1766 = vst [vmem:[%s2 + $0x40] sm:$0xff] %v1725
  %1767 = vst [vmem:[%s2 + $0x48] sm:$0xff] %v1727
  %1768 = vst [vmem:[%s2 + $0x50] sm:$0xff] %v1730
  %1769 = vst [vmem:[%s2 + $0x58] sm:$0xff] %v1732
  %1770 = vst [vmem:[%s2 + $0x60] sm:$0xff] %v1735
  %1771 = vst [vmem:[%s2 + $0x68] sm:$0xff] %v1737
  %1772 = vst [vmem:[%s2 + $0x70] sm:$0xff] %v1740
  %1773 = vst [vmem:[%s2 + $0x78] sm:$0xff] %v1742
  %1774 = vst [vmem:[%s2 + $0x80] sm:$0xff] %v1745
  %1775 = vst [vmem:[%s2 + $0x88] sm:$0xff] %v1747
  %1776 = vst [vmem:[%s2 + $0x90] sm:$0xff] %v1750
  %1777 = vst [vmem:[%s2 + $0x98] sm:$0xff] %v1752
  %1778 = vst [vmem:[%s2 + $0xa0] sm:$0xff] %v1755
  %v1779 = vld [vmem:[%s3] sm:$0x1]
  %v1780 = vadd.f32 %v1705, %v1707
  %v1781 = vadd.f32 %v1780, %v1710
  %v1782 = vadd.f32 %v1781, %v1712
  %v1783 = vadd.f32 %v1782, %v1715
  %v1784 = vadd.f32 %v1783, %v1717
  %v1785 = vadd.f32 %v1784, %v1720
  %v1786 = vadd.f32 %v1785, %v1722
  %v1787 = vadd.f32 %v1786, %v1725
  %v1788 = vadd.f32 %v1787, %v1727
  %v1789 = vadd.f32 %v1788, %v1730
  %v1790 = vadd.f32 %v1789, %v1732
  %v1791 = vadd.f32 %v1790, %v1735
  %v1792 = vadd.f32 %v1791, %v1737
  %v1793 = vadd.f32 %v1792, %v1740
  %v1794 = vadd.f32 %v1793, %v1742
  %v1795 = vadd.f32 %v1794, %v1745
  %v1796 = vadd.f32 %v1795, %v1747
  %v1797 = vadd.f32 %v1796, %v1750
  %v1798 = vadd.f32 %v1797, %v1752
  %v1799 = vadd.f32 %v1798, %v1755
  %v1800 = vrot.slane %v1799, 4
  %v1801 = vadd.f32 %v1799, %v1800
  %v1802 = vrot.slane %v1801, 2
  %v1803 = vadd.f32 %v1801, %v1802
  %v1804 = vrot.slane %v1803, 1
  %v1805 = vadd.f32 %v1803, %v1804
  %v1806 = vadd.f32 %v1779, %v1805
  %1807 = vst [vmem:[%s3] sm:$0x1] %v1806
  %v1808 = vld [vmem:[%s3 + $0x1] sm:$0x1]
  %v1809 = vmul.f32 %v1705, %v1705
  %v1810 = vmul.f32 %v1707, %v1707
  %v1811 = vmul.f32 %v1710, %v1710
  %v1812 = vmul.f32 %v1712, %v1712
  %v1813 = vmul.f32 %v1715, %v1715
  %v1814 = vmul.f32 %v1717, %v1717
  %v1815 = vmul.f32 %v1720, %v1720
  %v1816 = vmul.f32 %v1722, %v1722
  %v1817 = vmul.f32 %v1725, %v1725
  %v1818 = vmul.f32 %v1727, %v1727
  %v1819 = vmul.f32 %v1730, %v1730
  %v1820 = vmul.f32 %v1732, %v1732
  %v1821 = vmul.f32 %v1735, %v1735
  %v1822 = vmul.f32 %v1737, %v1737
  %v1823 = vmul.f32 %v1740, %v1740
  %v1824 = vmul.f32 %v1742, %v1742
  %v1825 = vmul.f32 %v1745, %v1745
  %v1826 = vmul.f32 %v1747, %v1747
  %v1827 = vmul.f32 %v1750, %v1750
  %v1828 = vmul.f32 %v1752, %v1752
  %v1829 = vmul.f32 %v1755, %v1755
  %v1830 = vadd.f32 %v1809, %v1810
  %v1831 = vadd.f32 %v1830, %v1811
  %v1832 = vadd.f32 %v1831, %v1812
  %v1833 = vadd.f32 %v1832, %v1813
  %v1834 = vadd.f32 %v1833, %v1814
  %v1835 = vadd.f32 %v1834, %v1815
  %v1836 = vadd.f32 %v1835, %v1816
  %v1837 = vadd.f32 %v1836, %v1817
  %v1838 = vadd.f32 %v1837, %v1818
  %v1839 = vadd.f32 %v1838, %v1819
  %v1840 = vadd.f32 %v1839, %v1820
  %v1841 = vadd.f32 %v1840, %v1821
  %v1842 = vadd.f32 %v1841, %v1822
  %v1843 = vadd.f32 %v1842, %v1823
  %v1844 = vadd.f32 %v1843, %v1824
  %v1845 = vadd.f32 %v1844, %v1825
  %v1846 = vadd.f32 %v1845, %v1826
  %v1847 = vadd.f32 %v1846, %v1827
  %v1848 = vadd.f32 %v1847, %v1828
  %v1849 = vadd.f32 %v1848, %v1829
  %v1850 = vrot.slane %v1849, 4
  %v1851 = vadd.f32 %v1849, %v1850
  %v1852 = vrot.slane %v1851, 2
  %v1853 = vadd.f32 %v1851, %v1852
  %v1854 = vrot.slane %v1853, 1
  %v1855 = vadd.f32 %v1853, %v1854
  %v1856 = vadd.f32 %v1808, %v1855
  %1857 = vst [vmem:[%s3 + $0x1] sm:$0x1] %v1856
  // Predicated region
  $region14: #{simp_resnet9_k33.24} parent=0 // pred_check
    _
  $region15: #{simp_resnet9_k33.24} parent=0 // pred_check_branch
    %1859 = sbr.rel (0) target = $region17
  $region16: #{simp_resnet9_k33.24} parent=0 // pred_region
    _
  $region17: #{simp_resnet9_k33.24} parent=0 // pred_fallthru
    _
  // Predicated region
  $region18: #{simp_resnet9_k33.24} parent=0 // pred_check
    _
  $region19: #{simp_resnet9_k33.24} parent=0 // pred_check_branch
    %1861 = sbr.rel (0) target = $region21
  $region20: #{simp_resnet9_k33.24} parent=0 // pred_region
    _
  $region21: #{simp_resnet9_k33.24} parent=0 // pred_fallthru
    _
  // Predicated region
  $region22: #{simp_resnet9_k33.24} parent=0 // pred_check
    _
  $region23: #{simp_resnet9_k33.24} parent=0 // pred_check_branch
    %1863 = sbr.rel (0) target = $region25
  $region24: #{simp_resnet9_k33.24} parent=0 // pred_region
    _
  $region25: #{simp_resnet9_k33.24} parent=0 // pred_fallthru
    _
  // Predicated region
  $region26: #{simp_resnet9_k33.24} parent=0 // pred_check
    _
  $region27: #{simp_resnet9_k33.24} parent=0 // pred_check_branch
    %1865 = sbr.rel (0) target = $region29
  $region28: #{simp_resnet9_k33.24} parent=0 // pred_region
    _
  $region29: #{simp_resnet9_k33.24} parent=0 // pred_fallthru
    _

// kernel: simp_resnet9_k33.31
$region0: #{simp_resnet9_k33.31}
  #allocation0 [shape = 'u32[]', space=smem, size = 0x4, offset = 0x4, fixed_abs, tag = 'smem constant byte address 0x4 - core index']
  #allocation1 [shape = 'u32[72,128]{1,0:T(1,128)}', space=vmem, size = 0x9000, scoped, tag = 'internal scratch']
  %s0 = inlined_call_operand.vmem [shape: f32[168,128], index: 0, kind: input, shape index: {}]
  %s1 = inlined_call_operand.vmem [shape: f32[2,128], index: 1, kind: input, shape index: {}]
  %s2 = inlined_call_operand.vmem [shape: f32[2,128], index: 2, kind: input, shape index: {}]
  %s3 = inlined_call_operand.vmem [shape: bf16[168,128], index: 3, kind: input, shape index: {}]
  %s4 = inlined_call_operand.vmem [shape: bf16[168,128], index: 4, kind: output, shape index: {}]
  %s5 = sld [smem:[#allocation0]]
  $region26: #{simp_resnet9_k33.31} parent=0
    _
  %s7 = ssub.s32 1, %s5
  %s8 = scalar_select 0, %s7, %s5
  // Predicated region
  $region2: #{simp_resnet9_k33.31} parent=0 // pred_check
    _
  $region3: #{simp_resnet9_k33.31} parent=0 // pred_check_branch
    %10 = sbr.rel (0) target = $region5
  $region4: #{simp_resnet9_k33.31} parent=0 // pred_region
    _
  $region5: #{simp_resnet9_k33.31} parent=0 // pred_fallthru
    _
  // Predicated region
  $region6: #{simp_resnet9_k33.31} parent=0 // pred_check
    _
  $region7: #{simp_resnet9_k33.31} parent=0 // pred_check_branch
    %12 = sbr.rel (0) target = $region9
  $region8: #{simp_resnet9_k33.31} parent=0 // pred_region
    _
  $region9: #{simp_resnet9_k33.31} parent=0 // pred_fallthru
    _
  // Predicated region
  $region10: #{simp_resnet9_k33.31} parent=0 // pred_check
    _
  $region11: #{simp_resnet9_k33.31} parent=0 // pred_check_branch
    %14 = sbr.rel (0) target = $region13
  $region12: #{simp_resnet9_k33.31} parent=0 // pred_region
    _
  $region13: #{simp_resnet9_k33.31} parent=0 // pred_fallthru
    _
  // Predicated region
  $region14: #{simp_resnet9_k33.31} parent=0 // pred_check
    _
  $region15: #{simp_resnet9_k33.31} parent=0 // pred_check_branch
    %16 = sbr.rel (0) target = $region17
  $region16: #{simp_resnet9_k33.31} parent=0 // pred_region
    _
  $region17: #{simp_resnet9_k33.31} parent=0 // pred_fallthru
    _
  %v17 = vld [vmem:[%s0] sm:$0xff]
  %v18 = vld [vmem:[%s0 + $0x8] sm:$0xff]
  %v19 = vld [vmem:[%s0 + $0x10] sm:$0xff]
  %v20 = vld [vmem:[%s0 + $0x18] sm:$0xff]
  %v21 = vld [vmem:[%s0 + $0x20] sm:$0xff]
  %v22 = vld [vmem:[%s0 + $0x28] sm:$0xff]
  %v23 = vld [vmem:[%s0 + $0x30] sm:$0xff]
  %v24 = vld [vmem:[%s0 + $0x38] sm:$0xff]
  %v25 = vld [vmem:[%s0 + $0x40] sm:$0xff]
  %v26 = vld [vmem:[%s0 + $0x48] sm:$0xff]
  %v27 = vld [vmem:[%s0 + $0x50] sm:$0xff]
  %v28 = vld [vmem:[%s0 + $0x58] sm:$0xff]
  %v29 = vld [vmem:[%s0 + $0x60] sm:$0xff]
  %v30 = vld [vmem:[%s0 + $0x68] sm:$0xff]
  %v31 = vld [vmem:[%s0 + $0x70] sm:$0xff]
  %v32 = vld [vmem:[%s0 + $0x78] sm:$0xff]
  %v33 = vld [vmem:[%s0 + $0x80] sm:$0xff]
  %v34 = vld [vmem:[%s0 + $0x88] sm:$0xff]
  %v35 = vld [vmem:[%s0 + $0x90] sm:$0xff]
  %v36 = vld [vmem:[%s0 + $0x98] sm:$0xff]
  %v37 = vld [vmem:[%s0 + $0xa0] sm:$0xff]
  %v38 = vld [vmem:[%s1] sm:$0x1]
  %v39 = vmul.f32 %v38, 0.0061728396
  %v40 = vld [vmem:[%s1 + $0x1] sm:$0x1]
  %v41 = vmul.f32 %v40, 0.0061728396
  %v42 = vmul.f32 %v39, %v39
  %v43 = vsub.f32 %v41, %v42
  %v44 = vld [vmem:[%s2] sm:$0x1]
  %v45 = vadd.f32 %v43, 1e-05
  %v46 = vrsqrt.pop %v45
  %v47 = vmul.f32 %v46, %v45
  %v48 = vmul.f32 %v47, %v46
  %v49 = vmul.f32 0.5, %v48
  %v50 = vsub.f32 1.5, %v49
  %v51 = vmul.f32 %v46, %v50
  %vm52 = vweird.f32 %v45
  %vm53 = vweird.f32 %v46
  %vm54 = vmor %vm52, %vm53
  %v55 = vsel %vm54, %v46, %v51
  %v56 = vmul.f32 %v44, %v55
  %v57 = vld [vmem:[%s2 + $0x1] sm:$0x1]
  %v58 = vmul.f32 %v39, %v56
  %v59 = vsub.f32 %v57, %v58
  %v60 = vperm.slane %v56, 0
  %v61 = vmul.f32 %v17, %v60
  %v62 = vmul.f32 %v18, %v60
  %v63 = vmul.f32 %v19, %v60
  %v64 = vmul.f32 %v20, %v60
  %v65 = vmul.f32 %v21, %v60
  %v66 = vmul.f32 %v22, %v60
  %v67 = vmul.f32 %v23, %v60
  %v68 = vmul.f32 %v24, %v60
  %v69 = vmul.f32 %v25, %v60
  %v70 = vmul.f32 %v26, %v60
  %v71 = vmul.f32 %v27, %v60
  %v72 = vmul.f32 %v28, %v60
  %v73 = vmul.f32 %v29, %v60
  %v74 = vmul.f32 %v30, %v60
  %v75 = vmul.f32 %v31, %v60
  %v76 = vmul.f32 %v32, %v60
  %v77 = vmul.f32 %v33, %v60
  %v78 = vmul.f32 %v34, %v60
  %v79 = vmul.f32 %v35, %v60
  %v80 = vmul.f32 %v36, %v60
  %v81 = vmul.f32 %v37, %v60
  %v82 = vperm.slane %v59, 0
  %v83 = vadd.f32 %v61, %v82
  %v84 = vadd.f32 %v62, %v82
  %v85 = vadd.f32 %v63, %v82
  %v86 = vadd.f32 %v64, %v82
  %v87 = vadd.f32 %v65, %v82
  %v88 = vadd.f32 %v66, %v82
  %v89 = vadd.f32 %v67, %v82
  %v90 = vadd.f32 %v68, %v82
  %v91 = vadd.f32 %v69, %v82
  %v92 = vadd.f32 %v70, %v82
  %v93 = vadd.f32 %v71, %v82
  %v94 = vadd.f32 %v72, %v82
  %v95 = vadd.f32 %v73, %v82
  %v96 = vadd.f32 %v74, %v82
  %v97 = vadd.f32 %v75, %v82
  %v98 = vadd.f32 %v76, %v82
  %v99 = vadd.f32 %v77, %v82
  %v100 = vadd.f32 %v78, %v82
  %v101 = vadd.f32 %v79, %v82
  %v102 = vadd.f32 %v80, %v82
  %v103 = vadd.f32 %v81, %v82
  %v104 = vmax.f32 %v83, 0.0
  %v105 = vmax.f32 %v84, 0.0
  %v106 = vmax.f32 %v85, 0.0
  %v107 = vmax.f32 %v86, 0.0
  %v108 = vmax.f32 %v87, 0.0
  %v109 = vmax.f32 %v88, 0.0
  %v110 = vmax.f32 %v89, 0.0
  %v111 = vmax.f32 %v90, 0.0
  %v112 = vmax.f32 %v91, 0.0
  %v113 = vmax.f32 %v92, 0.0
  %v114 = vmax.f32 %v93, 0.0
  %v115 = vmax.f32 %v94, 0.0
  %v116 = vmax.f32 %v95, 0.0
  %v117 = vmax.f32 %v96, 0.0
  %v118 = vmax.f32 %v97, 0.0
  %v119 = vmax.f32 %v98, 0.0
  %v120 = vmax.f32 %v99, 0.0
  %v121 = vmax.f32 %v100, 0.0
  %v122 = vmax.f32 %v101, 0.0
  %v123 = vmax.f32 %v102, 0.0
  %v124 = vmax.f32 %v103, 0.0
  %v125 = vld [vmem:[%s3] sm:$0xf]
  %v126 = vld [vmem:[%s3 + $0x4] sm:$0xf]
  %v127 = vld [vmem:[%s3 + $0x8] sm:$0xf]
  %v128 = vld [vmem:[%s3 + $0xc] sm:$0xf]
  %v129 = vld [vmem:[%s3 + $0x10] sm:$0xf]
  %v130 = vld [vmem:[%s3 + $0x14] sm:$0xf]
  %v131 = vld [vmem:[%s3 + $0x18] sm:$0xf]
  %v132 = vld [vmem:[%s3 + $0x1c] sm:$0xf]
  %v133 = vld [vmem:[%s3 + $0x20] sm:$0xf]
  %v134 = vld [vmem:[%s3 + $0x24] sm:$0xf]
  %v135 = vld [vmem:[%s3 + $0x28] sm:$0xf]
  %v136 = vld [vmem:[%s3 + $0x2c] sm:$0xf]
  %v137 = vld [vmem:[%s3 + $0x30] sm:$0xf]
  %v138 = vld [vmem:[%s3 + $0x34] sm:$0xf]
  %v139 = vld [vmem:[%s3 + $0x38] sm:$0xf]
  %v140 = vld [vmem:[%s3 + $0x3c] sm:$0xf]
  %v141 = vld [vmem:[%s3 + $0x40] sm:$0xf]
  %v142 = vld [vmem:[%s3 + $0x44] sm:$0xf]
  %v143 = vld [vmem:[%s3 + $0x48] sm:$0xf]
  %v144 = vld [vmem:[%s3 + $0x4c] sm:$0xf]
  %v145 = vld [vmem:[%s3 + $0x50] sm:$0xf]
  %v146 = vunpack.c.l.bf16 %v125
  %v147 = vunpack.c.l.bf16 %v126
  %v148 = vunpack.c.l.bf16 %v127
  %v149 = vunpack.c.l.bf16 %v128
  %v150 = vunpack.c.l.bf16 %v129
  %v151 = vunpack.c.l.bf16 %v130
  %v152 = vunpack.c.l.bf16 %v131
  %v153 = vunpack.c.l.bf16 %v132
  %v154 = vunpack.c.l.bf16 %v133
  %v155 = vunpack.c.l.bf16 %v134
  %v156 = vunpack.c.l.bf16 %v135
  %v157 = vunpack.c.l.bf16 %v136
  %v158 = vunpack.c.l.bf16 %v137
  %v159 = vunpack.c.l.bf16 %v138
  %v160 = vunpack.c.l.bf16 %v139
  %v161 = vunpack.c.l.bf16 %v140
  %v162 = vunpack.c.l.bf16 %v141
  %v163 = vunpack.c.l.bf16 %v142
  %v164 = vunpack.c.l.bf16 %v143
  %v165 = vunpack.c.l.bf16 %v144
  %v166 = vunpack.c.l.bf16 %v145
  %v167 = vadd.f32 %v146, %v104
  %v168 = vadd.f32 %v147, %v105
  %v169 = vadd.f32 %v148, %v106
  %v170 = vadd.f32 %v149, %v107
  %v171 = vadd.f32 %v150, %v108
  %v172 = vadd.f32 %v151, %v109
  %v173 = vadd.f32 %v152, %v110
  %v174 = vadd.f32 %v153, %v111
  %v175 = vadd.f32 %v154, %v112
  %v176 = vadd.f32 %v155, %v113
  %v177 = vadd.f32 %v156, %v114
  %v178 = vadd.f32 %v157, %v115
  %v179 = vadd.f32 %v158, %v116
  %v180 = vadd.f32 %v159, %v117
  %v181 = vadd.f32 %v160, %v118
  %v182 = vadd.f32 %v161, %v119
  %v183 = vadd.f32 %v162, %v120
  %v184 = vadd.f32 %v163, %v121
  %v185 = vadd.f32 %v164, %v122
  %v186 = vadd.f32 %v165, %v123
  %v187 = vadd.f32 %v166, %v124
  %v188 = vpack.c.bf16 %v167, %v167
  %v189 = vpack.c.bf16 %v168, %v168
  %v190 = vpack.c.bf16 %v169, %v169
  %v191 = vpack.c.bf16 %v170, %v170
  %v192 = vpack.c.bf16 %v171, %v171
  %v193 = vpack.c.bf16 %v172, %v172
  %v194 = vpack.c.bf16 %v173, %v173
  %v195 = vpack.c.bf16 %v174, %v174
  %v196 = vpack.c.bf16 %v175, %v175
  %v197 = vpack.c.bf16 %v176, %v176
  %v198 = vpack.c.bf16 %v177, %v177
  %v199 = vpack.c.bf16 %v178, %v178
  %v200 = vpack.c.bf16 %v179, %v179
  %v201 = vpack.c.bf16 %v180, %v180
  %v202 = vpack.c.bf16 %v181, %v181
  %v203 = vpack.c.bf16 %v182, %v182
  %v204 = vpack.c.bf16 %v183, %v183
  %v205 = vpack.c.bf16 %v184, %v184
  %v206 = vpack.c.bf16 %v185, %v185
  %v207 = vpack.c.bf16 %v186, %v186
  %v208 = vpack.c.bf16 %v187, %v187
  %209 = vst [vmem:[%s4] sm:$0xf] %v188
  %210 = vst [vmem:[%s4 + $0x4] sm:$0xf] %v189
  %211 = vst [vmem:[%s4 + $0x8] sm:$0xf] %v190
  %212 = vst [vmem:[%s4 + $0xc] sm:$0xf] %v191
  %213 = vst [vmem:[%s4 + $0x10] sm:$0xf] %v192
  %214 = vst [vmem:[%s4 + $0x14] sm:$0xf] %v193
  %215 = vst [vmem:[%s4 + $0x18] sm:$0xf] %v194
  %216 = vst [vmem:[%s4 + $0x1c] sm:$0xf] %v195
  %217 = vst [vmem:[%s4 + $0x20] sm:$0xf] %v196
  %218 = vst [vmem:[%s4 + $0x24] sm:$0xf] %v197
  %219 = vst [vmem:[%s4 + $0x28] sm:$0xf] %v198
  %220 = vst [vmem:[%s4 + $0x2c] sm:$0xf] %v199
  %221 = vst [vmem:[%s4 + $0x30] sm:$0xf] %v200
  %222 = vst [vmem:[%s4 + $0x34] sm:$0xf] %v201
  %223 = vst [vmem:[%s4 + $0x38] sm:$0xf] %v202
  %224 = vst [vmem:[%s4 + $0x3c] sm:$0xf] %v203
  %225 = vst [vmem:[%s4 + $0x40] sm:$0xf] %v204
  %226 = vst [vmem:[%s4 + $0x44] sm:$0xf] %v205
  %227 = vst [vmem:[%s4 + $0x48] sm:$0xf] %v206
  %228 = vst [vmem:[%s4 + $0x4c] sm:$0xf] %v207
  %229 = vst [vmem:[%s4 + $0x50] sm:$0xf] %v208
  // Predicated region
  $region18: #{simp_resnet9_k33.31} parent=0 // pred_check
    _
  $region19: #{simp_resnet9_k33.31} parent=0 // pred_check_branch
    %231 = sbr.rel (0) target = $region21
  $region20: #{simp_resnet9_k33.31} parent=0 // pred_region
    _
  $region21: #{simp_resnet9_k33.31} parent=0 // pred_fallthru
    _
  // Predicated region
  $region22: #{simp_resnet9_k33.31} parent=0 // pred_check
    _
  $region23: #{simp_resnet9_k33.31} parent=0 // pred_check_branch
    %233 = sbr.rel (0) target = $region25
  $region24: #{simp_resnet9_k33.31} parent=0 // pred_region
    _
  $region25: #{simp_resnet9_k33.31} parent=0 // pred_fallthru
    _

// kernel: simp_resnet9_k33.33
$region0: #{simp_resnet9_k33.33}
  #allocation0 [shape = 'u32[]', space=smem, size = 0x4, offset = 0x4, fixed_abs, tag = 'smem constant byte address 0x4 - core index']
  #allocation1 [shape = 'u32[72,128]{1,0:T(1,128)}', space=vmem, size = 0x9000, scoped, tag = 'internal scratch']
  %s0 = inlined_call_operand.vmem [shape: f32[168,256], index: 0, kind: input, shape index: {}]
  %s1 = inlined_call_operand.vmem [shape: f32[2,256], index: 1, kind: input, shape index: {}]
  %s2 = inlined_call_operand.vmem [shape: f32[2,256], index: 2, kind: input, shape index: {}]
  %s3 = inlined_call_operand.vmem [shape: bf16[168,256], index: 3, kind: output, shape index: {}]
  %s4 = sld [smem:[#allocation0]]
  $region22: #{simp_resnet9_k33.33} parent=0
    _
  %s6 = ssub.s32 1, %s4
  %s7 = scalar_select 0, %s6, %s4
  // Predicated region
  $region2: #{simp_resnet9_k33.33} parent=0 // pred_check
    _
  $region3: #{simp_resnet9_k33.33} parent=0 // pred_check_branch
    %9 = sbr.rel (0) target = $region5
  $region4: #{simp_resnet9_k33.33} parent=0 // pred_region
    _
  $region5: #{simp_resnet9_k33.33} parent=0 // pred_fallthru
    _
  // Predicated region
  $region6: #{simp_resnet9_k33.33} parent=0 // pred_check
    _
  $region7: #{simp_resnet9_k33.33} parent=0 // pred_check_branch
    %11 = sbr.rel (0) target = $region9
  $region8: #{simp_resnet9_k33.33} parent=0 // pred_region
    _
  $region9: #{simp_resnet9_k33.33} parent=0 // pred_fallthru
    _
  // Predicated region
  $region10: #{simp_resnet9_k33.33} parent=0 // pred_check
    _
  $region11: #{simp_resnet9_k33.33} parent=0 // pred_check_branch
    %13 = sbr.rel (0) target = $region13
  $region12: #{simp_resnet9_k33.33} parent=0 // pred_region
    _
  $region13: #{simp_resnet9_k33.33} parent=0 // pred_fallthru
    _
  %v14 = vld [vmem:[%s0] sm:$0xff]
  %v15 = vld [vmem:[%s0 + $0x8] sm:$0xff]
  %v16 = vld [vmem:[%s0 + $0x10] sm:$0xff]
  %v17 = vld [vmem:[%s0 + $0x18] sm:$0xff]
  %v18 = vld [vmem:[%s0 + $0x20] sm:$0xff]
  %v19 = vld [vmem:[%s0 + $0x28] sm:$0xff]
  %v20 = vld [vmem:[%s0 + $0x30] sm:$0xff]
  %v21 = vld [vmem:[%s0 + $0x38] sm:$0xff]
  %v22 = vld [vmem:[%s0 + $0x40] sm:$0xff]
  %v23 = vld [vmem:[%s0 + $0x48] sm:$0xff]
  %v24 = vld [vmem:[%s0 + $0x50] sm:$0xff]
  %v25 = vld [vmem:[%s0 + $0x58] sm:$0xff]
  %v26 = vld [vmem:[%s0 + $0x60] sm:$0xff]
  %v27 = vld [vmem:[%s0 + $0x68] sm:$0xff]
  %v28 = vld [vmem:[%s0 + $0x70] sm:$0xff]
  %v29 = vld [vmem:[%s0 + $0x78] sm:$0xff]
  %v30 = vld [vmem:[%s0 + $0x80] sm:$0xff]
  %v31 = vld [vmem:[%s0 + $0x88] sm:$0xff]
  %v32 = vld [vmem:[%s0 + $0x90] sm:$0xff]
  %v33 = vld [vmem:[%s0 + $0x98] sm:$0xff]
  %v34 = vld [vmem:[%s0 + $0xa0] sm:$0xff]
  %v35 = vld [vmem:[%s0 + $0xa8] sm:$0xff]
  %v36 = vld [vmem:[%s0 + $0xb0] sm:$0xff]
  %v37 = vld [vmem:[%s0 + $0xb8] sm:$0xff]
  %v38 = vld [vmem:[%s0 + $0xc0] sm:$0xff]
  %v39 = vld [vmem:[%s0 + $0xc8] sm:$0xff]
  %v40 = vld [vmem:[%s0 + $0xd0] sm:$0xff]
  %v41 = vld [vmem:[%s0 + $0xd8] sm:$0xff]
  %v42 = vld [vmem:[%s0 + $0xe0] sm:$0xff]
  %v43 = vld [vmem:[%s0 + $0xe8] sm:$0xff]
  %v44 = vld [vmem:[%s0 + $0xf0] sm:$0xff]
  %v45 = vld [vmem:[%s0 + $0xf8] sm:$0xff]
  %v46 = vld [vmem:[%s0 + $0x100] sm:$0xff]
  %v47 = vld [vmem:[%s0 + $0x108] sm:$0xff]
  %v48 = vld [vmem:[%s0 + $0x110] sm:$0xff]
  %v49 = vld [vmem:[%s0 + $0x118] sm:$0xff]
  %v50 = vld [vmem:[%s0 + $0x120] sm:$0xff]
  %v51 = vld [vmem:[%s0 + $0x128] sm:$0xff]
  %v52 = vld [vmem:[%s0 + $0x130] sm:$0xff]
  %v53 = vld [vmem:[%s0 + $0x138] sm:$0xff]
  %v54 = vld [vmem:[%s0 + $0x140] sm:$0xff]
  %v55 = vld [vmem:[%s0 + $0x148] sm:$0xff]
  %v56 = vld [vmem:[%s1] ss:$2 sm:$0x3]
  %v57 = vmul.f32 %v56, 0.0061728396
  %s58 = scalar_lea.vmem %s1, 1
  %v59 = vld [vmem:[%s58] ss:$2 sm:$0x3]
  %v60 = vmul.f32 %v59, 0.0061728396
  %v61 = vmul.f32 %v57, %v57
  %v62 = vsub.f32 %v60, %v61
  %v63 = vld [vmem:[%s2] ss:$2 sm:$0x3]
  %v64 = vadd.f32 %v62, 1e-05
  %v65 = vrsqrt.pop %v64
  %v66 = vmul.f32 %v65, %v64
  %v67 = vmul.f32 %v66, %v65
  %v68 = vmul.f32 0.5, %v67
  %v69 = vsub.f32 1.5, %v68
  %v70 = vmul.f32 %v65, %v69
  %vm71 = vweird.f32 %v64
  %vm72 = vweird.f32 %v65
  %vm73 = vmor %vm71, %vm72
  %v74 = vsel %vm73, %v65, %v70
  %v75 = vmul.f32 %v63, %v74
  %s76 = scalar_lea.vmem %s2, 1
  %v77 = vld [vmem:[%s76] ss:$2 sm:$0x3]
  %v78 = vmul.f32 %v57, %v75
  %v79 = vsub.f32 %v77, %v78
  %v81 = vperm.slane %v75, 0
  %v82 = vperm.slane %v75, 1
  %v85 = vmul.f32 %v14, %v81
  %v86 = vmul.f32 %v15, %v82
  %v87 = vmul.f32 %v16, %v81
  %v88 = vmul.f32 %v17, %v82
  %v89 = vmul.f32 %v18, %v81
  %v90 = vmul.f32 %v19, %v82
  %v91 = vmul.f32 %v20, %v81
  %v92 = vmul.f32 %v21, %v82
  %v93 = vmul.f32 %v22, %v81
  %v94 = vmul.f32 %v23, %v82
  %v95 = vmul.f32 %v24, %v81
  %v96 = vmul.f32 %v25, %v82
  %v97 = vmul.f32 %v26, %v81
  %v98 = vmul.f32 %v27, %v82
  %v99 = vmul.f32 %v28, %v81
  %v100 = vmul.f32 %v29, %v82
  %v101 = vmul.f32 %v30, %v81
  %v102 = vmul.f32 %v31, %v82
  %v103 = vmul.f32 %v32, %v81
  %v104 = vmul.f32 %v33, %v82
  %v105 = vmul.f32 %v34, %v81
  %v106 = vmul.f32 %v35, %v82
  %v107 = vmul.f32 %v36, %v81
  %v108 = vmul.f32 %v37, %v82
  %v109 = vmul.f32 %v38, %v81
  %v110 = vmul.f32 %v39, %v82
  %v111 = vmul.f32 %v40, %v81
  %v112 = vmul.f32 %v41, %v82
  %v113 = vmul.f32 %v42, %v81
  %v114 = vmul.f32 %v43, %v82
  %v115 = vmul.f32 %v44, %v81
  %v116 = vmul.f32 %v45, %v82
  %v117 = vmul.f32 %v46, %v81
  %v118 = vmul.f32 %v47, %v82
  %v119 = vmul.f32 %v48, %v81
  %v120 = vmul.f32 %v49, %v82
  %v121 = vmul.f32 %v50, %v81
  %v122 = vmul.f32 %v51, %v82
  %v123 = vmul.f32 %v52, %v81
  %v124 = vmul.f32 %v53, %v82
  %v125 = vmul.f32 %v54, %v81
  %v126 = vmul.f32 %v55, %v82
  %v128 = vperm.slane %v79, 0
  %v129 = vperm.slane %v79, 1
  %v132 = vadd.f32 %v85, %v128
  %v133 = vadd.f32 %v86, %v129
  %v134 = vadd.f32 %v87, %v128
  %v135 = vadd.f32 %v88, %v129
  %v136 = vadd.f32 %v89, %v128
  %v137 = vadd.f32 %v90, %v129
  %v138 = vadd.f32 %v91, %v128
  %v139 = vadd.f32 %v92, %v129
  %v140 = vadd.f32 %v93, %v128
  %v141 = vadd.f32 %v94, %v129
  %v142 = vadd.f32 %v95, %v128
  %v143 = vadd.f32 %v96, %v129
  %v144 = vadd.f32 %v97, %v128
  %v145 = vadd.f32 %v98, %v129
  %v146 = vadd.f32 %v99, %v128
  %v147 = vadd.f32 %v100, %v129
  %v148 = vadd.f32 %v101, %v128
  %v149 = vadd.f32 %v102, %v129
  %v150 = vadd.f32 %v103, %v128
  %v151 = vadd.f32 %v104, %v129
  %v152 = vadd.f32 %v105, %v128
  %v153 = vadd.f32 %v106, %v129
  %v154 = vadd.f32 %v107, %v128
  %v155 = vadd.f32 %v108, %v129
  %v156 = vadd.f32 %v109, %v128
  %v157 = vadd.f32 %v110, %v129
  %v158 = vadd.f32 %v111, %v128
  %v159 = vadd.f32 %v112, %v129
  %v160 = vadd.f32 %v113, %v128
  %v161 = vadd.f32 %v114, %v129
  %v162 = vadd.f32 %v115, %v128
  %v163 = vadd.f32 %v116, %v129
  %v164 = vadd.f32 %v117, %v128
  %v165 = vadd.f32 %v118, %v129
  %v166 = vadd.f32 %v119, %v128
  %v167 = vadd.f32 %v120, %v129
  %v168 = vadd.f32 %v121, %v128
  %v169 = vadd.f32 %v122, %v129
  %v170 = vadd.f32 %v123, %v128
  %v171 = vadd.f32 %v124, %v129
  %v172 = vadd.f32 %v125, %v128
  %v173 = vadd.f32 %v126, %v129
  %v174 = vmax.f32 %v132, 0.0
  %v175 = vmax.f32 %v133, 0.0
  %v176 = vmax.f32 %v134, 0.0
  %v177 = vmax.f32 %v135, 0.0
  %v178 = vmax.f32 %v136, 0.0
  %v179 = vmax.f32 %v137, 0.0
  %v180 = vmax.f32 %v138, 0.0
  %v181 = vmax.f32 %v139, 0.0
  %v182 = vmax.f32 %v140, 0.0
  %v183 = vmax.f32 %v141, 0.0
  %v184 = vmax.f32 %v142, 0.0
  %v185 = vmax.f32 %v143, 0.0
  %v186 = vmax.f32 %v144, 0.0
  %v187 = vmax.f32 %v145, 0.0
  %v188 = vmax.f32 %v146, 0.0
  %v189 = vmax.f32 %v147, 0.0
  %v190 = vmax.f32 %v148, 0.0
  %v191 = vmax.f32 %v149, 0.0
  %v192 = vmax.f32 %v150, 0.0
  %v193 = vmax.f32 %v151, 0.0
  %v194 = vmax.f32 %v152, 0.0
  %v195 = vmax.f32 %v153, 0.0
  %v196 = vmax.f32 %v154, 0.0
  %v197 = vmax.f32 %v155, 0.0
  %v198 = vmax.f32 %v156, 0.0
  %v199 = vmax.f32 %v157, 0.0
  %v200 = vmax.f32 %v158, 0.0
  %v201 = vmax.f32 %v159, 0.0
  %v202 = vmax.f32 %v160, 0.0
  %v203 = vmax.f32 %v161, 0.0
  %v204 = vmax.f32 %v162, 0.0
  %v205 = vmax.f32 %v163, 0.0
  %v206 = vmax.f32 %v164, 0.0
  %v207 = vmax.f32 %v165, 0.0
  %v208 = vmax.f32 %v166, 0.0
  %v209 = vmax.f32 %v167, 0.0
  %v210 = vmax.f32 %v168, 0.0
  %v211 = vmax.f32 %v169, 0.0
  %v212 = vmax.f32 %v170, 0.0
  %v213 = vmax.f32 %v171, 0.0
  %v214 = vmax.f32 %v172, 0.0
  %v215 = vmax.f32 %v173, 0.0
  %v216 = vpack.c.bf16 %v175, %v174
  %v217 = vpack.c.bf16 %v177, %v176
  %v218 = vpack.c.bf16 %v179, %v178
  %v219 = vpack.c.bf16 %v181, %v180
  %v220 = vpack.c.bf16 %v183, %v182
  %v221 = vpack.c.bf16 %v185, %v184
  %v222 = vpack.c.bf16 %v187, %v186
  %v223 = vpack.c.bf16 %v189, %v188
  %v224 = vpack.c.bf16 %v191, %v190
  %v225 = vpack.c.bf16 %v193, %v192
  %v226 = vpack.c.bf16 %v195, %v194
  %v227 = vpack.c.bf16 %v197, %v196
  %v228 = vpack.c.bf16 %v199, %v198
  %v229 = vpack.c.bf16 %v201, %v200
  %v230 = vpack.c.bf16 %v203, %v202
  %v231 = vpack.c.bf16 %v205, %v204
  %v232 = vpack.c.bf16 %v207, %v206
  %v233 = vpack.c.bf16 %v209, %v208
  %v234 = vpack.c.bf16 %v211, %v210
  %v235 = vpack.c.bf16 %v213, %v212
  %v236 = vpack.c.bf16 %v215, %v214
  %237 = vst [vmem:[%s3] sm:$0xff] %v216
  %238 = vst [vmem:[%s3 + $0x8] sm:$0xff] %v217
  %239 = vst [vmem:[%s3 + $0x10] sm:$0xff] %v218
  %240 = vst [vmem:[%s3 + $0x18] sm:$0xff] %v219
  %241 = vst [vmem:[%s3 + $0x20] sm:$0xff] %v220
  %242 = vst [vmem:[%s3 + $0x28] sm:$0xff] %v221
  %243 = vst [vmem:[%s3 + $0x30] sm:$0xff] %v222
  %244 = vst [vmem:[%s3 + $0x38] sm:$0xff] %v223
  %245 = vst [vmem:[%s3 + $0x40] sm:$0xff] %v224
  %246 = vst [vmem:[%s3 + $0x48] sm:$0xff] %v225
  %247 = vst [vmem:[%s3 + $0x50] sm:$0xff] %v226
  %248 = vst [vmem:[%s3 + $0x58] sm:$0xff] %v227
  %249 = vst [vmem:[%s3 + $0x60] sm:$0xff] %v228
  %250 = vst [vmem:[%s3 + $0x68] sm:$0xff] %v229
  %251 = vst [vmem:[%s3 + $0x70] sm:$0xff] %v230
  %252 = vst [vmem:[%s3 + $0x78] sm:$0xff] %v231
  %253 = vst [vmem:[%s3 + $0x80] sm:$0xff] %v232
  %254 = vst [vmem:[%s3 + $0x88] sm:$0xff] %v233
  %255 = vst [vmem:[%s3 + $0x90] sm:$0xff] %v234
  %256 = vst [vmem:[%s3 + $0x98] sm:$0xff] %v235
  %257 = vst [vmem:[%s3 + $0xa0] sm:$0xff] %v236
  // Predicated region
  $region14: #{simp_resnet9_k33.33} parent=0 // pred_check
    _
  $region15: #{simp_resnet9_k33.33} parent=0 // pred_check_branch
    %259 = sbr.rel (0) target = $region17
  $region16: #{simp_resnet9_k33.33} parent=0 // pred_region
    _
  $region17: #{simp_resnet9_k33.33} parent=0 // pred_fallthru
    _
  // Predicated region
  $region18: #{simp_resnet9_k33.33} parent=0 // pred_check
    _
  $region19: #{simp_resnet9_k33.33} parent=0 // pred_check_branch
    %261 = sbr.rel (0) target = $region21
  $region20: #{simp_resnet9_k33.33} parent=0 // pred_region
    _
  $region21: #{simp_resnet9_k33.33} parent=0 // pred_fallthru
    _

// kernel: simp_resnet9_k33.32
$region0: #{simp_resnet9_k33.32}
  #allocation0 [shape = 'u32[]', space=smem, size = 0x4, offset = 0x4, fixed_abs, tag = 'smem constant byte address 0x4 - core index']
  #allocation1 [shape = 'u32[72,128]{1,0:T(1,128)}', space=vmem, size = 0x9000, scoped, tag = 'internal scratch']
  %s0 = inlined_call_operand.vmem [shape: bf16[168,1152], index: 0, kind: input, shape index: {}]
  %s1 = inlined_call_operand.vmem [shape: bf16[1152,256], index: 1, kind: input, shape index: {}]
  %s2 = inlined_call_operand.vmem [shape: f32[168,256], index: 2, kind: output, shape index: {0}]
  %s3 = inlined_call_operand.vmem [shape: f32[2,256], index: 3, kind: output, shape index: {1}]
  %4 = xla_tuple %s2, %s3
  %s5 = sld [smem:[#allocation0]]
  $region30: #{simp_resnet9_k33.32} parent=0
    _
  %s7 = ssub.s32 1, %s5
  %s8 = scalar_select 0, %s7, %s5
  // Predicated region
  $region2: #{simp_resnet9_k33.32} parent=0 // pred_check
    _
  $region3: #{simp_resnet9_k33.32} parent=0 // pred_check_branch
    %10 = sbr.rel (0) target = $region5
  $region4: #{simp_resnet9_k33.32} parent=0 // pred_region
    _
  $region5: #{simp_resnet9_k33.32} parent=0 // pred_fallthru
    _
  // Predicated region
  $region6: #{simp_resnet9_k33.32} parent=0 // pred_check
    _
  $region7: #{simp_resnet9_k33.32} parent=0 // pred_check_branch
    %12 = sbr.rel (0) target = $region9
  $region8: #{simp_resnet9_k33.32} parent=0 // pred_region
    _
  $region9: #{simp_resnet9_k33.32} parent=0 // pred_fallthru
    _
  %p13 = scmp.eq.s32.totalorder 0, 0
  // Predicated region
  $region10: #{simp_resnet9_k33.32} parent=0 // pred_check
    %p14 = pneg %p13
  $region11: #{simp_resnet9_k33.32} parent=0 // pred_check_branch
    %16 = sbr.rel (%p14) target = $region13
  $region12: #{simp_resnet9_k33.32} parent=0 // pred_region
    %17 = vst [vmem:[%s3] sm:$0xf] 0.0
  $region13: #{simp_resnet9_k33.32} parent=0 // pred_fallthru
    _
  %v18 = vld [vmem:[%s0] sm:$0xff]
  %v19 = vld [vmem:[%s0 + $0x8] sm:$0xff]
  %v20 = vld [vmem:[%s0 + $0x10] sm:$0xff]
  %v21 = vld [vmem:[%s0 + $0x18] sm:$0xff]
  %v22 = vld [vmem:[%s0 + $0x20] sm:$0xf]
  %v23 = vld [vmem:[%s0 + $0x24] sm:$0xff]
  %v24 = vld [vmem:[%s0 + $0x2c] sm:$0xff]
  %v25 = vld [vmem:[%s0 + $0x34] sm:$0xff]
  %v26 = vld [vmem:[%s0 + $0x3c] sm:$0xff]
  %v27 = vld [vmem:[%s0 + $0x44] sm:$0xf]
  %v28 = vld [vmem:[%s0 + $0x48] sm:$0xff]
  %v29 = vld [vmem:[%s0 + $0x50] sm:$0xff]
  %v30 = vld [vmem:[%s0 + $0x58] sm:$0xff]
  %v31 = vld [vmem:[%s0 + $0x60] sm:$0xff]
  %v32 = vld [vmem:[%s0 + $0x68] sm:$0xf]
  %v33 = vld [vmem:[%s0 + $0x6c] sm:$0xff]
  %v34 = vld [vmem:[%s0 + $0x74] sm:$0xff]
  %v35 = vld [vmem:[%s0 + $0x7c] sm:$0xff]
  %v36 = vld [vmem:[%s0 + $0x84] sm:$0xff]
  %v37 = vld [vmem:[%s0 + $0x8c] sm:$0xf]
  %v38 = vld [vmem:[%s0 + $0x90] sm:$0xff]
  %v39 = vld [vmem:[%s0 + $0x98] sm:$0xff]
  %v40 = vld [vmem:[%s0 + $0xa0] sm:$0xff]
  %v41 = vld [vmem:[%s0 + $0xa8] sm:$0xff]
  %v42 = vld [vmem:[%s0 + $0xb0] sm:$0xf]
  %v43 = vld [vmem:[%s0 + $0xb4] sm:$0xff]
  %v44 = vld [vmem:[%s0 + $0xbc] sm:$0xff]
  %v45 = vld [vmem:[%s0 + $0xc4] sm:$0xff]
  %v46 = vld [vmem:[%s0 + $0xcc] sm:$0xff]
  %v47 = vld [vmem:[%s0 + $0xd4] sm:$0xf]
  %v48 = vld [vmem:[%s0 + $0xd8] sm:$0xff]
  %v49 = vld [vmem:[%s0 + $0xe0] sm:$0xff]
  %v50 = vld [vmem:[%s0 + $0xe8] sm:$0xff]
  %v51 = vld [vmem:[%s0 + $0xf0] sm:$0xff]
  %v52 = vld [vmem:[%s0 + $0xf8] sm:$0xf]
  %v53 = vld [vmem:[%s0 + $0xfc] sm:$0xff]
  %v54 = vld [vmem:[%s0 + $0x104] sm:$0xff]
  %v55 = vld [vmem:[%s0 + $0x10c] sm:$0xff]
  %v56 = vld [vmem:[%s0 + $0x114] sm:$0xff]
  %v57 = vld [vmem:[%s0 + $0x11c] sm:$0xf]
  %v58 = vld [vmem:[%s0 + $0x120] sm:$0xff]
  %v59 = vld [vmem:[%s0 + $0x128] sm:$0xff]
  %v60 = vld [vmem:[%s0 + $0x130] sm:$0xff]
  %v61 = vld [vmem:[%s0 + $0x138] sm:$0xff]
  %v62 = vld [vmem:[%s0 + $0x140] sm:$0xf]
  %v63 = vld [vmem:[%s0 + $0x144] sm:$0xff]
  %v64 = vld [vmem:[%s0 + $0x14c] sm:$0xff]
  %v65 = vld [vmem:[%s0 + $0x154] sm:$0xff]
  %v66 = vld [vmem:[%s0 + $0x15c] sm:$0xff]
  %v67 = vld [vmem:[%s0 + $0x164] sm:$0xf]
  %v68 = vld [vmem:[%s0 + $0x168] sm:$0xff]
  %v69 = vld [vmem:[%s0 + $0x170] sm:$0xff]
  %v70 = vld [vmem:[%s0 + $0x178] sm:$0xff]
  %v71 = vld [vmem:[%s0 + $0x180] sm:$0xff]
  %v72 = vld [vmem:[%s0 + $0x188] sm:$0xf]
  %v73 = vld [vmem:[%s0 + $0x18c] sm:$0xff]
  %v74 = vld [vmem:[%s0 + $0x194] sm:$0xff]
  %v75 = vld [vmem:[%s0 + $0x19c] sm:$0xff]
  %v76 = vld [vmem:[%s0 + $0x1a4] sm:$0xff]
  %v77 = vld [vmem:[%s0 + $0x1ac] sm:$0xf]
  %v78 = vld [vmem:[%s0 + $0x1b0] sm:$0xff]
  %v79 = vld [vmem:[%s0 + $0x1b8] sm:$0xff]
  %v80 = vld [vmem:[%s0 + $0x1c0] sm:$0xff]
  %v81 = vld [vmem:[%s0 + $0x1c8] sm:$0xff]
  %v82 = vld [vmem:[%s0 + $0x1d0] sm:$0xf]
  %v83 = vld [vmem:[%s0 + $0x1d4] sm:$0xff]
  %v84 = vld [vmem:[%s0 + $0x1dc] sm:$0xff]
  %v85 = vld [vmem:[%s0 + $0x1e4] sm:$0xff]
  %v86 = vld [vmem:[%s0 + $0x1ec] sm:$0xff]
  %v87 = vld [vmem:[%s0 + $0x1f4] sm:$0xf]
  %v88 = vld [vmem:[%s0 + $0x1f8] sm:$0xff]
  %v89 = vld [vmem:[%s0 + $0x200] sm:$0xff]
  %v90 = vld [vmem:[%s0 + $0x208] sm:$0xff]
  %v91 = vld [vmem:[%s0 + $0x210] sm:$0xff]
  %v92 = vld [vmem:[%s0 + $0x218] sm:$0xf]
  %v93 = vld [vmem:[%s0 + $0x21c] sm:$0xff]
  %v94 = vld [vmem:[%s0 + $0x224] sm:$0xff]
  %v95 = vld [vmem:[%s0 + $0x22c] sm:$0xff]
  %v96 = vld [vmem:[%s0 + $0x234] sm:$0xff]
  %v97 = vld [vmem:[%s0 + $0x23c] sm:$0xf]
  %v98 = vld [vmem:[%s0 + $0x240] sm:$0xff]
  %v99 = vld [vmem:[%s0 + $0x248] sm:$0xff]
  %v100 = vld [vmem:[%s0 + $0x250] sm:$0xff]
  %v101 = vld [vmem:[%s0 + $0x258] sm:$0xff]
  %v102 = vld [vmem:[%s0 + $0x260] sm:$0xf]
  %v103 = vld [vmem:[%s0 + $0x264] sm:$0xff]
  %v104 = vld [vmem:[%s0 + $0x26c] sm:$0xff]
  %v105 = vld [vmem:[%s0 + $0x274] sm:$0xff]
  %v106 = vld [vmem:[%s0 + $0x27c] sm:$0xff]
  %v107 = vld [vmem:[%s0 + $0x284] sm:$0xf]
  %v108 = vld [vmem:[%s0 + $0x288] sm:$0xff]
  %v109 = vld [vmem:[%s0 + $0x290] sm:$0xff]
  %v110 = vld [vmem:[%s0 + $0x298] sm:$0xff]
  %v111 = vld [vmem:[%s0 + $0x2a0] sm:$0xff]
  %v112 = vld [vmem:[%s0 + $0x2a8] sm:$0xf]
  %v113 = vld [vmem:[%s0 + $0x2ac] sm:$0xff]
  %v114 = vld [vmem:[%s0 + $0x2b4] sm:$0xff]
  %v115 = vld [vmem:[%s0 + $0x2bc] sm:$0xff]
  %v116 = vld [vmem:[%s0 + $0x2c4] sm:$0xff]
  %v117 = vld [vmem:[%s0 + $0x2cc] sm:$0xf]
  %v118 = vld [vmem:[%s0 + $0x2d0] sm:$0xff]
  %v119 = vld [vmem:[%s0 + $0x2d8] sm:$0xff]
  %v120 = vld [vmem:[%s0 + $0x2e0] sm:$0xff]
  %v121 = vld [vmem:[%s0 + $0x2e8] sm:$0xff]
  %v122 = vld [vmem:[%s0 + $0x2f0] sm:$0xf]
  %v123 = vld [vmem:[%s1] sm:$0xff]
  %v124 = vld [vmem:[%s1 + $0x8] sm:$0xff]
  %v125 = vld [vmem:[%s1 + $0x10] sm:$0xff]
  %v126 = vld [vmem:[%s1 + $0x18] sm:$0xff]
  %v127 = vld [vmem:[%s1 + $0x20] sm:$0xff]
  %v128 = vld [vmem:[%s1 + $0x28] sm:$0xff]
  %v129 = vld [vmem:[%s1 + $0x30] sm:$0xff]
  %v130 = vld [vmem:[%s1 + $0x38] sm:$0xff]
  %v131 = vld [vmem:[%s1 + $0x40] sm:$0xff]
  %v132 = vld [vmem:[%s1 + $0x48] sm:$0xff]
  %v133 = vld [vmem:[%s1 + $0x50] sm:$0xff]
  %v134 = vld [vmem:[%s1 + $0x58] sm:$0xff]
  %v135 = vld [vmem:[%s1 + $0x60] sm:$0xff]
  %v136 = vld [vmem:[%s1 + $0x68] sm:$0xff]
  %v137 = vld [vmem:[%s1 + $0x70] sm:$0xff]
  %v138 = vld [vmem:[%s1 + $0x78] sm:$0xff]
  %v139 = vld [vmem:[%s1 + $0x80] sm:$0xff]
  %v140 = vld [vmem:[%s1 + $0x88] sm:$0xff]
  %v141 = vld [vmem:[%s1 + $0x90] sm:$0xff]
  %v142 = vld [vmem:[%s1 + $0x98] sm:$0xff]
  %v143 = vld [vmem:[%s1 + $0xa0] sm:$0xff]
  %v144 = vld [vmem:[%s1 + $0xa8] sm:$0xff]
  %v145 = vld [vmem:[%s1 + $0xb0] sm:$0xff]
  %v146 = vld [vmem:[%s1 + $0xb8] sm:$0xff]
  %v147 = vld [vmem:[%s1 + $0xc0] sm:$0xff]
  %v148 = vld [vmem:[%s1 + $0xc8] sm:$0xff]
  %v149 = vld [vmem:[%s1 + $0xd0] sm:$0xff]
  %v150 = vld [vmem:[%s1 + $0xd8] sm:$0xff]
  %v151 = vld [vmem:[%s1 + $0xe0] sm:$0xff]
  %v152 = vld [vmem:[%s1 + $0xe8] sm:$0xff]
  %v153 = vld [vmem:[%s1 + $0xf0] sm:$0xff]
  %v154 = vld [vmem:[%s1 + $0xf8] sm:$0xff]
  %v155 = vld [vmem:[%s1 + $0x100] sm:$0xff]
  %v156 = vld [vmem:[%s1 + $0x108] sm:$0xff]
  %v157 = vld [vmem:[%s1 + $0x110] sm:$0xff]
  %v158 = vld [vmem:[%s1 + $0x118] sm:$0xff]
  %v159 = vld [vmem:[%s1 + $0x120] sm:$0xff]
  %v160 = vld [vmem:[%s1 + $0x128] sm:$0xff]
  %v161 = vld [vmem:[%s1 + $0x130] sm:$0xff]
  %v162 = vld [vmem:[%s1 + $0x138] sm:$0xff]
  %v163 = vld [vmem:[%s1 + $0x140] sm:$0xff]
  %v164 = vld [vmem:[%s1 + $0x148] sm:$0xff]
  %v165 = vld [vmem:[%s1 + $0x150] sm:$0xff]
  %v166 = vld [vmem:[%s1 + $0x158] sm:$0xff]
  %v167 = vld [vmem:[%s1 + $0x160] sm:$0xff]
  %v168 = vld [vmem:[%s1 + $0x168] sm:$0xff]
  %v169 = vld [vmem:[%s1 + $0x170] sm:$0xff]
  %v170 = vld [vmem:[%s1 + $0x178] sm:$0xff]
  %v171 = vld [vmem:[%s1 + $0x180] sm:$0xff]
  %v172 = vld [vmem:[%s1 + $0x188] sm:$0xff]
  %v173 = vld [vmem:[%s1 + $0x190] sm:$0xff]
  %v174 = vld [vmem:[%s1 + $0x198] sm:$0xff]
  %v175 = vld [vmem:[%s1 + $0x1a0] sm:$0xff]
  %v176 = vld [vmem:[%s1 + $0x1a8] sm:$0xff]
  %v177 = vld [vmem:[%s1 + $0x1b0] sm:$0xff]
  %v178 = vld [vmem:[%s1 + $0x1b8] sm:$0xff]
  %v179 = vld [vmem:[%s1 + $0x1c0] sm:$0xff]
  %v180 = vld [vmem:[%s1 + $0x1c8] sm:$0xff]
  %v181 = vld [vmem:[%s1 + $0x1d0] sm:$0xff]
  %v182 = vld [vmem:[%s1 + $0x1d8] sm:$0xff]
  %v183 = vld [vmem:[%s1 + $0x1e0] sm:$0xff]
  %v184 = vld [vmem:[%s1 + $0x1e8] sm:$0xff]
  %v185 = vld [vmem:[%s1 + $0x1f0] sm:$0xff]
  %v186 = vld [vmem:[%s1 + $0x1f8] sm:$0xff]
  %v187 = vld [vmem:[%s1 + $0x200] sm:$0xff]
  %v188 = vld [vmem:[%s1 + $0x208] sm:$0xff]
  %v189 = vld [vmem:[%s1 + $0x210] sm:$0xff]
  %v190 = vld [vmem:[%s1 + $0x218] sm:$0xff]
  %v191 = vld [vmem:[%s1 + $0x220] sm:$0xff]
  %v192 = vld [vmem:[%s1 + $0x228] sm:$0xff]
  %v193 = vld [vmem:[%s1 + $0x230] sm:$0xff]
  %v194 = vld [vmem:[%s1 + $0x238] sm:$0xff]
  %v195 = vld [vmem:[%s1 + $0x240] sm:$0xff]
  %v196 = vld [vmem:[%s1 + $0x248] sm:$0xff]
  %v197 = vld [vmem:[%s1 + $0x250] sm:$0xff]
  %v198 = vld [vmem:[%s1 + $0x258] sm:$0xff]
  %v199 = vld [vmem:[%s1 + $0x260] sm:$0xff]
  %v200 = vld [vmem:[%s1 + $0x268] sm:$0xff]
  %v201 = vld [vmem:[%s1 + $0x270] sm:$0xff]
  %v202 = vld [vmem:[%s1 + $0x278] sm:$0xff]
  %v203 = vld [vmem:[%s1 + $0x280] sm:$0xff]
  %v204 = vld [vmem:[%s1 + $0x288] sm:$0xff]
  %v205 = vld [vmem:[%s1 + $0x290] sm:$0xff]
  %v206 = vld [vmem:[%s1 + $0x298] sm:$0xff]
  %v207 = vld [vmem:[%s1 + $0x2a0] sm:$0xff]
  %v208 = vld [vmem:[%s1 + $0x2a8] sm:$0xff]
  %v209 = vld [vmem:[%s1 + $0x2b0] sm:$0xff]
  %v210 = vld [vmem:[%s1 + $0x2b8] sm:$0xff]
  %v211 = vld [vmem:[%s1 + $0x2c0] sm:$0xff]
  %v212 = vld [vmem:[%s1 + $0x2c8] sm:$0xff]
  %v213 = vld [vmem:[%s1 + $0x2d0] sm:$0xff]
  %v214 = vld [vmem:[%s1 + $0x2d8] sm:$0xff]
  %v215 = vld [vmem:[%s1 + $0x2e0] sm:$0xff]
  %v216 = vld [vmem:[%s1 + $0x2e8] sm:$0xff]
  %v217 = vld [vmem:[%s1 + $0x2f0] sm:$0xff]
  %v218 = vld [vmem:[%s1 + $0x2f8] sm:$0xff]
  %v219 = vld [vmem:[%s1 + $0x300] sm:$0xff]
  %v220 = vld [vmem:[%s1 + $0x308] sm:$0xff]
  %v221 = vld [vmem:[%s1 + $0x310] sm:$0xff]
  %v222 = vld [vmem:[%s1 + $0x318] sm:$0xff]
  %v223 = vld [vmem:[%s1 + $0x320] sm:$0xff]
  %v224 = vld [vmem:[%s1 + $0x328] sm:$0xff]
  %v225 = vld [vmem:[%s1 + $0x330] sm:$0xff]
  %v226 = vld [vmem:[%s1 + $0x338] sm:$0xff]
  %v227 = vld [vmem:[%s1 + $0x340] sm:$0xff]
  %v228 = vld [vmem:[%s1 + $0x348] sm:$0xff]
  %v229 = vld [vmem:[%s1 + $0x350] sm:$0xff]
  %v230 = vld [vmem:[%s1 + $0x358] sm:$0xff]
  %v231 = vld [vmem:[%s1 + $0x360] sm:$0xff]
  %v232 = vld [vmem:[%s1 + $0x368] sm:$0xff]
  %v233 = vld [vmem:[%s1 + $0x370] sm:$0xff]
  %v234 = vld [vmem:[%s1 + $0x378] sm:$0xff]
  %v235 = vld [vmem:[%s1 + $0x380] sm:$0xff]
  %v236 = vld [vmem:[%s1 + $0x388] sm:$0xff]
  %v237 = vld [vmem:[%s1 + $0x390] sm:$0xff]
  %v238 = vld [vmem:[%s1 + $0x398] sm:$0xff]
  %v239 = vld [vmem:[%s1 + $0x3a0] sm:$0xff]
  %v240 = vld [vmem:[%s1 + $0x3a8] sm:$0xff]
  %v241 = vld [vmem:[%s1 + $0x3b0] sm:$0xff]
  %v242 = vld [vmem:[%s1 + $0x3b8] sm:$0xff]
  %v243 = vld [vmem:[%s1 + $0x3c0] sm:$0xff]
  %v244 = vld [vmem:[%s1 + $0x3c8] sm:$0xff]
  %v245 = vld [vmem:[%s1 + $0x3d0] sm:$0xff]
  %v246 = vld [vmem:[%s1 + $0x3d8] sm:$0xff]
  %v247 = vld [vmem:[%s1 + $0x3e0] sm:$0xff]
  %v248 = vld [vmem:[%s1 + $0x3e8] sm:$0xff]
  %v249 = vld [vmem:[%s1 + $0x3f0] sm:$0xff]
  %v250 = vld [vmem:[%s1 + $0x3f8] sm:$0xff]
  %v251 = vld [vmem:[%s1 + $0x400] sm:$0xff]
  %v252 = vld [vmem:[%s1 + $0x408] sm:$0xff]
  %v253 = vld [vmem:[%s1 + $0x410] sm:$0xff]
  %v254 = vld [vmem:[%s1 + $0x418] sm:$0xff]
  %v255 = vld [vmem:[%s1 + $0x420] sm:$0xff]
  %v256 = vld [vmem:[%s1 + $0x428] sm:$0xff]
  %v257 = vld [vmem:[%s1 + $0x430] sm:$0xff]
  %v258 = vld [vmem:[%s1 + $0x438] sm:$0xff]
  %v259 = vld [vmem:[%s1 + $0x440] sm:$0xff]
  %v260 = vld [vmem:[%s1 + $0x448] sm:$0xff]
  %v261 = vld [vmem:[%s1 + $0x450] sm:$0xff]
  %v262 = vld [vmem:[%s1 + $0x458] sm:$0xff]
  %v263 = vld [vmem:[%s1 + $0x460] sm:$0xff]
  %v264 = vld [vmem:[%s1 + $0x468] sm:$0xff]
  %v265 = vld [vmem:[%s1 + $0x470] sm:$0xff]
  %v266 = vld [vmem:[%s1 + $0x478] sm:$0xff]
  %v372 = vunpack.c.l.b16 %v18
  %v373 = vunpack.c.h.b16 %v18
  %v374 = vunpack.c.l.b16 %v19
  %v375 = vunpack.c.h.b16 %v19
  %v376 = vunpack.c.l.b16 %v20
  %v377 = vunpack.c.h.b16 %v20
  %v378 = vunpack.c.l.b16 %v21
  %v379 = vunpack.c.h.b16 %v21
  %v380 = vunpack.c.l.b16 %v22
  %v381 = vunpack.c.l.b16 %v23
  %v382 = vunpack.c.h.b16 %v23
  %v383 = vunpack.c.l.b16 %v24
  %v384 = vunpack.c.h.b16 %v24
  %v385 = vunpack.c.l.b16 %v25
  %v386 = vunpack.c.h.b16 %v25
  %v387 = vunpack.c.l.b16 %v26
  %v388 = vunpack.c.h.b16 %v26
  %v389 = vunpack.c.l.b16 %v27
  %v390 = vunpack.c.l.b16 %v28
  %v391 = vunpack.c.h.b16 %v28
  %v392 = vunpack.c.l.b16 %v29
  %v393 = vunpack.c.h.b16 %v29
  %v394 = vunpack.c.l.b16 %v30
  %v395 = vunpack.c.h.b16 %v30
  %v396 = vunpack.c.l.b16 %v31
  %v397 = vunpack.c.h.b16 %v31
  %v398 = vunpack.c.l.b16 %v32
  %v399 = vunpack.c.l.b16 %v33
  %v400 = vunpack.c.h.b16 %v33
  %v401 = vunpack.c.l.b16 %v34
  %v402 = vunpack.c.h.b16 %v34
  %v403 = vunpack.c.l.b16 %v35
  %v404 = vunpack.c.h.b16 %v35
  %v405 = vunpack.c.l.b16 %v36
  %v406 = vunpack.c.h.b16 %v36
  %v407 = vunpack.c.l.b16 %v37
  %v408 = vunpack.c.l.b16 %v38
  %v409 = vunpack.c.h.b16 %v38
  %v410 = vunpack.c.l.b16 %v39
  %v411 = vunpack.c.h.b16 %v39
  %v412 = vunpack.c.l.b16 %v40
  %v413 = vunpack.c.h.b16 %v40
  %v414 = vunpack.c.l.b16 %v41
  %v415 = vunpack.c.h.b16 %v41
  %v416 = vunpack.c.l.b16 %v42
  %v417 = vunpack.c.l.b16 %v43
  %v418 = vunpack.c.h.b16 %v43
  %v419 = vunpack.c.l.b16 %v44
  %v420 = vunpack.c.h.b16 %v44
  %v421 = vunpack.c.l.b16 %v45
  %v422 = vunpack.c.h.b16 %v45
  %v423 = vunpack.c.l.b16 %v46
  %v424 = vunpack.c.h.b16 %v46
  %v425 = vunpack.c.l.b16 %v47
  %v426 = vunpack.c.l.b16 %v48
  %v427 = vunpack.c.h.b16 %v48
  %v428 = vunpack.c.l.b16 %v49
  %v429 = vunpack.c.h.b16 %v49
  %v430 = vunpack.c.l.b16 %v50
  %v431 = vunpack.c.h.b16 %v50
  %v432 = vunpack.c.l.b16 %v51
  %v433 = vunpack.c.h.b16 %v51
  %v434 = vunpack.c.l.b16 %v52
  %v435 = vunpack.c.l.b16 %v53
  %v436 = vunpack.c.h.b16 %v53
  %v437 = vunpack.c.l.b16 %v54
  %v438 = vunpack.c.h.b16 %v54
  %v439 = vunpack.c.l.b16 %v55
  %v440 = vunpack.c.h.b16 %v55
  %v441 = vunpack.c.l.b16 %v56
  %v442 = vunpack.c.h.b16 %v56
  %v443 = vunpack.c.l.b16 %v57
  %v444 = vunpack.c.l.b16 %v58
  %v445 = vunpack.c.h.b16 %v58
  %v446 = vunpack.c.l.b16 %v59
  %v447 = vunpack.c.h.b16 %v59
  %v448 = vunpack.c.l.b16 %v60
  %v449 = vunpack.c.h.b16 %v60
  %v450 = vunpack.c.l.b16 %v61
  %v451 = vunpack.c.h.b16 %v61
  %v452 = vunpack.c.l.b16 %v62
  %v453 = vunpack.c.l.b16 %v63
  %v454 = vunpack.c.h.b16 %v63
  %v455 = vunpack.c.l.b16 %v64
  %v456 = vunpack.c.h.b16 %v64
  %v457 = vunpack.c.l.b16 %v65
  %v458 = vunpack.c.h.b16 %v65
  %v459 = vunpack.c.l.b16 %v66
  %v460 = vunpack.c.h.b16 %v66
  %v461 = vunpack.c.l.b16 %v67
  %v462 = vunpack.c.l.b16 %v68
  %v463 = vunpack.c.h.b16 %v68
  %v464 = vunpack.c.l.b16 %v69
  %v465 = vunpack.c.h.b16 %v69
  %v466 = vunpack.c.l.b16 %v70
  %v467 = vunpack.c.h.b16 %v70
  %v468 = vunpack.c.l.b16 %v71
  %v469 = vunpack.c.h.b16 %v71
  %v470 = vunpack.c.l.b16 %v72
  %v471 = vunpack.c.l.b16 %v73
  %v472 = vunpack.c.h.b16 %v73
  %v473 = vunpack.c.l.b16 %v74
  %v474 = vunpack.c.h.b16 %v74
  %v475 = vunpack.c.l.b16 %v75
  %v476 = vunpack.c.h.b16 %v75
  %v477 = vunpack.c.l.b16 %v76
  %v478 = vunpack.c.h.b16 %v76
  %v479 = vunpack.c.l.b16 %v77
  %v480 = vunpack.c.l.b16 %v78
  %v481 = vunpack.c.h.b16 %v78
  %v482 = vunpack.c.l.b16 %v79
  %v483 = vunpack.c.h.b16 %v79
  %v484 = vunpack.c.l.b16 %v80
  %v485 = vunpack.c.h.b16 %v80
  %v486 = vunpack.c.l.b16 %v81
  %v487 = vunpack.c.h.b16 %v81
  %v488 = vunpack.c.l.b16 %v82
  %v489 = vunpack.c.l.b16 %v83
  %v490 = vunpack.c.h.b16 %v83
  %v491 = vunpack.c.l.b16 %v84
  %v492 = vunpack.c.h.b16 %v84
  %v493 = vunpack.c.l.b16 %v85
  %v494 = vunpack.c.h.b16 %v85
  %v495 = vunpack.c.l.b16 %v86
  %v496 = vunpack.c.h.b16 %v86
  %v497 = vunpack.c.l.b16 %v87
  %v498 = vunpack.c.l.b16 %v88
  %v499 = vunpack.c.h.b16 %v88
  %v500 = vunpack.c.l.b16 %v89
  %v501 = vunpack.c.h.b16 %v89
  %v502 = vunpack.c.l.b16 %v90
  %v503 = vunpack.c.h.b16 %v90
  %v504 = vunpack.c.l.b16 %v91
  %v505 = vunpack.c.h.b16 %v91
  %v506 = vunpack.c.l.b16 %v92
  %v507 = vunpack.c.l.b16 %v93
  %v508 = vunpack.c.h.b16 %v93
  %v509 = vunpack.c.l.b16 %v94
  %v510 = vunpack.c.h.b16 %v94
  %v511 = vunpack.c.l.b16 %v95
  %v512 = vunpack.c.h.b16 %v95
  %v513 = vunpack.c.l.b16 %v96
  %v514 = vunpack.c.h.b16 %v96
  %v515 = vunpack.c.l.b16 %v97
  %v516 = vunpack.c.l.b16 %v98
  %v517 = vunpack.c.h.b16 %v98
  %v518 = vunpack.c.l.b16 %v99
  %v519 = vunpack.c.h.b16 %v99
  %v520 = vunpack.c.l.b16 %v100
  %v521 = vunpack.c.h.b16 %v100
  %v522 = vunpack.c.l.b16 %v101
  %v523 = vunpack.c.h.b16 %v101
  %v524 = vunpack.c.l.b16 %v102
  %v525 = vunpack.c.l.b16 %v103
  %v526 = vunpack.c.h.b16 %v103
  %v527 = vunpack.c.l.b16 %v104
  %v528 = vunpack.c.h.b16 %v104
  %v529 = vunpack.c.l.b16 %v105
  %v530 = vunpack.c.h.b16 %v105
  %v531 = vunpack.c.l.b16 %v106
  %v532 = vunpack.c.h.b16 %v106
  %v533 = vunpack.c.l.b16 %v107
  %v534 = vunpack.c.l.b16 %v108
  %v535 = vunpack.c.h.b16 %v108
  %v536 = vunpack.c.l.b16 %v109
  %v537 = vunpack.c.h.b16 %v109
  %v538 = vunpack.c.l.b16 %v110
  %v539 = vunpack.c.h.b16 %v110
  %v540 = vunpack.c.l.b16 %v111
  %v541 = vunpack.c.h.b16 %v111
  %v542 = vunpack.c.l.b16 %v112
  %v543 = vunpack.c.l.b16 %v113
  %v544 = vunpack.c.h.b16 %v113
  %v545 = vunpack.c.l.b16 %v114
  %v546 = vunpack.c.h.b16 %v114
  %v547 = vunpack.c.l.b16 %v115
  %v548 = vunpack.c.h.b16 %v115
  %v549 = vunpack.c.l.b16 %v116
  %v550 = vunpack.c.h.b16 %v116
  %v551 = vunpack.c.l.b16 %v117
  %v552 = vunpack.c.l.b16 %v118
  %v553 = vunpack.c.h.b16 %v118
  %v554 = vunpack.c.l.b16 %v119
  %v555 = vunpack.c.h.b16 %v119
  %v556 = vunpack.c.l.b16 %v120
  %v557 = vunpack.c.h.b16 %v120
  %v558 = vunpack.c.l.b16 %v121
  %v559 = vunpack.c.h.b16 %v121
  %v560 = vunpack.c.l.b16 %v122
  %v561 = vpack.c.b16 %v381, %v372
  %v562 = vpack.c.b16 %v382, %v373
  %v563 = vpack.c.b16 %v383, %v374
  %v564 = vpack.c.b16 %v384, %v375
  %v565 = vpack.c.b16 %v385, %v376
  %v566 = vpack.c.b16 %v386, %v377
  %v567 = vpack.c.b16 %v387, %v378
  %v568 = vpack.c.b16 %v388, %v379
  %v569 = vpack.c.b16 %v389, %v380
  %v570 = vpack.c.b16 %v399, %v390
  %v571 = vpack.c.b16 %v400, %v391
  %v572 = vpack.c.b16 %v401, %v392
  %v573 = vpack.c.b16 %v402, %v393
  %v574 = vpack.c.b16 %v403, %v394
  %v575 = vpack.c.b16 %v404, %v395
  %v576 = vpack.c.b16 %v405, %v396
  %v577 = vpack.c.b16 %v406, %v397
  %v578 = vpack.c.b16 %v407, %v398
  %v579 = vpack.c.b16 %v417, %v408
  %v580 = vpack.c.b16 %v418, %v409
  %v581 = vpack.c.b16 %v419, %v410
  %v582 = vpack.c.b16 %v420, %v411
  %v583 = vpack.c.b16 %v421, %v412
  %v584 = vpack.c.b16 %v422, %v413
  %v585 = vpack.c.b16 %v423, %v414
  %v586 = vpack.c.b16 %v424, %v415
  %v587 = vpack.c.b16 %v425, %v416
  %v588 = vpack.c.b16 %v435, %v426
  %v589 = vpack.c.b16 %v436, %v427
  %v590 = vpack.c.b16 %v437, %v428
  %v591 = vpack.c.b16 %v438, %v429
  %v592 = vpack.c.b16 %v439, %v430
  %v593 = vpack.c.b16 %v440, %v431
  %v594 = vpack.c.b16 %v441, %v432
  %v595 = vpack.c.b16 %v442, %v433
  %v596 = vpack.c.b16 %v443, %v434
  %v597 = vpack.c.b16 %v453, %v444
  %v598 = vpack.c.b16 %v454, %v445
  %v599 = vpack.c.b16 %v455, %v446
  %v600 = vpack.c.b16 %v456, %v447
  %v601 = vpack.c.b16 %v457, %v448
  %v602 = vpack.c.b16 %v458, %v449
  %v603 = vpack.c.b16 %v459, %v450
  %v604 = vpack.c.b16 %v460, %v451
  %v605 = vpack.c.b16 %v461, %v452
  %v606 = vpack.c.b16 %v471, %v462
  %v607 = vpack.c.b16 %v472, %v463
  %v608 = vpack.c.b16 %v473, %v464
  %v609 = vpack.c.b16 %v474, %v465
  %v610 = vpack.c.b16 %v475, %v466
  %v611 = vpack.c.b16 %v476, %v467
  %v612 = vpack.c.b16 %v477, %v468
  %v613 = vpack.c.b16 %v478, %v469
  %v614 = vpack.c.b16 %v479, %v470
  %v615 = vpack.c.b16 %v489, %v480
  %v616 = vpack.c.b16 %v490, %v481
  %v617 = vpack.c.b16 %v491, %v482
  %v618 = vpack.c.b16 %v492, %v483
  %v619 = vpack.c.b16 %v493, %v484
  %v620 = vpack.c.b16 %v494, %v485
  %v621 = vpack.c.b16 %v495, %v486
  %v622 = vpack.c.b16 %v496, %v487
  %v623 = vpack.c.b16 %v497, %v488
  %v624 = vpack.c.b16 %v507, %v498
  %v625 = vpack.c.b16 %v508, %v499
  %v626 = vpack.c.b16 %v509, %v500
  %v627 = vpack.c.b16 %v510, %v501
  %v628 = vpack.c.b16 %v511, %v502
  %v629 = vpack.c.b16 %v512, %v503
  %v630 = vpack.c.b16 %v513, %v504
  %v631 = vpack.c.b16 %v514, %v505
  %v632 = vpack.c.b16 %v515, %v506
  %v633 = vpack.c.b16 %v525, %v516
  %v634 = vpack.c.b16 %v526, %v517
  %v635 = vpack.c.b16 %v527, %v518
  %v636 = vpack.c.b16 %v528, %v519
  %v637 = vpack.c.b16 %v529, %v520
  %v638 = vpack.c.b16 %v530, %v521
  %v639 = vpack.c.b16 %v531, %v522
  %v640 = vpack.c.b16 %v532, %v523
  %v641 = vpack.c.b16 %v533, %v524
  %v642 = vpack.c.b16 %v543, %v534
  %v643 = vpack.c.b16 %v544, %v535
  %v644 = vpack.c.b16 %v545, %v536
  %v645 = vpack.c.b16 %v546, %v537
  %v646 = vpack.c.b16 %v547, %v538
  %v647 = vpack.c.b16 %v548, %v539
  %v648 = vpack.c.b16 %v549, %v540
  %v649 = vpack.c.b16 %v550, %v541
  %v650 = vpack.c.b16 %v551, %v542
  %v651 = vpack.c.b16 %v552, %v552
  %v652 = vpack.c.b16 %v553, %v553
  %v653 = vpack.c.b16 %v554, %v554
  %v654 = vpack.c.b16 %v555, %v555
  %v655 = vpack.c.b16 %v556, %v556
  %v656 = vpack.c.b16 %v557, %v557
  %v657 = vpack.c.b16 %v558, %v558
  %v658 = vpack.c.b16 %v559, %v559
  %v659 = vpack.c.b16 %v560, %v560
  %v903 = vunpack.c.l.b16 %v123
  %v904 = vunpack.c.h.b16 %v123
  %v905 = vunpack.c.l.b16 %v124
  %v906 = vunpack.c.h.b16 %v124
  %v907 = vunpack.c.l.b16 %v125
  %v908 = vunpack.c.h.b16 %v125
  %v909 = vunpack.c.l.b16 %v126
  %v910 = vunpack.c.h.b16 %v126
  %v911 = vunpack.c.l.b16 %v127
  %v912 = vunpack.c.h.b16 %v127
  %v913 = vunpack.c.l.b16 %v128
  %v914 = vunpack.c.h.b16 %v128
  %v915 = vunpack.c.l.b16 %v129
  %v916 = vunpack.c.h.b16 %v129
  %v917 = vunpack.c.l.b16 %v130
  %v918 = vunpack.c.h.b16 %v130
  %v919 = vunpack.c.l.b16 %v131
  %v920 = vunpack.c.h.b16 %v131
  %v921 = vunpack.c.l.b16 %v132
  %v922 = vunpack.c.h.b16 %v132
  %v923 = vunpack.c.l.b16 %v133
  %v924 = vunpack.c.h.b16 %v133
  %v925 = vunpack.c.l.b16 %v134
  %v926 = vunpack.c.h.b16 %v134
  %v927 = vunpack.c.l.b16 %v135
  %v928 = vunpack.c.h.b16 %v135
  %v929 = vunpack.c.l.b16 %v136
  %v930 = vunpack.c.h.b16 %v136
  %v931 = vunpack.c.l.b16 %v137
  %v932 = vunpack.c.h.b16 %v137
  %v933 = vunpack.c.l.b16 %v138
  %v934 = vunpack.c.h.b16 %v138
  %v935 = vunpack.c.l.b16 %v139
  %v936 = vunpack.c.h.b16 %v139
  %v937 = vunpack.c.l.b16 %v140
  %v938 = vunpack.c.h.b16 %v140
  %v939 = vunpack.c.l.b16 %v141
  %v940 = vunpack.c.h.b16 %v141
  %v941 = vunpack.c.l.b16 %v142
  %v942 = vunpack.c.h.b16 %v142
  %v943 = vunpack.c.l.b16 %v143
  %v944 = vunpack.c.h.b16 %v143
  %v945 = vunpack.c.l.b16 %v144
  %v946 = vunpack.c.h.b16 %v144
  %v947 = vunpack.c.l.b16 %v145
  %v948 = vunpack.c.h.b16 %v145
  %v949 = vunpack.c.l.b16 %v146
  %v950 = vunpack.c.h.b16 %v146
  %v951 = vunpack.c.l.b16 %v147
  %v952 = vunpack.c.h.b16 %v147
  %v953 = vunpack.c.l.b16 %v148
  %v954 = vunpack.c.h.b16 %v148
  %v955 = vunpack.c.l.b16 %v149
  %v956 = vunpack.c.h.b16 %v149
  %v957 = vunpack.c.l.b16 %v150
  %v958 = vunpack.c.h.b16 %v150
  %v959 = vunpack.c.l.b16 %v151
  %v960 = vunpack.c.h.b16 %v151
  %v961 = vunpack.c.l.b16 %v152
  %v962 = vunpack.c.h.b16 %v152
  %v963 = vunpack.c.l.b16 %v153
  %v964 = vunpack.c.h.b16 %v153
  %v965 = vunpack.c.l.b16 %v154
  %v966 = vunpack.c.h.b16 %v154
  %v967 = vunpack.c.l.b16 %v155
  %v968 = vunpack.c.h.b16 %v155
  %v969 = vunpack.c.l.b16 %v156
  %v970 = vunpack.c.h.b16 %v156
  %v971 = vunpack.c.l.b16 %v157
  %v972 = vunpack.c.h.b16 %v157
  %v973 = vunpack.c.l.b16 %v158
  %v974 = vunpack.c.h.b16 %v158
  %v975 = vunpack.c.l.b16 %v159
  %v976 = vunpack.c.h.b16 %v159
  %v977 = vunpack.c.l.b16 %v160
  %v978 = vunpack.c.h.b16 %v160
  %v979 = vunpack.c.l.b16 %v161
  %v980 = vunpack.c.h.b16 %v161
  %v981 = vunpack.c.l.b16 %v162
  %v982 = vunpack.c.h.b16 %v162
  %v983 = vunpack.c.l.b16 %v163
  %v984 = vunpack.c.h.b16 %v163
  %v985 = vunpack.c.l.b16 %v164
  %v986 = vunpack.c.h.b16 %v164
  %v987 = vunpack.c.l.b16 %v165
  %v988 = vunpack.c.h.b16 %v165
  %v989 = vunpack.c.l.b16 %v166
  %v990 = vunpack.c.h.b16 %v166
  %v991 = vunpack.c.l.b16 %v167
  %v992 = vunpack.c.h.b16 %v167
  %v993 = vunpack.c.l.b16 %v168
  %v994 = vunpack.c.h.b16 %v168
  %v995 = vunpack.c.l.b16 %v169
  %v996 = vunpack.c.h.b16 %v169
  %v997 = vunpack.c.l.b16 %v170
  %v998 = vunpack.c.h.b16 %v170
  %v999 = vunpack.c.l.b16 %v171
  %v1000 = vunpack.c.h.b16 %v171
  %v1001 = vunpack.c.l.b16 %v172
  %v1002 = vunpack.c.h.b16 %v172
  %v1003 = vunpack.c.l.b16 %v173
  %v1004 = vunpack.c.h.b16 %v173
  %v1005 = vunpack.c.l.b16 %v174
  %v1006 = vunpack.c.h.b16 %v174
  %v1007 = vunpack.c.l.b16 %v175
  %v1008 = vunpack.c.h.b16 %v175
  %v1009 = vunpack.c.l.b16 %v176
  %v1010 = vunpack.c.h.b16 %v176
  %v1011 = vunpack.c.l.b16 %v177
  %v1012 = vunpack.c.h.b16 %v177
  %v1013 = vunpack.c.l.b16 %v178
  %v1014 = vunpack.c.h.b16 %v178
  %v1015 = vunpack.c.l.b16 %v179
  %v1016 = vunpack.c.h.b16 %v179
  %v1017 = vunpack.c.l.b16 %v180
  %v1018 = vunpack.c.h.b16 %v180
  %v1019 = vunpack.c.l.b16 %v181
  %v1020 = vunpack.c.h.b16 %v181
  %v1021 = vunpack.c.l.b16 %v182
  %v1022 = vunpack.c.h.b16 %v182
  %v1023 = vunpack.c.l.b16 %v183
  %v1024 = vunpack.c.h.b16 %v183
  %v1025 = vunpack.c.l.b16 %v184
  %v1026 = vunpack.c.h.b16 %v184
  %v1027 = vunpack.c.l.b16 %v185
  %v1028 = vunpack.c.h.b16 %v185
  %v1029 = vunpack.c.l.b16 %v186
  %v1030 = vunpack.c.h.b16 %v186
  %v1031 = vunpack.c.l.b16 %v187
  %v1032 = vunpack.c.h.b16 %v187
  %v1033 = vunpack.c.l.b16 %v188
  %v1034 = vunpack.c.h.b16 %v188
  %v1035 = vunpack.c.l.b16 %v189
  %v1036 = vunpack.c.h.b16 %v189
  %v1037 = vunpack.c.l.b16 %v190
  %v1038 = vunpack.c.h.b16 %v190
  %v1039 = vunpack.c.l.b16 %v191
  %v1040 = vunpack.c.h.b16 %v191
  %v1041 = vunpack.c.l.b16 %v192
  %v1042 = vunpack.c.h.b16 %v192
  %v1043 = vunpack.c.l.b16 %v193
  %v1044 = vunpack.c.h.b16 %v193
  %v1045 = vunpack.c.l.b16 %v194
  %v1046 = vunpack.c.h.b16 %v194
  %v1047 = vunpack.c.l.b16 %v195
  %v1048 = vunpack.c.h.b16 %v195
  %v1049 = vunpack.c.l.b16 %v196
  %v1050 = vunpack.c.h.b16 %v196
  %v1051 = vunpack.c.l.b16 %v197
  %v1052 = vunpack.c.h.b16 %v197
  %v1053 = vunpack.c.l.b16 %v198
  %v1054 = vunpack.c.h.b16 %v198
  %v1055 = vunpack.c.l.b16 %v199
  %v1056 = vunpack.c.h.b16 %v199
  %v1057 = vunpack.c.l.b16 %v200
  %v1058 = vunpack.c.h.b16 %v200
  %v1059 = vunpack.c.l.b16 %v201
  %v1060 = vunpack.c.h.b16 %v201
  %v1061 = vunpack.c.l.b16 %v202
  %v1062 = vunpack.c.h.b16 %v202
  %v1063 = vunpack.c.l.b16 %v203
  %v1064 = vunpack.c.h.b16 %v203
  %v1065 = vunpack.c.l.b16 %v204
  %v1066 = vunpack.c.h.b16 %v204
  %v1067 = vunpack.c.l.b16 %v205
  %v1068 = vunpack.c.h.b16 %v205
  %v1069 = vunpack.c.l.b16 %v206
  %v1070 = vunpack.c.h.b16 %v206
  %v1071 = vunpack.c.l.b16 %v207
  %v1072 = vunpack.c.h.b16 %v207
  %v1073 = vunpack.c.l.b16 %v208
  %v1074 = vunpack.c.h.b16 %v208
  %v1075 = vunpack.c.l.b16 %v209
  %v1076 = vunpack.c.h.b16 %v209
  %v1077 = vunpack.c.l.b16 %v210
  %v1078 = vunpack.c.h.b16 %v210
  %v1079 = vunpack.c.l.b16 %v211
  %v1080 = vunpack.c.h.b16 %v211
  %v1081 = vunpack.c.l.b16 %v212
  %v1082 = vunpack.c.h.b16 %v212
  %v1083 = vunpack.c.l.b16 %v213
  %v1084 = vunpack.c.h.b16 %v213
  %v1085 = vunpack.c.l.b16 %v214
  %v1086 = vunpack.c.h.b16 %v214
  %v1087 = vunpack.c.l.b16 %v215
  %v1088 = vunpack.c.h.b16 %v215
  %v1089 = vunpack.c.l.b16 %v216
  %v1090 = vunpack.c.h.b16 %v216
  %v1091 = vunpack.c.l.b16 %v217
  %v1092 = vunpack.c.h.b16 %v217
  %v1093 = vunpack.c.l.b16 %v218
  %v1094 = vunpack.c.h.b16 %v218
  %v1095 = vunpack.c.l.b16 %v219
  %v1096 = vunpack.c.h.b16 %v219
  %v1097 = vunpack.c.l.b16 %v220
  %v1098 = vunpack.c.h.b16 %v220
  %v1099 = vunpack.c.l.b16 %v221
  %v1100 = vunpack.c.h.b16 %v221
  %v1101 = vunpack.c.l.b16 %v222
  %v1102 = vunpack.c.h.b16 %v222
  %v1103 = vunpack.c.l.b16 %v223
  %v1104 = vunpack.c.h.b16 %v223
  %v1105 = vunpack.c.l.b16 %v224
  %v1106 = vunpack.c.h.b16 %v224
  %v1107 = vunpack.c.l.b16 %v225
  %v1108 = vunpack.c.h.b16 %v225
  %v1109 = vunpack.c.l.b16 %v226
  %v1110 = vunpack.c.h.b16 %v226
  %v1111 = vunpack.c.l.b16 %v227
  %v1112 = vunpack.c.h.b16 %v227
  %v1113 = vunpack.c.l.b16 %v228
  %v1114 = vunpack.c.h.b16 %v228
  %v1115 = vunpack.c.l.b16 %v229
  %v1116 = vunpack.c.h.b16 %v229
  %v1117 = vunpack.c.l.b16 %v230
  %v1118 = vunpack.c.h.b16 %v230
  %v1119 = vunpack.c.l.b16 %v231
  %v1120 = vunpack.c.h.b16 %v231
  %v1121 = vunpack.c.l.b16 %v232
  %v1122 = vunpack.c.h.b16 %v232
  %v1123 = vunpack.c.l.b16 %v233
  %v1124 = vunpack.c.h.b16 %v233
  %v1125 = vunpack.c.l.b16 %v234
  %v1126 = vunpack.c.h.b16 %v234
  %v1127 = vunpack.c.l.b16 %v235
  %v1128 = vunpack.c.h.b16 %v235
  %v1129 = vunpack.c.l.b16 %v236
  %v1130 = vunpack.c.h.b16 %v236
  %v1131 = vunpack.c.l.b16 %v237
  %v1132 = vunpack.c.h.b16 %v237
  %v1133 = vunpack.c.l.b16 %v238
  %v1134 = vunpack.c.h.b16 %v238
  %v1135 = vunpack.c.l.b16 %v239
  %v1136 = vunpack.c.h.b16 %v239
  %v1137 = vunpack.c.l.b16 %v240
  %v1138 = vunpack.c.h.b16 %v240
  %v1139 = vunpack.c.l.b16 %v241
  %v1140 = vunpack.c.h.b16 %v241
  %v1141 = vunpack.c.l.b16 %v242
  %v1142 = vunpack.c.h.b16 %v242
  %v1143 = vunpack.c.l.b16 %v243
  %v1144 = vunpack.c.h.b16 %v243
  %v1145 = vunpack.c.l.b16 %v244
  %v1146 = vunpack.c.h.b16 %v244
  %v1147 = vunpack.c.l.b16 %v245
  %v1148 = vunpack.c.h.b16 %v245
  %v1149 = vunpack.c.l.b16 %v246
  %v1150 = vunpack.c.h.b16 %v246
  %v1151 = vunpack.c.l.b16 %v247
  %v1152 = vunpack.c.h.b16 %v247
  %v1153 = vunpack.c.l.b16 %v248
  %v1154 = vunpack.c.h.b16 %v248
  %v1155 = vunpack.c.l.b16 %v249
  %v1156 = vunpack.c.h.b16 %v249
  %v1157 = vunpack.c.l.b16 %v250
  %v1158 = vunpack.c.h.b16 %v250
  %v1159 = vunpack.c.l.b16 %v251
  %v1160 = vunpack.c.h.b16 %v251
  %v1161 = vunpack.c.l.b16 %v252
  %v1162 = vunpack.c.h.b16 %v252
  %v1163 = vunpack.c.l.b16 %v253
  %v1164 = vunpack.c.h.b16 %v253
  %v1165 = vunpack.c.l.b16 %v254
  %v1166 = vunpack.c.h.b16 %v254
  %v1167 = vunpack.c.l.b16 %v255
  %v1168 = vunpack.c.h.b16 %v255
  %v1169 = vunpack.c.l.b16 %v256
  %v1170 = vunpack.c.h.b16 %v256
  %v1171 = vunpack.c.l.b16 %v257
  %v1172 = vunpack.c.h.b16 %v257
  %v1173 = vunpack.c.l.b16 %v258
  %v1174 = vunpack.c.h.b16 %v258
  %v1175 = vunpack.c.l.b16 %v259
  %v1176 = vunpack.c.h.b16 %v259
  %v1177 = vunpack.c.l.b16 %v260
  %v1178 = vunpack.c.h.b16 %v260
  %v1179 = vunpack.c.l.b16 %v261
  %v1180 = vunpack.c.h.b16 %v261
  %v1181 = vunpack.c.l.b16 %v262
  %v1182 = vunpack.c.h.b16 %v262
  %v1183 = vunpack.c.l.b16 %v263
  %v1184 = vunpack.c.h.b16 %v263
  %v1185 = vunpack.c.l.b16 %v264
  %v1186 = vunpack.c.h.b16 %v264
  %v1187 = vunpack.c.l.b16 %v265
  %v1188 = vunpack.c.h.b16 %v265
  %v1189 = vunpack.c.l.b16 %v266
  %v1190 = vunpack.c.h.b16 %v266
  %v1191 = vpack.c.b16 %v905, %v903
  %v1192 = vpack.c.b16 %v906, %v904
  %v1193 = vpack.c.b16 %v909, %v907
  %v1194 = vpack.c.b16 %v910, %v908
  %v1195 = vpack.c.b16 %v913, %v911
  %v1196 = vpack.c.b16 %v914, %v912
  %v1197 = vpack.c.b16 %v917, %v915
  %v1198 = vpack.c.b16 %v918, %v916
  %v1199 = vpack.c.b16 %v921, %v919
  %v1200 = vpack.c.b16 %v922, %v920
  %v1201 = vpack.c.b16 %v925, %v923
  %v1202 = vpack.c.b16 %v926, %v924
  %v1203 = vpack.c.b16 %v929, %v927
  %v1204 = vpack.c.b16 %v930, %v928
  %v1205 = vpack.c.b16 %v933, %v931
  %v1206 = vpack.c.b16 %v934, %v932
  %v1207 = vpack.c.b16 %v937, %v935
  %v1208 = vpack.c.b16 %v938, %v936
  %v1209 = vpack.c.b16 %v941, %v939
  %v1210 = vpack.c.b16 %v942, %v940
  %v1211 = vpack.c.b16 %v945, %v943
  %v1212 = vpack.c.b16 %v946, %v944
  %v1213 = vpack.c.b16 %v949, %v947
  %v1214 = vpack.c.b16 %v950, %v948
  %v1215 = vpack.c.b16 %v953, %v951
  %v1216 = vpack.c.b16 %v954, %v952
  %v1217 = vpack.c.b16 %v957, %v955
  %v1218 = vpack.c.b16 %v958, %v956
  %v1219 = vpack.c.b16 %v961, %v959
  %v1220 = vpack.c.b16 %v962, %v960
  %v1221 = vpack.c.b16 %v965, %v963
  %v1222 = vpack.c.b16 %v966, %v964
  %v1223 = vpack.c.b16 %v969, %v967
  %v1224 = vpack.c.b16 %v970, %v968
  %v1225 = vpack.c.b16 %v973, %v971
  %v1226 = vpack.c.b16 %v974, %v972
  %v1227 = vpack.c.b16 %v977, %v975
  %v1228 = vpack.c.b16 %v978, %v976
  %v1229 = vpack.c.b16 %v981, %v979
  %v1230 = vpack.c.b16 %v982, %v980
  %v1231 = vpack.c.b16 %v985, %v983
  %v1232 = vpack.c.b16 %v986, %v984
  %v1233 = vpack.c.b16 %v989, %v987
  %v1234 = vpack.c.b16 %v990, %v988
  %v1235 = vpack.c.b16 %v993, %v991
  %v1236 = vpack.c.b16 %v994, %v992
  %v1237 = vpack.c.b16 %v997, %v995
  %v1238 = vpack.c.b16 %v998, %v996
  %v1239 = vpack.c.b16 %v1001, %v999
  %v1240 = vpack.c.b16 %v1002, %v1000
  %v1241 = vpack.c.b16 %v1005, %v1003
  %v1242 = vpack.c.b16 %v1006, %v1004
  %v1243 = vpack.c.b16 %v1009, %v1007
  %v1244 = vpack.c.b16 %v1010, %v1008
  %v1245 = vpack.c.b16 %v1013, %v1011
  %v1246 = vpack.c.b16 %v1014, %v1012
  %v1247 = vpack.c.b16 %v1017, %v1015
  %v1248 = vpack.c.b16 %v1018, %v1016
  %v1249 = vpack.c.b16 %v1021, %v1019
  %v1250 = vpack.c.b16 %v1022, %v1020
  %v1251 = vpack.c.b16 %v1025, %v1023
  %v1252 = vpack.c.b16 %v1026, %v1024
  %v1253 = vpack.c.b16 %v1029, %v1027
  %v1254 = vpack.c.b16 %v1030, %v1028
  %v1255 = vpack.c.b16 %v1033, %v1031
  %v1256 = vpack.c.b16 %v1034, %v1032
  %v1257 = vpack.c.b16 %v1037, %v1035
  %v1258 = vpack.c.b16 %v1038, %v1036
  %v1259 = vpack.c.b16 %v1041, %v1039
  %v1260 = vpack.c.b16 %v1042, %v1040
  %v1261 = vpack.c.b16 %v1045, %v1043
  %v1262 = vpack.c.b16 %v1046, %v1044
  %v1263 = vpack.c.b16 %v1049, %v1047
  %v1264 = vpack.c.b16 %v1050, %v1048
  %v1265 = vpack.c.b16 %v1053, %v1051
  %v1266 = vpack.c.b16 %v1054, %v1052
  %v1267 = vpack.c.b16 %v1057, %v1055
  %v1268 = vpack.c.b16 %v1058, %v1056
  %v1269 = vpack.c.b16 %v1061, %v1059
  %v1270 = vpack.c.b16 %v1062, %v1060
  %v1271 = vpack.c.b16 %v1065, %v1063
  %v1272 = vpack.c.b16 %v1066, %v1064
  %v1273 = vpack.c.b16 %v1069, %v1067
  %v1274 = vpack.c.b16 %v1070, %v1068
  %v1275 = vpack.c.b16 %v1073, %v1071
  %v1276 = vpack.c.b16 %v1074, %v1072
  %v1277 = vpack.c.b16 %v1077, %v1075
  %v1278 = vpack.c.b16 %v1078, %v1076
  %v1279 = vpack.c.b16 %v1081, %v1079
  %v1280 = vpack.c.b16 %v1082, %v1080
  %v1281 = vpack.c.b16 %v1085, %v1083
  %v1282 = vpack.c.b16 %v1086, %v1084
  %v1283 = vpack.c.b16 %v1089, %v1087
  %v1284 = vpack.c.b16 %v1090, %v1088
  %v1285 = vpack.c.b16 %v1093, %v1091
  %v1286 = vpack.c.b16 %v1094, %v1092
  %v1287 = vpack.c.b16 %v1097, %v1095
  %v1288 = vpack.c.b16 %v1098, %v1096
  %v1289 = vpack.c.b16 %v1101, %v1099
  %v1290 = vpack.c.b16 %v1102, %v1100
  %v1291 = vpack.c.b16 %v1105, %v1103
  %v1292 = vpack.c.b16 %v1106, %v1104
  %v1293 = vpack.c.b16 %v1109, %v1107
  %v1294 = vpack.c.b16 %v1110, %v1108
  %v1295 = vpack.c.b16 %v1113, %v1111
  %v1296 = vpack.c.b16 %v1114, %v1112
  %v1297 = vpack.c.b16 %v1117, %v1115
  %v1298 = vpack.c.b16 %v1118, %v1116
  %v1299 = vpack.c.b16 %v1121, %v1119
  %v1300 = vpack.c.b16 %v1122, %v1120
  %v1301 = vpack.c.b16 %v1125, %v1123
  %v1302 = vpack.c.b16 %v1126, %v1124
  %v1303 = vpack.c.b16 %v1129, %v1127
  %v1304 = vpack.c.b16 %v1130, %v1128
  %v1305 = vpack.c.b16 %v1133, %v1131
  %v1306 = vpack.c.b16 %v1134, %v1132
  %v1307 = vpack.c.b16 %v1137, %v1135
  %v1308 = vpack.c.b16 %v1138, %v1136
  %v1309 = vpack.c.b16 %v1141, %v1139
  %v1310 = vpack.c.b16 %v1142, %v1140
  %v1311 = vpack.c.b16 %v1145, %v1143
  %v1312 = vpack.c.b16 %v1146, %v1144
  %v1313 = vpack.c.b16 %v1149, %v1147
  %v1314 = vpack.c.b16 %v1150, %v1148
  %v1315 = vpack.c.b16 %v1153, %v1151
  %v1316 = vpack.c.b16 %v1154, %v1152
  %v1317 = vpack.c.b16 %v1157, %v1155
  %v1318 = vpack.c.b16 %v1158, %v1156
  %v1319 = vpack.c.b16 %v1161, %v1159
  %v1320 = vpack.c.b16 %v1162, %v1160
  %v1321 = vpack.c.b16 %v1165, %v1163
  %v1322 = vpack.c.b16 %v1166, %v1164
  %v1323 = vpack.c.b16 %v1169, %v1167
  %v1324 = vpack.c.b16 %v1170, %v1168
  %v1325 = vpack.c.b16 %v1173, %v1171
  %v1326 = vpack.c.b16 %v1174, %v1172
  %v1327 = vpack.c.b16 %v1177, %v1175
  %v1328 = vpack.c.b16 %v1178, %v1176
  %v1329 = vpack.c.b16 %v1181, %v1179
  %v1330 = vpack.c.b16 %v1182, %v1180
  %v1331 = vpack.c.b16 %v1185, %v1183
  %v1332 = vpack.c.b16 %v1186, %v1184
  %v1333 = vpack.c.b16 %v1189, %v1187
  %v1334 = vpack.c.b16 %v1190, %v1188
  %1479 = vmatpush.bf16.msra.mxu0 %v1205
  %1480 = vmatpush.bf16.msra.mxu0 %v1203
  %1481 = vmatpush.bf16.msra.mxu0 %v1201
  %1482 = vmatpush.bf16.msra.mxu0 %v1199
  %1483 = vmatpush.bf16.msra.mxu0 %v1197
  %1484 = vmatpush.bf16.msra.mxu0 %v1195
  %1485 = vmatpush.bf16.msra.mxu0 %v1193
  %1486 = vmatpush.bf16.msra.mxu0 %v1191
  %1487 = vmatmul.bf16.gmra.mxu0 %v561
  %v1488 = vpop.f32.mrf.mxu0
  %v1489 = vadd.f32 0.0, %v1488
  %v1490 = vpop.f32.mrf.mxu0
  %v1491 = vadd.f32 0.0, %v1490
  %1492 = vmatmul.bf16.gmra.mxu0 %v570
  %v1493 = vpop.f32.mrf.mxu0
  %v1494 = vadd.f32 0.0, %v1493
  %v1495 = vpop.f32.mrf.mxu0
  %v1496 = vadd.f32 0.0, %v1495
  %1497 = vmatmul.bf16.gmra.mxu0 %v579
  %v1498 = vpop.f32.mrf.mxu0
  %v1499 = vadd.f32 0.0, %v1498
  %v1500 = vpop.f32.mrf.mxu0
  %v1501 = vadd.f32 0.0, %v1500
  %1502 = vmatmul.bf16.gmra.mxu0 %v588
  %v1503 = vpop.f32.mrf.mxu0
  %v1504 = vadd.f32 0.0, %v1503
  %v1505 = vpop.f32.mrf.mxu0
  %v1506 = vadd.f32 0.0, %v1505
  %1507 = vmatmul.bf16.gmra.mxu0 %v597
  %v1508 = vpop.f32.mrf.mxu0
  %v1509 = vadd.f32 0.0, %v1508
  %v1510 = vpop.f32.mrf.mxu0
  %v1511 = vadd.f32 0.0, %v1510
  %1512 = vmatmul.bf16.gmra.mxu0 %v606
  %v1513 = vpop.f32.mrf.mxu0
  %v1514 = vadd.f32 0.0, %v1513
  %v1515 = vpop.f32.mrf.mxu0
  %v1516 = vadd.f32 0.0, %v1515
  %1517 = vmatmul.bf16.gmra.mxu0 %v615
  %v1518 = vpop.f32.mrf.mxu0
  %v1519 = vadd.f32 0.0, %v1518
  %v1520 = vpop.f32.mrf.mxu0
  %v1521 = vadd.f32 0.0, %v1520
  %1522 = vmatmul.bf16.gmra.mxu0 %v624
  %v1523 = vpop.f32.mrf.mxu0
  %v1524 = vadd.f32 0.0, %v1523
  %v1525 = vpop.f32.mrf.mxu0
  %v1526 = vadd.f32 0.0, %v1525
  %1527 = vmatmul.bf16.gmra.mxu0 %v633
  %v1528 = vpop.f32.mrf.mxu0
  %v1529 = vadd.f32 0.0, %v1528
  %v1530 = vpop.f32.mrf.mxu0
  %v1531 = vadd.f32 0.0, %v1530
  %1532 = vmatmul.bf16.gmra.mxu0 %v642
  %v1533 = vpop.f32.mrf.mxu0
  %v1534 = vadd.f32 0.0, %v1533
  %v1535 = vpop.f32.mrf.mxu0
  %v1536 = vadd.f32 0.0, %v1535
  %1537 = vmatmul.bf16.gmra.mxu0 %v651
  %v1538 = vpop.f32.mrf.mxu0
  %v1539 = vadd.f32 0.0, %v1538
  %v1540 = vpop.f32.mrf.mxu0
  %1541 = vdwg.mxu0
  %1542 = vmatpush.bf16.msra.mxu0 %v1221
  %1543 = vmatpush.bf16.msra.mxu0 %v1219
  %1544 = vmatpush.bf16.msra.mxu0 %v1217
  %1545 = vmatpush.bf16.msra.mxu0 %v1215
  %1546 = vmatpush.bf16.msra.mxu0 %v1213
  %1547 = vmatpush.bf16.msra.mxu0 %v1211
  %1548 = vmatpush.bf16.msra.mxu0 %v1209
  %1549 = vmatpush.bf16.msra.mxu0 %v1207
  %1550 = vmatmul.bf16.gmra.mxu0 %v562
  %v1551 = vpop.f32.mrf.mxu0
  %v1552 = vadd.f32 %v1489, %v1551
  %v1553 = vpop.f32.mrf.mxu0
  %v1554 = vadd.f32 %v1491, %v1553
  %1555 = vmatmul.bf16.gmra.mxu0 %v571
  %v1556 = vpop.f32.mrf.mxu0
  %v1557 = vadd.f32 %v1494, %v1556
  %v1558 = vpop.f32.mrf.mxu0
  %v1559 = vadd.f32 %v1496, %v1558
  %1560 = vmatmul.bf16.gmra.mxu0 %v580
  %v1561 = vpop.f32.mrf.mxu0
  %v1562 = vadd.f32 %v1499, %v1561
  %v1563 = vpop.f32.mrf.mxu0
  %v1564 = vadd.f32 %v1501, %v1563
  %1565 = vmatmul.bf16.gmra.mxu0 %v589
  %v1566 = vpop.f32.mrf.mxu0
  %v1567 = vadd.f32 %v1504, %v1566
  %v1568 = vpop.f32.mrf.mxu0
  %v1569 = vadd.f32 %v1506, %v1568
  %1570 = vmatmul.bf16.gmra.mxu0 %v598
  %v1571 = vpop.f32.mrf.mxu0
  %v1572 = vadd.f32 %v1509, %v1571
  %v1573 = vpop.f32.mrf.mxu0
  %v1574 = vadd.f32 %v1511, %v1573
  %1575 = vmatmul.bf16.gmra.mxu0 %v607
  %v1576 = vpop.f32.mrf.mxu0
  %v1577 = vadd.f32 %v1514, %v1576
  %v1578 = vpop.f32.mrf.mxu0
  %v1579 = vadd.f32 %v1516, %v1578
  %1580 = vmatmul.bf16.gmra.mxu0 %v616
  %v1581 = vpop.f32.mrf.mxu0
  %v1582 = vadd.f32 %v1519, %v1581
  %v1583 = vpop.f32.mrf.mxu0
  %v1584 = vadd.f32 %v1521, %v1583
  %1585 = vmatmul.bf16.gmra.mxu0 %v625
  %v1586 = vpop.f32.mrf.mxu0
  %v1587 = vadd.f32 %v1524, %v1586
  %v1588 = vpop.f32.mrf.mxu0
  %v1589 = vadd.f32 %v1526, %v1588
  %1590 = vmatmul.bf16.gmra.mxu0 %v634
  %v1591 = vpop.f32.mrf.mxu0
  %v1592 = vadd.f32 %v1529, %v1591
  %v1593 = vpop.f32.mrf.mxu0
  %v1594 = vadd.f32 %v1531, %v1593
  %1595 = vmatmul.bf16.gmra.mxu0 %v643
  %v1596 = vpop.f32.mrf.mxu0
  %v1597 = vadd.f32 %v1534, %v1596
  %v1598 = vpop.f32.mrf.mxu0
  %v1599 = vadd.f32 %v1536, %v1598
  %1600 = vmatmul.bf16.gmra.mxu0 %v652
  %v1601 = vpop.f32.mrf.mxu0
  %v1602 = vadd.f32 %v1539, %v1601
  %v1603 = vpop.f32.mrf.mxu0
  %1604 = vdwg.mxu0
  %1605 = vmatpush.bf16.msra.mxu0 %v1237
  %1606 = vmatpush.bf16.msra.mxu0 %v1235
  %1607 = vmatpush.bf16.msra.mxu0 %v1233
  %1608 = vmatpush.bf16.msra.mxu0 %v1231
  %1609 = vmatpush.bf16.msra.mxu0 %v1229
  %1610 = vmatpush.bf16.msra.mxu0 %v1227
  %1611 = vmatpush.bf16.msra.mxu0 %v1225
  %1612 = vmatpush.bf16.msra.mxu0 %v1223
  %1613 = vmatmul.bf16.gmra.mxu0 %v563
  %v1614 = vpop.f32.mrf.mxu0
  %v1615 = vadd.f32 %v1552, %v1614
  %v1616 = vpop.f32.mrf.mxu0
  %v1617 = vadd.f32 %v1554, %v1616
  %1618 = vmatmul.bf16.gmra.mxu0 %v572
  %v1619 = vpop.f32.mrf.mxu0
  %v1620 = vadd.f32 %v1557, %v1619
  %v1621 = vpop.f32.mrf.mxu0
  %v1622 = vadd.f32 %v1559, %v1621
  %1623 = vmatmul.bf16.gmra.mxu0 %v581
  %v1624 = vpop.f32.mrf.mxu0
  %v1625 = vadd.f32 %v1562, %v1624
  %v1626 = vpop.f32.mrf.mxu0
  %v1627 = vadd.f32 %v1564, %v1626
  %1628 = vmatmul.bf16.gmra.mxu0 %v590
  %v1629 = vpop.f32.mrf.mxu0
  %v1630 = vadd.f32 %v1567, %v1629
  %v1631 = vpop.f32.mrf.mxu0
  %v1632 = vadd.f32 %v1569, %v1631
  %1633 = vmatmul.bf16.gmra.mxu0 %v599
  %v1634 = vpop.f32.mrf.mxu0
  %v1635 = vadd.f32 %v1572, %v1634
  %v1636 = vpop.f32.mrf.mxu0
  %v1637 = vadd.f32 %v1574, %v1636
  %1638 = vmatmul.bf16.gmra.mxu0 %v608
  %v1639 = vpop.f32.mrf.mxu0
  %v1640 = vadd.f32 %v1577, %v1639
  %v1641 = vpop.f32.mrf.mxu0
  %v1642 = vadd.f32 %v1579, %v1641
  %1643 = vmatmul.bf16.gmra.mxu0 %v617
  %v1644 = vpop.f32.mrf.mxu0
  %v1645 = vadd.f32 %v1582, %v1644
  %v1646 = vpop.f32.mrf.mxu0
  %v1647 = vadd.f32 %v1584, %v1646
  %1648 = vmatmul.bf16.gmra.mxu0 %v626
  %v1649 = vpop.f32.mrf.mxu0
  %v1650 = vadd.f32 %v1587, %v1649
  %v1651 = vpop.f32.mrf.mxu0
  %v1652 = vadd.f32 %v1589, %v1651
  %1653 = vmatmul.bf16.gmra.mxu0 %v635
  %v1654 = vpop.f32.mrf.mxu0
  %v1655 = vadd.f32 %v1592, %v1654
  %v1656 = vpop.f32.mrf.mxu0
  %v1657 = vadd.f32 %v1594, %v1656
  %1658 = vmatmul.bf16.gmra.mxu0 %v644
  %v1659 = vpop.f32.mrf.mxu0
  %v1660 = vadd.f32 %v1597, %v1659
  %v1661 = vpop.f32.mrf.mxu0
  %v1662 = vadd.f32 %v1599, %v1661
  %1663 = vmatmul.bf16.gmra.mxu0 %v653
  %v1664 = vpop.f32.mrf.mxu0
  %v1665 = vadd.f32 %v1602, %v1664
  %v1666 = vpop.f32.mrf.mxu0
  %1667 = vdwg.mxu0
  %1668 = vmatpush.bf16.msra.mxu0 %v1253
  %1669 = vmatpush.bf16.msra.mxu0 %v1251
  %1670 = vmatpush.bf16.msra.mxu0 %v1249
  %1671 = vmatpush.bf16.msra.mxu0 %v1247
  %1672 = vmatpush.bf16.msra.mxu0 %v1245
  %1673 = vmatpush.bf16.msra.mxu0 %v1243
  %1674 = vmatpush.bf16.msra.mxu0 %v1241
  %1675 = vmatpush.bf16.msra.mxu0 %v1239
  %1676 = vmatmul.bf16.gmra.mxu0 %v564
  %v1677 = vpop.f32.mrf.mxu0
  %v1678 = vadd.f32 %v1615, %v1677
  %v1679 = vpop.f32.mrf.mxu0
  %v1680 = vadd.f32 %v1617, %v1679
  %1681 = vmatmul.bf16.gmra.mxu0 %v573
  %v1682 = vpop.f32.mrf.mxu0
  %v1683 = vadd.f32 %v1620, %v1682
  %v1684 = vpop.f32.mrf.mxu0
  %v1685 = vadd.f32 %v1622, %v1684
  %1686 = vmatmul.bf16.gmra.mxu0 %v582
  %v1687 = vpop.f32.mrf.mxu0
  %v1688 = vadd.f32 %v1625, %v1687
  %v1689 = vpop.f32.mrf.mxu0
  %v1690 = vadd.f32 %v1627, %v1689
  %1691 = vmatmul.bf16.gmra.mxu0 %v591
  %v1692 = vpop.f32.mrf.mxu0
  %v1693 = vadd.f32 %v1630, %v1692
  %v1694 = vpop.f32.mrf.mxu0
  %v1695 = vadd.f32 %v1632, %v1694
  %1696 = vmatmul.bf16.gmra.mxu0 %v600
  %v1697 = vpop.f32.mrf.mxu0
  %v1698 = vadd.f32 %v1635, %v1697
  %v1699 = vpop.f32.mrf.mxu0
  %v1700 = vadd.f32 %v1637, %v1699
  %1701 = vmatmul.bf16.gmra.mxu0 %v609
  %v1702 = vpop.f32.mrf.mxu0
  %v1703 = vadd.f32 %v1640, %v1702
  %v1704 = vpop.f32.mrf.mxu0
  %v1705 = vadd.f32 %v1642, %v1704
  %1706 = vmatmul.bf16.gmra.mxu0 %v618
  %v1707 = vpop.f32.mrf.mxu0
  %v1708 = vadd.f32 %v1645, %v1707
  %v1709 = vpop.f32.mrf.mxu0
  %v1710 = vadd.f32 %v1647, %v1709
  %1711 = vmatmul.bf16.gmra.mxu0 %v627
  %v1712 = vpop.f32.mrf.mxu0
  %v1713 = vadd.f32 %v1650, %v1712
  %v1714 = vpop.f32.mrf.mxu0
  %v1715 = vadd.f32 %v1652, %v1714
  %1716 = vmatmul.bf16.gmra.mxu0 %v636
  %v1717 = vpop.f32.mrf.mxu0
  %v1718 = vadd.f32 %v1655, %v1717
  %v1719 = vpop.f32.mrf.mxu0
  %v1720 = vadd.f32 %v1657, %v1719
  %1721 = vmatmul.bf16.gmra.mxu0 %v645
  %v1722 = vpop.f32.mrf.mxu0
  %v1723 = vadd.f32 %v1660, %v1722
  %v1724 = vpop.f32.mrf.mxu0
  %v1725 = vadd.f32 %v1662, %v1724
  %1726 = vmatmul.bf16.gmra.mxu0 %v654
  %v1727 = vpop.f32.mrf.mxu0
  %v1728 = vadd.f32 %v1665, %v1727
  %v1729 = vpop.f32.mrf.mxu0
  %1730 = vdwg.mxu0
  %1731 = vmatpush.bf16.msra.mxu0 %v1269
  %1732 = vmatpush.bf16.msra.mxu0 %v1267
  %1733 = vmatpush.bf16.msra.mxu0 %v1265
  %1734 = vmatpush.bf16.msra.mxu0 %v1263
  %1735 = vmatpush.bf16.msra.mxu0 %v1261
  %1736 = vmatpush.bf16.msra.mxu0 %v1259
  %1737 = vmatpush.bf16.msra.mxu0 %v1257
  %1738 = vmatpush.bf16.msra.mxu0 %v1255
  %1739 = vmatmul.bf16.gmra.mxu0 %v565
  %v1740 = vpop.f32.mrf.mxu0
  %v1741 = vadd.f32 %v1678, %v1740
  %v1742 = vpop.f32.mrf.mxu0
  %v1743 = vadd.f32 %v1680, %v1742
  %1744 = vmatmul.bf16.gmra.mxu0 %v574
  %v1745 = vpop.f32.mrf.mxu0
  %v1746 = vadd.f32 %v1683, %v1745
  %v1747 = vpop.f32.mrf.mxu0
  %v1748 = vadd.f32 %v1685, %v1747
  %1749 = vmatmul.bf16.gmra.mxu0 %v583
  %v1750 = vpop.f32.mrf.mxu0
  %v1751 = vadd.f32 %v1688, %v1750
  %v1752 = vpop.f32.mrf.mxu0
  %v1753 = vadd.f32 %v1690, %v1752
  %1754 = vmatmul.bf16.gmra.mxu0 %v592
  %v1755 = vpop.f32.mrf.mxu0
  %v1756 = vadd.f32 %v1693, %v1755
  %v1757 = vpop.f32.mrf.mxu0
  %v1758 = vadd.f32 %v1695, %v1757
  %1759 = vmatmul.bf16.gmra.mxu0 %v601
  %v1760 = vpop.f32.mrf.mxu0
  %v1761 = vadd.f32 %v1698, %v1760
  %v1762 = vpop.f32.mrf.mxu0
  %v1763 = vadd.f32 %v1700, %v1762
  %1764 = vmatmul.bf16.gmra.mxu0 %v610
  %v1765 = vpop.f32.mrf.mxu0
  %v1766 = vadd.f32 %v1703, %v1765
  %v1767 = vpop.f32.mrf.mxu0
  %v1768 = vadd.f32 %v1705, %v1767
  %1769 = vmatmul.bf16.gmra.mxu0 %v619
  %v1770 = vpop.f32.mrf.mxu0
  %v1771 = vadd.f32 %v1708, %v1770
  %v1772 = vpop.f32.mrf.mxu0
  %v1773 = vadd.f32 %v1710, %v1772
  %1774 = vmatmul.bf16.gmra.mxu0 %v628
  %v1775 = vpop.f32.mrf.mxu0
  %v1776 = vadd.f32 %v1713, %v1775
  %v1777 = vpop.f32.mrf.mxu0
  %v1778 = vadd.f32 %v1715, %v1777
  %1779 = vmatmul.bf16.gmra.mxu0 %v637
  %v1780 = vpop.f32.mrf.mxu0
  %v1781 = vadd.f32 %v1718, %v1780
  %v1782 = vpop.f32.mrf.mxu0
  %v1783 = vadd.f32 %v1720, %v1782
  %1784 = vmatmul.bf16.gmra.mxu0 %v646
  %v1785 = vpop.f32.mrf.mxu0
  %v1786 = vadd.f32 %v1723, %v1785
  %v1787 = vpop.f32.mrf.mxu0
  %v1788 = vadd.f32 %v1725, %v1787
  %1789 = vmatmul.bf16.gmra.mxu0 %v655
  %v1790 = vpop.f32.mrf.mxu0
  %v1791 = vadd.f32 %v1728, %v1790
  %v1792 = vpop.f32.mrf.mxu0
  %1793 = vdwg.mxu0
  %1794 = vmatpush.bf16.msra.mxu0 %v1285
  %1795 = vmatpush.bf16.msra.mxu0 %v1283
  %1796 = vmatpush.bf16.msra.mxu0 %v1281
  %1797 = vmatpush.bf16.msra.mxu0 %v1279
  %1798 = vmatpush.bf16.msra.mxu0 %v1277
  %1799 = vmatpush.bf16.msra.mxu0 %v1275
  %1800 = vmatpush.bf16.msra.mxu0 %v1273
  %1801 = vmatpush.bf16.msra.mxu0 %v1271
  %1802 = vmatmul.bf16.gmra.mxu0 %v566
  %v1803 = vpop.f32.mrf.mxu0
  %v1804 = vadd.f32 %v1741, %v1803
  %v1805 = vpop.f32.mrf.mxu0
  %v1806 = vadd.f32 %v1743, %v1805
  %1807 = vmatmul.bf16.gmra.mxu0 %v575
  %v1808 = vpop.f32.mrf.mxu0
  %v1809 = vadd.f32 %v1746, %v1808
  %v1810 = vpop.f32.mrf.mxu0
  %v1811 = vadd.f32 %v1748, %v1810
  %1812 = vmatmul.bf16.gmra.mxu0 %v584
  %v1813 = vpop.f32.mrf.mxu0
  %v1814 = vadd.f32 %v1751, %v1813
  %v1815 = vpop.f32.mrf.mxu0
  %v1816 = vadd.f32 %v1753, %v1815
  %1817 = vmatmul.bf16.gmra.mxu0 %v593
  %v1818 = vpop.f32.mrf.mxu0
  %v1819 = vadd.f32 %v1756, %v1818
  %v1820 = vpop.f32.mrf.mxu0
  %v1821 = vadd.f32 %v1758, %v1820
  %1822 = vmatmul.bf16.gmra.mxu0 %v602
  %v1823 = vpop.f32.mrf.mxu0
  %v1824 = vadd.f32 %v1761, %v1823
  %v1825 = vpop.f32.mrf.mxu0
  %v1826 = vadd.f32 %v1763, %v1825
  %1827 = vmatmul.bf16.gmra.mxu0 %v611
  %v1828 = vpop.f32.mrf.mxu0
  %v1829 = vadd.f32 %v1766, %v1828
  %v1830 = vpop.f32.mrf.mxu0
  %v1831 = vadd.f32 %v1768, %v1830
  %1832 = vmatmul.bf16.gmra.mxu0 %v620
  %v1833 = vpop.f32.mrf.mxu0
  %v1834 = vadd.f32 %v1771, %v1833
  %v1835 = vpop.f32.mrf.mxu0
  %v1836 = vadd.f32 %v1773, %v1835
  %1837 = vmatmul.bf16.gmra.mxu0 %v629
  %v1838 = vpop.f32.mrf.mxu0
  %v1839 = vadd.f32 %v1776, %v1838
  %v1840 = vpop.f32.mrf.mxu0
  %v1841 = vadd.f32 %v1778, %v1840
  %1842 = vmatmul.bf16.gmra.mxu0 %v638
  %v1843 = vpop.f32.mrf.mxu0
  %v1844 = vadd.f32 %v1781, %v1843
  %v1845 = vpop.f32.mrf.mxu0
  %v1846 = vadd.f32 %v1783, %v1845
  %1847 = vmatmul.bf16.gmra.mxu0 %v647
  %v1848 = vpop.f32.mrf.mxu0
  %v1849 = vadd.f32 %v1786, %v1848
  %v1850 = vpop.f32.mrf.mxu0
  %v1851 = vadd.f32 %v1788, %v1850
  %1852 = vmatmul.bf16.gmra.mxu0 %v656
  %v1853 = vpop.f32.mrf.mxu0
  %v1854 = vadd.f32 %v1791, %v1853
  %v1855 = vpop.f32.mrf.mxu0
  %1856 = vdwg.mxu0
  %1857 = vmatpush.bf16.msra.mxu0 %v1301
  %1858 = vmatpush.bf16.msra.mxu0 %v1299
  %1859 = vmatpush.bf16.msra.mxu0 %v1297
  %1860 = vmatpush.bf16.msra.mxu0 %v1295
  %1861 = vmatpush.bf16.msra.mxu0 %v1293
  %1862 = vmatpush.bf16.msra.mxu0 %v1291
  %1863 = vmatpush.bf16.msra.mxu0 %v1289
  %1864 = vmatpush.bf16.msra.mxu0 %v1287
  %1865 = vmatmul.bf16.gmra.mxu0 %v567
  %v1866 = vpop.f32.mrf.mxu0
  %v1867 = vadd.f32 %v1804, %v1866
  %v1868 = vpop.f32.mrf.mxu0
  %v1869 = vadd.f32 %v1806, %v1868
  %1870 = vmatmul.bf16.gmra.mxu0 %v576
  %v1871 = vpop.f32.mrf.mxu0
  %v1872 = vadd.f32 %v1809, %v1871
  %v1873 = vpop.f32.mrf.mxu0
  %v1874 = vadd.f32 %v1811, %v1873
  %1875 = vmatmul.bf16.gmra.mxu0 %v585
  %v1876 = vpop.f32.mrf.mxu0
  %v1877 = vadd.f32 %v1814, %v1876
  %v1878 = vpop.f32.mrf.mxu0
  %v1879 = vadd.f32 %v1816, %v1878
  %1880 = vmatmul.bf16.gmra.mxu0 %v594
  %v1881 = vpop.f32.mrf.mxu0
  %v1882 = vadd.f32 %v1819, %v1881
  %v1883 = vpop.f32.mrf.mxu0
  %v1884 = vadd.f32 %v1821, %v1883
  %1885 = vmatmul.bf16.gmra.mxu0 %v603
  %v1886 = vpop.f32.mrf.mxu0
  %v1887 = vadd.f32 %v1824, %v1886
  %v1888 = vpop.f32.mrf.mxu0
  %v1889 = vadd.f32 %v1826, %v1888
  %1890 = vmatmul.bf16.gmra.mxu0 %v612
  %v1891 = vpop.f32.mrf.mxu0
  %v1892 = vadd.f32 %v1829, %v1891
  %v1893 = vpop.f32.mrf.mxu0
  %v1894 = vadd.f32 %v1831, %v1893
  %1895 = vmatmul.bf16.gmra.mxu0 %v621
  %v1896 = vpop.f32.mrf.mxu0
  %v1897 = vadd.f32 %v1834, %v1896
  %v1898 = vpop.f32.mrf.mxu0
  %v1899 = vadd.f32 %v1836, %v1898
  %1900 = vmatmul.bf16.gmra.mxu0 %v630
  %v1901 = vpop.f32.mrf.mxu0
  %v1902 = vadd.f32 %v1839, %v1901
  %v1903 = vpop.f32.mrf.mxu0
  %v1904 = vadd.f32 %v1841, %v1903
  %1905 = vmatmul.bf16.gmra.mxu0 %v639
  %v1906 = vpop.f32.mrf.mxu0
  %v1907 = vadd.f32 %v1844, %v1906
  %v1908 = vpop.f32.mrf.mxu0
  %v1909 = vadd.f32 %v1846, %v1908
  %1910 = vmatmul.bf16.gmra.mxu0 %v648
  %v1911 = vpop.f32.mrf.mxu0
  %v1912 = vadd.f32 %v1849, %v1911
  %v1913 = vpop.f32.mrf.mxu0
  %v1914 = vadd.f32 %v1851, %v1913
  %1915 = vmatmul.bf16.gmra.mxu0 %v657
  %v1916 = vpop.f32.mrf.mxu0
  %v1917 = vadd.f32 %v1854, %v1916
  %v1918 = vpop.f32.mrf.mxu0
  %1919 = vdwg.mxu0
  %1920 = vmatpush.bf16.msra.mxu0 %v1317
  %1921 = vmatpush.bf16.msra.mxu0 %v1315
  %1922 = vmatpush.bf16.msra.mxu0 %v1313
  %1923 = vmatpush.bf16.msra.mxu0 %v1311
  %1924 = vmatpush.bf16.msra.mxu0 %v1309
  %1925 = vmatpush.bf16.msra.mxu0 %v1307
  %1926 = vmatpush.bf16.msra.mxu0 %v1305
  %1927 = vmatpush.bf16.msra.mxu0 %v1303
  %1928 = vmatmul.bf16.gmra.mxu0 %v568
  %v1929 = vpop.f32.mrf.mxu0
  %v1930 = vadd.f32 %v1867, %v1929
  %v1931 = vpop.f32.mrf.mxu0
  %v1932 = vadd.f32 %v1869, %v1931
  %1933 = vmatmul.bf16.gmra.mxu0 %v577
  %v1934 = vpop.f32.mrf.mxu0
  %v1935 = vadd.f32 %v1872, %v1934
  %v1936 = vpop.f32.mrf.mxu0
  %v1937 = vadd.f32 %v1874, %v1936
  %1938 = vmatmul.bf16.gmra.mxu0 %v586
  %v1939 = vpop.f32.mrf.mxu0
  %v1940 = vadd.f32 %v1877, %v1939
  %v1941 = vpop.f32.mrf.mxu0
  %v1942 = vadd.f32 %v1879, %v1941
  %1943 = vmatmul.bf16.gmra.mxu0 %v595
  %v1944 = vpop.f32.mrf.mxu0
  %v1945 = vadd.f32 %v1882, %v1944
  %v1946 = vpop.f32.mrf.mxu0
  %v1947 = vadd.f32 %v1884, %v1946
  %1948 = vmatmul.bf16.gmra.mxu0 %v604
  %v1949 = vpop.f32.mrf.mxu0
  %v1950 = vadd.f32 %v1887, %v1949
  %v1951 = vpop.f32.mrf.mxu0
  %v1952 = vadd.f32 %v1889, %v1951
  %1953 = vmatmul.bf16.gmra.mxu0 %v613
  %v1954 = vpop.f32.mrf.mxu0
  %v1955 = vadd.f32 %v1892, %v1954
  %v1956 = vpop.f32.mrf.mxu0
  %v1957 = vadd.f32 %v1894, %v1956
  %1958 = vmatmul.bf16.gmra.mxu0 %v622
  %v1959 = vpop.f32.mrf.mxu0
  %v1960 = vadd.f32 %v1897, %v1959
  %v1961 = vpop.f32.mrf.mxu0
  %v1962 = vadd.f32 %v1899, %v1961
  %1963 = vmatmul.bf16.gmra.mxu0 %v631
  %v1964 = vpop.f32.mrf.mxu0
  %v1965 = vadd.f32 %v1902, %v1964
  %v1966 = vpop.f32.mrf.mxu0
  %v1967 = vadd.f32 %v1904, %v1966
  %1968 = vmatmul.bf16.gmra.mxu0 %v640
  %v1969 = vpop.f32.mrf.mxu0
  %v1970 = vadd.f32 %v1907, %v1969
  %v1971 = vpop.f32.mrf.mxu0
  %v1972 = vadd.f32 %v1909, %v1971
  %1973 = vmatmul.bf16.gmra.mxu0 %v649
  %v1974 = vpop.f32.mrf.mxu0
  %v1975 = vadd.f32 %v1912, %v1974
  %v1976 = vpop.f32.mrf.mxu0
  %v1977 = vadd.f32 %v1914, %v1976
  %1978 = vmatmul.bf16.gmra.mxu0 %v658
  %v1979 = vpop.f32.mrf.mxu0
  %v1980 = vadd.f32 %v1917, %v1979
  %v1981 = vpop.f32.mrf.mxu0
  %1982 = vdwg.mxu0
  %1983 = vmatpush.bf16.msra.mxu0 %v1333
  %1984 = vmatpush.bf16.msra.mxu0 %v1331
  %1985 = vmatpush.bf16.msra.mxu0 %v1329
  %1986 = vmatpush.bf16.msra.mxu0 %v1327
  %1987 = vmatpush.bf16.msra.mxu0 %v1325
  %1988 = vmatpush.bf16.msra.mxu0 %v1323
  %1989 = vmatpush.bf16.msra.mxu0 %v1321
  %1990 = vmatpush.bf16.msra.mxu0 %v1319
  %1991 = vmatmul.bf16.gmra.mxu0 %v569
  %v1992 = vpop.f32.mrf.mxu0
  %v1993 = vadd.f32 %v1930, %v1992
  %v1994 = vpop.f32.mrf.mxu0
  %v1995 = vadd.f32 %v1932, %v1994
  %1996 = vmatmul.bf16.gmra.mxu0 %v578
  %v1997 = vpop.f32.mrf.mxu0
  %v1998 = vadd.f32 %v1935, %v1997
  %v1999 = vpop.f32.mrf.mxu0
  %v2000 = vadd.f32 %v1937, %v1999
  %2001 = vmatmul.bf16.gmra.mxu0 %v587
  %v2002 = vpop.f32.mrf.mxu0
  %v2003 = vadd.f32 %v1940, %v2002
  %v2004 = vpop.f32.mrf.mxu0
  %v2005 = vadd.f32 %v1942, %v2004
  %2006 = vmatmul.bf16.gmra.mxu0 %v596
  %v2007 = vpop.f32.mrf.mxu0
  %v2008 = vadd.f32 %v1945, %v2007
  %v2009 = vpop.f32.mrf.mxu0
  %v2010 = vadd.f32 %v1947, %v2009
  %2011 = vmatmul.bf16.gmra.mxu0 %v605
  %v2012 = vpop.f32.mrf.mxu0
  %v2013 = vadd.f32 %v1950, %v2012
  %v2014 = vpop.f32.mrf.mxu0
  %v2015 = vadd.f32 %v1952, %v2014
  %2016 = vmatmul.bf16.gmra.mxu0 %v614
  %v2017 = vpop.f32.mrf.mxu0
  %v2018 = vadd.f32 %v1955, %v2017
  %v2019 = vpop.f32.mrf.mxu0
  %v2020 = vadd.f32 %v1957, %v2019
  %2021 = vmatmul.bf16.gmra.mxu0 %v623
  %v2022 = vpop.f32.mrf.mxu0
  %v2023 = vadd.f32 %v1960, %v2022
  %v2024 = vpop.f32.mrf.mxu0
  %v2025 = vadd.f32 %v1962, %v2024
  %2026 = vmatmul.bf16.gmra.mxu0 %v632
  %v2027 = vpop.f32.mrf.mxu0
  %v2028 = vadd.f32 %v1965, %v2027
  %v2029 = vpop.f32.mrf.mxu0
  %v2030 = vadd.f32 %v1967, %v2029
  %2031 = vmatmul.bf16.gmra.mxu0 %v641
  %v2032 = vpop.f32.mrf.mxu0
  %v2033 = vadd.f32 %v1970, %v2032
  %v2034 = vpop.f32.mrf.mxu0
  %v2035 = vadd.f32 %v1972, %v2034
  %2036 = vmatmul.bf16.gmra.mxu0 %v650
  %v2037 = vpop.f32.mrf.mxu0
  %v2038 = vadd.f32 %v1975, %v2037
  %v2039 = vpop.f32.mrf.mxu0
  %v2040 = vadd.f32 %v1977, %v2039
  %2041 = vmatmul.bf16.gmra.mxu0 %v659
  %v2042 = vpop.f32.mrf.mxu0
  %v2043 = vadd.f32 %v1980, %v2042
  %v2044 = vpop.f32.mrf.mxu0
  %2045 = vdwg.mxu0
  %2046 = vmatpush.bf16.msra.mxu0 %v1206
  %2047 = vmatpush.bf16.msra.mxu0 %v1204
  %2048 = vmatpush.bf16.msra.mxu0 %v1202
  %2049 = vmatpush.bf16.msra.mxu0 %v1200
  %2050 = vmatpush.bf16.msra.mxu0 %v1198
  %2051 = vmatpush.bf16.msra.mxu0 %v1196
  %2052 = vmatpush.bf16.msra.mxu0 %v1194
  %2053 = vmatpush.bf16.msra.mxu0 %v1192
  %2054 = vmatmul.bf16.gmra.mxu0 %v561
  %v2055 = vpop.f32.mrf.mxu0
  %v2056 = vadd.f32 0.0, %v2055
  %v2057 = vpop.f32.mrf.mxu0
  %v2058 = vadd.f32 0.0, %v2057
  %2059 = vmatmul.bf16.gmra.mxu0 %v570
  %v2060 = vpop.f32.mrf.mxu0
  %v2061 = vadd.f32 0.0, %v2060
  %v2062 = vpop.f32.mrf.mxu0
  %v2063 = vadd.f32 0.0, %v2062
  %2064 = vmatmul.bf16.gmra.mxu0 %v579
  %v2065 = vpop.f32.mrf.mxu0
  %v2066 = vadd.f32 0.0, %v2065
  %v2067 = vpop.f32.mrf.mxu0
  %v2068 = vadd.f32 0.0, %v2067
  %2069 = vmatmul.bf16.gmra.mxu0 %v588
  %v2070 = vpop.f32.mrf.mxu0
  %v2071 = vadd.f32 0.0, %v2070
  %v2072 = vpop.f32.mrf.mxu0
  %v2073 = vadd.f32 0.0, %v2072
  %2074 = vmatmul.bf16.gmra.mxu0 %v597
  %v2075 = vpop.f32.mrf.mxu0
  %v2076 = vadd.f32 0.0, %v2075
  %v2077 = vpop.f32.mrf.mxu0
  %v2078 = vadd.f32 0.0, %v2077
  %2079 = vmatmul.bf16.gmra.mxu0 %v606
  %v2080 = vpop.f32.mrf.mxu0
  %v2081 = vadd.f32 0.0, %v2080
  %v2082 = vpop.f32.mrf.mxu0
  %v2083 = vadd.f32 0.0, %v2082
  %2084 = vmatmul.bf16.gmra.mxu0 %v615
  %v2085 = vpop.f32.mrf.mxu0
  %v2086 = vadd.f32 0.0, %v2085
  %v2087 = vpop.f32.mrf.mxu0
  %v2088 = vadd.f32 0.0, %v2087
  %2089 = vmatmul.bf16.gmra.mxu0 %v624
  %v2090 = vpop.f32.mrf.mxu0
  %v2091 = vadd.f32 0.0, %v2090
  %v2092 = vpop.f32.mrf.mxu0
  %v2093 = vadd.f32 0.0, %v2092
  %2094 = vmatmul.bf16.gmra.mxu0 %v633
  %v2095 = vpop.f32.mrf.mxu0
  %v2096 = vadd.f32 0.0, %v2095
  %v2097 = vpop.f32.mrf.mxu0
  %v2098 = vadd.f32 0.0, %v2097
  %2099 = vmatmul.bf16.gmra.mxu0 %v642
  %v2100 = vpop.f32.mrf.mxu0
  %v2101 = vadd.f32 0.0, %v2100
  %v2102 = vpop.f32.mrf.mxu0
  %v2103 = vadd.f32 0.0, %v2102
  %2104 = vmatmul.bf16.gmra.mxu0 %v651
  %v2105 = vpop.f32.mrf.mxu0
  %v2106 = vadd.f32 0.0, %v2105
  %v2107 = vpop.f32.mrf.mxu0
  %2108 = vdwg.mxu0
  %2109 = vmatpush.bf16.msra.mxu0 %v1222
  %2110 = vmatpush.bf16.msra.mxu0 %v1220
  %2111 = vmatpush.bf16.msra.mxu0 %v1218
  %2112 = vmatpush.bf16.msra.mxu0 %v1216
  %2113 = vmatpush.bf16.msra.mxu0 %v1214
  %2114 = vmatpush.bf16.msra.mxu0 %v1212
  %2115 = vmatpush.bf16.msra.mxu0 %v1210
  %2116 = vmatpush.bf16.msra.mxu0 %v1208
  %2117 = vmatmul.bf16.gmra.mxu0 %v562
  %v2118 = vpop.f32.mrf.mxu0
  %v2119 = vadd.f32 %v2056, %v2118
  %v2120 = vpop.f32.mrf.mxu0
  %v2121 = vadd.f32 %v2058, %v2120
  %2122 = vmatmul.bf16.gmra.mxu0 %v571
  %v2123 = vpop.f32.mrf.mxu0
  %v2124 = vadd.f32 %v2061, %v2123
  %v2125 = vpop.f32.mrf.mxu0
  %v2126 = vadd.f32 %v2063, %v2125
  %2127 = vmatmul.bf16.gmra.mxu0 %v580
  %v2128 = vpop.f32.mrf.mxu0
  %v2129 = vadd.f32 %v2066, %v2128
  %v2130 = vpop.f32.mrf.mxu0
  %v2131 = vadd.f32 %v2068, %v2130
  %2132 = vmatmul.bf16.gmra.mxu0 %v589
  %v2133 = vpop.f32.mrf.mxu0
  %v2134 = vadd.f32 %v2071, %v2133
  %v2135 = vpop.f32.mrf.mxu0
  %v2136 = vadd.f32 %v2073, %v2135
  %2137 = vmatmul.bf16.gmra.mxu0 %v598
  %v2138 = vpop.f32.mrf.mxu0
  %v2139 = vadd.f32 %v2076, %v2138
  %v2140 = vpop.f32.mrf.mxu0
  %v2141 = vadd.f32 %v2078, %v2140
  %2142 = vmatmul.bf16.gmra.mxu0 %v607
  %v2143 = vpop.f32.mrf.mxu0
  %v2144 = vadd.f32 %v2081, %v2143
  %v2145 = vpop.f32.mrf.mxu0
  %v2146 = vadd.f32 %v2083, %v2145
  %2147 = vmatmul.bf16.gmra.mxu0 %v616
  %v2148 = vpop.f32.mrf.mxu0
  %v2149 = vadd.f32 %v2086, %v2148
  %v2150 = vpop.f32.mrf.mxu0
  %v2151 = vadd.f32 %v2088, %v2150
  %2152 = vmatmul.bf16.gmra.mxu0 %v625
  %v2153 = vpop.f32.mrf.mxu0
  %v2154 = vadd.f32 %v2091, %v2153
  %v2155 = vpop.f32.mrf.mxu0
  %v2156 = vadd.f32 %v2093, %v2155
  %2157 = vmatmul.bf16.gmra.mxu0 %v634
  %v2158 = vpop.f32.mrf.mxu0
  %v2159 = vadd.f32 %v2096, %v2158
  %v2160 = vpop.f32.mrf.mxu0
  %v2161 = vadd.f32 %v2098, %v2160
  %2162 = vmatmul.bf16.gmra.mxu0 %v643
  %v2163 = vpop.f32.mrf.mxu0
  %v2164 = vadd.f32 %v2101, %v2163
  %v2165 = vpop.f32.mrf.mxu0
  %v2166 = vadd.f32 %v2103, %v2165
  %2167 = vmatmul.bf16.gmra.mxu0 %v652
  %v2168 = vpop.f32.mrf.mxu0
  %v2169 = vadd.f32 %v2106, %v2168
  %v2170 = vpop.f32.mrf.mxu0
  %2171 = vdwg.mxu0
  %2172 = vmatpush.bf16.msra.mxu0 %v1238
  %2173 = vmatpush.bf16.msra.mxu0 %v1236
  %2174 = vmatpush.bf16.msra.mxu0 %v1234
  %2175 = vmatpush.bf16.msra.mxu0 %v1232
  %2176 = vmatpush.bf16.msra.mxu0 %v1230
  %2177 = vmatpush.bf16.msra.mxu0 %v1228
  %2178 = vmatpush.bf16.msra.mxu0 %v1226
  %2179 = vmatpush.bf16.msra.mxu0 %v1224
  %2180 = vmatmul.bf16.gmra.mxu0 %v563
  %v2181 = vpop.f32.mrf.mxu0
  %v2182 = vadd.f32 %v2119, %v2181
  %v2183 = vpop.f32.mrf.mxu0
  %v2184 = vadd.f32 %v2121, %v2183
  %2185 = vmatmul.bf16.gmra.mxu0 %v572
  %v2186 = vpop.f32.mrf.mxu0
  %v2187 = vadd.f32 %v2124, %v2186
  %v2188 = vpop.f32.mrf.mxu0
  %v2189 = vadd.f32 %v2126, %v2188
  %2190 = vmatmul.bf16.gmra.mxu0 %v581
  %v2191 = vpop.f32.mrf.mxu0
  %v2192 = vadd.f32 %v2129, %v2191
  %v2193 = vpop.f32.mrf.mxu0
  %v2194 = vadd.f32 %v2131, %v2193
  %2195 = vmatmul.bf16.gmra.mxu0 %v590
  %v2196 = vpop.f32.mrf.mxu0
  %v2197 = vadd.f32 %v2134, %v2196
  %v2198 = vpop.f32.mrf.mxu0
  %v2199 = vadd.f32 %v2136, %v2198
  %2200 = vmatmul.bf16.gmra.mxu0 %v599
  %v2201 = vpop.f32.mrf.mxu0
  %v2202 = vadd.f32 %v2139, %v2201
  %v2203 = vpop.f32.mrf.mxu0
  %v2204 = vadd.f32 %v2141, %v2203
  %2205 = vmatmul.bf16.gmra.mxu0 %v608
  %v2206 = vpop.f32.mrf.mxu0
  %v2207 = vadd.f32 %v2144, %v2206
  %v2208 = vpop.f32.mrf.mxu0
  %v2209 = vadd.f32 %v2146, %v2208
  %2210 = vmatmul.bf16.gmra.mxu0 %v617
  %v2211 = vpop.f32.mrf.mxu0
  %v2212 = vadd.f32 %v2149, %v2211
  %v2213 = vpop.f32.mrf.mxu0
  %v2214 = vadd.f32 %v2151, %v2213
  %2215 = vmatmul.bf16.gmra.mxu0 %v626
  %v2216 = vpop.f32.mrf.mxu0
  %v2217 = vadd.f32 %v2154, %v2216
  %v2218 = vpop.f32.mrf.mxu0
  %v2219 = vadd.f32 %v2156, %v2218
  %2220 = vmatmul.bf16.gmra.mxu0 %v635
  %v2221 = vpop.f32.mrf.mxu0
  %v2222 = vadd.f32 %v2159, %v2221
  %v2223 = vpop.f32.mrf.mxu0
  %v2224 = vadd.f32 %v2161, %v2223
  %2225 = vmatmul.bf16.gmra.mxu0 %v644
  %v2226 = vpop.f32.mrf.mxu0
  %v2227 = vadd.f32 %v2164, %v2226
  %v2228 = vpop.f32.mrf.mxu0
  %v2229 = vadd.f32 %v2166, %v2228
  %2230 = vmatmul.bf16.gmra.mxu0 %v653
  %v2231 = vpop.f32.mrf.mxu0
  %v2232 = vadd.f32 %v2169, %v2231
  %v2233 = vpop.f32.mrf.mxu0
  %2234 = vdwg.mxu0
  %2235 = vmatpush.bf16.msra.mxu0 %v1254
  %2236 = vmatpush.bf16.msra.mxu0 %v1252
  %2237 = vmatpush.bf16.msra.mxu0 %v1250
  %2238 = vmatpush.bf16.msra.mxu0 %v1248
  %2239 = vmatpush.bf16.msra.mxu0 %v1246
  %2240 = vmatpush.bf16.msra.mxu0 %v1244
  %2241 = vmatpush.bf16.msra.mxu0 %v1242
  %2242 = vmatpush.bf16.msra.mxu0 %v1240
  %2243 = vmatmul.bf16.gmra.mxu0 %v564
  %v2244 = vpop.f32.mrf.mxu0
  %v2245 = vadd.f32 %v2182, %v2244
  %v2246 = vpop.f32.mrf.mxu0
  %v2247 = vadd.f32 %v2184, %v2246
  %2248 = vmatmul.bf16.gmra.mxu0 %v573
  %v2249 = vpop.f32.mrf.mxu0
  %v2250 = vadd.f32 %v2187, %v2249
  %v2251 = vpop.f32.mrf.mxu0
  %v2252 = vadd.f32 %v2189, %v2251
  %2253 = vmatmul.bf16.gmra.mxu0 %v582
  %v2254 = vpop.f32.mrf.mxu0
  %v2255 = vadd.f32 %v2192, %v2254
  %v2256 = vpop.f32.mrf.mxu0
  %v2257 = vadd.f32 %v2194, %v2256
  %2258 = vmatmul.bf16.gmra.mxu0 %v591
  %v2259 = vpop.f32.mrf.mxu0
  %v2260 = vadd.f32 %v2197, %v2259
  %v2261 = vpop.f32.mrf.mxu0
  %v2262 = vadd.f32 %v2199, %v2261
  %2263 = vmatmul.bf16.gmra.mxu0 %v600
  %v2264 = vpop.f32.mrf.mxu0
  %v2265 = vadd.f32 %v2202, %v2264
  %v2266 = vpop.f32.mrf.mxu0
  %v2267 = vadd.f32 %v2204, %v2266
  %2268 = vmatmul.bf16.gmra.mxu0 %v609
  %v2269 = vpop.f32.mrf.mxu0
  %v2270 = vadd.f32 %v2207, %v2269
  %v2271 = vpop.f32.mrf.mxu0
  %v2272 = vadd.f32 %v2209, %v2271
  %2273 = vmatmul.bf16.gmra.mxu0 %v618
  %v2274 = vpop.f32.mrf.mxu0
  %v2275 = vadd.f32 %v2212, %v2274
  %v2276 = vpop.f32.mrf.mxu0
  %v2277 = vadd.f32 %v2214, %v2276
  %2278 = vmatmul.bf16.gmra.mxu0 %v627
  %v2279 = vpop.f32.mrf.mxu0
  %v2280 = vadd.f32 %v2217, %v2279
  %v2281 = vpop.f32.mrf.mxu0
  %v2282 = vadd.f32 %v2219, %v2281
  %2283 = vmatmul.bf16.gmra.mxu0 %v636
  %v2284 = vpop.f32.mrf.mxu0
  %v2285 = vadd.f32 %v2222, %v2284
  %v2286 = vpop.f32.mrf.mxu0
  %v2287 = vadd.f32 %v2224, %v2286
  %2288 = vmatmul.bf16.gmra.mxu0 %v645
  %v2289 = vpop.f32.mrf.mxu0
  %v2290 = vadd.f32 %v2227, %v2289
  %v2291 = vpop.f32.mrf.mxu0
  %v2292 = vadd.f32 %v2229, %v2291
  %2293 = vmatmul.bf16.gmra.mxu0 %v654
  %v2294 = vpop.f32.mrf.mxu0
  %v2295 = vadd.f32 %v2232, %v2294
  %v2296 = vpop.f32.mrf.mxu0
  %2297 = vdwg.mxu0
  %2298 = vmatpush.bf16.msra.mxu0 %v1270
  %2299 = vmatpush.bf16.msra.mxu0 %v1268
  %2300 = vmatpush.bf16.msra.mxu0 %v1266
  %2301 = vmatpush.bf16.msra.mxu0 %v1264
  %2302 = vmatpush.bf16.msra.mxu0 %v1262
  %2303 = vmatpush.bf16.msra.mxu0 %v1260
  %2304 = vmatpush.bf16.msra.mxu0 %v1258
  %2305 = vmatpush.bf16.msra.mxu0 %v1256
  %2306 = vmatmul.bf16.gmra.mxu0 %v565
  %v2307 = vpop.f32.mrf.mxu0
  %v2308 = vadd.f32 %v2245, %v2307
  %v2309 = vpop.f32.mrf.mxu0
  %v2310 = vadd.f32 %v2247, %v2309
  %2311 = vmatmul.bf16.gmra.mxu0 %v574
  %v2312 = vpop.f32.mrf.mxu0
  %v2313 = vadd.f32 %v2250, %v2312
  %v2314 = vpop.f32.mrf.mxu0
  %v2315 = vadd.f32 %v2252, %v2314
  %2316 = vmatmul.bf16.gmra.mxu0 %v583
  %v2317 = vpop.f32.mrf.mxu0
  %v2318 = vadd.f32 %v2255, %v2317
  %v2319 = vpop.f32.mrf.mxu0
  %v2320 = vadd.f32 %v2257, %v2319
  %2321 = vmatmul.bf16.gmra.mxu0 %v592
  %v2322 = vpop.f32.mrf.mxu0
  %v2323 = vadd.f32 %v2260, %v2322
  %v2324 = vpop.f32.mrf.mxu0
  %v2325 = vadd.f32 %v2262, %v2324
  %2326 = vmatmul.bf16.gmra.mxu0 %v601
  %v2327 = vpop.f32.mrf.mxu0
  %v2328 = vadd.f32 %v2265, %v2327
  %v2329 = vpop.f32.mrf.mxu0
  %v2330 = vadd.f32 %v2267, %v2329
  %2331 = vmatmul.bf16.gmra.mxu0 %v610
  %v2332 = vpop.f32.mrf.mxu0
  %v2333 = vadd.f32 %v2270, %v2332
  %v2334 = vpop.f32.mrf.mxu0
  %v2335 = vadd.f32 %v2272, %v2334
  %2336 = vmatmul.bf16.gmra.mxu0 %v619
  %v2337 = vpop.f32.mrf.mxu0
  %v2338 = vadd.f32 %v2275, %v2337
  %v2339 = vpop.f32.mrf.mxu0
  %v2340 = vadd.f32 %v2277, %v2339
  %2341 = vmatmul.bf16.gmra.mxu0 %v628
  %v2342 = vpop.f32.mrf.mxu0
  %v2343 = vadd.f32 %v2280, %v2342
  %v2344 = vpop.f32.mrf.mxu0
  %v2345 = vadd.f32 %v2282, %v2344
  %2346 = vmatmul.bf16.gmra.mxu0 %v637
  %v2347 = vpop.f32.mrf.mxu0
  %v2348 = vadd.f32 %v2285, %v2347
  %v2349 = vpop.f32.mrf.mxu0
  %v2350 = vadd.f32 %v2287, %v2349
  %2351 = vmatmul.bf16.gmra.mxu0 %v646
  %v2352 = vpop.f32.mrf.mxu0
  %v2353 = vadd.f32 %v2290, %v2352
  %v2354 = vpop.f32.mrf.mxu0
  %v2355 = vadd.f32 %v2292, %v2354
  %2356 = vmatmul.bf16.gmra.mxu0 %v655
  %v2357 = vpop.f32.mrf.mxu0
  %v2358 = vadd.f32 %v2295, %v2357
  %v2359 = vpop.f32.mrf.mxu0
  %2360 = vdwg.mxu0
  %2361 = vmatpush.bf16.msra.mxu0 %v1286
  %2362 = vmatpush.bf16.msra.mxu0 %v1284
  %2363 = vmatpush.bf16.msra.mxu0 %v1282
  %2364 = vmatpush.bf16.msra.mxu0 %v1280
  %2365 = vmatpush.bf16.msra.mxu0 %v1278
  %2366 = vmatpush.bf16.msra.mxu0 %v1276
  %2367 = vmatpush.bf16.msra.mxu0 %v1274
  %2368 = vmatpush.bf16.msra.mxu0 %v1272
  %2369 = vmatmul.bf16.gmra.mxu0 %v566
  %v2370 = vpop.f32.mrf.mxu0
  %v2371 = vadd.f32 %v2308, %v2370
  %v2372 = vpop.f32.mrf.mxu0
  %v2373 = vadd.f32 %v2310, %v2372
  %2374 = vmatmul.bf16.gmra.mxu0 %v575
  %v2375 = vpop.f32.mrf.mxu0
  %v2376 = vadd.f32 %v2313, %v2375
  %v2377 = vpop.f32.mrf.mxu0
  %v2378 = vadd.f32 %v2315, %v2377
  %2379 = vmatmul.bf16.gmra.mxu0 %v584
  %v2380 = vpop.f32.mrf.mxu0
  %v2381 = vadd.f32 %v2318, %v2380
  %v2382 = vpop.f32.mrf.mxu0
  %v2383 = vadd.f32 %v2320, %v2382
  %2384 = vmatmul.bf16.gmra.mxu0 %v593
  %v2385 = vpop.f32.mrf.mxu0
  %v2386 = vadd.f32 %v2323, %v2385
  %v2387 = vpop.f32.mrf.mxu0
  %v2388 = vadd.f32 %v2325, %v2387
  %2389 = vmatmul.bf16.gmra.mxu0 %v602
  %v2390 = vpop.f32.mrf.mxu0
  %v2391 = vadd.f32 %v2328, %v2390
  %v2392 = vpop.f32.mrf.mxu0
  %v2393 = vadd.f32 %v2330, %v2392
  %2394 = vmatmul.bf16.gmra.mxu0 %v611
  %v2395 = vpop.f32.mrf.mxu0
  %v2396 = vadd.f32 %v2333, %v2395
  %v2397 = vpop.f32.mrf.mxu0
  %v2398 = vadd.f32 %v2335, %v2397
  %2399 = vmatmul.bf16.gmra.mxu0 %v620
  %v2400 = vpop.f32.mrf.mxu0
  %v2401 = vadd.f32 %v2338, %v2400
  %v2402 = vpop.f32.mrf.mxu0
  %v2403 = vadd.f32 %v2340, %v2402
  %2404 = vmatmul.bf16.gmra.mxu0 %v629
  %v2405 = vpop.f32.mrf.mxu0
  %v2406 = vadd.f32 %v2343, %v2405
  %v2407 = vpop.f32.mrf.mxu0
  %v2408 = vadd.f32 %v2345, %v2407
  %2409 = vmatmul.bf16.gmra.mxu0 %v638
  %v2410 = vpop.f32.mrf.mxu0
  %v2411 = vadd.f32 %v2348, %v2410
  %v2412 = vpop.f32.mrf.mxu0
  %v2413 = vadd.f32 %v2350, %v2412
  %2414 = vmatmul.bf16.gmra.mxu0 %v647
  %v2415 = vpop.f32.mrf.mxu0
  %v2416 = vadd.f32 %v2353, %v2415
  %v2417 = vpop.f32.mrf.mxu0
  %v2418 = vadd.f32 %v2355, %v2417
  %2419 = vmatmul.bf16.gmra.mxu0 %v656
  %v2420 = vpop.f32.mrf.mxu0
  %v2421 = vadd.f32 %v2358, %v2420
  %v2422 = vpop.f32.mrf.mxu0
  %2423 = vdwg.mxu0
  %2424 = vmatpush.bf16.msra.mxu0 %v1302
  %2425 = vmatpush.bf16.msra.mxu0 %v1300
  %2426 = vmatpush.bf16.msra.mxu0 %v1298
  %2427 = vmatpush.bf16.msra.mxu0 %v1296
  %2428 = vmatpush.bf16.msra.mxu0 %v1294
  %2429 = vmatpush.bf16.msra.mxu0 %v1292
  %2430 = vmatpush.bf16.msra.mxu0 %v1290
  %2431 = vmatpush.bf16.msra.mxu0 %v1288
  %2432 = vmatmul.bf16.gmra.mxu0 %v567
  %v2433 = vpop.f32.mrf.mxu0
  %v2434 = vadd.f32 %v2371, %v2433
  %v2435 = vpop.f32.mrf.mxu0
  %v2436 = vadd.f32 %v2373, %v2435
  %2437 = vmatmul.bf16.gmra.mxu0 %v576
  %v2438 = vpop.f32.mrf.mxu0
  %v2439 = vadd.f32 %v2376, %v2438
  %v2440 = vpop.f32.mrf.mxu0
  %v2441 = vadd.f32 %v2378, %v2440
  %2442 = vmatmul.bf16.gmra.mxu0 %v585
  %v2443 = vpop.f32.mrf.mxu0
  %v2444 = vadd.f32 %v2381, %v2443
  %v2445 = vpop.f32.mrf.mxu0
  %v2446 = vadd.f32 %v2383, %v2445
  %2447 = vmatmul.bf16.gmra.mxu0 %v594
  %v2448 = vpop.f32.mrf.mxu0
  %v2449 = vadd.f32 %v2386, %v2448
  %v2450 = vpop.f32.mrf.mxu0
  %v2451 = vadd.f32 %v2388, %v2450
  %2452 = vmatmul.bf16.gmra.mxu0 %v603
  %v2453 = vpop.f32.mrf.mxu0
  %v2454 = vadd.f32 %v2391, %v2453
  %v2455 = vpop.f32.mrf.mxu0
  %v2456 = vadd.f32 %v2393, %v2455
  %2457 = vmatmul.bf16.gmra.mxu0 %v612
  %v2458 = vpop.f32.mrf.mxu0
  %v2459 = vadd.f32 %v2396, %v2458
  %v2460 = vpop.f32.mrf.mxu0
  %v2461 = vadd.f32 %v2398, %v2460
  %2462 = vmatmul.bf16.gmra.mxu0 %v621
  %v2463 = vpop.f32.mrf.mxu0
  %v2464 = vadd.f32 %v2401, %v2463
  %v2465 = vpop.f32.mrf.mxu0
  %v2466 = vadd.f32 %v2403, %v2465
  %2467 = vmatmul.bf16.gmra.mxu0 %v630
  %v2468 = vpop.f32.mrf.mxu0
  %v2469 = vadd.f32 %v2406, %v2468
  %v2470 = vpop.f32.mrf.mxu0
  %v2471 = vadd.f32 %v2408, %v2470
  %2472 = vmatmul.bf16.gmra.mxu0 %v639
  %v2473 = vpop.f32.mrf.mxu0
  %v2474 = vadd.f32 %v2411, %v2473
  %v2475 = vpop.f32.mrf.mxu0
  %v2476 = vadd.f32 %v2413, %v2475
  %2477 = vmatmul.bf16.gmra.mxu0 %v648
  %v2478 = vpop.f32.mrf.mxu0
  %v2479 = vadd.f32 %v2416, %v2478
  %v2480 = vpop.f32.mrf.mxu0
  %v2481 = vadd.f32 %v2418, %v2480
  %2482 = vmatmul.bf16.gmra.mxu0 %v657
  %v2483 = vpop.f32.mrf.mxu0
  %v2484 = vadd.f32 %v2421, %v2483
  %v2485 = vpop.f32.mrf.mxu0
  %2486 = vdwg.mxu0
  %2487 = vmatpush.bf16.msra.mxu0 %v1318
  %2488 = vmatpush.bf16.msra.mxu0 %v1316
  %2489 = vmatpush.bf16.msra.mxu0 %v1314
  %2490 = vmatpush.bf16.msra.mxu0 %v1312
  %2491 = vmatpush.bf16.msra.mxu0 %v1310
  %2492 = vmatpush.bf16.msra.mxu0 %v1308
  %2493 = vmatpush.bf16.msra.mxu0 %v1306
  %2494 = vmatpush.bf16.msra.mxu0 %v1304
  %2495 = vmatmul.bf16.gmra.mxu0 %v568
  %v2496 = vpop.f32.mrf.mxu0
  %v2497 = vadd.f32 %v2434, %v2496
  %v2498 = vpop.f32.mrf.mxu0
  %v2499 = vadd.f32 %v2436, %v2498
  %2500 = vmatmul.bf16.gmra.mxu0 %v577
  %v2501 = vpop.f32.mrf.mxu0
  %v2502 = vadd.f32 %v2439, %v2501
  %v2503 = vpop.f32.mrf.mxu0
  %v2504 = vadd.f32 %v2441, %v2503
  %2505 = vmatmul.bf16.gmra.mxu0 %v586
  %v2506 = vpop.f32.mrf.mxu0
  %v2507 = vadd.f32 %v2444, %v2506
  %v2508 = vpop.f32.mrf.mxu0
  %v2509 = vadd.f32 %v2446, %v2508
  %2510 = vmatmul.bf16.gmra.mxu0 %v595
  %v2511 = vpop.f32.mrf.mxu0
  %v2512 = vadd.f32 %v2449, %v2511
  %v2513 = vpop.f32.mrf.mxu0
  %v2514 = vadd.f32 %v2451, %v2513
  %2515 = vmatmul.bf16.gmra.mxu0 %v604
  %v2516 = vpop.f32.mrf.mxu0
  %v2517 = vadd.f32 %v2454, %v2516
  %v2518 = vpop.f32.mrf.mxu0
  %v2519 = vadd.f32 %v2456, %v2518
  %2520 = vmatmul.bf16.gmra.mxu0 %v613
  %v2521 = vpop.f32.mrf.mxu0
  %v2522 = vadd.f32 %v2459, %v2521
  %v2523 = vpop.f32.mrf.mxu0
  %v2524 = vadd.f32 %v2461, %v2523
  %2525 = vmatmul.bf16.gmra.mxu0 %v622
  %v2526 = vpop.f32.mrf.mxu0
  %v2527 = vadd.f32 %v2464, %v2526
  %v2528 = vpop.f32.mrf.mxu0
  %v2529 = vadd.f32 %v2466, %v2528
  %2530 = vmatmul.bf16.gmra.mxu0 %v631
  %v2531 = vpop.f32.mrf.mxu0
  %v2532 = vadd.f32 %v2469, %v2531
  %v2533 = vpop.f32.mrf.mxu0
  %v2534 = vadd.f32 %v2471, %v2533
  %2535 = vmatmul.bf16.gmra.mxu0 %v640
  %v2536 = vpop.f32.mrf.mxu0
  %v2537 = vadd.f32 %v2474, %v2536
  %v2538 = vpop.f32.mrf.mxu0
  %v2539 = vadd.f32 %v2476, %v2538
  %2540 = vmatmul.bf16.gmra.mxu0 %v649
  %v2541 = vpop.f32.mrf.mxu0
  %v2542 = vadd.f32 %v2479, %v2541
  %v2543 = vpop.f32.mrf.mxu0
  %v2544 = vadd.f32 %v2481, %v2543
  %2545 = vmatmul.bf16.gmra.mxu0 %v658
  %v2546 = vpop.f32.mrf.mxu0
  %v2547 = vadd.f32 %v2484, %v2546
  %v2548 = vpop.f32.mrf.mxu0
  %2549 = vdwg.mxu0
  %2550 = vmatpush.bf16.msra.mxu0 %v1334
  %2551 = vmatpush.bf16.msra.mxu0 %v1332
  %2552 = vmatpush.bf16.msra.mxu0 %v1330
  %2553 = vmatpush.bf16.msra.mxu0 %v1328
  %2554 = vmatpush.bf16.msra.mxu0 %v1326
  %2555 = vmatpush.bf16.msra.mxu0 %v1324
  %2556 = vmatpush.bf16.msra.mxu0 %v1322
  %2557 = vmatpush.bf16.msra.mxu0 %v1320
  %2558 = vmatmul.bf16.gmra.mxu0 %v569
  %v2559 = vpop.f32.mrf.mxu0
  %v2560 = vadd.f32 %v2497, %v2559
  %v2561 = vpop.f32.mrf.mxu0
  %v2562 = vadd.f32 %v2499, %v2561
  %2563 = vmatmul.bf16.gmra.mxu0 %v578
  %v2564 = vpop.f32.mrf.mxu0
  %v2565 = vadd.f32 %v2502, %v2564
  %v2566 = vpop.f32.mrf.mxu0
  %v2567 = vadd.f32 %v2504, %v2566
  %2568 = vmatmul.bf16.gmra.mxu0 %v587
  %v2569 = vpop.f32.mrf.mxu0
  %v2570 = vadd.f32 %v2507, %v2569
  %v2571 = vpop.f32.mrf.mxu0
  %v2572 = vadd.f32 %v2509, %v2571
  %2573 = vmatmul.bf16.gmra.mxu0 %v596
  %v2574 = vpop.f32.mrf.mxu0
  %v2575 = vadd.f32 %v2512, %v2574
  %v2576 = vpop.f32.mrf.mxu0
  %v2577 = vadd.f32 %v2514, %v2576
  %2578 = vmatmul.bf16.gmra.mxu0 %v605
  %v2579 = vpop.f32.mrf.mxu0
  %v2580 = vadd.f32 %v2517, %v2579
  %v2581 = vpop.f32.mrf.mxu0
  %v2582 = vadd.f32 %v2519, %v2581
  %2583 = vmatmul.bf16.gmra.mxu0 %v614
  %v2584 = vpop.f32.mrf.mxu0
  %v2585 = vadd.f32 %v2522, %v2584
  %v2586 = vpop.f32.mrf.mxu0
  %v2587 = vadd.f32 %v2524, %v2586
  %2588 = vmatmul.bf16.gmra.mxu0 %v623
  %v2589 = vpop.f32.mrf.mxu0
  %v2590 = vadd.f32 %v2527, %v2589
  %v2591 = vpop.f32.mrf.mxu0
  %v2592 = vadd.f32 %v2529, %v2591
  %2593 = vmatmul.bf16.gmra.mxu0 %v632
  %v2594 = vpop.f32.mrf.mxu0
  %v2595 = vadd.f32 %v2532, %v2594
  %v2596 = vpop.f32.mrf.mxu0
  %v2597 = vadd.f32 %v2534, %v2596
  %2598 = vmatmul.bf16.gmra.mxu0 %v641
  %v2599 = vpop.f32.mrf.mxu0
  %v2600 = vadd.f32 %v2537, %v2599
  %v2601 = vpop.f32.mrf.mxu0
  %v2602 = vadd.f32 %v2539, %v2601
  %2603 = vmatmul.bf16.gmra.mxu0 %v650
  %v2604 = vpop.f32.mrf.mxu0
  %v2605 = vadd.f32 %v2542, %v2604
  %v2606 = vpop.f32.mrf.mxu0
  %v2607 = vadd.f32 %v2544, %v2606
  %2608 = vmatmul.bf16.gmra.mxu0 %v659
  %v2609 = vpop.f32.mrf.mxu0
  %v2610 = vadd.f32 %v2547, %v2609
  %v2611 = vpop.f32.mrf.mxu0
  %2612 = vdwg.mxu0
  %2613 = vst [vmem:[%s2] sm:$0xff] %v1993
  %2614 = vst [vmem:[%s2 + $0x8] sm:$0xff] %v2560
  %2615 = vst [vmem:[%s2 + $0x10] sm:$0xff] %v1995
  %2616 = vst [vmem:[%s2 + $0x18] sm:$0xff] %v2562
  %2617 = vst [vmem:[%s2 + $0x20] sm:$0xff] %v1998
  %2618 = vst [vmem:[%s2 + $0x28] sm:$0xff] %v2565
  %2619 = vst [vmem:[%s2 + $0x30] sm:$0xff] %v2000
  %2620 = vst [vmem:[%s2 + $0x38] sm:$0xff] %v2567
  %2621 = vst [vmem:[%s2 + $0x40] sm:$0xff] %v2003
  %2622 = vst [vmem:[%s2 + $0x48] sm:$0xff] %v2570
  %2623 = vst [vmem:[%s2 + $0x50] sm:$0xff] %v2005
  %2624 = vst [vmem:[%s2 + $0x58] sm:$0xff] %v2572
  %2625 = vst [vmem:[%s2 + $0x60] sm:$0xff] %v2008
  %2626 = vst [vmem:[%s2 + $0x68] sm:$0xff] %v2575
  %2627 = vst [vmem:[%s2 + $0x70] sm:$0xff] %v2010
  %2628 = vst [vmem:[%s2 + $0x78] sm:$0xff] %v2577
  %2629 = vst [vmem:[%s2 + $0x80] sm:$0xff] %v2013
  %2630 = vst [vmem:[%s2 + $0x88] sm:$0xff] %v2580
  %2631 = vst [vmem:[%s2 + $0x90] sm:$0xff] %v2015
  %2632 = vst [vmem:[%s2 + $0x98] sm:$0xff] %v2582
  %2633 = vst [vmem:[%s2 + $0xa0] sm:$0xff] %v2018
  %2634 = vst [vmem:[%s2 + $0xa8] sm:$0xff] %v2585
  %2635 = vst [vmem:[%s2 + $0xb0] sm:$0xff] %v2020
  %2636 = vst [vmem:[%s2 + $0xb8] sm:$0xff] %v2587
  %2637 = vst [vmem:[%s2 + $0xc0] sm:$0xff] %v2023
  %2638 = vst [vmem:[%s2 + $0xc8] sm:$0xff] %v2590
  %2639 = vst [vmem:[%s2 + $0xd0] sm:$0xff] %v2025
  %2640 = vst [vmem:[%s2 + $0xd8] sm:$0xff] %v2592
  %2641 = vst [vmem:[%s2 + $0xe0] sm:$0xff] %v2028
  %2642 = vst [vmem:[%s2 + $0xe8] sm:$0xff] %v2595
  %2643 = vst [vmem:[%s2 + $0xf0] sm:$0xff] %v2030
  %2644 = vst [vmem:[%s2 + $0xf8] sm:$0xff] %v2597
  %2645 = vst [vmem:[%s2 + $0x100] sm:$0xff] %v2033
  %2646 = vst [vmem:[%s2 + $0x108] sm:$0xff] %v2600
  %2647 = vst [vmem:[%s2 + $0x110] sm:$0xff] %v2035
  %2648 = vst [vmem:[%s2 + $0x118] sm:$0xff] %v2602
  %2649 = vst [vmem:[%s2 + $0x120] sm:$0xff] %v2038
  %2650 = vst [vmem:[%s2 + $0x128] sm:$0xff] %v2605
  %2651 = vst [vmem:[%s2 + $0x130] sm:$0xff] %v2040
  %2652 = vst [vmem:[%s2 + $0x138] sm:$0xff] %v2607
  %2653 = vst [vmem:[%s2 + $0x140] sm:$0xff] %v2043
  %2654 = vst [vmem:[%s2 + $0x148] sm:$0xff] %v2610
  %v2655 = vld [vmem:[%s3] ss:$2 sm:$0x3]
  %v2656 = vadd.f32 %v1993, %v1995
  %v2657 = vadd.f32 %v2656, %v1998
  %v2658 = vadd.f32 %v2657, %v2000
  %v2659 = vadd.f32 %v2658, %v2003
  %v2660 = vadd.f32 %v2659, %v2005
  %v2661 = vadd.f32 %v2660, %v2008
  %v2662 = vadd.f32 %v2661, %v2010
  %v2663 = vadd.f32 %v2662, %v2013
  %v2664 = vadd.f32 %v2663, %v2015
  %v2665 = vadd.f32 %v2664, %v2018
  %v2666 = vadd.f32 %v2665, %v2020
  %v2667 = vadd.f32 %v2666, %v2023
  %v2668 = vadd.f32 %v2667, %v2025
  %v2669 = vadd.f32 %v2668, %v2028
  %v2670 = vadd.f32 %v2669, %v2030
  %v2671 = vadd.f32 %v2670, %v2033
  %v2672 = vadd.f32 %v2671, %v2035
  %v2673 = vadd.f32 %v2672, %v2038
  %v2674 = vadd.f32 %v2673, %v2040
  %v2675 = vadd.f32 %v2674, %v2043
  %v2676 = vrot.slane %v2675, 4
  %v2677 = vadd.f32 %v2675, %v2676
  %v2678 = vrot.slane %v2677, 2
  %v2679 = vadd.f32 %v2677, %v2678
  %v2680 = vrot.slane %v2679, 1
  %v2681 = vadd.f32 %v2679, %v2680
  %v2682 = vadd.f32 %v2560, %v2562
  %v2683 = vadd.f32 %v2682, %v2565
  %v2684 = vadd.f32 %v2683, %v2567
  %v2685 = vadd.f32 %v2684, %v2570
  %v2686 = vadd.f32 %v2685, %v2572
  %v2687 = vadd.f32 %v2686, %v2575
  %v2688 = vadd.f32 %v2687, %v2577
  %v2689 = vadd.f32 %v2688, %v2580
  %v2690 = vadd.f32 %v2689, %v2582
  %v2691 = vadd.f32 %v2690, %v2585
  %v2692 = vadd.f32 %v2691, %v2587
  %v2693 = vadd.f32 %v2692, %v2590
  %v2694 = vadd.f32 %v2693, %v2592
  %v2695 = vadd.f32 %v2694, %v2595
  %v2696 = vadd.f32 %v2695, %v2597
  %v2697 = vadd.f32 %v2696, %v2600
  %v2698 = vadd.f32 %v2697, %v2602
  %v2699 = vadd.f32 %v2698, %v2605
  %v2700 = vadd.f32 %v2699, %v2607
  %v2701 = vadd.f32 %v2700, %v2610
  %v2702 = vrot.slane %v2701, 4
  %v2703 = vadd.f32 %v2701, %v2702
  %v2704 = vrot.slane %v2703, 2
  %v2705 = vadd.f32 %v2703, %v2704
  %v2706 = vrot.slane %v2705, 1
  %v2707 = vadd.f32 %v2705, %v2706
  %v2710 = vrot.slane %v2707, 7
  %vm2711 = vcmask 1040384
  %v2712 = vsel %vm2711, %v2681, %v2710
  %v2714 = vadd.f32 %v2655, %v2712
  %v2715 = vlaneseq
  %vm2716 = vcmp.ge.s32.totalorder %v2715, 0
  %vm2717 = vcmp.lt.s32.totalorder %v2715, 256
  %vm2718 = vmand %vm2716, %vm2717
  %2719 = vst.msk [vmem:[%s3] ss:$2 sm:$0x3] %vm2718, %v2714
  %s2720 = scalar_lea.vmem %s3, 1
  %v2721 = vld [vmem:[%s2720] ss:$2 sm:$0x3]
  %v2722 = vmul.f32 %v1993, %v1993
  %v2723 = vmul.f32 %v2560, %v2560
  %v2724 = vmul.f32 %v1995, %v1995
  %v2725 = vmul.f32 %v2562, %v2562
  %v2726 = vmul.f32 %v1998, %v1998
  %v2727 = vmul.f32 %v2565, %v2565
  %v2728 = vmul.f32 %v2000, %v2000
  %v2729 = vmul.f32 %v2567, %v2567
  %v2730 = vmul.f32 %v2003, %v2003
  %v2731 = vmul.f32 %v2570, %v2570
  %v2732 = vmul.f32 %v2005, %v2005
  %v2733 = vmul.f32 %v2572, %v2572
  %v2734 = vmul.f32 %v2008, %v2008
  %v2735 = vmul.f32 %v2575, %v2575
  %v2736 = vmul.f32 %v2010, %v2010
  %v2737 = vmul.f32 %v2577, %v2577
  %v2738 = vmul.f32 %v2013, %v2013
  %v2739 = vmul.f32 %v2580, %v2580
  %v2740 = vmul.f32 %v2015, %v2015
  %v2741 = vmul.f32 %v2582, %v2582
  %v2742 = vmul.f32 %v2018, %v2018
  %v2743 = vmul.f32 %v2585, %v2585
  %v2744 = vmul.f32 %v2020, %v2020
  %v2745 = vmul.f32 %v2587, %v2587
  %v2746 = vmul.f32 %v2023, %v2023
  %v2747 = vmul.f32 %v2590, %v2590
  %v2748 = vmul.f32 %v2025, %v2025
  %v2749 = vmul.f32 %v2592, %v2592
  %v2750 = vmul.f32 %v2028, %v2028
  %v2751 = vmul.f32 %v2595, %v2595
  %v2752 = vmul.f32 %v2030, %v2030
  %v2753 = vmul.f32 %v2597, %v2597
  %v2754 = vmul.f32 %v2033, %v2033
  %v2755 = vmul.f32 %v2600, %v2600
  %v2756 = vmul.f32 %v2035, %v2035
  %v2757 = vmul.f32 %v2602, %v2602
  %v2758 = vmul.f32 %v2038, %v2038
  %v2759 = vmul.f32 %v2605, %v2605
  %v2760 = vmul.f32 %v2040, %v2040
  %v2761 = vmul.f32 %v2607, %v2607
  %v2762 = vmul.f32 %v2043, %v2043
  %v2763 = vmul.f32 %v2610, %v2610
  %v2764 = vadd.f32 %v2722, %v2724
  %v2765 = vadd.f32 %v2764, %v2726
  %v2766 = vadd.f32 %v2765, %v2728
  %v2767 = vadd.f32 %v2766, %v2730
  %v2768 = vadd.f32 %v2767, %v2732
  %v2769 = vadd.f32 %v2768, %v2734
  %v2770 = vadd.f32 %v2769, %v2736
  %v2771 = vadd.f32 %v2770, %v2738
  %v2772 = vadd.f32 %v2771, %v2740
  %v2773 = vadd.f32 %v2772, %v2742
  %v2774 = vadd.f32 %v2773, %v2744
  %v2775 = vadd.f32 %v2774, %v2746
  %v2776 = vadd.f32 %v2775, %v2748
  %v2777 = vadd.f32 %v2776, %v2750
  %v2778 = vadd.f32 %v2777, %v2752
  %v2779 = vadd.f32 %v2778, %v2754
  %v2780 = vadd.f32 %v2779, %v2756
  %v2781 = vadd.f32 %v2780, %v2758
  %v2782 = vadd.f32 %v2781, %v2760
  %v2783 = vadd.f32 %v2782, %v2762
  %v2784 = vrot.slane %v2783, 4
  %v2785 = vadd.f32 %v2783, %v2784
  %v2786 = vrot.slane %v2785, 2
  %v2787 = vadd.f32 %v2785, %v2786
  %v2788 = vrot.slane %v2787, 1
  %v2789 = vadd.f32 %v2787, %v2788
  %v2790 = vadd.f32 %v2723, %v2725
  %v2791 = vadd.f32 %v2790, %v2727
  %v2792 = vadd.f32 %v2791, %v2729
  %v2793 = vadd.f32 %v2792, %v2731
  %v2794 = vadd.f32 %v2793, %v2733
  %v2795 = vadd.f32 %v2794, %v2735
  %v2796 = vadd.f32 %v2795, %v2737
  %v2797 = vadd.f32 %v2796, %v2739
  %v2798 = vadd.f32 %v2797, %v2741
  %v2799 = vadd.f32 %v2798, %v2743
  %v2800 = vadd.f32 %v2799, %v2745
  %v2801 = vadd.f32 %v2800, %v2747
  %v2802 = vadd.f32 %v2801, %v2749
  %v2803 = vadd.f32 %v2802, %v2751
  %v2804 = vadd.f32 %v2803, %v2753
  %v2805 = vadd.f32 %v2804, %v2755
  %v2806 = vadd.f32 %v2805, %v2757
  %v2807 = vadd.f32 %v2806, %v2759
  %v2808 = vadd.f32 %v2807, %v2761
  %v2809 = vadd.f32 %v2808, %v2763
  %v2810 = vrot.slane %v2809, 4
  %v2811 = vadd.f32 %v2809, %v2810
  %v2812 = vrot.slane %v2811, 2
  %v2813 = vadd.f32 %v2811, %v2812
  %v2814 = vrot.slane %v2813, 1
  %v2815 = vadd.f32 %v2813, %v2814
  %v2818 = vrot.slane %v2815, 7
  %v2819 = vsel %vm2711, %v2789, %v2818
  %v2821 = vadd.f32 %v2721, %v2819
  %2822 = vst.msk [vmem:[%s2720] ss:$2 sm:$0x3] %vm2718, %v2821
  // Predicated region
  $region14: #{simp_resnet9_k33.32} parent=0 // pred_check
    _
  $region15: #{simp_resnet9_k33.32} parent=0 // pred_check_branch
    %2824 = sbr.rel (0) target = $region17
  $region16: #{simp_resnet9_k33.32} parent=0 // pred_region
    _
  $region17: #{simp_resnet9_k33.32} parent=0 // pred_fallthru
    _
  // Predicated region
  $region18: #{simp_resnet9_k33.32} parent=0 // pred_check
    _
  $region19: #{simp_resnet9_k33.32} parent=0 // pred_check_branch
    %2826 = sbr.rel (0) target = $region21
  $region20: #{simp_resnet9_k33.32} parent=0 // pred_region
    _
  $region21: #{simp_resnet9_k33.32} parent=0 // pred_fallthru
    _
  // Predicated region
  $region22: #{simp_resnet9_k33.32} parent=0 // pred_check
    _
  $region23: #{simp_resnet9_k33.32} parent=0 // pred_check_branch
    %2828 = sbr.rel (0) target = $region25
  $region24: #{simp_resnet9_k33.32} parent=0 // pred_region
    _
  $region25: #{simp_resnet9_k33.32} parent=0 // pred_fallthru
    _
  // Predicated region
  $region26: #{simp_resnet9_k33.32} parent=0 // pred_check
    _
  $region27: #{simp_resnet9_k33.32} parent=0 // pred_check_branch
    %2830 = sbr.rel (0) target = $region29
  $region28: #{simp_resnet9_k33.32} parent=0 // pred_region
    _
  $region29: #{simp_resnet9_k33.32} parent=0 // pred_fallthru
    _

// kernel: simp_resnet9_k33.35
$region0: #{simp_resnet9_k33.35}
  #allocation0 [shape = 'u32[]', space=smem, size = 0x4, offset = 0x4, fixed_abs, tag = 'smem constant byte address 0x4 - core index']
  #allocation1 [shape = 'u32[72,128]{1,0:T(1,128)}', space=vmem, size = 0x9000, scoped, tag = 'internal scratch']
  %s0 = inlined_call_operand.vmem [shape: bf16[32,256], index: 0, kind: input, shape index: {}]
  %s1 = inlined_call_operand.vmem [shape: bf16[256,128], index: 1, kind: input, shape index: {}]
  %s2 = inlined_call_operand.vmem [shape: f32[32,128], index: 2, kind: output, shape index: {0}]
  %s3 = inlined_call_operand.vmem [shape: f32[2,128], index: 3, kind: output, shape index: {1}]
  %4 = xla_tuple %s2, %s3
  %s5 = sld [smem:[#allocation0]]
  $region30: #{simp_resnet9_k33.35} parent=0
    _
  %s7 = ssub.s32 1, %s5
  %s8 = scalar_select 0, %s7, %s5
  // Predicated region
  $region2: #{simp_resnet9_k33.35} parent=0 // pred_check
    _
  $region3: #{simp_resnet9_k33.35} parent=0 // pred_check_branch
    %10 = sbr.rel (0) target = $region5
  $region4: #{simp_resnet9_k33.35} parent=0 // pred_region
    _
  $region5: #{simp_resnet9_k33.35} parent=0 // pred_fallthru
    _
  // Predicated region
  $region6: #{simp_resnet9_k33.35} parent=0 // pred_check
    _
  $region7: #{simp_resnet9_k33.35} parent=0 // pred_check_branch
    %12 = sbr.rel (0) target = $region9
  $region8: #{simp_resnet9_k33.35} parent=0 // pred_region
    _
  $region9: #{simp_resnet9_k33.35} parent=0 // pred_fallthru
    _
  %p13 = scmp.eq.s32.totalorder 0, 0
  // Predicated region
  $region10: #{simp_resnet9_k33.35} parent=0 // pred_check
    %p14 = pneg %p13
  $region11: #{simp_resnet9_k33.35} parent=0 // pred_check_branch
    %16 = sbr.rel (%p14) target = $region13
  $region12: #{simp_resnet9_k33.35} parent=0 // pred_region
    %17 = vst [vmem:[%s3] sm:$0x3] 0.0
  $region13: #{simp_resnet9_k33.35} parent=0 // pred_fallthru
    _
  %v18 = vld [vmem:[%s0] sm:$0xff]
  %v19 = vld [vmem:[%s0 + $0x8] sm:$0xff]
  %v20 = vld [vmem:[%s0 + $0x10] sm:$0xff]
  %v21 = vld [vmem:[%s0 + $0x18] sm:$0xff]
  %v22 = vld [vmem:[%s1] sm:$0xf]
  %v23 = vld [vmem:[%s1 + $0x4] sm:$0xf]
  %v24 = vld [vmem:[%s1 + $0x8] sm:$0xf]
  %v25 = vld [vmem:[%s1 + $0xc] sm:$0xf]
  %v26 = vld [vmem:[%s1 + $0x10] sm:$0xf]
  %v27 = vld [vmem:[%s1 + $0x14] sm:$0xf]
  %v28 = vld [vmem:[%s1 + $0x18] sm:$0xf]
  %v29 = vld [vmem:[%s1 + $0x1c] sm:$0xf]
  %v30 = vld [vmem:[%s1 + $0x20] sm:$0xf]
  %v31 = vld [vmem:[%s1 + $0x24] sm:$0xf]
  %v32 = vld [vmem:[%s1 + $0x28] sm:$0xf]
  %v33 = vld [vmem:[%s1 + $0x2c] sm:$0xf]
  %v34 = vld [vmem:[%s1 + $0x30] sm:$0xf]
  %v35 = vld [vmem:[%s1 + $0x34] sm:$0xf]
  %v36 = vld [vmem:[%s1 + $0x38] sm:$0xf]
  %v37 = vld [vmem:[%s1 + $0x3c] sm:$0xf]
  %v38 = vld [vmem:[%s1 + $0x40] sm:$0xf]
  %v39 = vld [vmem:[%s1 + $0x44] sm:$0xf]
  %v40 = vld [vmem:[%s1 + $0x48] sm:$0xf]
  %v41 = vld [vmem:[%s1 + $0x4c] sm:$0xf]
  %v42 = vld [vmem:[%s1 + $0x50] sm:$0xf]
  %v43 = vld [vmem:[%s1 + $0x54] sm:$0xf]
  %v44 = vld [vmem:[%s1 + $0x58] sm:$0xf]
  %v45 = vld [vmem:[%s1 + $0x5c] sm:$0xf]
  %v46 = vld [vmem:[%s1 + $0x60] sm:$0xf]
  %v47 = vld [vmem:[%s1 + $0x64] sm:$0xf]
  %v48 = vld [vmem:[%s1 + $0x68] sm:$0xf]
  %v49 = vld [vmem:[%s1 + $0x6c] sm:$0xf]
  %v50 = vld [vmem:[%s1 + $0x70] sm:$0xf]
  %v51 = vld [vmem:[%s1 + $0x74] sm:$0xf]
  %v52 = vld [vmem:[%s1 + $0x78] sm:$0xf]
  %v53 = vld [vmem:[%s1 + $0x7c] sm:$0xf]
  %v58 = vunpack.c.l.b16 %v18
  %v59 = vunpack.c.h.b16 %v18
  %v60 = vunpack.c.l.b16 %v19
  %v61 = vunpack.c.h.b16 %v19
  %v62 = vunpack.c.l.b16 %v20
  %v63 = vunpack.c.h.b16 %v20
  %v64 = vunpack.c.l.b16 %v21
  %v65 = vunpack.c.h.b16 %v21
  %v66 = vpack.c.b16 %v60, %v58
  %v67 = vpack.c.b16 %v61, %v59
  %v68 = vpack.c.b16 %v64, %v62
  %v69 = vpack.c.b16 %v65, %v63
  %v106 = vunpack.c.l.b16 %v22
  %v107 = vunpack.c.l.b16 %v23
  %v108 = vunpack.c.l.b16 %v24
  %v109 = vunpack.c.l.b16 %v25
  %v110 = vunpack.c.l.b16 %v26
  %v111 = vunpack.c.l.b16 %v27
  %v112 = vunpack.c.l.b16 %v28
  %v113 = vunpack.c.l.b16 %v29
  %v114 = vunpack.c.l.b16 %v30
  %v115 = vunpack.c.l.b16 %v31
  %v116 = vunpack.c.l.b16 %v32
  %v117 = vunpack.c.l.b16 %v33
  %v118 = vunpack.c.l.b16 %v34
  %v119 = vunpack.c.l.b16 %v35
  %v120 = vunpack.c.l.b16 %v36
  %v121 = vunpack.c.l.b16 %v37
  %v122 = vunpack.c.l.b16 %v38
  %v123 = vunpack.c.l.b16 %v39
  %v124 = vunpack.c.l.b16 %v40
  %v125 = vunpack.c.l.b16 %v41
  %v126 = vunpack.c.l.b16 %v42
  %v127 = vunpack.c.l.b16 %v43
  %v128 = vunpack.c.l.b16 %v44
  %v129 = vunpack.c.l.b16 %v45
  %v130 = vunpack.c.l.b16 %v46
  %v131 = vunpack.c.l.b16 %v47
  %v132 = vunpack.c.l.b16 %v48
  %v133 = vunpack.c.l.b16 %v49
  %v134 = vunpack.c.l.b16 %v50
  %v135 = vunpack.c.l.b16 %v51
  %v136 = vunpack.c.l.b16 %v52
  %v137 = vunpack.c.l.b16 %v53
  %v138 = vpack.c.b16 %v107, %v106
  %v139 = vpack.c.b16 %v109, %v108
  %v140 = vpack.c.b16 %v111, %v110
  %v141 = vpack.c.b16 %v113, %v112
  %v142 = vpack.c.b16 %v115, %v114
  %v143 = vpack.c.b16 %v117, %v116
  %v144 = vpack.c.b16 %v119, %v118
  %v145 = vpack.c.b16 %v121, %v120
  %v146 = vpack.c.b16 %v123, %v122
  %v147 = vpack.c.b16 %v125, %v124
  %v148 = vpack.c.b16 %v127, %v126
  %v149 = vpack.c.b16 %v129, %v128
  %v150 = vpack.c.b16 %v131, %v130
  %v151 = vpack.c.b16 %v133, %v132
  %v152 = vpack.c.b16 %v135, %v134
  %v153 = vpack.c.b16 %v137, %v136
  %170 = vmatpush.bf16.msra.mxu0 %v145
  %171 = vmatpush.bf16.msra.mxu0 %v144
  %172 = vmatpush.bf16.msra.mxu0 %v143
  %173 = vmatpush.bf16.msra.mxu0 %v142
  %174 = vmatpush.bf16.msra.mxu0 %v141
  %175 = vmatpush.bf16.msra.mxu0 %v140
  %176 = vmatpush.bf16.msra.mxu0 %v139
  %177 = vmatpush.bf16.msra.mxu0 %v138
  %178 = vmatmul.bf16.gmra.mxu0 %v66
  %v179 = vpop.f32.mrf.mxu0
  %v180 = vadd.f32 0.0, %v179
  %v181 = vpop.f32.mrf.mxu0
  %v182 = vadd.f32 0.0, %v181
  %183 = vmatmul.bf16.gmra.mxu0 %v68
  %v184 = vpop.f32.mrf.mxu0
  %v185 = vadd.f32 0.0, %v184
  %v186 = vpop.f32.mrf.mxu0
  %v187 = vadd.f32 0.0, %v186
  %188 = vdwg.mxu0
  %189 = vmatpush.bf16.msra.mxu0 %v153
  %190 = vmatpush.bf16.msra.mxu0 %v152
  %191 = vmatpush.bf16.msra.mxu0 %v151
  %192 = vmatpush.bf16.msra.mxu0 %v150
  %193 = vmatpush.bf16.msra.mxu0 %v149
  %194 = vmatpush.bf16.msra.mxu0 %v148
  %195 = vmatpush.bf16.msra.mxu0 %v147
  %196 = vmatpush.bf16.msra.mxu0 %v146
  %197 = vmatmul.bf16.gmra.mxu0 %v67
  %v198 = vpop.f32.mrf.mxu0
  %v199 = vadd.f32 %v180, %v198
  %v200 = vpop.f32.mrf.mxu0
  %v201 = vadd.f32 %v182, %v200
  %202 = vmatmul.bf16.gmra.mxu0 %v69
  %v203 = vpop.f32.mrf.mxu0
  %v204 = vadd.f32 %v185, %v203
  %v205 = vpop.f32.mrf.mxu0
  %v206 = vadd.f32 %v187, %v205
  %207 = vdwg.mxu0
  %208 = vst [vmem:[%s2] sm:$0xff] %v199
  %209 = vst [vmem:[%s2 + $0x8] sm:$0xff] %v201
  %210 = vst [vmem:[%s2 + $0x10] sm:$0xff] %v204
  %211 = vst [vmem:[%s2 + $0x18] sm:$0xff] %v206
  %v212 = vld [vmem:[%s3] sm:$0x1]
  %v213 = vadd.f32 %v199, %v201
  %v214 = vadd.f32 %v213, %v204
  %v215 = vadd.f32 %v214, %v206
  %v216 = vrot.slane %v215, 4
  %v217 = vadd.f32 %v215, %v216
  %v218 = vrot.slane %v217, 2
  %v219 = vadd.f32 %v217, %v218
  %v220 = vrot.slane %v219, 1
  %v221 = vadd.f32 %v219, %v220
  %v222 = vadd.f32 %v212, %v221
  %223 = vst [vmem:[%s3] sm:$0x1] %v222
  %v224 = vld [vmem:[%s3 + $0x1] sm:$0x1]
  %v225 = vmul.f32 %v199, %v199
  %v226 = vmul.f32 %v201, %v201
  %v227 = vmul.f32 %v204, %v204
  %v228 = vmul.f32 %v206, %v206
  %v229 = vadd.f32 %v225, %v226
  %v230 = vadd.f32 %v229, %v227
  %v231 = vadd.f32 %v230, %v228
  %v232 = vrot.slane %v231, 4
  %v233 = vadd.f32 %v231, %v232
  %v234 = vrot.slane %v233, 2
  %v235 = vadd.f32 %v233, %v234
  %v236 = vrot.slane %v235, 1
  %v237 = vadd.f32 %v235, %v236
  %v238 = vadd.f32 %v224, %v237
  %239 = vst [vmem:[%s3 + $0x1] sm:$0x1] %v238
  // Predicated region
  $region14: #{simp_resnet9_k33.35} parent=0 // pred_check
    _
  $region15: #{simp_resnet9_k33.35} parent=0 // pred_check_branch
    %241 = sbr.rel (0) target = $region17
  $region16: #{simp_resnet9_k33.35} parent=0 // pred_region
    _
  $region17: #{simp_resnet9_k33.35} parent=0 // pred_fallthru
    _
  // Predicated region
  $region18: #{simp_resnet9_k33.35} parent=0 // pred_check
    _
  $region19: #{simp_resnet9_k33.35} parent=0 // pred_check_branch
    %243 = sbr.rel (0) target = $region21
  $region20: #{simp_resnet9_k33.35} parent=0 // pred_region
    _
  $region21: #{simp_resnet9_k33.35} parent=0 // pred_fallthru
    _
  // Predicated region
  $region22: #{simp_resnet9_k33.35} parent=0 // pred_check
    _
  $region23: #{simp_resnet9_k33.35} parent=0 // pred_check_branch
    %245 = sbr.rel (0) target = $region25
  $region24: #{simp_resnet9_k33.35} parent=0 // pred_region
    _
  $region25: #{simp_resnet9_k33.35} parent=0 // pred_fallthru
    _
  // Predicated region
  $region26: #{simp_resnet9_k33.35} parent=0 // pred_check
    _
  $region27: #{simp_resnet9_k33.35} parent=0 // pred_check_branch
    %247 = sbr.rel (0) target = $region29
  $region28: #{simp_resnet9_k33.35} parent=0 // pred_region
    _
  $region29: #{simp_resnet9_k33.35} parent=0 // pred_fallthru
    _

// kernel: simp_resnet9_k33.36
$region0: #{simp_resnet9_k33.36}
  #allocation0 [shape = 'u32[]', space=smem, size = 0x4, offset = 0x4, fixed_abs, tag = 'smem constant byte address 0x4 - core index']
  #allocation1 [shape = 'u32[72,128]{1,0:T(1,128)}', space=vmem, size = 0x9000, scoped, tag = 'internal scratch']
  %s0 = inlined_call_operand.vmem [shape: f32[32,128], index: 0, kind: input, shape index: {}]
  %s1 = inlined_call_operand.vmem [shape: f32[2,128], index: 1, kind: input, shape index: {}]
  %s2 = inlined_call_operand.vmem [shape: f32[2,128], index: 2, kind: input, shape index: {}]
  %s3 = inlined_call_operand.vmem [shape: bf16[32,128], index: 3, kind: output, shape index: {}]
  %s4 = sld [smem:[#allocation0]]
  $region22: #{simp_resnet9_k33.36} parent=0
    _
  %s6 = ssub.s32 1, %s4
  %s7 = scalar_select 0, %s6, %s4
  // Predicated region
  $region2: #{simp_resnet9_k33.36} parent=0 // pred_check
    _
  $region3: #{simp_resnet9_k33.36} parent=0 // pred_check_branch
    %9 = sbr.rel (0) target = $region5
  $region4: #{simp_resnet9_k33.36} parent=0 // pred_region
    _
  $region5: #{simp_resnet9_k33.36} parent=0 // pred_fallthru
    _
  // Predicated region
  $region6: #{simp_resnet9_k33.36} parent=0 // pred_check
    _
  $region7: #{simp_resnet9_k33.36} parent=0 // pred_check_branch
    %11 = sbr.rel (0) target = $region9
  $region8: #{simp_resnet9_k33.36} parent=0 // pred_region
    _
  $region9: #{simp_resnet9_k33.36} parent=0 // pred_fallthru
    _
  // Predicated region
  $region10: #{simp_resnet9_k33.36} parent=0 // pred_check
    _
  $region11: #{simp_resnet9_k33.36} parent=0 // pred_check_branch
    %13 = sbr.rel (0) target = $region13
  $region12: #{simp_resnet9_k33.36} parent=0 // pred_region
    _
  $region13: #{simp_resnet9_k33.36} parent=0 // pred_fallthru
    _
  %v14 = vld [vmem:[%s0] sm:$0xff]
  %v15 = vld [vmem:[%s0 + $0x8] sm:$0xff]
  %v16 = vld [vmem:[%s0 + $0x10] sm:$0xff]
  %v17 = vld [vmem:[%s0 + $0x18] sm:$0xff]
  %v18 = vld [vmem:[%s1] sm:$0x1]
  %v19 = vmul.f32 %v18, 0.03125
  %v20 = vld [vmem:[%s1 + $0x1] sm:$0x1]
  %v21 = vmul.f32 %v20, 0.03125
  %v22 = vmul.f32 %v19, %v19
  %v23 = vsub.f32 %v21, %v22
  %v24 = vld [vmem:[%s2] sm:$0x1]
  %v25 = vadd.f32 %v23, 1e-05
  %v26 = vrsqrt.pop %v25
  %v27 = vmul.f32 %v26, %v25
  %v28 = vmul.f32 %v27, %v26
  %v29 = vmul.f32 0.5, %v28
  %v30 = vsub.f32 1.5, %v29
  %v31 = vmul.f32 %v26, %v30
  %vm32 = vweird.f32 %v25
  %vm33 = vweird.f32 %v26
  %vm34 = vmor %vm32, %vm33
  %v35 = vsel %vm34, %v26, %v31
  %v36 = vmul.f32 %v24, %v35
  %v37 = vld [vmem:[%s2 + $0x1] sm:$0x1]
  %v38 = vmul.f32 %v19, %v36
  %v39 = vsub.f32 %v37, %v38
  %v40 = vperm.slane %v36, 0
  %v41 = vmul.f32 %v14, %v40
  %v42 = vmul.f32 %v15, %v40
  %v43 = vmul.f32 %v16, %v40
  %v44 = vmul.f32 %v17, %v40
  %v45 = vperm.slane %v39, 0
  %v46 = vadd.f32 %v41, %v45
  %v47 = vadd.f32 %v42, %v45
  %v48 = vadd.f32 %v43, %v45
  %v49 = vadd.f32 %v44, %v45
  %v50 = vmax.f32 %v46, 0.0
  %v51 = vmax.f32 %v47, 0.0
  %v52 = vmax.f32 %v48, 0.0
  %v53 = vmax.f32 %v49, 0.0
  %v54 = vpack.c.bf16 %v50, %v50
  %v55 = vpack.c.bf16 %v51, %v51
  %v56 = vpack.c.bf16 %v52, %v52
  %v57 = vpack.c.bf16 %v53, %v53
  %58 = vst [vmem:[%s3] sm:$0xf] %v54
  %59 = vst [vmem:[%s3 + $0x4] sm:$0xf] %v55
  %60 = vst [vmem:[%s3 + $0x8] sm:$0xf] %v56
  %61 = vst [vmem:[%s3 + $0xc] sm:$0xf] %v57
  // Predicated region
  $region14: #{simp_resnet9_k33.36} parent=0 // pred_check
    _
  $region15: #{simp_resnet9_k33.36} parent=0 // pred_check_branch
    %63 = sbr.rel (0) target = $region17
  $region16: #{simp_resnet9_k33.36} parent=0 // pred_region
    _
  $region17: #{simp_resnet9_k33.36} parent=0 // pred_fallthru
    _
  // Predicated region
  $region18: #{simp_resnet9_k33.36} parent=0 // pred_check
    _
  $region19: #{simp_resnet9_k33.36} parent=0 // pred_check_branch
    %65 = sbr.rel (0) target = $region21
  $region20: #{simp_resnet9_k33.36} parent=0 // pred_region
    _
  $region21: #{simp_resnet9_k33.36} parent=0 // pred_fallthru
    _

// kernel: simp_resnet9_k33.34
$region0: #{simp_resnet9_k33.34}
  #allocation0 [shape = 'u32[]', space=smem, size = 0x4, offset = 0x4, fixed_abs, tag = 'smem constant byte address 0x4 - core index']
  #allocation1 [shape = 'u32[72,128]{1,0:T(1,128)}', space=vmem, size = 0x9000, scoped, tag = 'internal scratch']
  %s0 = inlined_call_operand.vmem [shape: bf16[8,2,4,2,256], index: 0, kind: input, shape index: {}]
  %s1 = inlined_call_operand.vmem [shape: bf16[8,4,1,256], index: 1, kind: output, shape index: {}]
  %s2 = sld [smem:[#allocation0]]
  $region14: #{simp_resnet9_k33.34} parent=0
    _
  %s4 = ssub.s32 1, %s2
  %s5 = scalar_select 0, %s4, %s2
  // Predicated region
  $region2: #{simp_resnet9_k33.34} parent=0 // pred_check
    _
  $region3: #{simp_resnet9_k33.34} parent=0 // pred_check_branch
    %7 = sbr.rel (0) target = $region5
  $region4: #{simp_resnet9_k33.34} parent=0 // pred_region
    _
  $region5: #{simp_resnet9_k33.34} parent=0 // pred_fallthru
    _
  %v8 = vld [vmem:[%s0] sm:$0x3]
  %v9 = vld [vmem:[%s0 + $0x2] sm:$0x3]
  %v10 = vld [vmem:[%s0 + $0x4] sm:$0x3]
  %v11 = vld [vmem:[%s0 + $0x6] sm:$0x3]
  %v12 = vld [vmem:[%s0 + $0x8] sm:$0x3]
  %v13 = vld [vmem:[%s0 + $0xa] sm:$0x3]
  %v14 = vld [vmem:[%s0 + $0xc] sm:$0x3]
  %v15 = vld [vmem:[%s0 + $0xe] sm:$0x3]
  %v16 = vld [vmem:[%s0 + $0x10] sm:$0x3]
  %v17 = vld [vmem:[%s0 + $0x12] sm:$0x3]
  %v18 = vld [vmem:[%s0 + $0x14] sm:$0x3]
  %v19 = vld [vmem:[%s0 + $0x16] sm:$0x3]
  %v20 = vld [vmem:[%s0 + $0x18] sm:$0x3]
  %v21 = vld [vmem:[%s0 + $0x1a] sm:$0x3]
  %v22 = vld [vmem:[%s0 + $0x1c] sm:$0x3]
  %v23 = vld [vmem:[%s0 + $0x1e] sm:$0x3]
  %v24 = vld [vmem:[%s0 + $0x20] sm:$0x3]
  %v25 = vld [vmem:[%s0 + $0x22] sm:$0x3]
  %v26 = vld [vmem:[%s0 + $0x24] sm:$0x3]
  %v27 = vld [vmem:[%s0 + $0x26] sm:$0x3]
  %v28 = vld [vmem:[%s0 + $0x28] sm:$0x3]
  %v29 = vld [vmem:[%s0 + $0x2a] sm:$0x3]
  %v30 = vld [vmem:[%s0 + $0x2c] sm:$0x3]
  %v31 = vld [vmem:[%s0 + $0x2e] sm:$0x3]
  %v32 = vld [vmem:[%s0 + $0x30] sm:$0x3]
  %v33 = vld [vmem:[%s0 + $0x32] sm:$0x3]
  %v34 = vld [vmem:[%s0 + $0x34] sm:$0x3]
  %v35 = vld [vmem:[%s0 + $0x36] sm:$0x3]
  %v36 = vld [vmem:[%s0 + $0x38] sm:$0x3]
  %v37 = vld [vmem:[%s0 + $0x3a] sm:$0x3]
  %v38 = vld [vmem:[%s0 + $0x3c] sm:$0x3]
  %v39 = vld [vmem:[%s0 + $0x3e] sm:$0x3]
  %v40 = vld [vmem:[%s0 + $0x40] sm:$0x3]
  %v41 = vld [vmem:[%s0 + $0x42] sm:$0x3]
  %v42 = vld [vmem:[%s0 + $0x44] sm:$0x3]
  %v43 = vld [vmem:[%s0 + $0x46] sm:$0x3]
  %v44 = vld [vmem:[%s0 + $0x48] sm:$0x3]
  %v45 = vld [vmem:[%s0 + $0x4a] sm:$0x3]
  %v46 = vld [vmem:[%s0 + $0x4c] sm:$0x3]
  %v47 = vld [vmem:[%s0 + $0x4e] sm:$0x3]
  %v48 = vld [vmem:[%s0 + $0x50] sm:$0x3]
  %v49 = vld [vmem:[%s0 + $0x52] sm:$0x3]
  %v50 = vld [vmem:[%s0 + $0x54] sm:$0x3]
  %v51 = vld [vmem:[%s0 + $0x56] sm:$0x3]
  %v52 = vld [vmem:[%s0 + $0x58] sm:$0x3]
  %v53 = vld [vmem:[%s0 + $0x5a] sm:$0x3]
  %v54 = vld [vmem:[%s0 + $0x5c] sm:$0x3]
  %v55 = vld [vmem:[%s0 + $0x5e] sm:$0x3]
  %v56 = vld [vmem:[%s0 + $0x60] sm:$0x3]
  %v57 = vld [vmem:[%s0 + $0x62] sm:$0x3]
  %v58 = vld [vmem:[%s0 + $0x64] sm:$0x3]
  %v59 = vld [vmem:[%s0 + $0x66] sm:$0x3]
  %v60 = vld [vmem:[%s0 + $0x68] sm:$0x3]
  %v61 = vld [vmem:[%s0 + $0x6a] sm:$0x3]
  %v62 = vld [vmem:[%s0 + $0x6c] sm:$0x3]
  %v63 = vld [vmem:[%s0 + $0x6e] sm:$0x3]
  %v64 = vld [vmem:[%s0 + $0x70] sm:$0x3]
  %v65 = vld [vmem:[%s0 + $0x72] sm:$0x3]
  %v66 = vld [vmem:[%s0 + $0x74] sm:$0x3]
  %v67 = vld [vmem:[%s0 + $0x76] sm:$0x3]
  %v68 = vld [vmem:[%s0 + $0x78] sm:$0x3]
  %v69 = vld [vmem:[%s0 + $0x7a] sm:$0x3]
  %v70 = vld [vmem:[%s0 + $0x7c] sm:$0x3]
  %v71 = vld [vmem:[%s0 + $0x7e] sm:$0x3]
  %v72 = vunpack.c.l.bf16 %v8
  %v73 = vunpack.c.l.bf16 %v9
  %v74 = vunpack.c.l.bf16 %v10
  %v75 = vunpack.c.l.bf16 %v11
  %v76 = vunpack.c.l.bf16 %v16
  %v77 = vunpack.c.l.bf16 %v17
  %v78 = vunpack.c.l.bf16 %v18
  %v79 = vunpack.c.l.bf16 %v19
  %v80 = vunpack.c.l.bf16 %v24
  %v81 = vunpack.c.l.bf16 %v25
  %v82 = vunpack.c.l.bf16 %v26
  %v83 = vunpack.c.l.bf16 %v27
  %v84 = vunpack.c.l.bf16 %v32
  %v85 = vunpack.c.l.bf16 %v33
  %v86 = vunpack.c.l.bf16 %v34
  %v87 = vunpack.c.l.bf16 %v35
  %v88 = vunpack.c.l.bf16 %v40
  %v89 = vunpack.c.l.bf16 %v41
  %v90 = vunpack.c.l.bf16 %v42
  %v91 = vunpack.c.l.bf16 %v43
  %v92 = vunpack.c.l.bf16 %v48
  %v93 = vunpack.c.l.bf16 %v49
  %v94 = vunpack.c.l.bf16 %v50
  %v95 = vunpack.c.l.bf16 %v51
  %v96 = vunpack.c.l.bf16 %v56
  %v97 = vunpack.c.l.bf16 %v57
  %v98 = vunpack.c.l.bf16 %v58
  %v99 = vunpack.c.l.bf16 %v59
  %v100 = vunpack.c.l.bf16 %v64
  %v101 = vunpack.c.l.bf16 %v65
  %v102 = vunpack.c.l.bf16 %v66
  %v103 = vunpack.c.l.bf16 %v67
  %v104 = vunpack.c.l.bf16 %v12
  %v105 = vunpack.c.l.bf16 %v13
  %v106 = vunpack.c.l.bf16 %v14
  %v107 = vunpack.c.l.bf16 %v15
  %v108 = vunpack.c.l.bf16 %v20
  %v109 = vunpack.c.l.bf16 %v21
  %v110 = vunpack.c.l.bf16 %v22
  %v111 = vunpack.c.l.bf16 %v23
  %v112 = vunpack.c.l.bf16 %v28
  %v113 = vunpack.c.l.bf16 %v29
  %v114 = vunpack.c.l.bf16 %v30
  %v115 = vunpack.c.l.bf16 %v31
  %v116 = vunpack.c.l.bf16 %v36
  %v117 = vunpack.c.l.bf16 %v37
  %v118 = vunpack.c.l.bf16 %v38
  %v119 = vunpack.c.l.bf16 %v39
  %v120 = vunpack.c.l.bf16 %v44
  %v121 = vunpack.c.l.bf16 %v45
  %v122 = vunpack.c.l.bf16 %v46
  %v123 = vunpack.c.l.bf16 %v47
  %v124 = vunpack.c.l.bf16 %v52
  %v125 = vunpack.c.l.bf16 %v53
  %v126 = vunpack.c.l.bf16 %v54
  %v127 = vunpack.c.l.bf16 %v55
  %v128 = vunpack.c.l.bf16 %v60
  %v129 = vunpack.c.l.bf16 %v61
  %v130 = vunpack.c.l.bf16 %v62
  %v131 = vunpack.c.l.bf16 %v63
  %v132 = vunpack.c.l.bf16 %v68
  %v133 = vunpack.c.l.bf16 %v69
  %v134 = vunpack.c.l.bf16 %v70
  %v135 = vunpack.c.l.bf16 %v71
  %v136 = vmax.f32 %v72, %v104
  %v137 = vmax.f32 %v73, %v105
  %v138 = vmax.f32 %v74, %v106
  %v139 = vmax.f32 %v75, %v107
  %v140 = vmax.f32 %v76, %v108
  %v141 = vmax.f32 %v77, %v109
  %v142 = vmax.f32 %v78, %v110
  %v143 = vmax.f32 %v79, %v111
  %v144 = vmax.f32 %v80, %v112
  %v145 = vmax.f32 %v81, %v113
  %v146 = vmax.f32 %v82, %v114
  %v147 = vmax.f32 %v83, %v115
  %v148 = vmax.f32 %v84, %v116
  %v149 = vmax.f32 %v85, %v117
  %v150 = vmax.f32 %v86, %v118
  %v151 = vmax.f32 %v87, %v119
  %v152 = vmax.f32 %v88, %v120
  %v153 = vmax.f32 %v89, %v121
  %v154 = vmax.f32 %v90, %v122
  %v155 = vmax.f32 %v91, %v123
  %v156 = vmax.f32 %v92, %v124
  %v157 = vmax.f32 %v93, %v125
  %v158 = vmax.f32 %v94, %v126
  %v159 = vmax.f32 %v95, %v127
  %v160 = vmax.f32 %v96, %v128
  %v161 = vmax.f32 %v97, %v129
  %v162 = vmax.f32 %v98, %v130
  %v163 = vmax.f32 %v99, %v131
  %v164 = vmax.f32 %v100, %v132
  %v165 = vmax.f32 %v101, %v133
  %v166 = vmax.f32 %v102, %v134
  %v167 = vmax.f32 %v103, %v135
  %200 = vst [vmem:[#allocation1] ss:$4 sm:$0xff] %v136
  %v201 = vld.sshfl [vmem:[#allocation1] sm:$0xff pattern:$0x73625140]
  %v202 = vld.sshfl [vmem:[#allocation1 + $0x8] sm:$0xff pattern:$0x73625140]
  %s203 = scalar_lea.vmem [#allocation1], 32
  %204 = vst [vmem:[%s203] ss:$4 sm:$0xff] %v137
  %v205 = vld.sshfl [vmem:[#allocation1 + $0x20] sm:$0xff pattern:$0x73625140]
  %v206 = vld.sshfl [vmem:[#allocation1 + $0x28] sm:$0xff pattern:$0x73625140]
  %207 = vst [vmem:[#allocation1] ss:$4 sm:$0xff] %v138
  %v208 = vld.sshfl [vmem:[#allocation1] sm:$0xff pattern:$0x73625140]
  %v209 = vld.sshfl [vmem:[#allocation1 + $0x8] sm:$0xff pattern:$0x73625140]
  %210 = vst [vmem:[%s203] ss:$4 sm:$0xff] %v139
  %v211 = vld.sshfl [vmem:[#allocation1 + $0x20] sm:$0xff pattern:$0x73625140]
  %v212 = vld.sshfl [vmem:[#allocation1 + $0x28] sm:$0xff pattern:$0x73625140]
  %213 = vst [vmem:[#allocation1] ss:$4 sm:$0xff] %v140
  %v214 = vld.sshfl [vmem:[#allocation1] sm:$0xff pattern:$0x73625140]
  %v215 = vld.sshfl [vmem:[#allocation1 + $0x8] sm:$0xff pattern:$0x73625140]
  %216 = vst [vmem:[%s203] ss:$4 sm:$0xff] %v141
  %v217 = vld.sshfl [vmem:[#allocation1 + $0x20] sm:$0xff pattern:$0x73625140]
  %v218 = vld.sshfl [vmem:[#allocation1 + $0x28] sm:$0xff pattern:$0x73625140]
  %219 = vst [vmem:[#allocation1] ss:$4 sm:$0xff] %v142
  %v220 = vld.sshfl [vmem:[#allocation1] sm:$0xff pattern:$0x73625140]
  %v221 = vld.sshfl [vmem:[#allocation1 + $0x8] sm:$0xff pattern:$0x73625140]
  %222 = vst [vmem:[%s203] ss:$4 sm:$0xff] %v143
  %v223 = vld.sshfl [vmem:[#allocation1 + $0x20] sm:$0xff pattern:$0x73625140]
  %v224 = vld.sshfl [vmem:[#allocation1 + $0x28] sm:$0xff pattern:$0x73625140]
  %225 = vst [vmem:[#allocation1] ss:$4 sm:$0xff] %v144
  %v226 = vld.sshfl [vmem:[#allocation1] sm:$0xff pattern:$0x73625140]
  %v227 = vld.sshfl [vmem:[#allocation1 + $0x8] sm:$0xff pattern:$0x73625140]
  %228 = vst [vmem:[%s203] ss:$4 sm:$0xff] %v145
  %v229 = vld.sshfl [vmem:[#allocation1 + $0x20] sm:$0xff pattern:$0x73625140]
  %v230 = vld.sshfl [vmem:[#allocation1 + $0x28] sm:$0xff pattern:$0x73625140]
  %231 = vst [vmem:[#allocation1] ss:$4 sm:$0xff] %v146
  %v232 = vld.sshfl [vmem:[#allocation1] sm:$0xff pattern:$0x73625140]
  %v233 = vld.sshfl [vmem:[#allocation1 + $0x8] sm:$0xff pattern:$0x73625140]
  %234 = vst [vmem:[%s203] ss:$4 sm:$0xff] %v147
  %v235 = vld.sshfl [vmem:[#allocation1 + $0x20] sm:$0xff pattern:$0x73625140]
  %v236 = vld.sshfl [vmem:[#allocation1 + $0x28] sm:$0xff pattern:$0x73625140]
  %237 = vst [vmem:[#allocation1] ss:$4 sm:$0xff] %v148
  %v238 = vld.sshfl [vmem:[#allocation1] sm:$0xff pattern:$0x73625140]
  %v239 = vld.sshfl [vmem:[#allocation1 + $0x8] sm:$0xff pattern:$0x73625140]
  %240 = vst [vmem:[%s203] ss:$4 sm:$0xff] %v149
  %v241 = vld.sshfl [vmem:[#allocation1 + $0x20] sm:$0xff pattern:$0x73625140]
  %v242 = vld.sshfl [vmem:[#allocation1 + $0x28] sm:$0xff pattern:$0x73625140]
  %243 = vst [vmem:[#allocation1] ss:$4 sm:$0xff] %v150
  %v244 = vld.sshfl [vmem:[#allocation1] sm:$0xff pattern:$0x73625140]
  %v245 = vld.sshfl [vmem:[#allocation1 + $0x8] sm:$0xff pattern:$0x73625140]
  %246 = vst [vmem:[%s203] ss:$4 sm:$0xff] %v151
  %v247 = vld.sshfl [vmem:[#allocation1 + $0x20] sm:$0xff pattern:$0x73625140]
  %v248 = vld.sshfl [vmem:[#allocation1 + $0x28] sm:$0xff pattern:$0x73625140]
  %249 = vst [vmem:[#allocation1] ss:$4 sm:$0xff] %v152
  %v250 = vld.sshfl [vmem:[#allocation1] sm:$0xff pattern:$0x73625140]
  %v251 = vld.sshfl [vmem:[#allocation1 + $0x8] sm:$0xff pattern:$0x73625140]
  %252 = vst [vmem:[%s203] ss:$4 sm:$0xff] %v153
  %v253 = vld.sshfl [vmem:[#allocation1 + $0x20] sm:$0xff pattern:$0x73625140]
  %v254 = vld.sshfl [vmem:[#allocation1 + $0x28] sm:$0xff pattern:$0x73625140]
  %255 = vst [vmem:[#allocation1] ss:$4 sm:$0xff] %v154
  %v256 = vld.sshfl [vmem:[#allocation1] sm:$0xff pattern:$0x73625140]
  %v257 = vld.sshfl [vmem:[#allocation1 + $0x8] sm:$0xff pattern:$0x73625140]
  %258 = vst [vmem:[%s203] ss:$4 sm:$0xff] %v155
  %v259 = vld.sshfl [vmem:[#allocation1 + $0x20] sm:$0xff pattern:$0x73625140]
  %v260 = vld.sshfl [vmem:[#allocation1 + $0x28] sm:$0xff pattern:$0x73625140]
  %261 = vst [vmem:[#allocation1] ss:$4 sm:$0xff] %v156
  %v262 = vld.sshfl [vmem:[#allocation1] sm:$0xff pattern:$0x73625140]
  %v263 = vld.sshfl [vmem:[#allocation1 + $0x8] sm:$0xff pattern:$0x73625140]
  %264 = vst [vmem:[%s203] ss:$4 sm:$0xff] %v157
  %v265 = vld.sshfl [vmem:[#allocation1 + $0x20] sm:$0xff pattern:$0x73625140]
  %v266 = vld.sshfl [vmem:[#allocation1 + $0x28] sm:$0xff pattern:$0x73625140]
  %267 = vst [vmem:[#allocation1] ss:$4 sm:$0xff] %v158
  %v268 = vld.sshfl [vmem:[#allocation1] sm:$0xff pattern:$0x73625140]
  %v269 = vld.sshfl [vmem:[#allocation1 + $0x8] sm:$0xff pattern:$0x73625140]
  %270 = vst [vmem:[%s203] ss:$4 sm:$0xff] %v159
  %v271 = vld.sshfl [vmem:[#allocation1 + $0x20] sm:$0xff pattern:$0x73625140]
  %v272 = vld.sshfl [vmem:[#allocation1 + $0x28] sm:$0xff pattern:$0x73625140]
  %273 = vst [vmem:[#allocation1] ss:$4 sm:$0xff] %v160
  %v274 = vld.sshfl [vmem:[#allocation1] sm:$0xff pattern:$0x73625140]
  %v275 = vld.sshfl [vmem:[#allocation1 + $0x8] sm:$0xff pattern:$0x73625140]
  %276 = vst [vmem:[%s203] ss:$4 sm:$0xff] %v161
  %v277 = vld.sshfl [vmem:[#allocation1 + $0x20] sm:$0xff pattern:$0x73625140]
  %v278 = vld.sshfl [vmem:[#allocation1 + $0x28] sm:$0xff pattern:$0x73625140]
  %279 = vst [vmem:[#allocation1] ss:$4 sm:$0xff] %v162
  %v280 = vld.sshfl [vmem:[#allocation1] sm:$0xff pattern:$0x73625140]
  %v281 = vld.sshfl [vmem:[#allocation1 + $0x8] sm:$0xff pattern:$0x73625140]
  %282 = vst [vmem:[%s203] ss:$4 sm:$0xff] %v163
  %v283 = vld.sshfl [vmem:[#allocation1 + $0x20] sm:$0xff pattern:$0x73625140]
  %v284 = vld.sshfl [vmem:[#allocation1 + $0x28] sm:$0xff pattern:$0x73625140]
  %285 = vst [vmem:[#allocation1] ss:$4 sm:$0xff] %v164
  %v286 = vld.sshfl [vmem:[#allocation1] sm:$0xff pattern:$0x73625140]
  %v287 = vld.sshfl [vmem:[#allocation1 + $0x8] sm:$0xff pattern:$0x73625140]
  %288 = vst [vmem:[%s203] ss:$4 sm:$0xff] %v165
  %v289 = vld.sshfl [vmem:[#allocation1 + $0x20] sm:$0xff pattern:$0x73625140]
  %v290 = vld.sshfl [vmem:[#allocation1 + $0x28] sm:$0xff pattern:$0x73625140]
  %291 = vst [vmem:[#allocation1] ss:$4 sm:$0xff] %v166
  %v292 = vld.sshfl [vmem:[#allocation1] sm:$0xff pattern:$0x73625140]
  %v293 = vld.sshfl [vmem:[#allocation1 + $0x8] sm:$0xff pattern:$0x73625140]
  %294 = vst [vmem:[%s203] ss:$4 sm:$0xff] %v167
  %v295 = vld.sshfl [vmem:[#allocation1 + $0x20] sm:$0xff pattern:$0x73625140]
  %v296 = vld.sshfl [vmem:[#allocation1 + $0x28] sm:$0xff pattern:$0x73625140]
  %v361 = vpack.c.bf16 %v201, %v201
  %v362 = vpack.c.bf16 %v202, %v202
  %v363 = vpack.c.bf16 %v205, %v205
  %v364 = vpack.c.bf16 %v206, %v206
  %v365 = vpack.c.bf16 %v208, %v208
  %v366 = vpack.c.bf16 %v209, %v209
  %v367 = vpack.c.bf16 %v211, %v211
  %v368 = vpack.c.bf16 %v212, %v212
  %v369 = vpack.c.bf16 %v214, %v214
  %v370 = vpack.c.bf16 %v215, %v215
  %v371 = vpack.c.bf16 %v217, %v217
  %v372 = vpack.c.bf16 %v218, %v218
  %v373 = vpack.c.bf16 %v220, %v220
  %v374 = vpack.c.bf16 %v221, %v221
  %v375 = vpack.c.bf16 %v223, %v223
  %v376 = vpack.c.bf16 %v224, %v224
  %v377 = vpack.c.bf16 %v226, %v226
  %v378 = vpack.c.bf16 %v227, %v227
  %v379 = vpack.c.bf16 %v229, %v229
  %v380 = vpack.c.bf16 %v230, %v230
  %v381 = vpack.c.bf16 %v232, %v232
  %v382 = vpack.c.bf16 %v233, %v233
  %v383 = vpack.c.bf16 %v235, %v235
  %v384 = vpack.c.bf16 %v236, %v236
  %v385 = vpack.c.bf16 %v238, %v238
  %v386 = vpack.c.bf16 %v239, %v239
  %v387 = vpack.c.bf16 %v241, %v241
  %v388 = vpack.c.bf16 %v242, %v242
  %v389 = vpack.c.bf16 %v244, %v244
  %v390 = vpack.c.bf16 %v245, %v245
  %v391 = vpack.c.bf16 %v247, %v247
  %v392 = vpack.c.bf16 %v248, %v248
  %v393 = vpack.c.bf16 %v250, %v250
  %v394 = vpack.c.bf16 %v251, %v251
  %v395 = vpack.c.bf16 %v253, %v253
  %v396 = vpack.c.bf16 %v254, %v254
  %v397 = vpack.c.bf16 %v256, %v256
  %v398 = vpack.c.bf16 %v257, %v257
  %v399 = vpack.c.bf16 %v259, %v259
  %v400 = vpack.c.bf16 %v260, %v260
  %v401 = vpack.c.bf16 %v262, %v262
  %v402 = vpack.c.bf16 %v263, %v263
  %v403 = vpack.c.bf16 %v265, %v265
  %v404 = vpack.c.bf16 %v266, %v266
  %v405 = vpack.c.bf16 %v268, %v268
  %v406 = vpack.c.bf16 %v269, %v269
  %v407 = vpack.c.bf16 %v271, %v271
  %v408 = vpack.c.bf16 %v272, %v272
  %v409 = vpack.c.bf16 %v274, %v274
  %v410 = vpack.c.bf16 %v275, %v275
  %v411 = vpack.c.bf16 %v277, %v277
  %v412 = vpack.c.bf16 %v278, %v278
  %v413 = vpack.c.bf16 %v280, %v280
  %v414 = vpack.c.bf16 %v281, %v281
  %v415 = vpack.c.bf16 %v283, %v283
  %v416 = vpack.c.bf16 %v284, %v284
  %v417 = vpack.c.bf16 %v286, %v286
  %v418 = vpack.c.bf16 %v287, %v287
  %v419 = vpack.c.bf16 %v289, %v289
  %v420 = vpack.c.bf16 %v290, %v290
  %v421 = vpack.c.bf16 %v292, %v292
  %v422 = vpack.c.bf16 %v293, %v293
  %v423 = vpack.c.bf16 %v295, %v295
  %v424 = vpack.c.bf16 %v296, %v296
  %v425 = vunpack.c.l.bf16 %v361
  %v426 = vunpack.c.l.bf16 %v362
  %v427 = vunpack.c.l.bf16 %v363
  %v428 = vunpack.c.l.bf16 %v364
  %v429 = vunpack.c.l.bf16 %v365
  %v430 = vunpack.c.l.bf16 %v366
  %v431 = vunpack.c.l.bf16 %v367
  %v432 = vunpack.c.l.bf16 %v368
  %v433 = vunpack.c.l.bf16 %v369
  %v434 = vunpack.c.l.bf16 %v370
  %v435 = vunpack.c.l.bf16 %v371
  %v436 = vunpack.c.l.bf16 %v372
  %v437 = vunpack.c.l.bf16 %v373
  %v438 = vunpack.c.l.bf16 %v374
  %v439 = vunpack.c.l.bf16 %v375
  %v440 = vunpack.c.l.bf16 %v376
  %v441 = vunpack.c.l.bf16 %v377
  %v442 = vunpack.c.l.bf16 %v378
  %v443 = vunpack.c.l.bf16 %v379
  %v444 = vunpack.c.l.bf16 %v380
  %v445 = vunpack.c.l.bf16 %v381
  %v446 = vunpack.c.l.bf16 %v382
  %v447 = vunpack.c.l.bf16 %v383
  %v448 = vunpack.c.l.bf16 %v384
  %v449 = vunpack.c.l.bf16 %v385
  %v450 = vunpack.c.l.bf16 %v386
  %v451 = vunpack.c.l.bf16 %v387
  %v452 = vunpack.c.l.bf16 %v388
  %v453 = vunpack.c.l.bf16 %v389
  %v454 = vunpack.c.l.bf16 %v390
  %v455 = vunpack.c.l.bf16 %v391
  %v456 = vunpack.c.l.bf16 %v392
  %v457 = vunpack.c.l.bf16 %v393
  %v458 = vunpack.c.l.bf16 %v394
  %v459 = vunpack.c.l.bf16 %v395
  %v460 = vunpack.c.l.bf16 %v396
  %v461 = vunpack.c.l.bf16 %v397
  %v462 = vunpack.c.l.bf16 %v398
  %v463 = vunpack.c.l.bf16 %v399
  %v464 = vunpack.c.l.bf16 %v400
  %v465 = vunpack.c.l.bf16 %v401
  %v466 = vunpack.c.l.bf16 %v402
  %v467 = vunpack.c.l.bf16 %v403
  %v468 = vunpack.c.l.bf16 %v404
  %v469 = vunpack.c.l.bf16 %v405
  %v470 = vunpack.c.l.bf16 %v406
  %v471 = vunpack.c.l.bf16 %v407
  %v472 = vunpack.c.l.bf16 %v408
  %v473 = vunpack.c.l.bf16 %v409
  %v474 = vunpack.c.l.bf16 %v410
  %v475 = vunpack.c.l.bf16 %v411
  %v476 = vunpack.c.l.bf16 %v412
  %v477 = vunpack.c.l.bf16 %v413
  %v478 = vunpack.c.l.bf16 %v414
  %v479 = vunpack.c.l.bf16 %v415
  %v480 = vunpack.c.l.bf16 %v416
  %v481 = vunpack.c.l.bf16 %v417
  %v482 = vunpack.c.l.bf16 %v418
  %v483 = vunpack.c.l.bf16 %v419
  %v484 = vunpack.c.l.bf16 %v420
  %v485 = vunpack.c.l.bf16 %v421
  %v486 = vunpack.c.l.bf16 %v422
  %v487 = vunpack.c.l.bf16 %v423
  %v488 = vunpack.c.l.bf16 %v424
  %vm489 = vcmask 1041408
  %v490 = vsel %vm489, %v425, -inf
  %v491 = vrot.slane %v490, 4
  %v492 = vmax.f32 %v490, %v491
  %v493 = vrot.slane %v492, 2
  %v494 = vmax.f32 %v492, %v493
  %v495 = vrot.slane %v494, 1
  %v496 = vmax.f32 %v494, %v495
  %v497 = vsel %vm489, %v426, -inf
  %v498 = vrot.slane %v497, 4
  %v499 = vmax.f32 %v497, %v498
  %v500 = vrot.slane %v499, 2
  %v501 = vmax.f32 %v499, %v500
  %v502 = vrot.slane %v501, 1
  %v503 = vmax.f32 %v501, %v502
  %v504 = vsel %vm489, %v427, -inf
  %v505 = vrot.slane %v504, 4
  %v506 = vmax.f32 %v504, %v505
  %v507 = vrot.slane %v506, 2
  %v508 = vmax.f32 %v506, %v507
  %v509 = vrot.slane %v508, 1
  %v510 = vmax.f32 %v508, %v509
  %v511 = vsel %vm489, %v428, -inf
  %v512 = vrot.slane %v511, 4
  %v513 = vmax.f32 %v511, %v512
  %v514 = vrot.slane %v513, 2
  %v515 = vmax.f32 %v513, %v514
  %v516 = vrot.slane %v515, 1
  %v517 = vmax.f32 %v515, %v516
  %v518 = vsel %vm489, %v429, -inf
  %v519 = vrot.slane %v518, 4
  %v520 = vmax.f32 %v518, %v519
  %v521 = vrot.slane %v520, 2
  %v522 = vmax.f32 %v520, %v521
  %v523 = vrot.slane %v522, 1
  %v524 = vmax.f32 %v522, %v523
  %v525 = vsel %vm489, %v430, -inf
  %v526 = vrot.slane %v525, 4
  %v527 = vmax.f32 %v525, %v526
  %v528 = vrot.slane %v527, 2
  %v529 = vmax.f32 %v527, %v528
  %v530 = vrot.slane %v529, 1
  %v531 = vmax.f32 %v529, %v530
  %v532 = vsel %vm489, %v431, -inf
  %v533 = vrot.slane %v532, 4
  %v534 = vmax.f32 %v532, %v533
  %v535 = vrot.slane %v534, 2
  %v536 = vmax.f32 %v534, %v535
  %v537 = vrot.slane %v536, 1
  %v538 = vmax.f32 %v536, %v537
  %v539 = vsel %vm489, %v432, -inf
  %v540 = vrot.slane %v539, 4
  %v541 = vmax.f32 %v539, %v540
  %v542 = vrot.slane %v541, 2
  %v543 = vmax.f32 %v541, %v542
  %v544 = vrot.slane %v543, 1
  %v545 = vmax.f32 %v543, %v544
  %v546 = vsel %vm489, %v433, -inf
  %v547 = vrot.slane %v546, 4
  %v548 = vmax.f32 %v546, %v547
  %v549 = vrot.slane %v548, 2
  %v550 = vmax.f32 %v548, %v549
  %v551 = vrot.slane %v550, 1
  %v552 = vmax.f32 %v550, %v551
  %v553 = vsel %vm489, %v434, -inf
  %v554 = vrot.slane %v553, 4
  %v555 = vmax.f32 %v553, %v554
  %v556 = vrot.slane %v555, 2
  %v557 = vmax.f32 %v555, %v556
  %v558 = vrot.slane %v557, 1
  %v559 = vmax.f32 %v557, %v558
  %v560 = vsel %vm489, %v435, -inf
  %v561 = vrot.slane %v560, 4
  %v562 = vmax.f32 %v560, %v561
  %v563 = vrot.slane %v562, 2
  %v564 = vmax.f32 %v562, %v563
  %v565 = vrot.slane %v564, 1
  %v566 = vmax.f32 %v564, %v565
  %v567 = vsel %vm489, %v436, -inf
  %v568 = vrot.slane %v567, 4
  %v569 = vmax.f32 %v567, %v568
  %v570 = vrot.slane %v569, 2
  %v571 = vmax.f32 %v569, %v570
  %v572 = vrot.slane %v571, 1
  %v573 = vmax.f32 %v571, %v572
  %v574 = vsel %vm489, %v437, -inf
  %v575 = vrot.slane %v574, 4
  %v576 = vmax.f32 %v574, %v575
  %v577 = vrot.slane %v576, 2
  %v578 = vmax.f32 %v576, %v577
  %v579 = vrot.slane %v578, 1
  %v580 = vmax.f32 %v578, %v579
  %v581 = vsel %vm489, %v438, -inf
  %v582 = vrot.slane %v581, 4
  %v583 = vmax.f32 %v581, %v582
  %v584 = vrot.slane %v583, 2
  %v585 = vmax.f32 %v583, %v584
  %v586 = vrot.slane %v585, 1
  %v587 = vmax.f32 %v585, %v586
  %v588 = vsel %vm489, %v439, -inf
  %v589 = vrot.slane %v588, 4
  %v590 = vmax.f32 %v588, %v589
  %v591 = vrot.slane %v590, 2
  %v592 = vmax.f32 %v590, %v591
  %v593 = vrot.slane %v592, 1
  %v594 = vmax.f32 %v592, %v593
  %v595 = vsel %vm489, %v440, -inf
  %v596 = vrot.slane %v595, 4
  %v597 = vmax.f32 %v595, %v596
  %v598 = vrot.slane %v597, 2
  %v599 = vmax.f32 %v597, %v598
  %v600 = vrot.slane %v599, 1
  %v601 = vmax.f32 %v599, %v600
  %v602 = vsel %vm489, %v441, -inf
  %v603 = vrot.slane %v602, 4
  %v604 = vmax.f32 %v602, %v603
  %v605 = vrot.slane %v604, 2
  %v606 = vmax.f32 %v604, %v605
  %v607 = vrot.slane %v606, 1
  %v608 = vmax.f32 %v606, %v607
  %v609 = vsel %vm489, %v442, -inf
  %v610 = vrot.slane %v609, 4
  %v611 = vmax.f32 %v609, %v610
  %v612 = vrot.slane %v611, 2
  %v613 = vmax.f32 %v611, %v612
  %v614 = vrot.slane %v613, 1
  %v615 = vmax.f32 %v613, %v614
  %v616 = vsel %vm489, %v443, -inf
  %v617 = vrot.slane %v616, 4
  %v618 = vmax.f32 %v616, %v617
  %v619 = vrot.slane %v618, 2
  %v620 = vmax.f32 %v618, %v619
  %v621 = vrot.slane %v620, 1
  %v622 = vmax.f32 %v620, %v621
  %v623 = vsel %vm489, %v444, -inf
  %v624 = vrot.slane %v623, 4
  %v625 = vmax.f32 %v623, %v624
  %v626 = vrot.slane %v625, 2
  %v627 = vmax.f32 %v625, %v626
  %v628 = vrot.slane %v627, 1
  %v629 = vmax.f32 %v627, %v628
  %v630 = vsel %vm489, %v445, -inf
  %v631 = vrot.slane %v630, 4
  %v632 = vmax.f32 %v630, %v631
  %v633 = vrot.slane %v632, 2
  %v634 = vmax.f32 %v632, %v633
  %v635 = vrot.slane %v634, 1
  %v636 = vmax.f32 %v634, %v635
  %v637 = vsel %vm489, %v446, -inf
  %v638 = vrot.slane %v637, 4
  %v639 = vmax.f32 %v637, %v638
  %v640 = vrot.slane %v639, 2
  %v641 = vmax.f32 %v639, %v640
  %v642 = vrot.slane %v641, 1
  %v643 = vmax.f32 %v641, %v642
  %v644 = vsel %vm489, %v447, -inf
  %v645 = vrot.slane %v644, 4
  %v646 = vmax.f32 %v644, %v645
  %v647 = vrot.slane %v646, 2
  %v648 = vmax.f32 %v646, %v647
  %v649 = vrot.slane %v648, 1
  %v650 = vmax.f32 %v648, %v649
  %v651 = vsel %vm489, %v448, -inf
  %v652 = vrot.slane %v651, 4
  %v653 = vmax.f32 %v651, %v652
  %v654 = vrot.slane %v653, 2
  %v655 = vmax.f32 %v653, %v654
  %v656 = vrot.slane %v655, 1
  %v657 = vmax.f32 %v655, %v656
  %v658 = vsel %vm489, %v449, -inf
  %v659 = vrot.slane %v658, 4
  %v660 = vmax.f32 %v658, %v659
  %v661 = vrot.slane %v660, 2
  %v662 = vmax.f32 %v660, %v661
  %v663 = vrot.slane %v662, 1
  %v664 = vmax.f32 %v662, %v663
  %v665 = vsel %vm489, %v450, -inf
  %v666 = vrot.slane %v665, 4
  %v667 = vmax.f32 %v665, %v666
  %v668 = vrot.slane %v667, 2
  %v669 = vmax.f32 %v667, %v668
  %v670 = vrot.slane %v669, 1
  %v671 = vmax.f32 %v669, %v670
  %v672 = vsel %vm489, %v451, -inf
  %v673 = vrot.slane %v672, 4
  %v674 = vmax.f32 %v672, %v673
  %v675 = vrot.slane %v674, 2
  %v676 = vmax.f32 %v674, %v675
  %v677 = vrot.slane %v676, 1
  %v678 = vmax.f32 %v676, %v677
  %v679 = vsel %vm489, %v452, -inf
  %v680 = vrot.slane %v679, 4
  %v681 = vmax.f32 %v679, %v680
  %v682 = vrot.slane %v681, 2
  %v683 = vmax.f32 %v681, %v682
  %v684 = vrot.slane %v683, 1
  %v685 = vmax.f32 %v683, %v684
  %v686 = vsel %vm489, %v453, -inf
  %v687 = vrot.slane %v686, 4
  %v688 = vmax.f32 %v686, %v687
  %v689 = vrot.slane %v688, 2
  %v690 = vmax.f32 %v688, %v689
  %v691 = vrot.slane %v690, 1
  %v692 = vmax.f32 %v690, %v691
  %v693 = vsel %vm489, %v454, -inf
  %v694 = vrot.slane %v693, 4
  %v695 = vmax.f32 %v693, %v694
  %v696 = vrot.slane %v695, 2
  %v697 = vmax.f32 %v695, %v696
  %v698 = vrot.slane %v697, 1
  %v699 = vmax.f32 %v697, %v698
  %v700 = vsel %vm489, %v455, -inf
  %v701 = vrot.slane %v700, 4
  %v702 = vmax.f32 %v700, %v701
  %v703 = vrot.slane %v702, 2
  %v704 = vmax.f32 %v702, %v703
  %v705 = vrot.slane %v704, 1
  %v706 = vmax.f32 %v704, %v705
  %v707 = vsel %vm489, %v456, -inf
  %v708 = vrot.slane %v707, 4
  %v709 = vmax.f32 %v707, %v708
  %v710 = vrot.slane %v709, 2
  %v711 = vmax.f32 %v709, %v710
  %v712 = vrot.slane %v711, 1
  %v713 = vmax.f32 %v711, %v712
  %v714 = vsel %vm489, %v457, -inf
  %v715 = vrot.slane %v714, 4
  %v716 = vmax.f32 %v714, %v715
  %v717 = vrot.slane %v716, 2
  %v718 = vmax.f32 %v716, %v717
  %v719 = vrot.slane %v718, 1
  %v720 = vmax.f32 %v718, %v719
  %v721 = vsel %vm489, %v458, -inf
  %v722 = vrot.slane %v721, 4
  %v723 = vmax.f32 %v721, %v722
  %v724 = vrot.slane %v723, 2
  %v725 = vmax.f32 %v723, %v724
  %v726 = vrot.slane %v725, 1
  %v727 = vmax.f32 %v725, %v726
  %v728 = vsel %vm489, %v459, -inf
  %v729 = vrot.slane %v728, 4
  %v730 = vmax.f32 %v728, %v729
  %v731 = vrot.slane %v730, 2
  %v732 = vmax.f32 %v730, %v731
  %v733 = vrot.slane %v732, 1
  %v734 = vmax.f32 %v732, %v733
  %v735 = vsel %vm489, %v460, -inf
  %v736 = vrot.slane %v735, 4
  %v737 = vmax.f32 %v735, %v736
  %v738 = vrot.slane %v737, 2
  %v739 = vmax.f32 %v737, %v738
  %v740 = vrot.slane %v739, 1
  %v741 = vmax.f32 %v739, %v740
  %v742 = vsel %vm489, %v461, -inf
  %v743 = vrot.slane %v742, 4
  %v744 = vmax.f32 %v742, %v743
  %v745 = vrot.slane %v744, 2
  %v746 = vmax.f32 %v744, %v745
  %v747 = vrot.slane %v746, 1
  %v748 = vmax.f32 %v746, %v747
  %v749 = vsel %vm489, %v462, -inf
  %v750 = vrot.slane %v749, 4
  %v751 = vmax.f32 %v749, %v750
  %v752 = vrot.slane %v751, 2
  %v753 = vmax.f32 %v751, %v752
  %v754 = vrot.slane %v753, 1
  %v755 = vmax.f32 %v753, %v754
  %v756 = vsel %vm489, %v463, -inf
  %v757 = vrot.slane %v756, 4
  %v758 = vmax.f32 %v756, %v757
  %v759 = vrot.slane %v758, 2
  %v760 = vmax.f32 %v758, %v759
  %v761 = vrot.slane %v760, 1
  %v762 = vmax.f32 %v760, %v761
  %v763 = vsel %vm489, %v464, -inf
  %v764 = vrot.slane %v763, 4
  %v765 = vmax.f32 %v763, %v764
  %v766 = vrot.slane %v765, 2
  %v767 = vmax.f32 %v765, %v766
  %v768 = vrot.slane %v767, 1
  %v769 = vmax.f32 %v767, %v768
  %v770 = vsel %vm489, %v465, -inf
  %v771 = vrot.slane %v770, 4
  %v772 = vmax.f32 %v770, %v771
  %v773 = vrot.slane %v772, 2
  %v774 = vmax.f32 %v772, %v773
  %v775 = vrot.slane %v774, 1
  %v776 = vmax.f32 %v774, %v775
  %v777 = vsel %vm489, %v466, -inf
  %v778 = vrot.slane %v777, 4
  %v779 = vmax.f32 %v777, %v778
  %v780 = vrot.slane %v779, 2
  %v781 = vmax.f32 %v779, %v780
  %v782 = vrot.slane %v781, 1
  %v783 = vmax.f32 %v781, %v782
  %v784 = vsel %vm489, %v467, -inf
  %v785 = vrot.slane %v784, 4
  %v786 = vmax.f32 %v784, %v785
  %v787 = vrot.slane %v786, 2
  %v788 = vmax.f32 %v786, %v787
  %v789 = vrot.slane %v788, 1
  %v790 = vmax.f32 %v788, %v789
  %v791 = vsel %vm489, %v468, -inf
  %v792 = vrot.slane %v791, 4
  %v793 = vmax.f32 %v791, %v792
  %v794 = vrot.slane %v793, 2
  %v795 = vmax.f32 %v793, %v794
  %v796 = vrot.slane %v795, 1
  %v797 = vmax.f32 %v795, %v796
  %v798 = vsel %vm489, %v469, -inf
  %v799 = vrot.slane %v798, 4
  %v800 = vmax.f32 %v798, %v799
  %v801 = vrot.slane %v800, 2
  %v802 = vmax.f32 %v800, %v801
  %v803 = vrot.slane %v802, 1
  %v804 = vmax.f32 %v802, %v803
  %v805 = vsel %vm489, %v470, -inf
  %v806 = vrot.slane %v805, 4
  %v807 = vmax.f32 %v805, %v806
  %v808 = vrot.slane %v807, 2
  %v809 = vmax.f32 %v807, %v808
  %v810 = vrot.slane %v809, 1
  %v811 = vmax.f32 %v809, %v810
  %v812 = vsel %vm489, %v471, -inf
  %v813 = vrot.slane %v812, 4
  %v814 = vmax.f32 %v812, %v813
  %v815 = vrot.slane %v814, 2
  %v816 = vmax.f32 %v814, %v815
  %v817 = vrot.slane %v816, 1
  %v818 = vmax.f32 %v816, %v817
  %v819 = vsel %vm489, %v472, -inf
  %v820 = vrot.slane %v819, 4
  %v821 = vmax.f32 %v819, %v820
  %v822 = vrot.slane %v821, 2
  %v823 = vmax.f32 %v821, %v822
  %v824 = vrot.slane %v823, 1
  %v825 = vmax.f32 %v823, %v824
  %v826 = vsel %vm489, %v473, -inf
  %v827 = vrot.slane %v826, 4
  %v828 = vmax.f32 %v826, %v827
  %v829 = vrot.slane %v828, 2
  %v830 = vmax.f32 %v828, %v829
  %v831 = vrot.slane %v830, 1
  %v832 = vmax.f32 %v830, %v831
  %v833 = vsel %vm489, %v474, -inf
  %v834 = vrot.slane %v833, 4
  %v835 = vmax.f32 %v833, %v834
  %v836 = vrot.slane %v835, 2
  %v837 = vmax.f32 %v835, %v836
  %v838 = vrot.slane %v837, 1
  %v839 = vmax.f32 %v837, %v838
  %v840 = vsel %vm489, %v475, -inf
  %v841 = vrot.slane %v840, 4
  %v842 = vmax.f32 %v840, %v841
  %v843 = vrot.slane %v842, 2
  %v844 = vmax.f32 %v842, %v843
  %v845 = vrot.slane %v844, 1
  %v846 = vmax.f32 %v844, %v845
  %v847 = vsel %vm489, %v476, -inf
  %v848 = vrot.slane %v847, 4
  %v849 = vmax.f32 %v847, %v848
  %v850 = vrot.slane %v849, 2
  %v851 = vmax.f32 %v849, %v850
  %v852 = vrot.slane %v851, 1
  %v853 = vmax.f32 %v851, %v852
  %v854 = vsel %vm489, %v477, -inf
  %v855 = vrot.slane %v854, 4
  %v856 = vmax.f32 %v854, %v855
  %v857 = vrot.slane %v856, 2
  %v858 = vmax.f32 %v856, %v857
  %v859 = vrot.slane %v858, 1
  %v860 = vmax.f32 %v858, %v859
  %v861 = vsel %vm489, %v478, -inf
  %v862 = vrot.slane %v861, 4
  %v863 = vmax.f32 %v861, %v862
  %v864 = vrot.slane %v863, 2
  %v865 = vmax.f32 %v863, %v864
  %v866 = vrot.slane %v865, 1
  %v867 = vmax.f32 %v865, %v866
  %v868 = vsel %vm489, %v479, -inf
  %v869 = vrot.slane %v868, 4
  %v870 = vmax.f32 %v868, %v869
  %v871 = vrot.slane %v870, 2
  %v872 = vmax.f32 %v870, %v871
  %v873 = vrot.slane %v872, 1
  %v874 = vmax.f32 %v872, %v873
  %v875 = vsel %vm489, %v480, -inf
  %v876 = vrot.slane %v875, 4
  %v877 = vmax.f32 %v875, %v876
  %v878 = vrot.slane %v877, 2
  %v879 = vmax.f32 %v877, %v878
  %v880 = vrot.slane %v879, 1
  %v881 = vmax.f32 %v879, %v880
  %v882 = vsel %vm489, %v481, -inf
  %v883 = vrot.slane %v882, 4
  %v884 = vmax.f32 %v882, %v883
  %v885 = vrot.slane %v884, 2
  %v886 = vmax.f32 %v884, %v885
  %v887 = vrot.slane %v886, 1
  %v888 = vmax.f32 %v886, %v887
  %v889 = vsel %vm489, %v482, -inf
  %v890 = vrot.slane %v889, 4
  %v891 = vmax.f32 %v889, %v890
  %v892 = vrot.slane %v891, 2
  %v893 = vmax.f32 %v891, %v892
  %v894 = vrot.slane %v893, 1
  %v895 = vmax.f32 %v893, %v894
  %v896 = vsel %vm489, %v483, -inf
  %v897 = vrot.slane %v896, 4
  %v898 = vmax.f32 %v896, %v897
  %v899 = vrot.slane %v898, 2
  %v900 = vmax.f32 %v898, %v899
  %v901 = vrot.slane %v900, 1
  %v902 = vmax.f32 %v900, %v901
  %v903 = vsel %vm489, %v484, -inf
  %v904 = vrot.slane %v903, 4
  %v905 = vmax.f32 %v903, %v904
  %v906 = vrot.slane %v905, 2
  %v907 = vmax.f32 %v905, %v906
  %v908 = vrot.slane %v907, 1
  %v909 = vmax.f32 %v907, %v908
  %v910 = vsel %vm489, %v485, -inf
  %v911 = vrot.slane %v910, 4
  %v912 = vmax.f32 %v910, %v911
  %v913 = vrot.slane %v912, 2
  %v914 = vmax.f32 %v912, %v913
  %v915 = vrot.slane %v914, 1
  %v916 = vmax.f32 %v914, %v915
  %v917 = vsel %vm489, %v486, -inf
  %v918 = vrot.slane %v917, 4
  %v919 = vmax.f32 %v917, %v918
  %v920 = vrot.slane %v919, 2
  %v921 = vmax.f32 %v919, %v920
  %v922 = vrot.slane %v921, 1
  %v923 = vmax.f32 %v921, %v922
  %v924 = vsel %vm489, %v487, -inf
  %v925 = vrot.slane %v924, 4
  %v926 = vmax.f32 %v924, %v925
  %v927 = vrot.slane %v926, 2
  %v928 = vmax.f32 %v926, %v927
  %v929 = vrot.slane %v928, 1
  %v930 = vmax.f32 %v928, %v929
  %v931 = vsel %vm489, %v488, -inf
  %v932 = vrot.slane %v931, 4
  %v933 = vmax.f32 %v931, %v932
  %v934 = vrot.slane %v933, 2
  %v935 = vmax.f32 %v933, %v934
  %v936 = vrot.slane %v935, 1
  %v937 = vmax.f32 %v935, %v936
  %v938 = vpack.c.bf16 %v503, %v496
  %v939 = vpack.c.bf16 %v517, %v510
  %v940 = vpack.c.bf16 %v531, %v524
  %v941 = vpack.c.bf16 %v545, %v538
  %v942 = vpack.c.bf16 %v559, %v552
  %v943 = vpack.c.bf16 %v573, %v566
  %v944 = vpack.c.bf16 %v587, %v580
  %v945 = vpack.c.bf16 %v601, %v594
  %v946 = vpack.c.bf16 %v615, %v608
  %v947 = vpack.c.bf16 %v629, %v622
  %v948 = vpack.c.bf16 %v643, %v636
  %v949 = vpack.c.bf16 %v657, %v650
  %v950 = vpack.c.bf16 %v671, %v664
  %v951 = vpack.c.bf16 %v685, %v678
  %v952 = vpack.c.bf16 %v699, %v692
  %v953 = vpack.c.bf16 %v713, %v706
  %v954 = vpack.c.bf16 %v727, %v720
  %v955 = vpack.c.bf16 %v741, %v734
  %v956 = vpack.c.bf16 %v755, %v748
  %v957 = vpack.c.bf16 %v769, %v762
  %v958 = vpack.c.bf16 %v783, %v776
  %v959 = vpack.c.bf16 %v797, %v790
  %v960 = vpack.c.bf16 %v811, %v804
  %v961 = vpack.c.bf16 %v825, %v818
  %v962 = vpack.c.bf16 %v839, %v832
  %v963 = vpack.c.bf16 %v853, %v846
  %v964 = vpack.c.bf16 %v867, %v860
  %v965 = vpack.c.bf16 %v881, %v874
  %v966 = vpack.c.bf16 %v895, %v888
  %v967 = vpack.c.bf16 %v909, %v902
  %v968 = vpack.c.bf16 %v923, %v916
  %v969 = vpack.c.bf16 %v937, %v930
  %v1002 = vrot.slane %v938, 3
  %v1003 = vrot.slane %v939, 3
  %v1004 = vrot.slane %v940, 3
  %v1005 = vrot.slane %v941, 3
  %v1006 = vrot.slane %v942, 3
  %v1007 = vrot.slane %v943, 3
  %v1008 = vrot.slane %v944, 3
  %v1009 = vrot.slane %v945, 3
  %v1010 = vrot.slane %v946, 3
  %v1011 = vrot.slane %v947, 3
  %v1012 = vrot.slane %v948, 3
  %v1013 = vrot.slane %v949, 3
  %v1014 = vrot.slane %v950, 3
  %v1015 = vrot.slane %v951, 3
  %v1016 = vrot.slane %v952, 3
  %v1017 = vrot.slane %v953, 3
  %v1018 = vrot.slane %v954, 3
  %v1019 = vrot.slane %v955, 3
  %v1020 = vrot.slane %v956, 3
  %v1021 = vrot.slane %v957, 3
  %v1022 = vrot.slane %v958, 3
  %v1023 = vrot.slane %v959, 3
  %v1024 = vrot.slane %v960, 3
  %v1025 = vrot.slane %v961, 3
  %v1026 = vrot.slane %v962, 3
  %v1027 = vrot.slane %v963, 3
  %v1028 = vrot.slane %v964, 3
  %v1029 = vrot.slane %v965, 3
  %v1030 = vrot.slane %v966, 3
  %v1031 = vrot.slane %v967, 3
  %v1032 = vrot.slane %v968, 3
  %v1033 = vrot.slane %v969, 3
  %vm1034 = vcmask 1040384
  %v1037 = vsel %vm1034, %v938, %v1002
  %v1040 = vsel %vm1034, %v939, %v1003
  %v1043 = vsel %vm1034, %v940, %v1004
  %v1046 = vsel %vm1034, %v941, %v1005
  %v1049 = vsel %vm1034, %v942, %v1006
  %v1052 = vsel %vm1034, %v943, %v1007
  %v1055 = vsel %vm1034, %v944, %v1008
  %v1058 = vsel %vm1034, %v945, %v1009
  %v1061 = vsel %vm1034, %v946, %v1010
  %v1064 = vsel %vm1034, %v947, %v1011
  %v1067 = vsel %vm1034, %v948, %v1012
  %v1070 = vsel %vm1034, %v949, %v1013
  %v1073 = vsel %vm1034, %v950, %v1014
  %v1076 = vsel %vm1034, %v951, %v1015
  %v1079 = vsel %vm1034, %v952, %v1016
  %v1082 = vsel %vm1034, %v953, %v1017
  %v1085 = vsel %vm1034, %v954, %v1018
  %v1088 = vsel %vm1034, %v955, %v1019
  %v1091 = vsel %vm1034, %v956, %v1020
  %v1094 = vsel %vm1034, %v957, %v1021
  %v1097 = vsel %vm1034, %v958, %v1022
  %v1100 = vsel %vm1034, %v959, %v1023
  %v1103 = vsel %vm1034, %v960, %v1024
  %v1106 = vsel %vm1034, %v961, %v1025
  %v1109 = vsel %vm1034, %v962, %v1026
  %v1112 = vsel %vm1034, %v963, %v1027
  %v1115 = vsel %vm1034, %v964, %v1028
  %v1118 = vsel %vm1034, %v965, %v1029
  %v1121 = vsel %vm1034, %v966, %v1030
  %v1124 = vsel %vm1034, %v967, %v1031
  %v1127 = vsel %vm1034, %v968, %v1032
  %v1130 = vsel %vm1034, %v969, %v1033
  %vm1163 = vcmask 1040384
  %vm1164 = vsmask.f32 256
  %vm1165 = vmand %vm1163, %vm1164
  %vm1166 = vcmask 1041409
  %vm1167 = vsmask.f32 1280
  %vm1168 = vmand %vm1166, %vm1167
  %vm1169 = vmor %vm1168, %vm1165
  %v1170 = vld [vmem:[%s1] sm:$0x3]
  %v1171 = vsel %vm1169, %v1037, %v1170
  %1172 = vst [vmem:[%s1] sm:$0x3] %v1171
  %v1173 = vld [vmem:[%s1 + $0x2] sm:$0x3]
  %v1174 = vsel %vm1169, %v1040, %v1173
  %1175 = vst [vmem:[%s1 + $0x2] sm:$0x3] %v1174
  %v1176 = vld [vmem:[%s1 + $0x4] sm:$0x3]
  %v1177 = vsel %vm1169, %v1043, %v1176
  %1178 = vst [vmem:[%s1 + $0x4] sm:$0x3] %v1177
  %v1179 = vld [vmem:[%s1 + $0x6] sm:$0x3]
  %v1180 = vsel %vm1169, %v1046, %v1179
  %1181 = vst [vmem:[%s1 + $0x6] sm:$0x3] %v1180
  %v1182 = vld [vmem:[%s1 + $0x8] sm:$0x3]
  %v1183 = vsel %vm1169, %v1049, %v1182
  %1184 = vst [vmem:[%s1 + $0x8] sm:$0x3] %v1183
  %v1185 = vld [vmem:[%s1 + $0xa] sm:$0x3]
  %v1186 = vsel %vm1169, %v1052, %v1185
  %1187 = vst [vmem:[%s1 + $0xa] sm:$0x3] %v1186
  %v1188 = vld [vmem:[%s1 + $0xc] sm:$0x3]
  %v1189 = vsel %vm1169, %v1055, %v1188
  %1190 = vst [vmem:[%s1 + $0xc] sm:$0x3] %v1189
  %v1191 = vld [vmem:[%s1 + $0xe] sm:$0x3]
  %v1192 = vsel %vm1169, %v1058, %v1191
  %1193 = vst [vmem:[%s1 + $0xe] sm:$0x3] %v1192
  %v1194 = vld [vmem:[%s1 + $0x10] sm:$0x3]
  %v1195 = vsel %vm1169, %v1061, %v1194
  %1196 = vst [vmem:[%s1 + $0x10] sm:$0x3] %v1195
  %v1197 = vld [vmem:[%s1 + $0x12] sm:$0x3]
  %v1198 = vsel %vm1169, %v1064, %v1197
  %1199 = vst [vmem:[%s1 + $0x12] sm:$0x3] %v1198
  %v1200 = vld [vmem:[%s1 + $0x14] sm:$0x3]
  %v1201 = vsel %vm1169, %v1067, %v1200
  %1202 = vst [vmem:[%s1 + $0x14] sm:$0x3] %v1201
  %v1203 = vld [vmem:[%s1 + $0x16] sm:$0x3]
  %v1204 = vsel %vm1169, %v1070, %v1203
  %1205 = vst [vmem:[%s1 + $0x16] sm:$0x3] %v1204
  %v1206 = vld [vmem:[%s1 + $0x18] sm:$0x3]
  %v1207 = vsel %vm1169, %v1073, %v1206
  %1208 = vst [vmem:[%s1 + $0x18] sm:$0x3] %v1207
  %v1209 = vld [vmem:[%s1 + $0x1a] sm:$0x3]
  %v1210 = vsel %vm1169, %v1076, %v1209
  %1211 = vst [vmem:[%s1 + $0x1a] sm:$0x3] %v1210
  %v1212 = vld [vmem:[%s1 + $0x1c] sm:$0x3]
  %v1213 = vsel %vm1169, %v1079, %v1212
  %1214 = vst [vmem:[%s1 + $0x1c] sm:$0x3] %v1213
  %v1215 = vld [vmem:[%s1 + $0x1e] sm:$0x3]
  %v1216 = vsel %vm1169, %v1082, %v1215
  %1217 = vst [vmem:[%s1 + $0x1e] sm:$0x3] %v1216
  %v1218 = vld [vmem:[%s1 + $0x20] sm:$0x3]
  %v1219 = vsel %vm1169, %v1085, %v1218
  %1220 = vst [vmem:[%s1 + $0x20] sm:$0x3] %v1219
  %v1221 = vld [vmem:[%s1 + $0x22] sm:$0x3]
  %v1222 = vsel %vm1169, %v1088, %v1221
  %1223 = vst [vmem:[%s1 + $0x22] sm:$0x3] %v1222
  %v1224 = vld [vmem:[%s1 + $0x24] sm:$0x3]
  %v1225 = vsel %vm1169, %v1091, %v1224
  %1226 = vst [vmem:[%s1 + $0x24] sm:$0x3] %v1225
  %v1227 = vld [vmem:[%s1 + $0x26] sm:$0x3]
  %v1228 = vsel %vm1169, %v1094, %v1227
  %1229 = vst [vmem:[%s1 + $0x26] sm:$0x3] %v1228
  %v1230 = vld [vmem:[%s1 + $0x28] sm:$0x3]
  %v1231 = vsel %vm1169, %v1097, %v1230
  %1232 = vst [vmem:[%s1 + $0x28] sm:$0x3] %v1231
  %v1233 = vld [vmem:[%s1 + $0x2a] sm:$0x3]
  %v1234 = vsel %vm1169, %v1100, %v1233
  %1235 = vst [vmem:[%s1 + $0x2a] sm:$0x3] %v1234
  %v1236 = vld [vmem:[%s1 + $0x2c] sm:$0x3]
  %v1237 = vsel %vm1169, %v1103, %v1236
  %1238 = vst [vmem:[%s1 + $0x2c] sm:$0x3] %v1237
  %v1239 = vld [vmem:[%s1 + $0x2e] sm:$0x3]
  %v1240 = vsel %vm1169, %v1106, %v1239
  %1241 = vst [vmem:[%s1 + $0x2e] sm:$0x3] %v1240
  %v1242 = vld [vmem:[%s1 + $0x30] sm:$0x3]
  %v1243 = vsel %vm1169, %v1109, %v1242
  %1244 = vst [vmem:[%s1 + $0x30] sm:$0x3] %v1243
  %v1245 = vld [vmem:[%s1 + $0x32] sm:$0x3]
  %v1246 = vsel %vm1169, %v1112, %v1245
  %1247 = vst [vmem:[%s1 + $0x32] sm:$0x3] %v1246
  %v1248 = vld [vmem:[%s1 + $0x34] sm:$0x3]
  %v1249 = vsel %vm1169, %v1115, %v1248
  %1250 = vst [vmem:[%s1 + $0x34] sm:$0x3] %v1249
  %v1251 = vld [vmem:[%s1 + $0x36] sm:$0x3]
  %v1252 = vsel %vm1169, %v1118, %v1251
  %1253 = vst [vmem:[%s1 + $0x36] sm:$0x3] %v1252
  %v1254 = vld [vmem:[%s1 + $0x38] sm:$0x3]
  %v1255 = vsel %vm1169, %v1121, %v1254
  %1256 = vst [vmem:[%s1 + $0x38] sm:$0x3] %v1255
  %v1257 = vld [vmem:[%s1 + $0x3a] sm:$0x3]
  %v1258 = vsel %vm1169, %v1124, %v1257
  %1259 = vst [vmem:[%s1 + $0x3a] sm:$0x3] %v1258
  %v1260 = vld [vmem:[%s1 + $0x3c] sm:$0x3]
  %v1261 = vsel %vm1169, %v1127, %v1260
  %1262 = vst [vmem:[%s1 + $0x3c] sm:$0x3] %v1261
  %v1263 = vld [vmem:[%s1 + $0x3e] sm:$0x3]
  %v1264 = vsel %vm1169, %v1130, %v1263
  %1265 = vst [vmem:[%s1 + $0x3e] sm:$0x3] %v1264
  // Predicated region
  $region6: #{simp_resnet9_k33.34} parent=0 // pred_check
    _
  $region7: #{simp_resnet9_k33.34} parent=0 // pred_check_branch
    %1267 = sbr.rel (0) target = $region9
  $region8: #{simp_resnet9_k33.34} parent=0 // pred_region
    _
  $region9: #{simp_resnet9_k33.34} parent=0 // pred_fallthru
    _
  // Predicated region
  $region10: #{simp_resnet9_k33.34} parent=0 // pred_check
    _
  $region11: #{simp_resnet9_k33.34} parent=0 // pred_check_branch
    %1269 = sbr.rel (0) target = $region13
  $region12: #{simp_resnet9_k33.34} parent=0 // pred_region
    _
  $region13: #{simp_resnet9_k33.34} parent=0 // pred_fallthru
    _

// kernel: simp_resnet9_k33.39
$region0: #{simp_resnet9_k33.39}
  #allocation0 [shape = 'u32[]', space=smem, size = 0x4, offset = 0x4, fixed_abs, tag = 'smem constant byte address 0x4 - core index']
  #allocation1 [shape = 'u32[72,128]{1,0:T(1,128)}', space=vmem, size = 0x9000, scoped, tag = 'internal scratch']
  %s0 = inlined_call_operand.vmem [shape: bf16[32,128], index: 0, kind: input, shape index: {}]
  %s1 = inlined_call_operand.vmem [shape: bf16[128,256], index: 1, kind: input, shape index: {}]
  %s2 = inlined_call_operand.vmem [shape: f32[32,256], index: 2, kind: output, shape index: {0}]
  %s3 = inlined_call_operand.vmem [shape: f32[2,256], index: 3, kind: output, shape index: {1}]
  %4 = xla_tuple %s2, %s3
  %s5 = sld [smem:[#allocation0]]
  $region30: #{simp_resnet9_k33.39} parent=0
    _
  %s7 = ssub.s32 1, %s5
  %s8 = scalar_select 0, %s7, %s5
  // Predicated region
  $region2: #{simp_resnet9_k33.39} parent=0 // pred_check
    _
  $region3: #{simp_resnet9_k33.39} parent=0 // pred_check_branch
    %10 = sbr.rel (0) target = $region5
  $region4: #{simp_resnet9_k33.39} parent=0 // pred_region
    _
  $region5: #{simp_resnet9_k33.39} parent=0 // pred_fallthru
    _
  // Predicated region
  $region6: #{simp_resnet9_k33.39} parent=0 // pred_check
    _
  $region7: #{simp_resnet9_k33.39} parent=0 // pred_check_branch
    %12 = sbr.rel (0) target = $region9
  $region8: #{simp_resnet9_k33.39} parent=0 // pred_region
    _
  $region9: #{simp_resnet9_k33.39} parent=0 // pred_fallthru
    _
  %p13 = scmp.eq.s32.totalorder 0, 0
  // Predicated region
  $region10: #{simp_resnet9_k33.39} parent=0 // pred_check
    %p14 = pneg %p13
  $region11: #{simp_resnet9_k33.39} parent=0 // pred_check_branch
    %16 = sbr.rel (%p14) target = $region13
  $region12: #{simp_resnet9_k33.39} parent=0 // pred_region
    %17 = vst [vmem:[%s3] sm:$0xf] 0.0
  $region13: #{simp_resnet9_k33.39} parent=0 // pred_fallthru
    _
  %v18 = vld [vmem:[%s0] sm:$0xf]
  %v19 = vld [vmem:[%s0 + $0x4] sm:$0xf]
  %v20 = vld [vmem:[%s0 + $0x8] sm:$0xf]
  %v21 = vld [vmem:[%s0 + $0xc] sm:$0xf]
  %v22 = vld [vmem:[%s1] sm:$0xff]
  %v23 = vld [vmem:[%s1 + $0x8] sm:$0xff]
  %v24 = vld [vmem:[%s1 + $0x10] sm:$0xff]
  %v25 = vld [vmem:[%s1 + $0x18] sm:$0xff]
  %v26 = vld [vmem:[%s1 + $0x20] sm:$0xff]
  %v27 = vld [vmem:[%s1 + $0x28] sm:$0xff]
  %v28 = vld [vmem:[%s1 + $0x30] sm:$0xff]
  %v29 = vld [vmem:[%s1 + $0x38] sm:$0xff]
  %v30 = vld [vmem:[%s1 + $0x40] sm:$0xff]
  %v31 = vld [vmem:[%s1 + $0x48] sm:$0xff]
  %v32 = vld [vmem:[%s1 + $0x50] sm:$0xff]
  %v33 = vld [vmem:[%s1 + $0x58] sm:$0xff]
  %v34 = vld [vmem:[%s1 + $0x60] sm:$0xff]
  %v35 = vld [vmem:[%s1 + $0x68] sm:$0xff]
  %v36 = vld [vmem:[%s1 + $0x70] sm:$0xff]
  %v37 = vld [vmem:[%s1 + $0x78] sm:$0xff]
  %v42 = vunpack.c.l.b16 %v18
  %v43 = vunpack.c.l.b16 %v19
  %v44 = vunpack.c.l.b16 %v20
  %v45 = vunpack.c.l.b16 %v21
  %v46 = vpack.c.b16 %v43, %v42
  %v47 = vpack.c.b16 %v45, %v44
  %v66 = vunpack.c.l.b16 %v22
  %v67 = vunpack.c.h.b16 %v22
  %v68 = vunpack.c.l.b16 %v23
  %v69 = vunpack.c.h.b16 %v23
  %v70 = vunpack.c.l.b16 %v24
  %v71 = vunpack.c.h.b16 %v24
  %v72 = vunpack.c.l.b16 %v25
  %v73 = vunpack.c.h.b16 %v25
  %v74 = vunpack.c.l.b16 %v26
  %v75 = vunpack.c.h.b16 %v26
  %v76 = vunpack.c.l.b16 %v27
  %v77 = vunpack.c.h.b16 %v27
  %v78 = vunpack.c.l.b16 %v28
  %v79 = vunpack.c.h.b16 %v28
  %v80 = vunpack.c.l.b16 %v29
  %v81 = vunpack.c.h.b16 %v29
  %v82 = vunpack.c.l.b16 %v30
  %v83 = vunpack.c.h.b16 %v30
  %v84 = vunpack.c.l.b16 %v31
  %v85 = vunpack.c.h.b16 %v31
  %v86 = vunpack.c.l.b16 %v32
  %v87 = vunpack.c.h.b16 %v32
  %v88 = vunpack.c.l.b16 %v33
  %v89 = vunpack.c.h.b16 %v33
  %v90 = vunpack.c.l.b16 %v34
  %v91 = vunpack.c.h.b16 %v34
  %v92 = vunpack.c.l.b16 %v35
  %v93 = vunpack.c.h.b16 %v35
  %v94 = vunpack.c.l.b16 %v36
  %v95 = vunpack.c.h.b16 %v36
  %v96 = vunpack.c.l.b16 %v37
  %v97 = vunpack.c.h.b16 %v37
  %v98 = vpack.c.b16 %v68, %v66
  %v99 = vpack.c.b16 %v69, %v67
  %v100 = vpack.c.b16 %v72, %v70
  %v101 = vpack.c.b16 %v73, %v71
  %v102 = vpack.c.b16 %v76, %v74
  %v103 = vpack.c.b16 %v77, %v75
  %v104 = vpack.c.b16 %v80, %v78
  %v105 = vpack.c.b16 %v81, %v79
  %v106 = vpack.c.b16 %v84, %v82
  %v107 = vpack.c.b16 %v85, %v83
  %v108 = vpack.c.b16 %v88, %v86
  %v109 = vpack.c.b16 %v89, %v87
  %v110 = vpack.c.b16 %v92, %v90
  %v111 = vpack.c.b16 %v93, %v91
  %v112 = vpack.c.b16 %v96, %v94
  %v113 = vpack.c.b16 %v97, %v95
  %130 = vmatpush.bf16.msra.mxu0 %v112
  %131 = vmatpush.bf16.msra.mxu0 %v110
  %132 = vmatpush.bf16.msra.mxu0 %v108
  %133 = vmatpush.bf16.msra.mxu0 %v106
  %134 = vmatpush.bf16.msra.mxu0 %v104
  %135 = vmatpush.bf16.msra.mxu0 %v102
  %136 = vmatpush.bf16.msra.mxu0 %v100
  %137 = vmatpush.bf16.msra.mxu0 %v98
  %138 = vmatmul.bf16.gmra.mxu0 %v46
  %v139 = vpop.f32.mrf.mxu0
  %v140 = vadd.f32 0.0, %v139
  %v141 = vpop.f32.mrf.mxu0
  %v142 = vadd.f32 0.0, %v141
  %143 = vmatmul.bf16.gmra.mxu0 %v47
  %v144 = vpop.f32.mrf.mxu0
  %v145 = vadd.f32 0.0, %v144
  %v146 = vpop.f32.mrf.mxu0
  %v147 = vadd.f32 0.0, %v146
  %148 = vdwg.mxu0
  %149 = vmatpush.bf16.msra.mxu0 %v113
  %150 = vmatpush.bf16.msra.mxu0 %v111
  %151 = vmatpush.bf16.msra.mxu0 %v109
  %152 = vmatpush.bf16.msra.mxu0 %v107
  %153 = vmatpush.bf16.msra.mxu0 %v105
  %154 = vmatpush.bf16.msra.mxu0 %v103
  %155 = vmatpush.bf16.msra.mxu0 %v101
  %156 = vmatpush.bf16.msra.mxu0 %v99
  %157 = vmatmul.bf16.gmra.mxu0 %v46
  %v158 = vpop.f32.mrf.mxu0
  %v159 = vadd.f32 0.0, %v158
  %v160 = vpop.f32.mrf.mxu0
  %v161 = vadd.f32 0.0, %v160
  %162 = vmatmul.bf16.gmra.mxu0 %v47
  %v163 = vpop.f32.mrf.mxu0
  %v164 = vadd.f32 0.0, %v163
  %v165 = vpop.f32.mrf.mxu0
  %v166 = vadd.f32 0.0, %v165
  %167 = vdwg.mxu0
  %168 = vst [vmem:[%s2] sm:$0xff] %v140
  %169 = vst [vmem:[%s2 + $0x8] sm:$0xff] %v159
  %170 = vst [vmem:[%s2 + $0x10] sm:$0xff] %v142
  %171 = vst [vmem:[%s2 + $0x18] sm:$0xff] %v161
  %172 = vst [vmem:[%s2 + $0x20] sm:$0xff] %v145
  %173 = vst [vmem:[%s2 + $0x28] sm:$0xff] %v164
  %174 = vst [vmem:[%s2 + $0x30] sm:$0xff] %v147
  %175 = vst [vmem:[%s2 + $0x38] sm:$0xff] %v166
  %v176 = vld [vmem:[%s3] ss:$2 sm:$0x3]
  %v177 = vadd.f32 %v140, %v142
  %v178 = vadd.f32 %v177, %v145
  %v179 = vadd.f32 %v178, %v147
  %v180 = vrot.slane %v179, 4
  %v181 = vadd.f32 %v179, %v180
  %v182 = vrot.slane %v181, 2
  %v183 = vadd.f32 %v181, %v182
  %v184 = vrot.slane %v183, 1
  %v185 = vadd.f32 %v183, %v184
  %v186 = vadd.f32 %v159, %v161
  %v187 = vadd.f32 %v186, %v164
  %v188 = vadd.f32 %v187, %v166
  %v189 = vrot.slane %v188, 4
  %v190 = vadd.f32 %v188, %v189
  %v191 = vrot.slane %v190, 2
  %v192 = vadd.f32 %v190, %v191
  %v193 = vrot.slane %v192, 1
  %v194 = vadd.f32 %v192, %v193
  %v197 = vrot.slane %v194, 7
  %vm198 = vcmask 1040384
  %v199 = vsel %vm198, %v185, %v197
  %v201 = vadd.f32 %v176, %v199
  %v202 = vlaneseq
  %vm203 = vcmp.ge.s32.totalorder %v202, 0
  %vm204 = vcmp.lt.s32.totalorder %v202, 256
  %vm205 = vmand %vm203, %vm204
  %206 = vst.msk [vmem:[%s3] ss:$2 sm:$0x3] %vm205, %v201
  %s207 = scalar_lea.vmem %s3, 1
  %v208 = vld [vmem:[%s207] ss:$2 sm:$0x3]
  %v209 = vmul.f32 %v140, %v140
  %v210 = vmul.f32 %v159, %v159
  %v211 = vmul.f32 %v142, %v142
  %v212 = vmul.f32 %v161, %v161
  %v213 = vmul.f32 %v145, %v145
  %v214 = vmul.f32 %v164, %v164
  %v215 = vmul.f32 %v147, %v147
  %v216 = vmul.f32 %v166, %v166
  %v217 = vadd.f32 %v209, %v211
  %v218 = vadd.f32 %v217, %v213
  %v219 = vadd.f32 %v218, %v215
  %v220 = vrot.slane %v219, 4
  %v221 = vadd.f32 %v219, %v220
  %v222 = vrot.slane %v221, 2
  %v223 = vadd.f32 %v221, %v222
  %v224 = vrot.slane %v223, 1
  %v225 = vadd.f32 %v223, %v224
  %v226 = vadd.f32 %v210, %v212
  %v227 = vadd.f32 %v226, %v214
  %v228 = vadd.f32 %v227, %v216
  %v229 = vrot.slane %v228, 4
  %v230 = vadd.f32 %v228, %v229
  %v231 = vrot.slane %v230, 2
  %v232 = vadd.f32 %v230, %v231
  %v233 = vrot.slane %v232, 1
  %v234 = vadd.f32 %v232, %v233
  %v237 = vrot.slane %v234, 7
  %v238 = vsel %vm198, %v225, %v237
  %v240 = vadd.f32 %v208, %v238
  %241 = vst.msk [vmem:[%s207] ss:$2 sm:$0x3] %vm205, %v240
  // Predicated region
  $region14: #{simp_resnet9_k33.39} parent=0 // pred_check
    _
  $region15: #{simp_resnet9_k33.39} parent=0 // pred_check_branch
    %243 = sbr.rel (0) target = $region17
  $region16: #{simp_resnet9_k33.39} parent=0 // pred_region
    _
  $region17: #{simp_resnet9_k33.39} parent=0 // pred_fallthru
    _
  // Predicated region
  $region18: #{simp_resnet9_k33.39} parent=0 // pred_check
    _
  $region19: #{simp_resnet9_k33.39} parent=0 // pred_check_branch
    %245 = sbr.rel (0) target = $region21
  $region20: #{simp_resnet9_k33.39} parent=0 // pred_region
    _
  $region21: #{simp_resnet9_k33.39} parent=0 // pred_fallthru
    _
  // Predicated region
  $region22: #{simp_resnet9_k33.39} parent=0 // pred_check
    _
  $region23: #{simp_resnet9_k33.39} parent=0 // pred_check_branch
    %247 = sbr.rel (0) target = $region25
  $region24: #{simp_resnet9_k33.39} parent=0 // pred_region
    _
  $region25: #{simp_resnet9_k33.39} parent=0 // pred_fallthru
    _
  // Predicated region
  $region26: #{simp_resnet9_k33.39} parent=0 // pred_check
    _
  $region27: #{simp_resnet9_k33.39} parent=0 // pred_check_branch
    %249 = sbr.rel (0) target = $region29
  $region28: #{simp_resnet9_k33.39} parent=0 // pred_region
    _
  $region29: #{simp_resnet9_k33.39} parent=0 // pred_fallthru
    _

// kernel: simp_resnet9_k33.40
$region0: #{simp_resnet9_k33.40}
  #allocation0 [shape = 'u32[]', space=smem, size = 0x4, offset = 0x4, fixed_abs, tag = 'smem constant byte address 0x4 - core index']
  #allocation1 [shape = 'u32[72,128]{1,0:T(1,128)}', space=vmem, size = 0x9000, scoped, tag = 'internal scratch']
  %s0 = inlined_call_operand.vmem [shape: f32[32,256], index: 0, kind: input, shape index: {}]
  %s1 = inlined_call_operand.vmem [shape: f32[2,256], index: 1, kind: input, shape index: {}]
  %s2 = inlined_call_operand.vmem [shape: f32[2,256], index: 2, kind: input, shape index: {}]
  %s3 = inlined_call_operand.vmem [shape: bf16[32,256], index: 3, kind: input, shape index: {}]
  %s4 = inlined_call_operand.vmem [shape: bf16[32,256], index: 4, kind: output, shape index: {}]
  %s5 = sld [smem:[#allocation0]]
  $region26: #{simp_resnet9_k33.40} parent=0
    _
  %s7 = ssub.s32 1, %s5
  %s8 = scalar_select 0, %s7, %s5
  // Predicated region
  $region2: #{simp_resnet9_k33.40} parent=0 // pred_check
    _
  $region3: #{simp_resnet9_k33.40} parent=0 // pred_check_branch
    %10 = sbr.rel (0) target = $region5
  $region4: #{simp_resnet9_k33.40} parent=0 // pred_region
    _
  $region5: #{simp_resnet9_k33.40} parent=0 // pred_fallthru
    _
  // Predicated region
  $region6: #{simp_resnet9_k33.40} parent=0 // pred_check
    _
  $region7: #{simp_resnet9_k33.40} parent=0 // pred_check_branch
    %12 = sbr.rel (0) target = $region9
  $region8: #{simp_resnet9_k33.40} parent=0 // pred_region
    _
  $region9: #{simp_resnet9_k33.40} parent=0 // pred_fallthru
    _
  // Predicated region
  $region10: #{simp_resnet9_k33.40} parent=0 // pred_check
    _
  $region11: #{simp_resnet9_k33.40} parent=0 // pred_check_branch
    %14 = sbr.rel (0) target = $region13
  $region12: #{simp_resnet9_k33.40} parent=0 // pred_region
    _
  $region13: #{simp_resnet9_k33.40} parent=0 // pred_fallthru
    _
  // Predicated region
  $region14: #{simp_resnet9_k33.40} parent=0 // pred_check
    _
  $region15: #{simp_resnet9_k33.40} parent=0 // pred_check_branch
    %16 = sbr.rel (0) target = $region17
  $region16: #{simp_resnet9_k33.40} parent=0 // pred_region
    _
  $region17: #{simp_resnet9_k33.40} parent=0 // pred_fallthru
    _
  %v17 = vld [vmem:[%s0] sm:$0xff]
  %v18 = vld [vmem:[%s0 + $0x8] sm:$0xff]
  %v19 = vld [vmem:[%s0 + $0x10] sm:$0xff]
  %v20 = vld [vmem:[%s0 + $0x18] sm:$0xff]
  %v21 = vld [vmem:[%s0 + $0x20] sm:$0xff]
  %v22 = vld [vmem:[%s0 + $0x28] sm:$0xff]
  %v23 = vld [vmem:[%s0 + $0x30] sm:$0xff]
  %v24 = vld [vmem:[%s0 + $0x38] sm:$0xff]
  %v25 = vld [vmem:[%s1] ss:$2 sm:$0x3]
  %v26 = vmul.f32 %v25, 0.03125
  %s27 = scalar_lea.vmem %s1, 1
  %v28 = vld [vmem:[%s27] ss:$2 sm:$0x3]
  %v29 = vmul.f32 %v28, 0.03125
  %v30 = vmul.f32 %v26, %v26
  %v31 = vsub.f32 %v29, %v30
  %v32 = vld [vmem:[%s2] ss:$2 sm:$0x3]
  %v33 = vadd.f32 %v31, 1e-05
  %v34 = vrsqrt.pop %v33
  %v35 = vmul.f32 %v34, %v33
  %v36 = vmul.f32 %v35, %v34
  %v37 = vmul.f32 0.5, %v36
  %v38 = vsub.f32 1.5, %v37
  %v39 = vmul.f32 %v34, %v38
  %vm40 = vweird.f32 %v33
  %vm41 = vweird.f32 %v34
  %vm42 = vmor %vm40, %vm41
  %v43 = vsel %vm42, %v34, %v39
  %v44 = vmul.f32 %v32, %v43
  %s45 = scalar_lea.vmem %s2, 1
  %v46 = vld [vmem:[%s45] ss:$2 sm:$0x3]
  %v47 = vmul.f32 %v26, %v44
  %v48 = vsub.f32 %v46, %v47
  %v50 = vperm.slane %v44, 0
  %v51 = vperm.slane %v44, 1
  %v54 = vmul.f32 %v17, %v50
  %v55 = vmul.f32 %v18, %v51
  %v56 = vmul.f32 %v19, %v50
  %v57 = vmul.f32 %v20, %v51
  %v58 = vmul.f32 %v21, %v50
  %v59 = vmul.f32 %v22, %v51
  %v60 = vmul.f32 %v23, %v50
  %v61 = vmul.f32 %v24, %v51
  %v63 = vperm.slane %v48, 0
  %v64 = vperm.slane %v48, 1
  %v67 = vadd.f32 %v54, %v63
  %v68 = vadd.f32 %v55, %v64
  %v69 = vadd.f32 %v56, %v63
  %v70 = vadd.f32 %v57, %v64
  %v71 = vadd.f32 %v58, %v63
  %v72 = vadd.f32 %v59, %v64
  %v73 = vadd.f32 %v60, %v63
  %v74 = vadd.f32 %v61, %v64
  %v75 = vmax.f32 %v67, 0.0
  %v76 = vmax.f32 %v68, 0.0
  %v77 = vmax.f32 %v69, 0.0
  %v78 = vmax.f32 %v70, 0.0
  %v79 = vmax.f32 %v71, 0.0
  %v80 = vmax.f32 %v72, 0.0
  %v81 = vmax.f32 %v73, 0.0
  %v82 = vmax.f32 %v74, 0.0
  %v83 = vld [vmem:[%s3] sm:$0xff]
  %v84 = vld [vmem:[%s3 + $0x8] sm:$0xff]
  %v85 = vld [vmem:[%s3 + $0x10] sm:$0xff]
  %v86 = vld [vmem:[%s3 + $0x18] sm:$0xff]
  %v87 = vunpack.c.l.bf16 %v83
  %v88 = vunpack.c.h.bf16 %v83
  %v89 = vunpack.c.l.bf16 %v84
  %v90 = vunpack.c.h.bf16 %v84
  %v91 = vunpack.c.l.bf16 %v85
  %v92 = vunpack.c.h.bf16 %v85
  %v93 = vunpack.c.l.bf16 %v86
  %v94 = vunpack.c.h.bf16 %v86
  %v95 = vadd.f32 %v87, %v75
  %v96 = vadd.f32 %v88, %v76
  %v97 = vadd.f32 %v89, %v77
  %v98 = vadd.f32 %v90, %v78
  %v99 = vadd.f32 %v91, %v79
  %v100 = vadd.f32 %v92, %v80
  %v101 = vadd.f32 %v93, %v81
  %v102 = vadd.f32 %v94, %v82
  %v103 = vpack.c.bf16 %v96, %v95
  %v104 = vpack.c.bf16 %v98, %v97
  %v105 = vpack.c.bf16 %v100, %v99
  %v106 = vpack.c.bf16 %v102, %v101
  %107 = vst [vmem:[%s4] sm:$0xff] %v103
  %108 = vst [vmem:[%s4 + $0x8] sm:$0xff] %v104
  %109 = vst [vmem:[%s4 + $0x10] sm:$0xff] %v105
  %110 = vst [vmem:[%s4 + $0x18] sm:$0xff] %v106
  // Predicated region
  $region18: #{simp_resnet9_k33.40} parent=0 // pred_check
    _
  $region19: #{simp_resnet9_k33.40} parent=0 // pred_check_branch
    %112 = sbr.rel (0) target = $region21
  $region20: #{simp_resnet9_k33.40} parent=0 // pred_region
    _
  $region21: #{simp_resnet9_k33.40} parent=0 // pred_fallthru
    _
  // Predicated region
  $region22: #{simp_resnet9_k33.40} parent=0 // pred_check
    _
  $region23: #{simp_resnet9_k33.40} parent=0 // pred_check_branch
    %114 = sbr.rel (0) target = $region25
  $region24: #{simp_resnet9_k33.40} parent=0 // pred_region
    _
  $region25: #{simp_resnet9_k33.40} parent=0 // pred_fallthru
    _

// kernel: simp_resnet9_k33.37
$region0: #{simp_resnet9_k33.37}
  #allocation0 [shape = 'u32[]', space=smem, size = 0x4, offset = 0x4, fixed_abs, tag = 'smem constant byte address 0x4 - core index']
  #allocation1 [shape = 'u32[72,128]{1,0:T(1,128)}', space=vmem, size = 0x9000, scoped, tag = 'internal scratch']
  %s0 = inlined_call_operand.vmem [shape: bf16[32,1152], index: 0, kind: input, shape index: {}]
  %s1 = inlined_call_operand.vmem [shape: bf16[1152,128], index: 1, kind: input, shape index: {}]
  %s2 = inlined_call_operand.vmem [shape: f32[32,128], index: 2, kind: output, shape index: {0}]
  %s3 = inlined_call_operand.vmem [shape: f32[2,128], index: 3, kind: output, shape index: {1}]
  %4 = xla_tuple %s2, %s3
  %s5 = sld [smem:[#allocation0]]
  $region30: #{simp_resnet9_k33.37} parent=0
    _
  %s7 = ssub.s32 1, %s5
  %s8 = scalar_select 0, %s7, %s5
  // Predicated region
  $region2: #{simp_resnet9_k33.37} parent=0 // pred_check
    _
  $region3: #{simp_resnet9_k33.37} parent=0 // pred_check_branch
    %10 = sbr.rel (0) target = $region5
  $region4: #{simp_resnet9_k33.37} parent=0 // pred_region
    _
  $region5: #{simp_resnet9_k33.37} parent=0 // pred_fallthru
    _
  // Predicated region
  $region6: #{simp_resnet9_k33.37} parent=0 // pred_check
    _
  $region7: #{simp_resnet9_k33.37} parent=0 // pred_check_branch
    %12 = sbr.rel (0) target = $region9
  $region8: #{simp_resnet9_k33.37} parent=0 // pred_region
    _
  $region9: #{simp_resnet9_k33.37} parent=0 // pred_fallthru
    _
  %p13 = scmp.eq.s32.totalorder 0, 0
  // Predicated region
  $region10: #{simp_resnet9_k33.37} parent=0 // pred_check
    %p14 = pneg %p13
  $region11: #{simp_resnet9_k33.37} parent=0 // pred_check_branch
    %16 = sbr.rel (%p14) target = $region13
  $region12: #{simp_resnet9_k33.37} parent=0 // pred_region
    %17 = vst [vmem:[%s3] sm:$0x3] 0.0
  $region13: #{simp_resnet9_k33.37} parent=0 // pred_fallthru
    _
  %v18 = vld [vmem:[%s0] sm:$0xff]
  %v19 = vld [vmem:[%s0 + $0x8] sm:$0xff]
  %v20 = vld [vmem:[%s0 + $0x10] sm:$0xff]
  %v21 = vld [vmem:[%s0 + $0x18] sm:$0xff]
  %v22 = vld [vmem:[%s0 + $0x20] sm:$0xf]
  %v23 = vld [vmem:[%s0 + $0x24] sm:$0xff]
  %v24 = vld [vmem:[%s0 + $0x2c] sm:$0xff]
  %v25 = vld [vmem:[%s0 + $0x34] sm:$0xff]
  %v26 = vld [vmem:[%s0 + $0x3c] sm:$0xff]
  %v27 = vld [vmem:[%s0 + $0x44] sm:$0xf]
  %v28 = vld [vmem:[%s0 + $0x48] sm:$0xff]
  %v29 = vld [vmem:[%s0 + $0x50] sm:$0xff]
  %v30 = vld [vmem:[%s0 + $0x58] sm:$0xff]
  %v31 = vld [vmem:[%s0 + $0x60] sm:$0xff]
  %v32 = vld [vmem:[%s0 + $0x68] sm:$0xf]
  %v33 = vld [vmem:[%s0 + $0x6c] sm:$0xff]
  %v34 = vld [vmem:[%s0 + $0x74] sm:$0xff]
  %v35 = vld [vmem:[%s0 + $0x7c] sm:$0xff]
  %v36 = vld [vmem:[%s0 + $0x84] sm:$0xff]
  %v37 = vld [vmem:[%s0 + $0x8c] sm:$0xf]
  %v38 = vld [vmem:[%s1] sm:$0xf]
  %v39 = vld [vmem:[%s1 + $0x4] sm:$0xf]
  %v40 = vld [vmem:[%s1 + $0x8] sm:$0xf]
  %v41 = vld [vmem:[%s1 + $0xc] sm:$0xf]
  %v42 = vld [vmem:[%s1 + $0x10] sm:$0xf]
  %v43 = vld [vmem:[%s1 + $0x14] sm:$0xf]
  %v44 = vld [vmem:[%s1 + $0x18] sm:$0xf]
  %v45 = vld [vmem:[%s1 + $0x1c] sm:$0xf]
  %v46 = vld [vmem:[%s1 + $0x20] sm:$0xf]
  %v47 = vld [vmem:[%s1 + $0x24] sm:$0xf]
  %v48 = vld [vmem:[%s1 + $0x28] sm:$0xf]
  %v49 = vld [vmem:[%s1 + $0x2c] sm:$0xf]
  %v50 = vld [vmem:[%s1 + $0x30] sm:$0xf]
  %v51 = vld [vmem:[%s1 + $0x34] sm:$0xf]
  %v52 = vld [vmem:[%s1 + $0x38] sm:$0xf]
  %v53 = vld [vmem:[%s1 + $0x3c] sm:$0xf]
  %v54 = vld [vmem:[%s1 + $0x40] sm:$0xf]
  %v55 = vld [vmem:[%s1 + $0x44] sm:$0xf]
  %v56 = vld [vmem:[%s1 + $0x48] sm:$0xf]
  %v57 = vld [vmem:[%s1 + $0x4c] sm:$0xf]
  %v58 = vld [vmem:[%s1 + $0x50] sm:$0xf]
  %v59 = vld [vmem:[%s1 + $0x54] sm:$0xf]
  %v60 = vld [vmem:[%s1 + $0x58] sm:$0xf]
  %v61 = vld [vmem:[%s1 + $0x5c] sm:$0xf]
  %v62 = vld [vmem:[%s1 + $0x60] sm:$0xf]
  %v63 = vld [vmem:[%s1 + $0x64] sm:$0xf]
  %v64 = vld [vmem:[%s1 + $0x68] sm:$0xf]
  %v65 = vld [vmem:[%s1 + $0x6c] sm:$0xf]
  %v66 = vld [vmem:[%s1 + $0x70] sm:$0xf]
  %v67 = vld [vmem:[%s1 + $0x74] sm:$0xf]
  %v68 = vld [vmem:[%s1 + $0x78] sm:$0xf]
  %v69 = vld [vmem:[%s1 + $0x7c] sm:$0xf]
  %v70 = vld [vmem:[%s1 + $0x80] sm:$0xf]
  %v71 = vld [vmem:[%s1 + $0x84] sm:$0xf]
  %v72 = vld [vmem:[%s1 + $0x88] sm:$0xf]
  %v73 = vld [vmem:[%s1 + $0x8c] sm:$0xf]
  %v74 = vld [vmem:[%s1 + $0x90] sm:$0xf]
  %v75 = vld [vmem:[%s1 + $0x94] sm:$0xf]
  %v76 = vld [vmem:[%s1 + $0x98] sm:$0xf]
  %v77 = vld [vmem:[%s1 + $0x9c] sm:$0xf]
  %v78 = vld [vmem:[%s1 + $0xa0] sm:$0xf]
  %v79 = vld [vmem:[%s1 + $0xa4] sm:$0xf]
  %v80 = vld [vmem:[%s1 + $0xa8] sm:$0xf]
  %v81 = vld [vmem:[%s1 + $0xac] sm:$0xf]
  %v82 = vld [vmem:[%s1 + $0xb0] sm:$0xf]
  %v83 = vld [vmem:[%s1 + $0xb4] sm:$0xf]
  %v84 = vld [vmem:[%s1 + $0xb8] sm:$0xf]
  %v85 = vld [vmem:[%s1 + $0xbc] sm:$0xf]
  %v86 = vld [vmem:[%s1 + $0xc0] sm:$0xf]
  %v87 = vld [vmem:[%s1 + $0xc4] sm:$0xf]
  %v88 = vld [vmem:[%s1 + $0xc8] sm:$0xf]
  %v89 = vld [vmem:[%s1 + $0xcc] sm:$0xf]
  %v90 = vld [vmem:[%s1 + $0xd0] sm:$0xf]
  %v91 = vld [vmem:[%s1 + $0xd4] sm:$0xf]
  %v92 = vld [vmem:[%s1 + $0xd8] sm:$0xf]
  %v93 = vld [vmem:[%s1 + $0xdc] sm:$0xf]
  %v94 = vld [vmem:[%s1 + $0xe0] sm:$0xf]
  %v95 = vld [vmem:[%s1 + $0xe4] sm:$0xf]
  %v96 = vld [vmem:[%s1 + $0xe8] sm:$0xf]
  %v97 = vld [vmem:[%s1 + $0xec] sm:$0xf]
  %v98 = vld [vmem:[%s1 + $0xf0] sm:$0xf]
  %v99 = vld [vmem:[%s1 + $0xf4] sm:$0xf]
  %v100 = vld [vmem:[%s1 + $0xf8] sm:$0xf]
  %v101 = vld [vmem:[%s1 + $0xfc] sm:$0xf]
  %v102 = vld [vmem:[%s1 + $0x100] sm:$0xf]
  %v103 = vld [vmem:[%s1 + $0x104] sm:$0xf]
  %v104 = vld [vmem:[%s1 + $0x108] sm:$0xf]
  %v105 = vld [vmem:[%s1 + $0x10c] sm:$0xf]
  %v106 = vld [vmem:[%s1 + $0x110] sm:$0xf]
  %v107 = vld [vmem:[%s1 + $0x114] sm:$0xf]
  %v108 = vld [vmem:[%s1 + $0x118] sm:$0xf]
  %v109 = vld [vmem:[%s1 + $0x11c] sm:$0xf]
  %v110 = vld [vmem:[%s1 + $0x120] sm:$0xf]
  %v111 = vld [vmem:[%s1 + $0x124] sm:$0xf]
  %v112 = vld [vmem:[%s1 + $0x128] sm:$0xf]
  %v113 = vld [vmem:[%s1 + $0x12c] sm:$0xf]
  %v114 = vld [vmem:[%s1 + $0x130] sm:$0xf]
  %v115 = vld [vmem:[%s1 + $0x134] sm:$0xf]
  %v116 = vld [vmem:[%s1 + $0x138] sm:$0xf]
  %v117 = vld [vmem:[%s1 + $0x13c] sm:$0xf]
  %v118 = vld [vmem:[%s1 + $0x140] sm:$0xf]
  %v119 = vld [vmem:[%s1 + $0x144] sm:$0xf]
  %v120 = vld [vmem:[%s1 + $0x148] sm:$0xf]
  %v121 = vld [vmem:[%s1 + $0x14c] sm:$0xf]
  %v122 = vld [vmem:[%s1 + $0x150] sm:$0xf]
  %v123 = vld [vmem:[%s1 + $0x154] sm:$0xf]
  %v124 = vld [vmem:[%s1 + $0x158] sm:$0xf]
  %v125 = vld [vmem:[%s1 + $0x15c] sm:$0xf]
  %v126 = vld [vmem:[%s1 + $0x160] sm:$0xf]
  %v127 = vld [vmem:[%s1 + $0x164] sm:$0xf]
  %v128 = vld [vmem:[%s1 + $0x168] sm:$0xf]
  %v129 = vld [vmem:[%s1 + $0x16c] sm:$0xf]
  %v130 = vld [vmem:[%s1 + $0x170] sm:$0xf]
  %v131 = vld [vmem:[%s1 + $0x174] sm:$0xf]
  %v132 = vld [vmem:[%s1 + $0x178] sm:$0xf]
  %v133 = vld [vmem:[%s1 + $0x17c] sm:$0xf]
  %v134 = vld [vmem:[%s1 + $0x180] sm:$0xf]
  %v135 = vld [vmem:[%s1 + $0x184] sm:$0xf]
  %v136 = vld [vmem:[%s1 + $0x188] sm:$0xf]
  %v137 = vld [vmem:[%s1 + $0x18c] sm:$0xf]
  %v138 = vld [vmem:[%s1 + $0x190] sm:$0xf]
  %v139 = vld [vmem:[%s1 + $0x194] sm:$0xf]
  %v140 = vld [vmem:[%s1 + $0x198] sm:$0xf]
  %v141 = vld [vmem:[%s1 + $0x19c] sm:$0xf]
  %v142 = vld [vmem:[%s1 + $0x1a0] sm:$0xf]
  %v143 = vld [vmem:[%s1 + $0x1a4] sm:$0xf]
  %v144 = vld [vmem:[%s1 + $0x1a8] sm:$0xf]
  %v145 = vld [vmem:[%s1 + $0x1ac] sm:$0xf]
  %v146 = vld [vmem:[%s1 + $0x1b0] sm:$0xf]
  %v147 = vld [vmem:[%s1 + $0x1b4] sm:$0xf]
  %v148 = vld [vmem:[%s1 + $0x1b8] sm:$0xf]
  %v149 = vld [vmem:[%s1 + $0x1bc] sm:$0xf]
  %v150 = vld [vmem:[%s1 + $0x1c0] sm:$0xf]
  %v151 = vld [vmem:[%s1 + $0x1c4] sm:$0xf]
  %v152 = vld [vmem:[%s1 + $0x1c8] sm:$0xf]
  %v153 = vld [vmem:[%s1 + $0x1cc] sm:$0xf]
  %v154 = vld [vmem:[%s1 + $0x1d0] sm:$0xf]
  %v155 = vld [vmem:[%s1 + $0x1d4] sm:$0xf]
  %v156 = vld [vmem:[%s1 + $0x1d8] sm:$0xf]
  %v157 = vld [vmem:[%s1 + $0x1dc] sm:$0xf]
  %v158 = vld [vmem:[%s1 + $0x1e0] sm:$0xf]
  %v159 = vld [vmem:[%s1 + $0x1e4] sm:$0xf]
  %v160 = vld [vmem:[%s1 + $0x1e8] sm:$0xf]
  %v161 = vld [vmem:[%s1 + $0x1ec] sm:$0xf]
  %v162 = vld [vmem:[%s1 + $0x1f0] sm:$0xf]
  %v163 = vld [vmem:[%s1 + $0x1f4] sm:$0xf]
  %v164 = vld [vmem:[%s1 + $0x1f8] sm:$0xf]
  %v165 = vld [vmem:[%s1 + $0x1fc] sm:$0xf]
  %v166 = vld [vmem:[%s1 + $0x200] sm:$0xf]
  %v167 = vld [vmem:[%s1 + $0x204] sm:$0xf]
  %v168 = vld [vmem:[%s1 + $0x208] sm:$0xf]
  %v169 = vld [vmem:[%s1 + $0x20c] sm:$0xf]
  %v170 = vld [vmem:[%s1 + $0x210] sm:$0xf]
  %v171 = vld [vmem:[%s1 + $0x214] sm:$0xf]
  %v172 = vld [vmem:[%s1 + $0x218] sm:$0xf]
  %v173 = vld [vmem:[%s1 + $0x21c] sm:$0xf]
  %v174 = vld [vmem:[%s1 + $0x220] sm:$0xf]
  %v175 = vld [vmem:[%s1 + $0x224] sm:$0xf]
  %v176 = vld [vmem:[%s1 + $0x228] sm:$0xf]
  %v177 = vld [vmem:[%s1 + $0x22c] sm:$0xf]
  %v178 = vld [vmem:[%s1 + $0x230] sm:$0xf]
  %v179 = vld [vmem:[%s1 + $0x234] sm:$0xf]
  %v180 = vld [vmem:[%s1 + $0x238] sm:$0xf]
  %v181 = vld [vmem:[%s1 + $0x23c] sm:$0xf]
  %v202 = vunpack.c.l.b16 %v18
  %v203 = vunpack.c.h.b16 %v18
  %v204 = vunpack.c.l.b16 %v19
  %v205 = vunpack.c.h.b16 %v19
  %v206 = vunpack.c.l.b16 %v20
  %v207 = vunpack.c.h.b16 %v20
  %v208 = vunpack.c.l.b16 %v21
  %v209 = vunpack.c.h.b16 %v21
  %v210 = vunpack.c.l.b16 %v22
  %v211 = vunpack.c.l.b16 %v23
  %v212 = vunpack.c.h.b16 %v23
  %v213 = vunpack.c.l.b16 %v24
  %v214 = vunpack.c.h.b16 %v24
  %v215 = vunpack.c.l.b16 %v25
  %v216 = vunpack.c.h.b16 %v25
  %v217 = vunpack.c.l.b16 %v26
  %v218 = vunpack.c.h.b16 %v26
  %v219 = vunpack.c.l.b16 %v27
  %v220 = vunpack.c.l.b16 %v28
  %v221 = vunpack.c.h.b16 %v28
  %v222 = vunpack.c.l.b16 %v29
  %v223 = vunpack.c.h.b16 %v29
  %v224 = vunpack.c.l.b16 %v30
  %v225 = vunpack.c.h.b16 %v30
  %v226 = vunpack.c.l.b16 %v31
  %v227 = vunpack.c.h.b16 %v31
  %v228 = vunpack.c.l.b16 %v32
  %v229 = vunpack.c.l.b16 %v33
  %v230 = vunpack.c.h.b16 %v33
  %v231 = vunpack.c.l.b16 %v34
  %v232 = vunpack.c.h.b16 %v34
  %v233 = vunpack.c.l.b16 %v35
  %v234 = vunpack.c.h.b16 %v35
  %v235 = vunpack.c.l.b16 %v36
  %v236 = vunpack.c.h.b16 %v36
  %v237 = vunpack.c.l.b16 %v37
  %v238 = vpack.c.b16 %v211, %v202
  %v239 = vpack.c.b16 %v212, %v203
  %v240 = vpack.c.b16 %v213, %v204
  %v241 = vpack.c.b16 %v214, %v205
  %v242 = vpack.c.b16 %v215, %v206
  %v243 = vpack.c.b16 %v216, %v207
  %v244 = vpack.c.b16 %v217, %v208
  %v245 = vpack.c.b16 %v218, %v209
  %v246 = vpack.c.b16 %v219, %v210
  %v247 = vpack.c.b16 %v229, %v220
  %v248 = vpack.c.b16 %v230, %v221
  %v249 = vpack.c.b16 %v231, %v222
  %v250 = vpack.c.b16 %v232, %v223
  %v251 = vpack.c.b16 %v233, %v224
  %v252 = vpack.c.b16 %v234, %v225
  %v253 = vpack.c.b16 %v235, %v226
  %v254 = vpack.c.b16 %v236, %v227
  %v255 = vpack.c.b16 %v237, %v228
  %v418 = vunpack.c.l.b16 %v38
  %v419 = vunpack.c.l.b16 %v39
  %v420 = vunpack.c.l.b16 %v40
  %v421 = vunpack.c.l.b16 %v41
  %v422 = vunpack.c.l.b16 %v42
  %v423 = vunpack.c.l.b16 %v43
  %v424 = vunpack.c.l.b16 %v44
  %v425 = vunpack.c.l.b16 %v45
  %v426 = vunpack.c.l.b16 %v46
  %v427 = vunpack.c.l.b16 %v47
  %v428 = vunpack.c.l.b16 %v48
  %v429 = vunpack.c.l.b16 %v49
  %v430 = vunpack.c.l.b16 %v50
  %v431 = vunpack.c.l.b16 %v51
  %v432 = vunpack.c.l.b16 %v52
  %v433 = vunpack.c.l.b16 %v53
  %v434 = vunpack.c.l.b16 %v54
  %v435 = vunpack.c.l.b16 %v55
  %v436 = vunpack.c.l.b16 %v56
  %v437 = vunpack.c.l.b16 %v57
  %v438 = vunpack.c.l.b16 %v58
  %v439 = vunpack.c.l.b16 %v59
  %v440 = vunpack.c.l.b16 %v60
  %v441 = vunpack.c.l.b16 %v61
  %v442 = vunpack.c.l.b16 %v62
  %v443 = vunpack.c.l.b16 %v63
  %v444 = vunpack.c.l.b16 %v64
  %v445 = vunpack.c.l.b16 %v65
  %v446 = vunpack.c.l.b16 %v66
  %v447 = vunpack.c.l.b16 %v67
  %v448 = vunpack.c.l.b16 %v68
  %v449 = vunpack.c.l.b16 %v69
  %v450 = vunpack.c.l.b16 %v70
  %v451 = vunpack.c.l.b16 %v71
  %v452 = vunpack.c.l.b16 %v72
  %v453 = vunpack.c.l.b16 %v73
  %v454 = vunpack.c.l.b16 %v74
  %v455 = vunpack.c.l.b16 %v75
  %v456 = vunpack.c.l.b16 %v76
  %v457 = vunpack.c.l.b16 %v77
  %v458 = vunpack.c.l.b16 %v78
  %v459 = vunpack.c.l.b16 %v79
  %v460 = vunpack.c.l.b16 %v80
  %v461 = vunpack.c.l.b16 %v81
  %v462 = vunpack.c.l.b16 %v82
  %v463 = vunpack.c.l.b16 %v83
  %v464 = vunpack.c.l.b16 %v84
  %v465 = vunpack.c.l.b16 %v85
  %v466 = vunpack.c.l.b16 %v86
  %v467 = vunpack.c.l.b16 %v87
  %v468 = vunpack.c.l.b16 %v88
  %v469 = vunpack.c.l.b16 %v89
  %v470 = vunpack.c.l.b16 %v90
  %v471 = vunpack.c.l.b16 %v91
  %v472 = vunpack.c.l.b16 %v92
  %v473 = vunpack.c.l.b16 %v93
  %v474 = vunpack.c.l.b16 %v94
  %v475 = vunpack.c.l.b16 %v95
  %v476 = vunpack.c.l.b16 %v96
  %v477 = vunpack.c.l.b16 %v97
  %v478 = vunpack.c.l.b16 %v98
  %v479 = vunpack.c.l.b16 %v99
  %v480 = vunpack.c.l.b16 %v100
  %v481 = vunpack.c.l.b16 %v101
  %v482 = vunpack.c.l.b16 %v102
  %v483 = vunpack.c.l.b16 %v103
  %v484 = vunpack.c.l.b16 %v104
  %v485 = vunpack.c.l.b16 %v105
  %v486 = vunpack.c.l.b16 %v106
  %v487 = vunpack.c.l.b16 %v107
  %v488 = vunpack.c.l.b16 %v108
  %v489 = vunpack.c.l.b16 %v109
  %v490 = vunpack.c.l.b16 %v110
  %v491 = vunpack.c.l.b16 %v111
  %v492 = vunpack.c.l.b16 %v112
  %v493 = vunpack.c.l.b16 %v113
  %v494 = vunpack.c.l.b16 %v114
  %v495 = vunpack.c.l.b16 %v115
  %v496 = vunpack.c.l.b16 %v116
  %v497 = vunpack.c.l.b16 %v117
  %v498 = vunpack.c.l.b16 %v118
  %v499 = vunpack.c.l.b16 %v119
  %v500 = vunpack.c.l.b16 %v120
  %v501 = vunpack.c.l.b16 %v121
  %v502 = vunpack.c.l.b16 %v122
  %v503 = vunpack.c.l.b16 %v123
  %v504 = vunpack.c.l.b16 %v124
  %v505 = vunpack.c.l.b16 %v125
  %v506 = vunpack.c.l.b16 %v126
  %v507 = vunpack.c.l.b16 %v127
  %v508 = vunpack.c.l.b16 %v128
  %v509 = vunpack.c.l.b16 %v129
  %v510 = vunpack.c.l.b16 %v130
  %v511 = vunpack.c.l.b16 %v131
  %v512 = vunpack.c.l.b16 %v132
  %v513 = vunpack.c.l.b16 %v133
  %v514 = vunpack.c.l.b16 %v134
  %v515 = vunpack.c.l.b16 %v135
  %v516 = vunpack.c.l.b16 %v136
  %v517 = vunpack.c.l.b16 %v137
  %v518 = vunpack.c.l.b16 %v138
  %v519 = vunpack.c.l.b16 %v139
  %v520 = vunpack.c.l.b16 %v140
  %v521 = vunpack.c.l.b16 %v141
  %v522 = vunpack.c.l.b16 %v142
  %v523 = vunpack.c.l.b16 %v143
  %v524 = vunpack.c.l.b16 %v144
  %v525 = vunpack.c.l.b16 %v145
  %v526 = vunpack.c.l.b16 %v146
  %v527 = vunpack.c.l.b16 %v147
  %v528 = vunpack.c.l.b16 %v148
  %v529 = vunpack.c.l.b16 %v149
  %v530 = vunpack.c.l.b16 %v150
  %v531 = vunpack.c.l.b16 %v151
  %v532 = vunpack.c.l.b16 %v152
  %v533 = vunpack.c.l.b16 %v153
  %v534 = vunpack.c.l.b16 %v154
  %v535 = vunpack.c.l.b16 %v155
  %v536 = vunpack.c.l.b16 %v156
  %v537 = vunpack.c.l.b16 %v157
  %v538 = vunpack.c.l.b16 %v158
  %v539 = vunpack.c.l.b16 %v159
  %v540 = vunpack.c.l.b16 %v160
  %v541 = vunpack.c.l.b16 %v161
  %v542 = vunpack.c.l.b16 %v162
  %v543 = vunpack.c.l.b16 %v163
  %v544 = vunpack.c.l.b16 %v164
  %v545 = vunpack.c.l.b16 %v165
  %v546 = vunpack.c.l.b16 %v166
  %v547 = vunpack.c.l.b16 %v167
  %v548 = vunpack.c.l.b16 %v168
  %v549 = vunpack.c.l.b16 %v169
  %v550 = vunpack.c.l.b16 %v170
  %v551 = vunpack.c.l.b16 %v171
  %v552 = vunpack.c.l.b16 %v172
  %v553 = vunpack.c.l.b16 %v173
  %v554 = vunpack.c.l.b16 %v174
  %v555 = vunpack.c.l.b16 %v175
  %v556 = vunpack.c.l.b16 %v176
  %v557 = vunpack.c.l.b16 %v177
  %v558 = vunpack.c.l.b16 %v178
  %v559 = vunpack.c.l.b16 %v179
  %v560 = vunpack.c.l.b16 %v180
  %v561 = vunpack.c.l.b16 %v181
  %v562 = vpack.c.b16 %v419, %v418
  %v563 = vpack.c.b16 %v421, %v420
  %v564 = vpack.c.b16 %v423, %v422
  %v565 = vpack.c.b16 %v425, %v424
  %v566 = vpack.c.b16 %v427, %v426
  %v567 = vpack.c.b16 %v429, %v428
  %v568 = vpack.c.b16 %v431, %v430
  %v569 = vpack.c.b16 %v433, %v432
  %v570 = vpack.c.b16 %v435, %v434
  %v571 = vpack.c.b16 %v437, %v436
  %v572 = vpack.c.b16 %v439, %v438
  %v573 = vpack.c.b16 %v441, %v440
  %v574 = vpack.c.b16 %v443, %v442
  %v575 = vpack.c.b16 %v445, %v444
  %v576 = vpack.c.b16 %v447, %v446
  %v577 = vpack.c.b16 %v449, %v448
  %v578 = vpack.c.b16 %v451, %v450
  %v579 = vpack.c.b16 %v453, %v452
  %v580 = vpack.c.b16 %v455, %v454
  %v581 = vpack.c.b16 %v457, %v456
  %v582 = vpack.c.b16 %v459, %v458
  %v583 = vpack.c.b16 %v461, %v460
  %v584 = vpack.c.b16 %v463, %v462
  %v585 = vpack.c.b16 %v465, %v464
  %v586 = vpack.c.b16 %v467, %v466
  %v587 = vpack.c.b16 %v469, %v468
  %v588 = vpack.c.b16 %v471, %v470
  %v589 = vpack.c.b16 %v473, %v472
  %v590 = vpack.c.b16 %v475, %v474
  %v591 = vpack.c.b16 %v477, %v476
  %v592 = vpack.c.b16 %v479, %v478
  %v593 = vpack.c.b16 %v481, %v480
  %v594 = vpack.c.b16 %v483, %v482
  %v595 = vpack.c.b16 %v485, %v484
  %v596 = vpack.c.b16 %v487, %v486
  %v597 = vpack.c.b16 %v489, %v488
  %v598 = vpack.c.b16 %v491, %v490
  %v599 = vpack.c.b16 %v493, %v492
  %v600 = vpack.c.b16 %v495, %v494
  %v601 = vpack.c.b16 %v497, %v496
  %v602 = vpack.c.b16 %v499, %v498
  %v603 = vpack.c.b16 %v501, %v500
  %v604 = vpack.c.b16 %v503, %v502
  %v605 = vpack.c.b16 %v505, %v504
  %v606 = vpack.c.b16 %v507, %v506
  %v607 = vpack.c.b16 %v509, %v508
  %v608 = vpack.c.b16 %v511, %v510
  %v609 = vpack.c.b16 %v513, %v512
  %v610 = vpack.c.b16 %v515, %v514
  %v611 = vpack.c.b16 %v517, %v516
  %v612 = vpack.c.b16 %v519, %v518
  %v613 = vpack.c.b16 %v521, %v520
  %v614 = vpack.c.b16 %v523, %v522
  %v615 = vpack.c.b16 %v525, %v524
  %v616 = vpack.c.b16 %v527, %v526
  %v617 = vpack.c.b16 %v529, %v528
  %v618 = vpack.c.b16 %v531, %v530
  %v619 = vpack.c.b16 %v533, %v532
  %v620 = vpack.c.b16 %v535, %v534
  %v621 = vpack.c.b16 %v537, %v536
  %v622 = vpack.c.b16 %v539, %v538
  %v623 = vpack.c.b16 %v541, %v540
  %v624 = vpack.c.b16 %v543, %v542
  %v625 = vpack.c.b16 %v545, %v544
  %v626 = vpack.c.b16 %v547, %v546
  %v627 = vpack.c.b16 %v549, %v548
  %v628 = vpack.c.b16 %v551, %v550
  %v629 = vpack.c.b16 %v553, %v552
  %v630 = vpack.c.b16 %v555, %v554
  %v631 = vpack.c.b16 %v557, %v556
  %v632 = vpack.c.b16 %v559, %v558
  %v633 = vpack.c.b16 %v561, %v560
  %706 = vmatpush.bf16.msra.mxu0 %v569
  %707 = vmatpush.bf16.msra.mxu0 %v568
  %708 = vmatpush.bf16.msra.mxu0 %v567
  %709 = vmatpush.bf16.msra.mxu0 %v566
  %710 = vmatpush.bf16.msra.mxu0 %v565
  %711 = vmatpush.bf16.msra.mxu0 %v564
  %712 = vmatpush.bf16.msra.mxu0 %v563
  %713 = vmatpush.bf16.msra.mxu0 %v562
  %714 = vmatmul.bf16.gmra.mxu0 %v238
  %v715 = vpop.f32.mrf.mxu0
  %v716 = vadd.f32 0.0, %v715
  %v717 = vpop.f32.mrf.mxu0
  %v718 = vadd.f32 0.0, %v717
  %719 = vmatmul.bf16.gmra.mxu0 %v247
  %v720 = vpop.f32.mrf.mxu0
  %v721 = vadd.f32 0.0, %v720
  %v722 = vpop.f32.mrf.mxu0
  %v723 = vadd.f32 0.0, %v722
  %724 = vdwg.mxu0
  %725 = vmatpush.bf16.msra.mxu0 %v577
  %726 = vmatpush.bf16.msra.mxu0 %v576
  %727 = vmatpush.bf16.msra.mxu0 %v575
  %728 = vmatpush.bf16.msra.mxu0 %v574
  %729 = vmatpush.bf16.msra.mxu0 %v573
  %730 = vmatpush.bf16.msra.mxu0 %v572
  %731 = vmatpush.bf16.msra.mxu0 %v571
  %732 = vmatpush.bf16.msra.mxu0 %v570
  %733 = vmatmul.bf16.gmra.mxu0 %v239
  %v734 = vpop.f32.mrf.mxu0
  %v735 = vadd.f32 %v716, %v734
  %v736 = vpop.f32.mrf.mxu0
  %v737 = vadd.f32 %v718, %v736
  %738 = vmatmul.bf16.gmra.mxu0 %v248
  %v739 = vpop.f32.mrf.mxu0
  %v740 = vadd.f32 %v721, %v739
  %v741 = vpop.f32.mrf.mxu0
  %v742 = vadd.f32 %v723, %v741
  %743 = vdwg.mxu0
  %744 = vmatpush.bf16.msra.mxu0 %v585
  %745 = vmatpush.bf16.msra.mxu0 %v584
  %746 = vmatpush.bf16.msra.mxu0 %v583
  %747 = vmatpush.bf16.msra.mxu0 %v582
  %748 = vmatpush.bf16.msra.mxu0 %v581
  %749 = vmatpush.bf16.msra.mxu0 %v580
  %750 = vmatpush.bf16.msra.mxu0 %v579
  %751 = vmatpush.bf16.msra.mxu0 %v578
  %752 = vmatmul.bf16.gmra.mxu0 %v240
  %v753 = vpop.f32.mrf.mxu0
  %v754 = vadd.f32 %v735, %v753
  %v755 = vpop.f32.mrf.mxu0
  %v756 = vadd.f32 %v737, %v755
  %757 = vmatmul.bf16.gmra.mxu0 %v249
  %v758 = vpop.f32.mrf.mxu0
  %v759 = vadd.f32 %v740, %v758
  %v760 = vpop.f32.mrf.mxu0
  %v761 = vadd.f32 %v742, %v760
  %762 = vdwg.mxu0
  %763 = vmatpush.bf16.msra.mxu0 %v593
  %764 = vmatpush.bf16.msra.mxu0 %v592
  %765 = vmatpush.bf16.msra.mxu0 %v591
  %766 = vmatpush.bf16.msra.mxu0 %v590
  %767 = vmatpush.bf16.msra.mxu0 %v589
  %768 = vmatpush.bf16.msra.mxu0 %v588
  %769 = vmatpush.bf16.msra.mxu0 %v587
  %770 = vmatpush.bf16.msra.mxu0 %v586
  %771 = vmatmul.bf16.gmra.mxu0 %v241
  %v772 = vpop.f32.mrf.mxu0
  %v773 = vadd.f32 %v754, %v772
  %v774 = vpop.f32.mrf.mxu0
  %v775 = vadd.f32 %v756, %v774
  %776 = vmatmul.bf16.gmra.mxu0 %v250
  %v777 = vpop.f32.mrf.mxu0
  %v778 = vadd.f32 %v759, %v777
  %v779 = vpop.f32.mrf.mxu0
  %v780 = vadd.f32 %v761, %v779
  %781 = vdwg.mxu0
  %782 = vmatpush.bf16.msra.mxu0 %v601
  %783 = vmatpush.bf16.msra.mxu0 %v600
  %784 = vmatpush.bf16.msra.mxu0 %v599
  %785 = vmatpush.bf16.msra.mxu0 %v598
  %786 = vmatpush.bf16.msra.mxu0 %v597
  %787 = vmatpush.bf16.msra.mxu0 %v596
  %788 = vmatpush.bf16.msra.mxu0 %v595
  %789 = vmatpush.bf16.msra.mxu0 %v594
  %790 = vmatmul.bf16.gmra.mxu0 %v242
  %v791 = vpop.f32.mrf.mxu0
  %v792 = vadd.f32 %v773, %v791
  %v793 = vpop.f32.mrf.mxu0
  %v794 = vadd.f32 %v775, %v793
  %795 = vmatmul.bf16.gmra.mxu0 %v251
  %v796 = vpop.f32.mrf.mxu0
  %v797 = vadd.f32 %v778, %v796
  %v798 = vpop.f32.mrf.mxu0
  %v799 = vadd.f32 %v780, %v798
  %800 = vdwg.mxu0
  %801 = vmatpush.bf16.msra.mxu0 %v609
  %802 = vmatpush.bf16.msra.mxu0 %v608
  %803 = vmatpush.bf16.msra.mxu0 %v607
  %804 = vmatpush.bf16.msra.mxu0 %v606
  %805 = vmatpush.bf16.msra.mxu0 %v605
  %806 = vmatpush.bf16.msra.mxu0 %v604
  %807 = vmatpush.bf16.msra.mxu0 %v603
  %808 = vmatpush.bf16.msra.mxu0 %v602
  %809 = vmatmul.bf16.gmra.mxu0 %v243
  %v810 = vpop.f32.mrf.mxu0
  %v811 = vadd.f32 %v792, %v810
  %v812 = vpop.f32.mrf.mxu0
  %v813 = vadd.f32 %v794, %v812
  %814 = vmatmul.bf16.gmra.mxu0 %v252
  %v815 = vpop.f32.mrf.mxu0
  %v816 = vadd.f32 %v797, %v815
  %v817 = vpop.f32.mrf.mxu0
  %v818 = vadd.f32 %v799, %v817
  %819 = vdwg.mxu0
  %820 = vmatpush.bf16.msra.mxu0 %v617
  %821 = vmatpush.bf16.msra.mxu0 %v616
  %822 = vmatpush.bf16.msra.mxu0 %v615
  %823 = vmatpush.bf16.msra.mxu0 %v614
  %824 = vmatpush.bf16.msra.mxu0 %v613
  %825 = vmatpush.bf16.msra.mxu0 %v612
  %826 = vmatpush.bf16.msra.mxu0 %v611
  %827 = vmatpush.bf16.msra.mxu0 %v610
  %828 = vmatmul.bf16.gmra.mxu0 %v244
  %v829 = vpop.f32.mrf.mxu0
  %v830 = vadd.f32 %v811, %v829
  %v831 = vpop.f32.mrf.mxu0
  %v832 = vadd.f32 %v813, %v831
  %833 = vmatmul.bf16.gmra.mxu0 %v253
  %v834 = vpop.f32.mrf.mxu0
  %v835 = vadd.f32 %v816, %v834
  %v836 = vpop.f32.mrf.mxu0
  %v837 = vadd.f32 %v818, %v836
  %838 = vdwg.mxu0
  %839 = vmatpush.bf16.msra.mxu0 %v625
  %840 = vmatpush.bf16.msra.mxu0 %v624
  %841 = vmatpush.bf16.msra.mxu0 %v623
  %842 = vmatpush.bf16.msra.mxu0 %v622
  %843 = vmatpush.bf16.msra.mxu0 %v621
  %844 = vmatpush.bf16.msra.mxu0 %v620
  %845 = vmatpush.bf16.msra.mxu0 %v619
  %846 = vmatpush.bf16.msra.mxu0 %v618
  %847 = vmatmul.bf16.gmra.mxu0 %v245
  %v848 = vpop.f32.mrf.mxu0
  %v849 = vadd.f32 %v830, %v848
  %v850 = vpop.f32.mrf.mxu0
  %v851 = vadd.f32 %v832, %v850
  %852 = vmatmul.bf16.gmra.mxu0 %v254
  %v853 = vpop.f32.mrf.mxu0
  %v854 = vadd.f32 %v835, %v853
  %v855 = vpop.f32.mrf.mxu0
  %v856 = vadd.f32 %v837, %v855
  %857 = vdwg.mxu0
  %858 = vmatpush.bf16.msra.mxu0 %v633
  %859 = vmatpush.bf16.msra.mxu0 %v632
  %860 = vmatpush.bf16.msra.mxu0 %v631
  %861 = vmatpush.bf16.msra.mxu0 %v630
  %862 = vmatpush.bf16.msra.mxu0 %v629
  %863 = vmatpush.bf16.msra.mxu0 %v628
  %864 = vmatpush.bf16.msra.mxu0 %v627
  %865 = vmatpush.bf16.msra.mxu0 %v626
  %866 = vmatmul.bf16.gmra.mxu0 %v246
  %v867 = vpop.f32.mrf.mxu0
  %v868 = vadd.f32 %v849, %v867
  %v869 = vpop.f32.mrf.mxu0
  %v870 = vadd.f32 %v851, %v869
  %871 = vmatmul.bf16.gmra.mxu0 %v255
  %v872 = vpop.f32.mrf.mxu0
  %v873 = vadd.f32 %v854, %v872
  %v874 = vpop.f32.mrf.mxu0
  %v875 = vadd.f32 %v856, %v874
  %876 = vdwg.mxu0
  %877 = vst [vmem:[%s2] sm:$0xff] %v868
  %878 = vst [vmem:[%s2 + $0x8] sm:$0xff] %v870
  %879 = vst [vmem:[%s2 + $0x10] sm:$0xff] %v873
  %880 = vst [vmem:[%s2 + $0x18] sm:$0xff] %v875
  %v881 = vld [vmem:[%s3] sm:$0x1]
  %v882 = vadd.f32 %v868, %v870
  %v883 = vadd.f32 %v882, %v873
  %v884 = vadd.f32 %v883, %v875
  %v885 = vrot.slane %v884, 4
  %v886 = vadd.f32 %v884, %v885
  %v887 = vrot.slane %v886, 2
  %v888 = vadd.f32 %v886, %v887
  %v889 = vrot.slane %v888, 1
  %v890 = vadd.f32 %v888, %v889
  %v891 = vadd.f32 %v881, %v890
  %892 = vst [vmem:[%s3] sm:$0x1] %v891
  %v893 = vld [vmem:[%s3 + $0x1] sm:$0x1]
  %v894 = vmul.f32 %v868, %v868
  %v895 = vmul.f32 %v870, %v870
  %v896 = vmul.f32 %v873, %v873
  %v897 = vmul.f32 %v875, %v875
  %v898 = vadd.f32 %v894, %v895
  %v899 = vadd.f32 %v898, %v896
  %v900 = vadd.f32 %v899, %v897
  %v901 = vrot.slane %v900, 4
  %v902 = vadd.f32 %v900, %v901
  %v903 = vrot.slane %v902, 2
  %v904 = vadd.f32 %v902, %v903
  %v905 = vrot.slane %v904, 1
  %v906 = vadd.f32 %v904, %v905
  %v907 = vadd.f32 %v893, %v906
  %908 = vst [vmem:[%s3 + $0x1] sm:$0x1] %v907
  // Predicated region
  $region14: #{simp_resnet9_k33.37} parent=0 // pred_check
    _
  $region15: #{simp_resnet9_k33.37} parent=0 // pred_check_branch
    %910 = sbr.rel (0) target = $region17
  $region16: #{simp_resnet9_k33.37} parent=0 // pred_region
    _
  $region17: #{simp_resnet9_k33.37} parent=0 // pred_fallthru
    _
  // Predicated region
  $region18: #{simp_resnet9_k33.37} parent=0 // pred_check
    _
  $region19: #{simp_resnet9_k33.37} parent=0 // pred_check_branch
    %912 = sbr.rel (0) target = $region21
  $region20: #{simp_resnet9_k33.37} parent=0 // pred_region
    _
  $region21: #{simp_resnet9_k33.37} parent=0 // pred_fallthru
    _
  // Predicated region
  $region22: #{simp_resnet9_k33.37} parent=0 // pred_check
    _
  $region23: #{simp_resnet9_k33.37} parent=0 // pred_check_branch
    %914 = sbr.rel (0) target = $region25
  $region24: #{simp_resnet9_k33.37} parent=0 // pred_region
    _
  $region25: #{simp_resnet9_k33.37} parent=0 // pred_fallthru
    _
  // Predicated region
  $region26: #{simp_resnet9_k33.37} parent=0 // pred_check
    _
  $region27: #{simp_resnet9_k33.37} parent=0 // pred_check_branch
    %916 = sbr.rel (0) target = $region29
  $region28: #{simp_resnet9_k33.37} parent=0 // pred_region
    _
  $region29: #{simp_resnet9_k33.37} parent=0 // pred_fallthru
    _

// kernel: simp_resnet9_k33.43
$region0: #{simp_resnet9_k33.43}
  #allocation0 [shape = 'u32[]', space=smem, size = 0x4, offset = 0x4, fixed_abs, tag = 'smem constant byte address 0x4 - core index']
  #allocation1 [shape = 'u32[72,128]{1,0:T(1,128)}', space=vmem, size = 0x9000, scoped, tag = 'internal scratch']
  %s0 = inlined_call_operand.vmem [shape: bf16[2,4,128], index: 0, kind: input, shape index: {}]
  %s1 = inlined_call_operand.vmem [shape: bf16[128,128], index: 1, kind: input, shape index: {}]
  %s2 = inlined_call_operand.hbm [shape: f32[2,128], index: 2, kind: output, shape index: {}]
  %s3 = sld [smem:[#allocation0]]
  $region18: #{simp_resnet9_k33.43} parent=0
    _
  %s5 = ssub.s32 1, %s3
  %s6 = scalar_select 0, %s5, %s3
  $region1: #{simp_resnet9_k33.43} parent=0
    #allocation2 [shape = 'u8[1024]{0}', space=vmem, size = 0x400, scoped, tag = 'output window, operand 0, single buffered']
    #allocation3 [shape = 's32[1]{0}', space=sflag, size = 0x4, scoped, tag = 'scoped memory for simp_resnet9_k33.43']
    %7 = vsyncpa [#allocation3], 0
    // Predicated region
    $region2: #{simp_resnet9_k33.43} parent=1 // pred_check
      _
    $region3: #{simp_resnet9_k33.43} parent=1 // pred_check_branch
      %9 = sbr.rel (0) target = $region5
    $region4: #{simp_resnet9_k33.43} parent=1 // pred_region
      _
    $region5: #{simp_resnet9_k33.43} parent=1 // pred_fallthru
      _
    // Predicated region
    $region6: #{simp_resnet9_k33.43} parent=1 // pred_check
      _
    $region7: #{simp_resnet9_k33.43} parent=1 // pred_check_branch
      %11 = sbr.rel (0) target = $region9
    $region8: #{simp_resnet9_k33.43} parent=1 // pred_region
      _
    $region9: #{simp_resnet9_k33.43} parent=1 // pred_fallthru
      _
    %v12 = vld [vmem:[%s0] sm:$0x3]
    %v13 = vld [vmem:[%s0 + $0x2] sm:$0x3]
    %v14 = vunpack.c.l.bf16 %v12
    %v15 = vunpack.c.l.bf16 %v13
    %vm16 = vcmask 1043456
    %v17 = vsel %vm16, %v14, -inf
    %v18 = vrot.slane %v17, 4
    %v19 = vmax.f32 %v17, %v18
    %v20 = vrot.slane %v19, 2
    %v21 = vmax.f32 %v19, %v20
    %v22 = vrot.slane %v21, 1
    %v23 = vmax.f32 %v21, %v22
    %v24 = vsel %vm16, %v15, -inf
    %v25 = vrot.slane %v24, 4
    %v26 = vmax.f32 %v24, %v25
    %v27 = vrot.slane %v26, 2
    %v28 = vmax.f32 %v26, %v27
    %v29 = vrot.slane %v28, 1
    %v30 = vmax.f32 %v28, %v29
    %v31 = vpack.c.bf16 %v23, %v23
    %v32 = vpack.c.bf16 %v30, %v30
    %v33 = vld [vmem:[%s1] sm:$0xf]
    %v34 = vld [vmem:[%s1 + $0x4] sm:$0xf]
    %v35 = vld [vmem:[%s1 + $0x8] sm:$0xf]
    %v36 = vld [vmem:[%s1 + $0xc] sm:$0xf]
    %v37 = vld [vmem:[%s1 + $0x10] sm:$0xf]
    %v38 = vld [vmem:[%s1 + $0x14] sm:$0xf]
    %v39 = vld [vmem:[%s1 + $0x18] sm:$0xf]
    %v40 = vld [vmem:[%s1 + $0x1c] sm:$0xf]
    %v41 = vld [vmem:[%s1 + $0x20] sm:$0xf]
    %v42 = vld [vmem:[%s1 + $0x24] sm:$0xf]
    %v43 = vld [vmem:[%s1 + $0x28] sm:$0xf]
    %v44 = vld [vmem:[%s1 + $0x2c] sm:$0xf]
    %v45 = vld [vmem:[%s1 + $0x30] sm:$0xf]
    %v46 = vld [vmem:[%s1 + $0x34] sm:$0xf]
    %v47 = vld [vmem:[%s1 + $0x38] sm:$0xf]
    %v48 = vld [vmem:[%s1 + $0x3c] sm:$0xf]
    %v51 = vunpack.c.l.b16 %v31
    %v52 = vunpack.c.l.b16 %v32
    %vm53 = vcmask 1041409
    %v54 = vsel %vm53, %v52, %v51
    %v55 = vpack.c.b16 %v54, %v54
    %v73 = vunpack.c.l.b16 %v33
    %v74 = vunpack.c.l.b16 %v34
    %v75 = vunpack.c.l.b16 %v35
    %v76 = vunpack.c.l.b16 %v36
    %v77 = vunpack.c.l.b16 %v37
    %v78 = vunpack.c.l.b16 %v38
    %v79 = vunpack.c.l.b16 %v39
    %v80 = vunpack.c.l.b16 %v40
    %v81 = vunpack.c.l.b16 %v41
    %v82 = vunpack.c.l.b16 %v42
    %v83 = vunpack.c.l.b16 %v43
    %v84 = vunpack.c.l.b16 %v44
    %v85 = vunpack.c.l.b16 %v45
    %v86 = vunpack.c.l.b16 %v46
    %v87 = vunpack.c.l.b16 %v47
    %v88 = vunpack.c.l.b16 %v48
    %v89 = vpack.c.b16 %v74, %v73
    %v90 = vpack.c.b16 %v76, %v75
    %v91 = vpack.c.b16 %v78, %v77
    %v92 = vpack.c.b16 %v80, %v79
    %v93 = vpack.c.b16 %v82, %v81
    %v94 = vpack.c.b16 %v84, %v83
    %v95 = vpack.c.b16 %v86, %v85
    %v96 = vpack.c.b16 %v88, %v87
    %105 = vmatpush.bf16.msra.mxu0 %v96
    %106 = vmatpush.bf16.msra.mxu0 %v95
    %107 = vmatpush.bf16.msra.mxu0 %v94
    %108 = vmatpush.bf16.msra.mxu0 %v93
    %109 = vmatpush.bf16.msra.mxu0 %v92
    %110 = vmatpush.bf16.msra.mxu0 %v91
    %111 = vmatpush.bf16.msra.mxu0 %v90
    %112 = vmatpush.bf16.msra.mxu0 %v89
    %113 = vmatmul.bf16.gmra.mxu0 %v55
    %v114 = vpop.f32.mrf.mxu0
    %v115 = vadd.f32 0.0, %v114
    %v116 = vpop.f32.mrf.mxu0
    %117 = vdwg.mxu0
    %118 = vst [vmem:[#allocation2] sm:$0x3] %v115
    // Predicated region
    $region10: #{simp_resnet9_k33.43} parent=1 // pred_check
      _
    $region11: #{simp_resnet9_k33.43} parent=1 // pred_check_branch
      %120 = sbr.rel (0) target = $region13
    $region12: #{simp_resnet9_k33.43} parent=1 // pred_region
      %122 = vsyncadd [#allocation3], 0
      %s124 = sshll.u32 [#allocation2], 4
      %s125 = int_to_ptr.vmem [resolvable:$true] %s124
      %s126 = sshll.u32 %s2, 4
      %s127 = int_to_ptr.hbm [resolvable:$true] %s126
      %129 = dma.vmem_to_hbm [thread:$0]  %s125, 32, %s127, [#allocation3]
    $region13: #{simp_resnet9_k33.43} parent=1 // pred_fallthru
      _
    // Predicated region
    $region14: #{simp_resnet9_k33.43} parent=1 // pred_check
      _
    $region15: #{simp_resnet9_k33.43} parent=1 // pred_check_branch
      %131 = sbr.rel (0) target = $region17
    $region16: #{simp_resnet9_k33.43} parent=1 // pred_region
      %133 = dma.done [#allocation3], 32
    $region17: #{simp_resnet9_k33.43} parent=1 // pred_fallthru
      _
    %134 = vsyncpa [#allocation3], 1

// kernel: simp_resnet9_k33.42
$region0: #{simp_resnet9_k33.42}
  #allocation0 [shape = 'u32[]', space=smem, size = 0x4, offset = 0x4, fixed_abs, tag = 'smem constant byte address 0x4 - core index']
  #allocation1 [shape = 'u32[72,128]{1,0:T(1,128)}', space=vmem, size = 0x9000, scoped, tag = 'internal scratch']
  %s0 = inlined_call_operand.vmem [shape: f32[8,128], index: 0, kind: input, shape index: {}]
  %s1 = inlined_call_operand.vmem [shape: f32[2,128], index: 1, kind: input, shape index: {}]
  %s2 = inlined_call_operand.vmem [shape: f32[2,128], index: 2, kind: input, shape index: {}]
  %s3 = inlined_call_operand.vmem [shape: bf16[8,128], index: 3, kind: output, shape index: {}]
  %s4 = sld [smem:[#allocation0]]
  $region22: #{simp_resnet9_k33.42} parent=0
    _
  %s6 = ssub.s32 1, %s4
  %s7 = scalar_select 0, %s6, %s4
  // Predicated region
  $region2: #{simp_resnet9_k33.42} parent=0 // pred_check
    _
  $region3: #{simp_resnet9_k33.42} parent=0 // pred_check_branch
    %9 = sbr.rel (0) target = $region5
  $region4: #{simp_resnet9_k33.42} parent=0 // pred_region
    _
  $region5: #{simp_resnet9_k33.42} parent=0 // pred_fallthru
    _
  // Predicated region
  $region6: #{simp_resnet9_k33.42} parent=0 // pred_check
    _
  $region7: #{simp_resnet9_k33.42} parent=0 // pred_check_branch
    %11 = sbr.rel (0) target = $region9
  $region8: #{simp_resnet9_k33.42} parent=0 // pred_region
    _
  $region9: #{simp_resnet9_k33.42} parent=0 // pred_fallthru
    _
  // Predicated region
  $region10: #{simp_resnet9_k33.42} parent=0 // pred_check
    _
  $region11: #{simp_resnet9_k33.42} parent=0 // pred_check_branch
    %13 = sbr.rel (0) target = $region13
  $region12: #{simp_resnet9_k33.42} parent=0 // pred_region
    _
  $region13: #{simp_resnet9_k33.42} parent=0 // pred_fallthru
    _
  %v14 = vld [vmem:[%s0] sm:$0xff]
  %v15 = vld [vmem:[%s1] sm:$0x1]
  %v16 = vmul.f32 %v15, 0.125
  %v17 = vld [vmem:[%s1 + $0x1] sm:$0x1]
  %v18 = vmul.f32 %v17, 0.125
  %v19 = vmul.f32 %v16, %v16
  %v20 = vsub.f32 %v18, %v19
  %v21 = vld [vmem:[%s2] sm:$0x1]
  %v22 = vadd.f32 %v20, 1e-05
  %v23 = vrsqrt.pop %v22
  %v24 = vmul.f32 %v23, %v22
  %v25 = vmul.f32 %v24, %v23
  %v26 = vmul.f32 0.5, %v25
  %v27 = vsub.f32 1.5, %v26
  %v28 = vmul.f32 %v23, %v27
  %vm29 = vweird.f32 %v22
  %vm30 = vweird.f32 %v23
  %vm31 = vmor %vm29, %vm30
  %v32 = vsel %vm31, %v23, %v28
  %v33 = vmul.f32 %v21, %v32
  %v34 = vld [vmem:[%s2 + $0x1] sm:$0x1]
  %v35 = vmul.f32 %v16, %v33
  %v36 = vsub.f32 %v34, %v35
  %v37 = vperm.slane %v33, 0
  %v38 = vmul.f32 %v14, %v37
  %v39 = vperm.slane %v36, 0
  %v40 = vadd.f32 %v38, %v39
  %v41 = vmax.f32 %v40, 0.0
  %v42 = vpack.c.bf16 %v41, %v41
  %43 = vst [vmem:[%s3] sm:$0xf] %v42
  // Predicated region
  $region14: #{simp_resnet9_k33.42} parent=0 // pred_check
    _
  $region15: #{simp_resnet9_k33.42} parent=0 // pred_check_branch
    %45 = sbr.rel (0) target = $region17
  $region16: #{simp_resnet9_k33.42} parent=0 // pred_region
    _
  $region17: #{simp_resnet9_k33.42} parent=0 // pred_fallthru
    _
  // Predicated region
  $region18: #{simp_resnet9_k33.42} parent=0 // pred_check
    _
  $region19: #{simp_resnet9_k33.42} parent=0 // pred_check_branch
    %47 = sbr.rel (0) target = $region21
  $region20: #{simp_resnet9_k33.42} parent=0 // pred_region
    _
  $region21: #{simp_resnet9_k33.42} parent=0 // pred_fallthru
    _

// kernel: simp_resnet9_k33.41
$region0: #{simp_resnet9_k33.41}
  #allocation0 [shape = 'u32[]', space=smem, size = 0x4, offset = 0x4, fixed_abs, tag = 'smem constant byte address 0x4 - core index']
  #allocation1 [shape = 'u32[72,128]{1,0:T(1,128)}', space=vmem, size = 0x9000, scoped, tag = 'internal scratch']
  %s0 = inlined_call_operand.vmem [shape: bf16[8,2304], index: 0, kind: input, shape index: {}]
  %s1 = inlined_call_operand.vmem [shape: bf16[2304,128], index: 1, kind: input, shape index: {}]
  %s2 = inlined_call_operand.vmem [shape: f32[8,128], index: 2, kind: output, shape index: {0}]
  %s3 = inlined_call_operand.vmem [shape: f32[2,128], index: 3, kind: output, shape index: {1}]
  %4 = xla_tuple %s2, %s3
  %s5 = sld [smem:[#allocation0]]
  $region30: #{simp_resnet9_k33.41} parent=0
    _
  %s7 = ssub.s32 1, %s5
  %s8 = scalar_select 0, %s7, %s5
  // Predicated region
  $region2: #{simp_resnet9_k33.41} parent=0 // pred_check
    _
  $region3: #{simp_resnet9_k33.41} parent=0 // pred_check_branch
    %10 = sbr.rel (0) target = $region5
  $region4: #{simp_resnet9_k33.41} parent=0 // pred_region
    _
  $region5: #{simp_resnet9_k33.41} parent=0 // pred_fallthru
    _
  // Predicated region
  $region6: #{simp_resnet9_k33.41} parent=0 // pred_check
    _
  $region7: #{simp_resnet9_k33.41} parent=0 // pred_check_branch
    %12 = sbr.rel (0) target = $region9
  $region8: #{simp_resnet9_k33.41} parent=0 // pred_region
    _
  $region9: #{simp_resnet9_k33.41} parent=0 // pred_fallthru
    _
  %p13 = scmp.eq.s32.totalorder 0, 0
  // Predicated region
  $region10: #{simp_resnet9_k33.41} parent=0 // pred_check
    %p14 = pneg %p13
  $region11: #{simp_resnet9_k33.41} parent=0 // pred_check_branch
    %16 = sbr.rel (%p14) target = $region13
  $region12: #{simp_resnet9_k33.41} parent=0 // pred_region
    %17 = vst [vmem:[%s3] sm:$0x3] 0.0
  $region13: #{simp_resnet9_k33.41} parent=0 // pred_fallthru
    _
  %v18 = vld [vmem:[%s0] sm:$0xff]
  %v19 = vld [vmem:[%s0 + $0x8] sm:$0xff]
  %v20 = vld [vmem:[%s0 + $0x10] sm:$0xff]
  %v21 = vld [vmem:[%s0 + $0x18] sm:$0xff]
  %v22 = vld [vmem:[%s0 + $0x20] sm:$0xff]
  %v23 = vld [vmem:[%s0 + $0x28] sm:$0xff]
  %v24 = vld [vmem:[%s0 + $0x30] sm:$0xff]
  %v25 = vld [vmem:[%s0 + $0x38] sm:$0xff]
  %v26 = vld [vmem:[%s0 + $0x40] sm:$0xff]
  %v27 = vld [vmem:[%s1] sm:$0xf]
  %v28 = vld [vmem:[%s1 + $0x4] sm:$0xf]
  %v29 = vld [vmem:[%s1 + $0x8] sm:$0xf]
  %v30 = vld [vmem:[%s1 + $0xc] sm:$0xf]
  %v31 = vld [vmem:[%s1 + $0x10] sm:$0xf]
  %v32 = vld [vmem:[%s1 + $0x14] sm:$0xf]
  %v33 = vld [vmem:[%s1 + $0x18] sm:$0xf]
  %v34 = vld [vmem:[%s1 + $0x1c] sm:$0xf]
  %v35 = vld [vmem:[%s1 + $0x20] sm:$0xf]
  %v36 = vld [vmem:[%s1 + $0x24] sm:$0xf]
  %v37 = vld [vmem:[%s1 + $0x28] sm:$0xf]
  %v38 = vld [vmem:[%s1 + $0x2c] sm:$0xf]
  %v39 = vld [vmem:[%s1 + $0x30] sm:$0xf]
  %v40 = vld [vmem:[%s1 + $0x34] sm:$0xf]
  %v41 = vld [vmem:[%s1 + $0x38] sm:$0xf]
  %v42 = vld [vmem:[%s1 + $0x3c] sm:$0xf]
  %v43 = vld [vmem:[%s1 + $0x40] sm:$0xf]
  %v44 = vld [vmem:[%s1 + $0x44] sm:$0xf]
  %v45 = vld [vmem:[%s1 + $0x48] sm:$0xf]
  %v46 = vld [vmem:[%s1 + $0x4c] sm:$0xf]
  %v47 = vld [vmem:[%s1 + $0x50] sm:$0xf]
  %v48 = vld [vmem:[%s1 + $0x54] sm:$0xf]
  %v49 = vld [vmem:[%s1 + $0x58] sm:$0xf]
  %v50 = vld [vmem:[%s1 + $0x5c] sm:$0xf]
  %v51 = vld [vmem:[%s1 + $0x60] sm:$0xf]
  %v52 = vld [vmem:[%s1 + $0x64] sm:$0xf]
  %v53 = vld [vmem:[%s1 + $0x68] sm:$0xf]
  %v54 = vld [vmem:[%s1 + $0x6c] sm:$0xf]
  %v55 = vld [vmem:[%s1 + $0x70] sm:$0xf]
  %v56 = vld [vmem:[%s1 + $0x74] sm:$0xf]
  %v57 = vld [vmem:[%s1 + $0x78] sm:$0xf]
  %v58 = vld [vmem:[%s1 + $0x7c] sm:$0xf]
  %v59 = vld [vmem:[%s1 + $0x80] sm:$0xf]
  %v60 = vld [vmem:[%s1 + $0x84] sm:$0xf]
  %v61 = vld [vmem:[%s1 + $0x88] sm:$0xf]
  %v62 = vld [vmem:[%s1 + $0x8c] sm:$0xf]
  %v63 = vld [vmem:[%s1 + $0x90] sm:$0xf]
  %v64 = vld [vmem:[%s1 + $0x94] sm:$0xf]
  %v65 = vld [vmem:[%s1 + $0x98] sm:$0xf]
  %v66 = vld [vmem:[%s1 + $0x9c] sm:$0xf]
  %v67 = vld [vmem:[%s1 + $0xa0] sm:$0xf]
  %v68 = vld [vmem:[%s1 + $0xa4] sm:$0xf]
  %v69 = vld [vmem:[%s1 + $0xa8] sm:$0xf]
  %v70 = vld [vmem:[%s1 + $0xac] sm:$0xf]
  %v71 = vld [vmem:[%s1 + $0xb0] sm:$0xf]
  %v72 = vld [vmem:[%s1 + $0xb4] sm:$0xf]
  %v73 = vld [vmem:[%s1 + $0xb8] sm:$0xf]
  %v74 = vld [vmem:[%s1 + $0xbc] sm:$0xf]
  %v75 = vld [vmem:[%s1 + $0xc0] sm:$0xf]
  %v76 = vld [vmem:[%s1 + $0xc4] sm:$0xf]
  %v77 = vld [vmem:[%s1 + $0xc8] sm:$0xf]
  %v78 = vld [vmem:[%s1 + $0xcc] sm:$0xf]
  %v79 = vld [vmem:[%s1 + $0xd0] sm:$0xf]
  %v80 = vld [vmem:[%s1 + $0xd4] sm:$0xf]
  %v81 = vld [vmem:[%s1 + $0xd8] sm:$0xf]
  %v82 = vld [vmem:[%s1 + $0xdc] sm:$0xf]
  %v83 = vld [vmem:[%s1 + $0xe0] sm:$0xf]
  %v84 = vld [vmem:[%s1 + $0xe4] sm:$0xf]
  %v85 = vld [vmem:[%s1 + $0xe8] sm:$0xf]
  %v86 = vld [vmem:[%s1 + $0xec] sm:$0xf]
  %v87 = vld [vmem:[%s1 + $0xf0] sm:$0xf]
  %v88 = vld [vmem:[%s1 + $0xf4] sm:$0xf]
  %v89 = vld [vmem:[%s1 + $0xf8] sm:$0xf]
  %v90 = vld [vmem:[%s1 + $0xfc] sm:$0xf]
  %v91 = vld [vmem:[%s1 + $0x100] sm:$0xf]
  %v92 = vld [vmem:[%s1 + $0x104] sm:$0xf]
  %v93 = vld [vmem:[%s1 + $0x108] sm:$0xf]
  %v94 = vld [vmem:[%s1 + $0x10c] sm:$0xf]
  %v95 = vld [vmem:[%s1 + $0x110] sm:$0xf]
  %v96 = vld [vmem:[%s1 + $0x114] sm:$0xf]
  %v97 = vld [vmem:[%s1 + $0x118] sm:$0xf]
  %v98 = vld [vmem:[%s1 + $0x11c] sm:$0xf]
  %v99 = vld [vmem:[%s1 + $0x120] sm:$0xf]
  %v100 = vld [vmem:[%s1 + $0x124] sm:$0xf]
  %v101 = vld [vmem:[%s1 + $0x128] sm:$0xf]
  %v102 = vld [vmem:[%s1 + $0x12c] sm:$0xf]
  %v103 = vld [vmem:[%s1 + $0x130] sm:$0xf]
  %v104 = vld [vmem:[%s1 + $0x134] sm:$0xf]
  %v105 = vld [vmem:[%s1 + $0x138] sm:$0xf]
  %v106 = vld [vmem:[%s1 + $0x13c] sm:$0xf]
  %v107 = vld [vmem:[%s1 + $0x140] sm:$0xf]
  %v108 = vld [vmem:[%s1 + $0x144] sm:$0xf]
  %v109 = vld [vmem:[%s1 + $0x148] sm:$0xf]
  %v110 = vld [vmem:[%s1 + $0x14c] sm:$0xf]
  %v111 = vld [vmem:[%s1 + $0x150] sm:$0xf]
  %v112 = vld [vmem:[%s1 + $0x154] sm:$0xf]
  %v113 = vld [vmem:[%s1 + $0x158] sm:$0xf]
  %v114 = vld [vmem:[%s1 + $0x15c] sm:$0xf]
  %v115 = vld [vmem:[%s1 + $0x160] sm:$0xf]
  %v116 = vld [vmem:[%s1 + $0x164] sm:$0xf]
  %v117 = vld [vmem:[%s1 + $0x168] sm:$0xf]
  %v118 = vld [vmem:[%s1 + $0x16c] sm:$0xf]
  %v119 = vld [vmem:[%s1 + $0x170] sm:$0xf]
  %v120 = vld [vmem:[%s1 + $0x174] sm:$0xf]
  %v121 = vld [vmem:[%s1 + $0x178] sm:$0xf]
  %v122 = vld [vmem:[%s1 + $0x17c] sm:$0xf]
  %v123 = vld [vmem:[%s1 + $0x180] sm:$0xf]
  %v124 = vld [vmem:[%s1 + $0x184] sm:$0xf]
  %v125 = vld [vmem:[%s1 + $0x188] sm:$0xf]
  %v126 = vld [vmem:[%s1 + $0x18c] sm:$0xf]
  %v127 = vld [vmem:[%s1 + $0x190] sm:$0xf]
  %v128 = vld [vmem:[%s1 + $0x194] sm:$0xf]
  %v129 = vld [vmem:[%s1 + $0x198] sm:$0xf]
  %v130 = vld [vmem:[%s1 + $0x19c] sm:$0xf]
  %v131 = vld [vmem:[%s1 + $0x1a0] sm:$0xf]
  %v132 = vld [vmem:[%s1 + $0x1a4] sm:$0xf]
  %v133 = vld [vmem:[%s1 + $0x1a8] sm:$0xf]
  %v134 = vld [vmem:[%s1 + $0x1ac] sm:$0xf]
  %v135 = vld [vmem:[%s1 + $0x1b0] sm:$0xf]
  %v136 = vld [vmem:[%s1 + $0x1b4] sm:$0xf]
  %v137 = vld [vmem:[%s1 + $0x1b8] sm:$0xf]
  %v138 = vld [vmem:[%s1 + $0x1bc] sm:$0xf]
  %v139 = vld [vmem:[%s1 + $0x1c0] sm:$0xf]
  %v140 = vld [vmem:[%s1 + $0x1c4] sm:$0xf]
  %v141 = vld [vmem:[%s1 + $0x1c8] sm:$0xf]
  %v142 = vld [vmem:[%s1 + $0x1cc] sm:$0xf]
  %v143 = vld [vmem:[%s1 + $0x1d0] sm:$0xf]
  %v144 = vld [vmem:[%s1 + $0x1d4] sm:$0xf]
  %v145 = vld [vmem:[%s1 + $0x1d8] sm:$0xf]
  %v146 = vld [vmem:[%s1 + $0x1dc] sm:$0xf]
  %v147 = vld [vmem:[%s1 + $0x1e0] sm:$0xf]
  %v148 = vld [vmem:[%s1 + $0x1e4] sm:$0xf]
  %v149 = vld [vmem:[%s1 + $0x1e8] sm:$0xf]
  %v150 = vld [vmem:[%s1 + $0x1ec] sm:$0xf]
  %v151 = vld [vmem:[%s1 + $0x1f0] sm:$0xf]
  %v152 = vld [vmem:[%s1 + $0x1f4] sm:$0xf]
  %v153 = vld [vmem:[%s1 + $0x1f8] sm:$0xf]
  %v154 = vld [vmem:[%s1 + $0x1fc] sm:$0xf]
  %v155 = vld [vmem:[%s1 + $0x200] sm:$0xf]
  %v156 = vld [vmem:[%s1 + $0x204] sm:$0xf]
  %v157 = vld [vmem:[%s1 + $0x208] sm:$0xf]
  %v158 = vld [vmem:[%s1 + $0x20c] sm:$0xf]
  %v159 = vld [vmem:[%s1 + $0x210] sm:$0xf]
  %v160 = vld [vmem:[%s1 + $0x214] sm:$0xf]
  %v161 = vld [vmem:[%s1 + $0x218] sm:$0xf]
  %v162 = vld [vmem:[%s1 + $0x21c] sm:$0xf]
  %v163 = vld [vmem:[%s1 + $0x220] sm:$0xf]
  %v164 = vld [vmem:[%s1 + $0x224] sm:$0xf]
  %v165 = vld [vmem:[%s1 + $0x228] sm:$0xf]
  %v166 = vld [vmem:[%s1 + $0x22c] sm:$0xf]
  %v167 = vld [vmem:[%s1 + $0x230] sm:$0xf]
  %v168 = vld [vmem:[%s1 + $0x234] sm:$0xf]
  %v169 = vld [vmem:[%s1 + $0x238] sm:$0xf]
  %v170 = vld [vmem:[%s1 + $0x23c] sm:$0xf]
  %v171 = vld [vmem:[%s1 + $0x240] sm:$0xf]
  %v172 = vld [vmem:[%s1 + $0x244] sm:$0xf]
  %v173 = vld [vmem:[%s1 + $0x248] sm:$0xf]
  %v174 = vld [vmem:[%s1 + $0x24c] sm:$0xf]
  %v175 = vld [vmem:[%s1 + $0x250] sm:$0xf]
  %v176 = vld [vmem:[%s1 + $0x254] sm:$0xf]
  %v177 = vld [vmem:[%s1 + $0x258] sm:$0xf]
  %v178 = vld [vmem:[%s1 + $0x25c] sm:$0xf]
  %v179 = vld [vmem:[%s1 + $0x260] sm:$0xf]
  %v180 = vld [vmem:[%s1 + $0x264] sm:$0xf]
  %v181 = vld [vmem:[%s1 + $0x268] sm:$0xf]
  %v182 = vld [vmem:[%s1 + $0x26c] sm:$0xf]
  %v183 = vld [vmem:[%s1 + $0x270] sm:$0xf]
  %v184 = vld [vmem:[%s1 + $0x274] sm:$0xf]
  %v185 = vld [vmem:[%s1 + $0x278] sm:$0xf]
  %v186 = vld [vmem:[%s1 + $0x27c] sm:$0xf]
  %v187 = vld [vmem:[%s1 + $0x280] sm:$0xf]
  %v188 = vld [vmem:[%s1 + $0x284] sm:$0xf]
  %v189 = vld [vmem:[%s1 + $0x288] sm:$0xf]
  %v190 = vld [vmem:[%s1 + $0x28c] sm:$0xf]
  %v191 = vld [vmem:[%s1 + $0x290] sm:$0xf]
  %v192 = vld [vmem:[%s1 + $0x294] sm:$0xf]
  %v193 = vld [vmem:[%s1 + $0x298] sm:$0xf]
  %v194 = vld [vmem:[%s1 + $0x29c] sm:$0xf]
  %v195 = vld [vmem:[%s1 + $0x2a0] sm:$0xf]
  %v196 = vld [vmem:[%s1 + $0x2a4] sm:$0xf]
  %v197 = vld [vmem:[%s1 + $0x2a8] sm:$0xf]
  %v198 = vld [vmem:[%s1 + $0x2ac] sm:$0xf]
  %v199 = vld [vmem:[%s1 + $0x2b0] sm:$0xf]
  %v200 = vld [vmem:[%s1 + $0x2b4] sm:$0xf]
  %v201 = vld [vmem:[%s1 + $0x2b8] sm:$0xf]
  %v202 = vld [vmem:[%s1 + $0x2bc] sm:$0xf]
  %v203 = vld [vmem:[%s1 + $0x2c0] sm:$0xf]
  %v204 = vld [vmem:[%s1 + $0x2c4] sm:$0xf]
  %v205 = vld [vmem:[%s1 + $0x2c8] sm:$0xf]
  %v206 = vld [vmem:[%s1 + $0x2cc] sm:$0xf]
  %v207 = vld [vmem:[%s1 + $0x2d0] sm:$0xf]
  %v208 = vld [vmem:[%s1 + $0x2d4] sm:$0xf]
  %v209 = vld [vmem:[%s1 + $0x2d8] sm:$0xf]
  %v210 = vld [vmem:[%s1 + $0x2dc] sm:$0xf]
  %v211 = vld [vmem:[%s1 + $0x2e0] sm:$0xf]
  %v212 = vld [vmem:[%s1 + $0x2e4] sm:$0xf]
  %v213 = vld [vmem:[%s1 + $0x2e8] sm:$0xf]
  %v214 = vld [vmem:[%s1 + $0x2ec] sm:$0xf]
  %v215 = vld [vmem:[%s1 + $0x2f0] sm:$0xf]
  %v216 = vld [vmem:[%s1 + $0x2f4] sm:$0xf]
  %v217 = vld [vmem:[%s1 + $0x2f8] sm:$0xf]
  %v218 = vld [vmem:[%s1 + $0x2fc] sm:$0xf]
  %v219 = vld [vmem:[%s1 + $0x300] sm:$0xf]
  %v220 = vld [vmem:[%s1 + $0x304] sm:$0xf]
  %v221 = vld [vmem:[%s1 + $0x308] sm:$0xf]
  %v222 = vld [vmem:[%s1 + $0x30c] sm:$0xf]
  %v223 = vld [vmem:[%s1 + $0x310] sm:$0xf]
  %v224 = vld [vmem:[%s1 + $0x314] sm:$0xf]
  %v225 = vld [vmem:[%s1 + $0x318] sm:$0xf]
  %v226 = vld [vmem:[%s1 + $0x31c] sm:$0xf]
  %v227 = vld [vmem:[%s1 + $0x320] sm:$0xf]
  %v228 = vld [vmem:[%s1 + $0x324] sm:$0xf]
  %v229 = vld [vmem:[%s1 + $0x328] sm:$0xf]
  %v230 = vld [vmem:[%s1 + $0x32c] sm:$0xf]
  %v231 = vld [vmem:[%s1 + $0x330] sm:$0xf]
  %v232 = vld [vmem:[%s1 + $0x334] sm:$0xf]
  %v233 = vld [vmem:[%s1 + $0x338] sm:$0xf]
  %v234 = vld [vmem:[%s1 + $0x33c] sm:$0xf]
  %v235 = vld [vmem:[%s1 + $0x340] sm:$0xf]
  %v236 = vld [vmem:[%s1 + $0x344] sm:$0xf]
  %v237 = vld [vmem:[%s1 + $0x348] sm:$0xf]
  %v238 = vld [vmem:[%s1 + $0x34c] sm:$0xf]
  %v239 = vld [vmem:[%s1 + $0x350] sm:$0xf]
  %v240 = vld [vmem:[%s1 + $0x354] sm:$0xf]
  %v241 = vld [vmem:[%s1 + $0x358] sm:$0xf]
  %v242 = vld [vmem:[%s1 + $0x35c] sm:$0xf]
  %v243 = vld [vmem:[%s1 + $0x360] sm:$0xf]
  %v244 = vld [vmem:[%s1 + $0x364] sm:$0xf]
  %v245 = vld [vmem:[%s1 + $0x368] sm:$0xf]
  %v246 = vld [vmem:[%s1 + $0x36c] sm:$0xf]
  %v247 = vld [vmem:[%s1 + $0x370] sm:$0xf]
  %v248 = vld [vmem:[%s1 + $0x374] sm:$0xf]
  %v249 = vld [vmem:[%s1 + $0x378] sm:$0xf]
  %v250 = vld [vmem:[%s1 + $0x37c] sm:$0xf]
  %v251 = vld [vmem:[%s1 + $0x380] sm:$0xf]
  %v252 = vld [vmem:[%s1 + $0x384] sm:$0xf]
  %v253 = vld [vmem:[%s1 + $0x388] sm:$0xf]
  %v254 = vld [vmem:[%s1 + $0x38c] sm:$0xf]
  %v255 = vld [vmem:[%s1 + $0x390] sm:$0xf]
  %v256 = vld [vmem:[%s1 + $0x394] sm:$0xf]
  %v257 = vld [vmem:[%s1 + $0x398] sm:$0xf]
  %v258 = vld [vmem:[%s1 + $0x39c] sm:$0xf]
  %v259 = vld [vmem:[%s1 + $0x3a0] sm:$0xf]
  %v260 = vld [vmem:[%s1 + $0x3a4] sm:$0xf]
  %v261 = vld [vmem:[%s1 + $0x3a8] sm:$0xf]
  %v262 = vld [vmem:[%s1 + $0x3ac] sm:$0xf]
  %v263 = vld [vmem:[%s1 + $0x3b0] sm:$0xf]
  %v264 = vld [vmem:[%s1 + $0x3b4] sm:$0xf]
  %v265 = vld [vmem:[%s1 + $0x3b8] sm:$0xf]
  %v266 = vld [vmem:[%s1 + $0x3bc] sm:$0xf]
  %v267 = vld [vmem:[%s1 + $0x3c0] sm:$0xf]
  %v268 = vld [vmem:[%s1 + $0x3c4] sm:$0xf]
  %v269 = vld [vmem:[%s1 + $0x3c8] sm:$0xf]
  %v270 = vld [vmem:[%s1 + $0x3cc] sm:$0xf]
  %v271 = vld [vmem:[%s1 + $0x3d0] sm:$0xf]
  %v272 = vld [vmem:[%s1 + $0x3d4] sm:$0xf]
  %v273 = vld [vmem:[%s1 + $0x3d8] sm:$0xf]
  %v274 = vld [vmem:[%s1 + $0x3dc] sm:$0xf]
  %v275 = vld [vmem:[%s1 + $0x3e0] sm:$0xf]
  %v276 = vld [vmem:[%s1 + $0x3e4] sm:$0xf]
  %v277 = vld [vmem:[%s1 + $0x3e8] sm:$0xf]
  %v278 = vld [vmem:[%s1 + $0x3ec] sm:$0xf]
  %v279 = vld [vmem:[%s1 + $0x3f0] sm:$0xf]
  %v280 = vld [vmem:[%s1 + $0x3f4] sm:$0xf]
  %v281 = vld [vmem:[%s1 + $0x3f8] sm:$0xf]
  %v282 = vld [vmem:[%s1 + $0x3fc] sm:$0xf]
  %v283 = vld [vmem:[%s1 + $0x400] sm:$0xf]
  %v284 = vld [vmem:[%s1 + $0x404] sm:$0xf]
  %v285 = vld [vmem:[%s1 + $0x408] sm:$0xf]
  %v286 = vld [vmem:[%s1 + $0x40c] sm:$0xf]
  %v287 = vld [vmem:[%s1 + $0x410] sm:$0xf]
  %v288 = vld [vmem:[%s1 + $0x414] sm:$0xf]
  %v289 = vld [vmem:[%s1 + $0x418] sm:$0xf]
  %v290 = vld [vmem:[%s1 + $0x41c] sm:$0xf]
  %v291 = vld [vmem:[%s1 + $0x420] sm:$0xf]
  %v292 = vld [vmem:[%s1 + $0x424] sm:$0xf]
  %v293 = vld [vmem:[%s1 + $0x428] sm:$0xf]
  %v294 = vld [vmem:[%s1 + $0x42c] sm:$0xf]
  %v295 = vld [vmem:[%s1 + $0x430] sm:$0xf]
  %v296 = vld [vmem:[%s1 + $0x434] sm:$0xf]
  %v297 = vld [vmem:[%s1 + $0x438] sm:$0xf]
  %v298 = vld [vmem:[%s1 + $0x43c] sm:$0xf]
  %v299 = vld [vmem:[%s1 + $0x440] sm:$0xf]
  %v300 = vld [vmem:[%s1 + $0x444] sm:$0xf]
  %v301 = vld [vmem:[%s1 + $0x448] sm:$0xf]
  %v302 = vld [vmem:[%s1 + $0x44c] sm:$0xf]
  %v303 = vld [vmem:[%s1 + $0x450] sm:$0xf]
  %v304 = vld [vmem:[%s1 + $0x454] sm:$0xf]
  %v305 = vld [vmem:[%s1 + $0x458] sm:$0xf]
  %v306 = vld [vmem:[%s1 + $0x45c] sm:$0xf]
  %v307 = vld [vmem:[%s1 + $0x460] sm:$0xf]
  %v308 = vld [vmem:[%s1 + $0x464] sm:$0xf]
  %v309 = vld [vmem:[%s1 + $0x468] sm:$0xf]
  %v310 = vld [vmem:[%s1 + $0x46c] sm:$0xf]
  %v311 = vld [vmem:[%s1 + $0x470] sm:$0xf]
  %v312 = vld [vmem:[%s1 + $0x474] sm:$0xf]
  %v313 = vld [vmem:[%s1 + $0x478] sm:$0xf]
  %v314 = vld [vmem:[%s1 + $0x47c] sm:$0xf]
  %v324 = vunpack.c.l.b16 %v18
  %v325 = vunpack.c.h.b16 %v18
  %v326 = vunpack.c.l.b16 %v19
  %v327 = vunpack.c.h.b16 %v19
  %v328 = vunpack.c.l.b16 %v20
  %v329 = vunpack.c.h.b16 %v20
  %v330 = vunpack.c.l.b16 %v21
  %v331 = vunpack.c.h.b16 %v21
  %v332 = vunpack.c.l.b16 %v22
  %v333 = vunpack.c.h.b16 %v22
  %v334 = vunpack.c.l.b16 %v23
  %v335 = vunpack.c.h.b16 %v23
  %v336 = vunpack.c.l.b16 %v24
  %v337 = vunpack.c.h.b16 %v24
  %v338 = vunpack.c.l.b16 %v25
  %v339 = vunpack.c.h.b16 %v25
  %v340 = vunpack.c.l.b16 %v26
  %v341 = vunpack.c.h.b16 %v26
  %v342 = vpack.c.b16 %v324, %v324
  %v343 = vpack.c.b16 %v325, %v325
  %v344 = vpack.c.b16 %v326, %v326
  %v345 = vpack.c.b16 %v327, %v327
  %v346 = vpack.c.b16 %v328, %v328
  %v347 = vpack.c.b16 %v329, %v329
  %v348 = vpack.c.b16 %v330, %v330
  %v349 = vpack.c.b16 %v331, %v331
  %v350 = vpack.c.b16 %v332, %v332
  %v351 = vpack.c.b16 %v333, %v333
  %v352 = vpack.c.b16 %v334, %v334
  %v353 = vpack.c.b16 %v335, %v335
  %v354 = vpack.c.b16 %v336, %v336
  %v355 = vpack.c.b16 %v337, %v337
  %v356 = vpack.c.b16 %v338, %v338
  %v357 = vpack.c.b16 %v339, %v339
  %v358 = vpack.c.b16 %v340, %v340
  %v359 = vpack.c.b16 %v341, %v341
  %v666 = vunpack.c.l.b16 %v27
  %v667 = vunpack.c.l.b16 %v28
  %v668 = vunpack.c.l.b16 %v29
  %v669 = vunpack.c.l.b16 %v30
  %v670 = vunpack.c.l.b16 %v31
  %v671 = vunpack.c.l.b16 %v32
  %v672 = vunpack.c.l.b16 %v33
  %v673 = vunpack.c.l.b16 %v34
  %v674 = vunpack.c.l.b16 %v35
  %v675 = vunpack.c.l.b16 %v36
  %v676 = vunpack.c.l.b16 %v37
  %v677 = vunpack.c.l.b16 %v38
  %v678 = vunpack.c.l.b16 %v39
  %v679 = vunpack.c.l.b16 %v40
  %v680 = vunpack.c.l.b16 %v41
  %v681 = vunpack.c.l.b16 %v42
  %v682 = vunpack.c.l.b16 %v43
  %v683 = vunpack.c.l.b16 %v44
  %v684 = vunpack.c.l.b16 %v45
  %v685 = vunpack.c.l.b16 %v46
  %v686 = vunpack.c.l.b16 %v47
  %v687 = vunpack.c.l.b16 %v48
  %v688 = vunpack.c.l.b16 %v49
  %v689 = vunpack.c.l.b16 %v50
  %v690 = vunpack.c.l.b16 %v51
  %v691 = vunpack.c.l.b16 %v52
  %v692 = vunpack.c.l.b16 %v53
  %v693 = vunpack.c.l.b16 %v54
  %v694 = vunpack.c.l.b16 %v55
  %v695 = vunpack.c.l.b16 %v56
  %v696 = vunpack.c.l.b16 %v57
  %v697 = vunpack.c.l.b16 %v58
  %v698 = vunpack.c.l.b16 %v59
  %v699 = vunpack.c.l.b16 %v60
  %v700 = vunpack.c.l.b16 %v61
  %v701 = vunpack.c.l.b16 %v62
  %v702 = vunpack.c.l.b16 %v63
  %v703 = vunpack.c.l.b16 %v64
  %v704 = vunpack.c.l.b16 %v65
  %v705 = vunpack.c.l.b16 %v66
  %v706 = vunpack.c.l.b16 %v67
  %v707 = vunpack.c.l.b16 %v68
  %v708 = vunpack.c.l.b16 %v69
  %v709 = vunpack.c.l.b16 %v70
  %v710 = vunpack.c.l.b16 %v71
  %v711 = vunpack.c.l.b16 %v72
  %v712 = vunpack.c.l.b16 %v73
  %v713 = vunpack.c.l.b16 %v74
  %v714 = vunpack.c.l.b16 %v75
  %v715 = vunpack.c.l.b16 %v76
  %v716 = vunpack.c.l.b16 %v77
  %v717 = vunpack.c.l.b16 %v78
  %v718 = vunpack.c.l.b16 %v79
  %v719 = vunpack.c.l.b16 %v80
  %v720 = vunpack.c.l.b16 %v81
  %v721 = vunpack.c.l.b16 %v82
  %v722 = vunpack.c.l.b16 %v83
  %v723 = vunpack.c.l.b16 %v84
  %v724 = vunpack.c.l.b16 %v85
  %v725 = vunpack.c.l.b16 %v86
  %v726 = vunpack.c.l.b16 %v87
  %v727 = vunpack.c.l.b16 %v88
  %v728 = vunpack.c.l.b16 %v89
  %v729 = vunpack.c.l.b16 %v90
  %v730 = vunpack.c.l.b16 %v91
  %v731 = vunpack.c.l.b16 %v92
  %v732 = vunpack.c.l.b16 %v93
  %v733 = vunpack.c.l.b16 %v94
  %v734 = vunpack.c.l.b16 %v95
  %v735 = vunpack.c.l.b16 %v96
  %v736 = vunpack.c.l.b16 %v97
  %v737 = vunpack.c.l.b16 %v98
  %v738 = vunpack.c.l.b16 %v99
  %v739 = vunpack.c.l.b16 %v100
  %v740 = vunpack.c.l.b16 %v101
  %v741 = vunpack.c.l.b16 %v102
  %v742 = vunpack.c.l.b16 %v103
  %v743 = vunpack.c.l.b16 %v104
  %v744 = vunpack.c.l.b16 %v105
  %v745 = vunpack.c.l.b16 %v106
  %v746 = vunpack.c.l.b16 %v107
  %v747 = vunpack.c.l.b16 %v108
  %v748 = vunpack.c.l.b16 %v109
  %v749 = vunpack.c.l.b16 %v110
  %v750 = vunpack.c.l.b16 %v111
  %v751 = vunpack.c.l.b16 %v112
  %v752 = vunpack.c.l.b16 %v113
  %v753 = vunpack.c.l.b16 %v114
  %v754 = vunpack.c.l.b16 %v115
  %v755 = vunpack.c.l.b16 %v116
  %v756 = vunpack.c.l.b16 %v117
  %v757 = vunpack.c.l.b16 %v118
  %v758 = vunpack.c.l.b16 %v119
  %v759 = vunpack.c.l.b16 %v120
  %v760 = vunpack.c.l.b16 %v121
  %v761 = vunpack.c.l.b16 %v122
  %v762 = vunpack.c.l.b16 %v123
  %v763 = vunpack.c.l.b16 %v124
  %v764 = vunpack.c.l.b16 %v125
  %v765 = vunpack.c.l.b16 %v126
  %v766 = vunpack.c.l.b16 %v127
  %v767 = vunpack.c.l.b16 %v128
  %v768 = vunpack.c.l.b16 %v129
  %v769 = vunpack.c.l.b16 %v130
  %v770 = vunpack.c.l.b16 %v131
  %v771 = vunpack.c.l.b16 %v132
  %v772 = vunpack.c.l.b16 %v133
  %v773 = vunpack.c.l.b16 %v134
  %v774 = vunpack.c.l.b16 %v135
  %v775 = vunpack.c.l.b16 %v136
  %v776 = vunpack.c.l.b16 %v137
  %v777 = vunpack.c.l.b16 %v138
  %v778 = vunpack.c.l.b16 %v139
  %v779 = vunpack.c.l.b16 %v140
  %v780 = vunpack.c.l.b16 %v141
  %v781 = vunpack.c.l.b16 %v142
  %v782 = vunpack.c.l.b16 %v143
  %v783 = vunpack.c.l.b16 %v144
  %v784 = vunpack.c.l.b16 %v145
  %v785 = vunpack.c.l.b16 %v146
  %v786 = vunpack.c.l.b16 %v147
  %v787 = vunpack.c.l.b16 %v148
  %v788 = vunpack.c.l.b16 %v149
  %v789 = vunpack.c.l.b16 %v150
  %v790 = vunpack.c.l.b16 %v151
  %v791 = vunpack.c.l.b16 %v152
  %v792 = vunpack.c.l.b16 %v153
  %v793 = vunpack.c.l.b16 %v154
  %v794 = vunpack.c.l.b16 %v155
  %v795 = vunpack.c.l.b16 %v156
  %v796 = vunpack.c.l.b16 %v157
  %v797 = vunpack.c.l.b16 %v158
  %v798 = vunpack.c.l.b16 %v159
  %v799 = vunpack.c.l.b16 %v160
  %v800 = vunpack.c.l.b16 %v161
  %v801 = vunpack.c.l.b16 %v162
  %v802 = vunpack.c.l.b16 %v163
  %v803 = vunpack.c.l.b16 %v164
  %v804 = vunpack.c.l.b16 %v165
  %v805 = vunpack.c.l.b16 %v166
  %v806 = vunpack.c.l.b16 %v167
  %v807 = vunpack.c.l.b16 %v168
  %v808 = vunpack.c.l.b16 %v169
  %v809 = vunpack.c.l.b16 %v170
  %v810 = vunpack.c.l.b16 %v171
  %v811 = vunpack.c.l.b16 %v172
  %v812 = vunpack.c.l.b16 %v173
  %v813 = vunpack.c.l.b16 %v174
  %v814 = vunpack.c.l.b16 %v175
  %v815 = vunpack.c.l.b16 %v176
  %v816 = vunpack.c.l.b16 %v177
  %v817 = vunpack.c.l.b16 %v178
  %v818 = vunpack.c.l.b16 %v179
  %v819 = vunpack.c.l.b16 %v180
  %v820 = vunpack.c.l.b16 %v181
  %v821 = vunpack.c.l.b16 %v182
  %v822 = vunpack.c.l.b16 %v183
  %v823 = vunpack.c.l.b16 %v184
  %v824 = vunpack.c.l.b16 %v185
  %v825 = vunpack.c.l.b16 %v186
  %v826 = vunpack.c.l.b16 %v187
  %v827 = vunpack.c.l.b16 %v188
  %v828 = vunpack.c.l.b16 %v189
  %v829 = vunpack.c.l.b16 %v190
  %v830 = vunpack.c.l.b16 %v191
  %v831 = vunpack.c.l.b16 %v192
  %v832 = vunpack.c.l.b16 %v193
  %v833 = vunpack.c.l.b16 %v194
  %v834 = vunpack.c.l.b16 %v195
  %v835 = vunpack.c.l.b16 %v196
  %v836 = vunpack.c.l.b16 %v197
  %v837 = vunpack.c.l.b16 %v198
  %v838 = vunpack.c.l.b16 %v199
  %v839 = vunpack.c.l.b16 %v200
  %v840 = vunpack.c.l.b16 %v201
  %v841 = vunpack.c.l.b16 %v202
  %v842 = vunpack.c.l.b16 %v203
  %v843 = vunpack.c.l.b16 %v204
  %v844 = vunpack.c.l.b16 %v205
  %v845 = vunpack.c.l.b16 %v206
  %v846 = vunpack.c.l.b16 %v207
  %v847 = vunpack.c.l.b16 %v208
  %v848 = vunpack.c.l.b16 %v209
  %v849 = vunpack.c.l.b16 %v210
  %v850 = vunpack.c.l.b16 %v211
  %v851 = vunpack.c.l.b16 %v212
  %v852 = vunpack.c.l.b16 %v213
  %v853 = vunpack.c.l.b16 %v214
  %v854 = vunpack.c.l.b16 %v215
  %v855 = vunpack.c.l.b16 %v216
  %v856 = vunpack.c.l.b16 %v217
  %v857 = vunpack.c.l.b16 %v218
  %v858 = vunpack.c.l.b16 %v219
  %v859 = vunpack.c.l.b16 %v220
  %v860 = vunpack.c.l.b16 %v221
  %v861 = vunpack.c.l.b16 %v222
  %v862 = vunpack.c.l.b16 %v223
  %v863 = vunpack.c.l.b16 %v224
  %v864 = vunpack.c.l.b16 %v225
  %v865 = vunpack.c.l.b16 %v226
  %v866 = vunpack.c.l.b16 %v227
  %v867 = vunpack.c.l.b16 %v228
  %v868 = vunpack.c.l.b16 %v229
  %v869 = vunpack.c.l.b16 %v230
  %v870 = vunpack.c.l.b16 %v231
  %v871 = vunpack.c.l.b16 %v232
  %v872 = vunpack.c.l.b16 %v233
  %v873 = vunpack.c.l.b16 %v234
  %v874 = vunpack.c.l.b16 %v235
  %v875 = vunpack.c.l.b16 %v236
  %v876 = vunpack.c.l.b16 %v237
  %v877 = vunpack.c.l.b16 %v238
  %v878 = vunpack.c.l.b16 %v239
  %v879 = vunpack.c.l.b16 %v240
  %v880 = vunpack.c.l.b16 %v241
  %v881 = vunpack.c.l.b16 %v242
  %v882 = vunpack.c.l.b16 %v243
  %v883 = vunpack.c.l.b16 %v244
  %v884 = vunpack.c.l.b16 %v245
  %v885 = vunpack.c.l.b16 %v246
  %v886 = vunpack.c.l.b16 %v247
  %v887 = vunpack.c.l.b16 %v248
  %v888 = vunpack.c.l.b16 %v249
  %v889 = vunpack.c.l.b16 %v250
  %v890 = vunpack.c.l.b16 %v251
  %v891 = vunpack.c.l.b16 %v252
  %v892 = vunpack.c.l.b16 %v253
  %v893 = vunpack.c.l.b16 %v254
  %v894 = vunpack.c.l.b16 %v255
  %v895 = vunpack.c.l.b16 %v256
  %v896 = vunpack.c.l.b16 %v257
  %v897 = vunpack.c.l.b16 %v258
  %v898 = vunpack.c.l.b16 %v259
  %v899 = vunpack.c.l.b16 %v260
  %v900 = vunpack.c.l.b16 %v261
  %v901 = vunpack.c.l.b16 %v262
  %v902 = vunpack.c.l.b16 %v263
  %v903 = vunpack.c.l.b16 %v264
  %v904 = vunpack.c.l.b16 %v265
  %v905 = vunpack.c.l.b16 %v266
  %v906 = vunpack.c.l.b16 %v267
  %v907 = vunpack.c.l.b16 %v268
  %v908 = vunpack.c.l.b16 %v269
  %v909 = vunpack.c.l.b16 %v270
  %v910 = vunpack.c.l.b16 %v271
  %v911 = vunpack.c.l.b16 %v272
  %v912 = vunpack.c.l.b16 %v273
  %v913 = vunpack.c.l.b16 %v274
  %v914 = vunpack.c.l.b16 %v275
  %v915 = vunpack.c.l.b16 %v276
  %v916 = vunpack.c.l.b16 %v277
  %v917 = vunpack.c.l.b16 %v278
  %v918 = vunpack.c.l.b16 %v279
  %v919 = vunpack.c.l.b16 %v280
  %v920 = vunpack.c.l.b16 %v281
  %v921 = vunpack.c.l.b16 %v282
  %v922 = vunpack.c.l.b16 %v283
  %v923 = vunpack.c.l.b16 %v284
  %v924 = vunpack.c.l.b16 %v285
  %v925 = vunpack.c.l.b16 %v286
  %v926 = vunpack.c.l.b16 %v287
  %v927 = vunpack.c.l.b16 %v288
  %v928 = vunpack.c.l.b16 %v289
  %v929 = vunpack.c.l.b16 %v290
  %v930 = vunpack.c.l.b16 %v291
  %v931 = vunpack.c.l.b16 %v292
  %v932 = vunpack.c.l.b16 %v293
  %v933 = vunpack.c.l.b16 %v294
  %v934 = vunpack.c.l.b16 %v295
  %v935 = vunpack.c.l.b16 %v296
  %v936 = vunpack.c.l.b16 %v297
  %v937 = vunpack.c.l.b16 %v298
  %v938 = vunpack.c.l.b16 %v299
  %v939 = vunpack.c.l.b16 %v300
  %v940 = vunpack.c.l.b16 %v301
  %v941 = vunpack.c.l.b16 %v302
  %v942 = vunpack.c.l.b16 %v303
  %v943 = vunpack.c.l.b16 %v304
  %v944 = vunpack.c.l.b16 %v305
  %v945 = vunpack.c.l.b16 %v306
  %v946 = vunpack.c.l.b16 %v307
  %v947 = vunpack.c.l.b16 %v308
  %v948 = vunpack.c.l.b16 %v309
  %v949 = vunpack.c.l.b16 %v310
  %v950 = vunpack.c.l.b16 %v311
  %v951 = vunpack.c.l.b16 %v312
  %v952 = vunpack.c.l.b16 %v313
  %v953 = vunpack.c.l.b16 %v314
  %v954 = vpack.c.b16 %v667, %v666
  %v955 = vpack.c.b16 %v669, %v668
  %v956 = vpack.c.b16 %v671, %v670
  %v957 = vpack.c.b16 %v673, %v672
  %v958 = vpack.c.b16 %v675, %v674
  %v959 = vpack.c.b16 %v677, %v676
  %v960 = vpack.c.b16 %v679, %v678
  %v961 = vpack.c.b16 %v681, %v680
  %v962 = vpack.c.b16 %v683, %v682
  %v963 = vpack.c.b16 %v685, %v684
  %v964 = vpack.c.b16 %v687, %v686
  %v965 = vpack.c.b16 %v689, %v688
  %v966 = vpack.c.b16 %v691, %v690
  %v967 = vpack.c.b16 %v693, %v692
  %v968 = vpack.c.b16 %v695, %v694
  %v969 = vpack.c.b16 %v697, %v696
  %v970 = vpack.c.b16 %v699, %v698
  %v971 = vpack.c.b16 %v701, %v700
  %v972 = vpack.c.b16 %v703, %v702
  %v973 = vpack.c.b16 %v705, %v704
  %v974 = vpack.c.b16 %v707, %v706
  %v975 = vpack.c.b16 %v709, %v708
  %v976 = vpack.c.b16 %v711, %v710
  %v977 = vpack.c.b16 %v713, %v712
  %v978 = vpack.c.b16 %v715, %v714
  %v979 = vpack.c.b16 %v717, %v716
  %v980 = vpack.c.b16 %v719, %v718
  %v981 = vpack.c.b16 %v721, %v720
  %v982 = vpack.c.b16 %v723, %v722
  %v983 = vpack.c.b16 %v725, %v724
  %v984 = vpack.c.b16 %v727, %v726
  %v985 = vpack.c.b16 %v729, %v728
  %v986 = vpack.c.b16 %v731, %v730
  %v987 = vpack.c.b16 %v733, %v732
  %v988 = vpack.c.b16 %v735, %v734
  %v989 = vpack.c.b16 %v737, %v736
  %v990 = vpack.c.b16 %v739, %v738
  %v991 = vpack.c.b16 %v741, %v740
  %v992 = vpack.c.b16 %v743, %v742
  %v993 = vpack.c.b16 %v745, %v744
  %v994 = vpack.c.b16 %v747, %v746
  %v995 = vpack.c.b16 %v749, %v748
  %v996 = vpack.c.b16 %v751, %v750
  %v997 = vpack.c.b16 %v753, %v752
  %v998 = vpack.c.b16 %v755, %v754
  %v999 = vpack.c.b16 %v757, %v756
  %v1000 = vpack.c.b16 %v759, %v758
  %v1001 = vpack.c.b16 %v761, %v760
  %v1002 = vpack.c.b16 %v763, %v762
  %v1003 = vpack.c.b16 %v765, %v764
  %v1004 = vpack.c.b16 %v767, %v766
  %v1005 = vpack.c.b16 %v769, %v768
  %v1006 = vpack.c.b16 %v771, %v770
  %v1007 = vpack.c.b16 %v773, %v772
  %v1008 = vpack.c.b16 %v775, %v774
  %v1009 = vpack.c.b16 %v777, %v776
  %v1010 = vpack.c.b16 %v779, %v778
  %v1011 = vpack.c.b16 %v781, %v780
  %v1012 = vpack.c.b16 %v783, %v782
  %v1013 = vpack.c.b16 %v785, %v784
  %v1014 = vpack.c.b16 %v787, %v786
  %v1015 = vpack.c.b16 %v789, %v788
  %v1016 = vpack.c.b16 %v791, %v790
  %v1017 = vpack.c.b16 %v793, %v792
  %v1018 = vpack.c.b16 %v795, %v794
  %v1019 = vpack.c.b16 %v797, %v796
  %v1020 = vpack.c.b16 %v799, %v798
  %v1021 = vpack.c.b16 %v801, %v800
  %v1022 = vpack.c.b16 %v803, %v802
  %v1023 = vpack.c.b16 %v805, %v804
  %v1024 = vpack.c.b16 %v807, %v806
  %v1025 = vpack.c.b16 %v809, %v808
  %v1026 = vpack.c.b16 %v811, %v810
  %v1027 = vpack.c.b16 %v813, %v812
  %v1028 = vpack.c.b16 %v815, %v814
  %v1029 = vpack.c.b16 %v817, %v816
  %v1030 = vpack.c.b16 %v819, %v818
  %v1031 = vpack.c.b16 %v821, %v820
  %v1032 = vpack.c.b16 %v823, %v822
  %v1033 = vpack.c.b16 %v825, %v824
  %v1034 = vpack.c.b16 %v827, %v826
  %v1035 = vpack.c.b16 %v829, %v828
  %v1036 = vpack.c.b16 %v831, %v830
  %v1037 = vpack.c.b16 %v833, %v832
  %v1038 = vpack.c.b16 %v835, %v834
  %v1039 = vpack.c.b16 %v837, %v836
  %v1040 = vpack.c.b16 %v839, %v838
  %v1041 = vpack.c.b16 %v841, %v840
  %v1042 = vpack.c.b16 %v843, %v842
  %v1043 = vpack.c.b16 %v845, %v844
  %v1044 = vpack.c.b16 %v847, %v846
  %v1045 = vpack.c.b16 %v849, %v848
  %v1046 = vpack.c.b16 %v851, %v850
  %v1047 = vpack.c.b16 %v853, %v852
  %v1048 = vpack.c.b16 %v855, %v854
  %v1049 = vpack.c.b16 %v857, %v856
  %v1050 = vpack.c.b16 %v859, %v858
  %v1051 = vpack.c.b16 %v861, %v860
  %v1052 = vpack.c.b16 %v863, %v862
  %v1053 = vpack.c.b16 %v865, %v864
  %v1054 = vpack.c.b16 %v867, %v866
  %v1055 = vpack.c.b16 %v869, %v868
  %v1056 = vpack.c.b16 %v871, %v870
  %v1057 = vpack.c.b16 %v873, %v872
  %v1058 = vpack.c.b16 %v875, %v874
  %v1059 = vpack.c.b16 %v877, %v876
  %v1060 = vpack.c.b16 %v879, %v878
  %v1061 = vpack.c.b16 %v881, %v880
  %v1062 = vpack.c.b16 %v883, %v882
  %v1063 = vpack.c.b16 %v885, %v884
  %v1064 = vpack.c.b16 %v887, %v886
  %v1065 = vpack.c.b16 %v889, %v888
  %v1066 = vpack.c.b16 %v891, %v890
  %v1067 = vpack.c.b16 %v893, %v892
  %v1068 = vpack.c.b16 %v895, %v894
  %v1069 = vpack.c.b16 %v897, %v896
  %v1070 = vpack.c.b16 %v899, %v898
  %v1071 = vpack.c.b16 %v901, %v900
  %v1072 = vpack.c.b16 %v903, %v902
  %v1073 = vpack.c.b16 %v905, %v904
  %v1074 = vpack.c.b16 %v907, %v906
  %v1075 = vpack.c.b16 %v909, %v908
  %v1076 = vpack.c.b16 %v911, %v910
  %v1077 = vpack.c.b16 %v913, %v912
  %v1078 = vpack.c.b16 %v915, %v914
  %v1079 = vpack.c.b16 %v917, %v916
  %v1080 = vpack.c.b16 %v919, %v918
  %v1081 = vpack.c.b16 %v921, %v920
  %v1082 = vpack.c.b16 %v923, %v922
  %v1083 = vpack.c.b16 %v925, %v924
  %v1084 = vpack.c.b16 %v927, %v926
  %v1085 = vpack.c.b16 %v929, %v928
  %v1086 = vpack.c.b16 %v931, %v930
  %v1087 = vpack.c.b16 %v933, %v932
  %v1088 = vpack.c.b16 %v935, %v934
  %v1089 = vpack.c.b16 %v937, %v936
  %v1090 = vpack.c.b16 %v939, %v938
  %v1091 = vpack.c.b16 %v941, %v940
  %v1092 = vpack.c.b16 %v943, %v942
  %v1093 = vpack.c.b16 %v945, %v944
  %v1094 = vpack.c.b16 %v947, %v946
  %v1095 = vpack.c.b16 %v949, %v948
  %v1096 = vpack.c.b16 %v951, %v950
  %v1097 = vpack.c.b16 %v953, %v952
  %1242 = vmatpush.bf16.msra.mxu0 %v961
  %1243 = vmatpush.bf16.msra.mxu0 %v960
  %1244 = vmatpush.bf16.msra.mxu0 %v959
  %1245 = vmatpush.bf16.msra.mxu0 %v958
  %1246 = vmatpush.bf16.msra.mxu0 %v957
  %1247 = vmatpush.bf16.msra.mxu0 %v956
  %1248 = vmatpush.bf16.msra.mxu0 %v955
  %1249 = vmatpush.bf16.msra.mxu0 %v954
  %1250 = vmatmul.bf16.gmra.mxu0 %v342
  %v1251 = vpop.f32.mrf.mxu0
  %v1252 = vadd.f32 0.0, %v1251
  %v1253 = vpop.f32.mrf.mxu0
  %1254 = vdwg.mxu0
  %1255 = vmatpush.bf16.msra.mxu0 %v969
  %1256 = vmatpush.bf16.msra.mxu0 %v968
  %1257 = vmatpush.bf16.msra.mxu0 %v967
  %1258 = vmatpush.bf16.msra.mxu0 %v966
  %1259 = vmatpush.bf16.msra.mxu0 %v965
  %1260 = vmatpush.bf16.msra.mxu0 %v964
  %1261 = vmatpush.bf16.msra.mxu0 %v963
  %1262 = vmatpush.bf16.msra.mxu0 %v962
  %1263 = vmatmul.bf16.gmra.mxu0 %v343
  %v1264 = vpop.f32.mrf.mxu0
  %v1265 = vadd.f32 %v1252, %v1264
  %v1266 = vpop.f32.mrf.mxu0
  %1267 = vdwg.mxu0
  %1268 = vmatpush.bf16.msra.mxu0 %v977
  %1269 = vmatpush.bf16.msra.mxu0 %v976
  %1270 = vmatpush.bf16.msra.mxu0 %v975
  %1271 = vmatpush.bf16.msra.mxu0 %v974
  %1272 = vmatpush.bf16.msra.mxu0 %v973
  %1273 = vmatpush.bf16.msra.mxu0 %v972
  %1274 = vmatpush.bf16.msra.mxu0 %v971
  %1275 = vmatpush.bf16.msra.mxu0 %v970
  %1276 = vmatmul.bf16.gmra.mxu0 %v344
  %v1277 = vpop.f32.mrf.mxu0
  %v1278 = vadd.f32 %v1265, %v1277
  %v1279 = vpop.f32.mrf.mxu0
  %1280 = vdwg.mxu0
  %1281 = vmatpush.bf16.msra.mxu0 %v985
  %1282 = vmatpush.bf16.msra.mxu0 %v984
  %1283 = vmatpush.bf16.msra.mxu0 %v983
  %1284 = vmatpush.bf16.msra.mxu0 %v982
  %1285 = vmatpush.bf16.msra.mxu0 %v981
  %1286 = vmatpush.bf16.msra.mxu0 %v980
  %1287 = vmatpush.bf16.msra.mxu0 %v979
  %1288 = vmatpush.bf16.msra.mxu0 %v978
  %1289 = vmatmul.bf16.gmra.mxu0 %v345
  %v1290 = vpop.f32.mrf.mxu0
  %v1291 = vadd.f32 %v1278, %v1290
  %v1292 = vpop.f32.mrf.mxu0
  %1293 = vdwg.mxu0
  %1294 = vmatpush.bf16.msra.mxu0 %v993
  %1295 = vmatpush.bf16.msra.mxu0 %v992
  %1296 = vmatpush.bf16.msra.mxu0 %v991
  %1297 = vmatpush.bf16.msra.mxu0 %v990
  %1298 = vmatpush.bf16.msra.mxu0 %v989
  %1299 = vmatpush.bf16.msra.mxu0 %v988
  %1300 = vmatpush.bf16.msra.mxu0 %v987
  %1301 = vmatpush.bf16.msra.mxu0 %v986
  %1302 = vmatmul.bf16.gmra.mxu0 %v346
  %v1303 = vpop.f32.mrf.mxu0
  %v1304 = vadd.f32 %v1291, %v1303
  %v1305 = vpop.f32.mrf.mxu0
  %1306 = vdwg.mxu0
  %1307 = vmatpush.bf16.msra.mxu0 %v1001
  %1308 = vmatpush.bf16.msra.mxu0 %v1000
  %1309 = vmatpush.bf16.msra.mxu0 %v999
  %1310 = vmatpush.bf16.msra.mxu0 %v998
  %1311 = vmatpush.bf16.msra.mxu0 %v997
  %1312 = vmatpush.bf16.msra.mxu0 %v996
  %1313 = vmatpush.bf16.msra.mxu0 %v995
  %1314 = vmatpush.bf16.msra.mxu0 %v994
  %1315 = vmatmul.bf16.gmra.mxu0 %v347
  %v1316 = vpop.f32.mrf.mxu0
  %v1317 = vadd.f32 %v1304, %v1316
  %v1318 = vpop.f32.mrf.mxu0
  %1319 = vdwg.mxu0
  %1320 = vmatpush.bf16.msra.mxu0 %v1009
  %1321 = vmatpush.bf16.msra.mxu0 %v1008
  %1322 = vmatpush.bf16.msra.mxu0 %v1007
  %1323 = vmatpush.bf16.msra.mxu0 %v1006
  %1324 = vmatpush.bf16.msra.mxu0 %v1005
  %1325 = vmatpush.bf16.msra.mxu0 %v1004
  %1326 = vmatpush.bf16.msra.mxu0 %v1003
  %1327 = vmatpush.bf16.msra.mxu0 %v1002
  %1328 = vmatmul.bf16.gmra.mxu0 %v348
  %v1329 = vpop.f32.mrf.mxu0
  %v1330 = vadd.f32 %v1317, %v1329
  %v1331 = vpop.f32.mrf.mxu0
  %1332 = vdwg.mxu0
  %1333 = vmatpush.bf16.msra.mxu0 %v1017
  %1334 = vmatpush.bf16.msra.mxu0 %v1016
  %1335 = vmatpush.bf16.msra.mxu0 %v1015
  %1336 = vmatpush.bf16.msra.mxu0 %v1014
  %1337 = vmatpush.bf16.msra.mxu0 %v1013
  %1338 = vmatpush.bf16.msra.mxu0 %v1012
  %1339 = vmatpush.bf16.msra.mxu0 %v1011
  %1340 = vmatpush.bf16.msra.mxu0 %v1010
  %1341 = vmatmul.bf16.gmra.mxu0 %v349
  %v1342 = vpop.f32.mrf.mxu0
  %v1343 = vadd.f32 %v1330, %v1342
  %v1344 = vpop.f32.mrf.mxu0
  %1345 = vdwg.mxu0
  %1346 = vmatpush.bf16.msra.mxu0 %v1025
  %1347 = vmatpush.bf16.msra.mxu0 %v1024
  %1348 = vmatpush.bf16.msra.mxu0 %v1023
  %1349 = vmatpush.bf16.msra.mxu0 %v1022
  %1350 = vmatpush.bf16.msra.mxu0 %v1021
  %1351 = vmatpush.bf16.msra.mxu0 %v1020
  %1352 = vmatpush.bf16.msra.mxu0 %v1019
  %1353 = vmatpush.bf16.msra.mxu0 %v1018
  %1354 = vmatmul.bf16.gmra.mxu0 %v350
  %v1355 = vpop.f32.mrf.mxu0
  %v1356 = vadd.f32 %v1343, %v1355
  %v1357 = vpop.f32.mrf.mxu0
  %1358 = vdwg.mxu0
  %1359 = vmatpush.bf16.msra.mxu0 %v1033
  %1360 = vmatpush.bf16.msra.mxu0 %v1032
  %1361 = vmatpush.bf16.msra.mxu0 %v1031
  %1362 = vmatpush.bf16.msra.mxu0 %v1030
  %1363 = vmatpush.bf16.msra.mxu0 %v1029
  %1364 = vmatpush.bf16.msra.mxu0 %v1028
  %1365 = vmatpush.bf16.msra.mxu0 %v1027
  %1366 = vmatpush.bf16.msra.mxu0 %v1026
  %1367 = vmatmul.bf16.gmra.mxu0 %v351
  %v1368 = vpop.f32.mrf.mxu0
  %v1369 = vadd.f32 %v1356, %v1368
  %v1370 = vpop.f32.mrf.mxu0
  %1371 = vdwg.mxu0
  %1372 = vmatpush.bf16.msra.mxu0 %v1041
  %1373 = vmatpush.bf16.msra.mxu0 %v1040
  %1374 = vmatpush.bf16.msra.mxu0 %v1039
  %1375 = vmatpush.bf16.msra.mxu0 %v1038
  %1376 = vmatpush.bf16.msra.mxu0 %v1037
  %1377 = vmatpush.bf16.msra.mxu0 %v1036
  %1378 = vmatpush.bf16.msra.mxu0 %v1035
  %1379 = vmatpush.bf16.msra.mxu0 %v1034
  %1380 = vmatmul.bf16.gmra.mxu0 %v352
  %v1381 = vpop.f32.mrf.mxu0
  %v1382 = vadd.f32 %v1369, %v1381
  %v1383 = vpop.f32.mrf.mxu0
  %1384 = vdwg.mxu0
  %1385 = vmatpush.bf16.msra.mxu0 %v1049
  %1386 = vmatpush.bf16.msra.mxu0 %v1048
  %1387 = vmatpush.bf16.msra.mxu0 %v1047
  %1388 = vmatpush.bf16.msra.mxu0 %v1046
  %1389 = vmatpush.bf16.msra.mxu0 %v1045
  %1390 = vmatpush.bf16.msra.mxu0 %v1044
  %1391 = vmatpush.bf16.msra.mxu0 %v1043
  %1392 = vmatpush.bf16.msra.mxu0 %v1042
  %1393 = vmatmul.bf16.gmra.mxu0 %v353
  %v1394 = vpop.f32.mrf.mxu0
  %v1395 = vadd.f32 %v1382, %v1394
  %v1396 = vpop.f32.mrf.mxu0
  %1397 = vdwg.mxu0
  %1398 = vmatpush.bf16.msra.mxu0 %v1057
  %1399 = vmatpush.bf16.msra.mxu0 %v1056
  %1400 = vmatpush.bf16.msra.mxu0 %v1055
  %1401 = vmatpush.bf16.msra.mxu0 %v1054
  %1402 = vmatpush.bf16.msra.mxu0 %v1053
  %1403 = vmatpush.bf16.msra.mxu0 %v1052
  %1404 = vmatpush.bf16.msra.mxu0 %v1051
  %1405 = vmatpush.bf16.msra.mxu0 %v1050
  %1406 = vmatmul.bf16.gmra.mxu0 %v354
  %v1407 = vpop.f32.mrf.mxu0
  %v1408 = vadd.f32 %v1395, %v1407
  %v1409 = vpop.f32.mrf.mxu0
  %1410 = vdwg.mxu0
  %1411 = vmatpush.bf16.msra.mxu0 %v1065
  %1412 = vmatpush.bf16.msra.mxu0 %v1064
  %1413 = vmatpush.bf16.msra.mxu0 %v1063
  %1414 = vmatpush.bf16.msra.mxu0 %v1062
  %1415 = vmatpush.bf16.msra.mxu0 %v1061
  %1416 = vmatpush.bf16.msra.mxu0 %v1060
  %1417 = vmatpush.bf16.msra.mxu0 %v1059
  %1418 = vmatpush.bf16.msra.mxu0 %v1058
  %1419 = vmatmul.bf16.gmra.mxu0 %v355
  %v1420 = vpop.f32.mrf.mxu0
  %v1421 = vadd.f32 %v1408, %v1420
  %v1422 = vpop.f32.mrf.mxu0
  %1423 = vdwg.mxu0
  %1424 = vmatpush.bf16.msra.mxu0 %v1073
  %1425 = vmatpush.bf16.msra.mxu0 %v1072
  %1426 = vmatpush.bf16.msra.mxu0 %v1071
  %1427 = vmatpush.bf16.msra.mxu0 %v1070
  %1428 = vmatpush.bf16.msra.mxu0 %v1069
  %1429 = vmatpush.bf16.msra.mxu0 %v1068
  %1430 = vmatpush.bf16.msra.mxu0 %v1067
  %1431 = vmatpush.bf16.msra.mxu0 %v1066
  %1432 = vmatmul.bf16.gmra.mxu0 %v356
  %v1433 = vpop.f32.mrf.mxu0
  %v1434 = vadd.f32 %v1421, %v1433
  %v1435 = vpop.f32.mrf.mxu0
  %1436 = vdwg.mxu0
  %1437 = vmatpush.bf16.msra.mxu0 %v1081
  %1438 = vmatpush.bf16.msra.mxu0 %v1080
  %1439 = vmatpush.bf16.msra.mxu0 %v1079
  %1440 = vmatpush.bf16.msra.mxu0 %v1078
  %1441 = vmatpush.bf16.msra.mxu0 %v1077
  %1442 = vmatpush.bf16.msra.mxu0 %v1076
  %1443 = vmatpush.bf16.msra.mxu0 %v1075
  %1444 = vmatpush.bf16.msra.mxu0 %v1074
  %1445 = vmatmul.bf16.gmra.mxu0 %v357
  %v1446 = vpop.f32.mrf.mxu0
  %v1447 = vadd.f32 %v1434, %v1446
  %v1448 = vpop.f32.mrf.mxu0
  %1449 = vdwg.mxu0
  %1450 = vmatpush.bf16.msra.mxu0 %v1089
  %1451 = vmatpush.bf16.msra.mxu0 %v1088
  %1452 = vmatpush.bf16.msra.mxu0 %v1087
  %1453 = vmatpush.bf16.msra.mxu0 %v1086
  %1454 = vmatpush.bf16.msra.mxu0 %v1085
  %1455 = vmatpush.bf16.msra.mxu0 %v1084
  %1456 = vmatpush.bf16.msra.mxu0 %v1083
  %1457 = vmatpush.bf16.msra.mxu0 %v1082
  %1458 = vmatmul.bf16.gmra.mxu0 %v358
  %v1459 = vpop.f32.mrf.mxu0
  %v1460 = vadd.f32 %v1447, %v1459
  %v1461 = vpop.f32.mrf.mxu0
  %1462 = vdwg.mxu0
  %1463 = vmatpush.bf16.msra.mxu0 %v1097
  %1464 = vmatpush.bf16.msra.mxu0 %v1096
  %1465 = vmatpush.bf16.msra.mxu0 %v1095
  %1466 = vmatpush.bf16.msra.mxu0 %v1094
  %1467 = vmatpush.bf16.msra.mxu0 %v1093
  %1468 = vmatpush.bf16.msra.mxu0 %v1092
  %1469 = vmatpush.bf16.msra.mxu0 %v1091
  %1470 = vmatpush.bf16.msra.mxu0 %v1090
  %1471 = vmatmul.bf16.gmra.mxu0 %v359
  %v1472 = vpop.f32.mrf.mxu0
  %v1473 = vadd.f32 %v1460, %v1472
  %v1474 = vpop.f32.mrf.mxu0
  %1475 = vdwg.mxu0
  %1476 = vst [vmem:[%s2] sm:$0xff] %v1473
  %v1477 = vld [vmem:[%s3] sm:$0x1]
  %v1478 = vrot.slane %v1473, 4
  %v1479 = vadd.f32 %v1473, %v1478
  %v1480 = vrot.slane %v1479, 2
  %v1481 = vadd.f32 %v1479, %v1480
  %v1482 = vrot.slane %v1481, 1
  %v1483 = vadd.f32 %v1481, %v1482
  %v1484 = vadd.f32 %v1477, %v1483
  %1485 = vst [vmem:[%s3] sm:$0x1] %v1484
  %v1486 = vld [vmem:[%s3 + $0x1] sm:$0x1]
  %v1487 = vmul.f32 %v1473, %v1473
  %v1488 = vrot.slane %v1487, 4
  %v1489 = vadd.f32 %v1487, %v1488
  %v1490 = vrot.slane %v1489, 2
  %v1491 = vadd.f32 %v1489, %v1490
  %v1492 = vrot.slane %v1491, 1
  %v1493 = vadd.f32 %v1491, %v1492
  %v1494 = vadd.f32 %v1486, %v1493
  %1495 = vst [vmem:[%s3 + $0x1] sm:$0x1] %v1494
  // Predicated region
  $region14: #{simp_resnet9_k33.41} parent=0 // pred_check
    _
  $region15: #{simp_resnet9_k33.41} parent=0 // pred_check_branch
    %1497 = sbr.rel (0) target = $region17
  $region16: #{simp_resnet9_k33.41} parent=0 // pred_region
    _
  $region17: #{simp_resnet9_k33.41} parent=0 // pred_fallthru
    _
  // Predicated region
  $region18: #{simp_resnet9_k33.41} parent=0 // pred_check
    _
  $region19: #{simp_resnet9_k33.41} parent=0 // pred_check_branch
    %1499 = sbr.rel (0) target = $region21
  $region20: #{simp_resnet9_k33.41} parent=0 // pred_region
    _
  $region21: #{simp_resnet9_k33.41} parent=0 // pred_fallthru
    _
  // Predicated region
  $region22: #{simp_resnet9_k33.41} parent=0 // pred_check
    _
  $region23: #{simp_resnet9_k33.41} parent=0 // pred_check_branch
    %1501 = sbr.rel (0) target = $region25
  $region24: #{simp_resnet9_k33.41} parent=0 // pred_region
    _
  $region25: #{simp_resnet9_k33.41} parent=0 // pred_fallthru
    _
  // Predicated region
  $region26: #{simp_resnet9_k33.41} parent=0 // pred_check
    _
  $region27: #{simp_resnet9_k33.41} parent=0 // pred_check_branch
    %1503 = sbr.rel (0) target = $region29
  $region28: #{simp_resnet9_k33.41} parent=0 // pred_region
    _
  $region29: #{simp_resnet9_k33.41} parent=0 // pred_fallthru
    _

</llo_original>
